<compile_context>
chip_gen: v5e
topology: v5e:2x2
jax: 0.10.0
libtpu: 0.0.40
codegen_flags: <defaults>
</compile_context>

<pallas_src>
import jax
import jax.numpy as jnp
import numpy as np
from jax.experimental import pallas as pl
from jax.experimental.pallas import tpu as pltpu

C_IN = 3
C_OUT = 3
KSIZE = 3
POOL = 7
SPATIAL_SCALE = 1.0
ROI_BLOCK = 32            # ROIs processed per grid step (224 output rows / step)
LANE_PAD = 32             # lanes reserved per ROI in the batched x-interp matmul (>= C_OUT*POOL)


def _fused_kernel(w_ref, b_ref, rowp_ref, colp_ref, bcolp_ref, browp_ref,
                  sel_ref, summat_ref, x_hbm, o_ref, feat_ref):
    """Fused Conv2d(3,3,3,1,1) + ROIAlign((7,7), scale=1, sampling_ratio=1).

    w_ref      : SMEM (C_OUT*C_IN*9,) f32       conv weights, flattened PyTorch OIHW order
    b_ref      : SMEM (C_OUT,)        f32       conv bias
    rowp_ref   : VMEM (RB*POOL, 2)    f32       per output row: [y sample coord, batch idx]
    colp_ref   : VMEM (2, N*H)        f32       per feature row: [h index, batch idx]   (const)
    bcolp_ref  : VMEM (2, RB*32)      f32       per output col : [x sample coord, channel id]
    browp_ref  : VMEM (C_OUT*W, 2)    f32       per feature col: [w index, channel id]  (const)
    sel_ref    : VMEM (RB*POOL, RB*32) f32      diagonal-block selection mask            (const)
    summat_ref : VMEM (RB*32, C_OUT*POOL) f32   per-ROI 32->21 column compaction matrix  (const)
    x_hbm      : ANY  (N, C_IN, H, W) f32       raw image batch in HBM (DMA'd only at step 0)
    o_ref      : VMEM (RB*POOL, C_OUT*POOL) f32 output slab for this ROI block
    feat_ref   : VMEM scratch (N*H, C_OUT*W) f32  conv feature bank (persists across steps)
    """
    N, _, H, W = x_hbm.shape

    # ---------------- stage 1: 3x3 conv, computed once at grid step 0 ----------------------
    @pl.when(pl.program_id(0) == 0)
    def _conv():
        def conv_body(xbuf):
            # One-shot DMA of the image batch; xbuf's VMEM lifetime ends with this scope.
            pltpu.sync_copy(x_hbm, xbuf)
            zrow = jnp.zeros((1, W), jnp.float32)
            zcol = jnp.zeros((H, 1), jnp.float32)
            for n in range(N):
                accs = [jnp.full((H, W), b_ref[co], dtype=jnp.float32) for co in range(C_OUT)]
                for ci in range(C_IN):
                    plane = xbuf[n, ci]
                    # zero-padded 1-px shifted planes, built once, reused for every C_OUT output
                    row_sh = [
                        jnp.concatenate([zrow, plane[:H - 1, :]], axis=0),   # kh=0 (dh=-1)
                        plane,                                               # kh=1
                        jnp.concatenate([plane[1:, :], zrow], axis=0),       # kh=2 (dh=+1)
                    ]
                    for kh in range(KSIZE):
                        base = row_sh[kh]
                        col_sh = [
                            jnp.concatenate([zcol, base[:, :W - 1]], axis=1),   # kw=0
                            base,                                               # kw=1
                            jnp.concatenate([base[:, 1:], zcol], axis=1),       # kw=2
                        ]
                        for kw in range(KSIZE):
                            tap = col_sh[kw]
                            for co in range(C_OUT):
                                wv = w_ref[((co * C_IN + ci) * KSIZE + kh) * KSIZE + kw]
                                accs[co] = accs[co] + tap * wv
                for co in range(C_OUT):
                    feat_ref[n * H:(n + 1) * H, co * W:(co + 1) * W] = accs[co]

        pl.run_scoped(conv_body, pltpu.VMEM((N, C_IN, H, W), jnp.float32))

    # ---------------- stage 2: batched ROIAlign for this block of ROI_BLOCK ROIs ------------
    feat = feat_ref[...]                                    # (N*H, C_OUT*W)

    # Row (y) interpolation: ONE matmul for the whole block.
    #   A_block[(r,p), (n,h)] = [batch(n)==batch(r)] * hat(h - clip(ys[r,p])) * in_range(ys)
    ys = rowp_ref[:, 0:1]                                   # (RB*P, 1)  y sample coordinate
    bf = rowp_ref[:, 1:2]                                   # (RB*P, 1)  ROI batch index (f32)
    h_row = colp_ref[0:1, :]                                # (1, N*H)   within-image row index
    mb_row = colp_ref[1:2, :]                               # (1, N*H)   image (batch) index

    iry = ((ys >= -1.0) & (ys <= float(H))).astype(jnp.float32)
    yc = jnp.clip(ys, 0.0, float(H - 1))
    a_blk = ((mb_row == bf).astype(jnp.float32)
             * jnp.maximum(0.0, 1.0 - jnp.abs(h_row - yc)) * iry)        # (RB*P, N*H)

    rows_all = jnp.dot(a_blk, feat, preferred_element_type=jnp.float32)  # (RB*P, C_OUT*W)

    # Column (x) interpolation: ONE block-diagonal matmul for the whole block, then a constant
    # mask + constant summation matmul pick out each ROI's own (7, 21) diagonal block.
    xs = bcolp_ref[0:1, :]                                  # (1, RB*32)  x sample coordinate
    cc = bcolp_ref[1:2, :]                                  # (1, RB*32)  output channel id
    w_idx = browp_ref[:, 0:1]                               # (C_OUT*W, 1) feature w index
    cr = browp_ref[:, 1:2]                                  # (C_OUT*W, 1) feature channel id

    irx = ((xs >= -1.0) & (xs <= float(W))).astype(jnp.float32)
    xc = jnp.clip(xs, 0.0, float(W - 1))
    b_blk = ((cr == cc).astype(jnp.float32)
             * jnp.maximum(0.0, 1.0 - jnp.abs(w_idx - xc)) * irx)        # (C_OUT*W, RB*32)

    big = jnp.dot(rows_all, b_blk, preferred_element_type=jnp.float32)   # (RB*P, RB*32)
    out_blk = jnp.dot(big * sel_ref[...], summat_ref[...],
                      preferred_element_type=jnp.float32)                # (RB*P, C_OUT*P)

    # Single aligned full-block store (vs 8/32 strip writes at 7-row offsets before).
    o_ref[...] = out_blk.astype(o_ref.dtype)


def roi_feature_extractor(x, proposals, conv_weight, conv_bias):
    """x: (N, 3, H, W) f32; proposals: (K, 5) = (batch_idx, x1, y1, x2, y2) -> (K, 3, 7, 7)."""
    x = x.astype(jnp.float32)
    N, C, H, W = x.shape
    assert C == C_IN
    assert (ROI_BLOCK * LANE_PAD) % 128 == 0 and LANE_PAD >= C_OUT * POOL

    K = proposals.shape[0]
    k_pad = ((K + ROI_BLOCK - 1) // ROI_BLOCK) * ROI_BLOCK
    n_blocks = k_pad // ROI_BLOCK

    props = proposals.astype(jnp.float32)
    bidx_f = jnp.pad(props[:, 0], (0, k_pad - K))                         # (k_pad,)
    boxes = jnp.pad(props[:, 1:5], ((0, k_pad - K), (0, 0)))              # (k_pad, 4)

    x1 = boxes[:, 0] * SPATIAL_SCALE
    y1 = boxes[:, 1] * SPATIAL_SCALE
    x2 = boxes[:, 2] * SPATIAL_SCALE
    y2 = boxes[:, 3] * SPATIAL_SCALE
    bin_w = jnp.maximum(x2 - x1, 1.0) / POOL
    bin_h = jnp.maximum(y2 - y1, 1.0) / POOL

    pq = jnp.arange(POOL, dtype=jnp.float32) + 0.5
    ys = y1[:, None] + pq[None, :] * bin_h[:, None]                       # (k_pad, POOL)
    xs = x1[:, None] + pq[None, :] * bin_w[:, None]                       # (k_pad, POOL)

    # Per-output-row params for the batched row (y) interpolation matmul.
    row_params = jnp.stack([ys.reshape(-1),
                            jnp.repeat(bidx_f, POOL)], axis=1)            # (k_pad*POOL, 2)

    # Per-output-column params for the batched column (x) interpolation matmul.  Each ROI owns
    # LANE_PAD lanes: 21 real columns ordered c*POOL+q, plus padding lanes (channel id -1).
    xs_cols = jnp.concatenate(
        [xs] * C_OUT + [jnp.full((k_pad, LANE_PAD - C_OUT * POOL), -100.0, jnp.float32)],
        axis=1)                                                           # (k_pad, LANE_PAD)
    c_cols_1d = np.concatenate(
        [np.full(POOL, c, np.float32) for c in range(C_OUT)]
        + [np.full(LANE_PAD - C_OUT * POOL, -1.0, np.float32)])           # (LANE_PAD,)
    bcol_params = jnp.stack([xs_cols.reshape(-1),
                             jnp.tile(jnp.asarray(c_cols_1d), k_pad)], axis=0)  # (2, k_pad*32)

    # ROI-independent constants, hoisted out of the per-step kernel trace.
    col_params = jnp.asarray(np.stack(
        [np.tile(np.arange(H, dtype=np.float32), N),
         np.repeat(np.arange(N).astype(np.float32), H)], axis=0))         # (2, N*H)
    brow_params = jnp.asarray(np.stack(
        [np.tile(np.arange(W, dtype=np.float32), C_OUT),
         np.repeat(np.arange(C_OUT).astype(np.float32), W)], axis=1))     # (C_OUT*W, 2)
    sel = jnp.asarray(np.kron(np.eye(ROI_BLOCK, dtype=np.float32),
                              np.ones((POOL, LANE_PAD), np.float32)))     # (RB*P, RB*32)
    blk = np.zeros((LANE_PAD, C_OUT * POOL), np.float32)
    blk[:C_OUT * POOL, :] = np.eye(C_OUT * POOL, dtype=np.float32)
    summat = jnp.asarray(np.tile(blk, (ROI_BLOCK, 1)))                    # (RB*32, C_OUT*P)

    w_flat = conv_weight.reshape(-1).astype(jnp.float32)
    bias = conv_bias.astype(jnp.float32)

    grid_spec = pltpu.PrefetchScalarGridSpec(
        num_scalar_prefetch=0,
        grid=(n_blocks,),
        in_specs=[
            pl.BlockSpec(memory_space=pltpu.MemorySpace.SMEM),             # conv weights (1-D)
            pl.BlockSpec(memory_space=pltpu.MemorySpace.SMEM),             # conv bias
            pl.BlockSpec((ROI_BLOCK * POOL, 2), lambda s: (s, 0)),         # per-row params
            pl.BlockSpec((2, N * H), lambda s: (0, 0)),                    # column consts
            pl.BlockSpec((2, ROI_BLOCK * LANE_PAD), lambda s: (0, s)),     # per-column params
            pl.BlockSpec((C_OUT * W, 2), lambda s: (0, 0)),                # feature-col consts
            pl.BlockSpec((ROI_BLOCK * POOL, ROI_BLOCK * LANE_PAD),
                         lambda s: (0, 0)),                                # diag selection mask
            pl.BlockSpec((ROI_BLOCK * LANE_PAD, C_OUT * POOL),
                         lambda s: (0, 0)),                                # column compaction
            pl.BlockSpec(memory_space=pl.ANY),                             # x stays in HBM
        ],
        out_specs=pl.BlockSpec((ROI_BLOCK * POOL, C_OUT * POOL), lambda s: (s, 0)),
        scratch_shapes=[
            pltpu.VMEM((N * H, C_OUT * W), jnp.float32),                   # conv feature bank
        ],
    )
    out2d = pl.pallas_call(
        _fused_kernel,
        out_shape=jax.ShapeDtypeStruct((k_pad * POOL, C_OUT * POOL), jnp.float32),
        grid_spec=grid_spec,
        # "arbitrary": step 0 fills the persistent feature-bank scratch that later steps reuse.
        compiler_params=pltpu.CompilerParams(dimension_semantics=("arbitrary",)),
    )(w_flat, bias, row_params, col_params, bcol_params, brow_params, sel, summat, x)

    out = out2d.reshape(k_pad, POOL, C_OUT, POOL).transpose(0, 2, 1, 3)
    return out[:K]


# ----------------------------- numpy reference (float64) ---------------------------------- #
def _reference_forward(x, proposals, w, b):
    x = np.asarray(x, np.float64)
    w = np.asarray(w, np.float64)
    b = np.asarray(b, np.float64)
    props = np.asarray(proposals, np.float64)
    N, C, H, W = x.shape
    xp = np.pad(x, ((0, 0), (0, 0), (1, 1), (1, 1)))
    feat = np.zeros((N, C_OUT, H, W), np.float64)
    for co in range(C_OUT):
        feat[:, co] = b[co]
        for ci in range(C_IN):
            for kh in range(KSIZE):
                for kw in range(KSIZE):
                    feat[:, co] += w[co, ci, kh, kw] * xp[:, ci, kh:kh + H, kw:kw + W]
    K = props.shape[0]
    out = np.zeros((K, C_OUT, POOL, POOL), np.float64)
    for k in range(K):
        bi = int(props[k, 0])
        x1, y1, x2, y2 = props[k, 1:5] * SPATIAL_SCALE
        bw = max(x2 - x1, 1.0) / POOL
        bh = max(y2 - y1, 1.0) / POOL
        for p in range(POOL):
            y = y1 + (p + 0.5) * bh
            for q in range(POOL):
                xq = x1 + (q + 0.5) * bw
                if y < -1.0 or y > H or xq < -1.0 or xq > W:
                    continue
                yy = min(max(y, 0.0), H - 1.0)
                xx = min(max(xq, 0.0), W - 1.0)
                y0 = int(np.floor(yy)); x0 = int(np.floor(xx))
                y1i = min(y0 + 1, H - 1); x1i = min(x0 + 1, W - 1)
                ly = yy - y0; lx = xx - x0
                hy = 1.0 - ly; hx = 1.0 - lx
                out[k, :, p, q] = (hy * hx * feat[bi, :, y0, x0]
                                   + hy * lx * feat[bi, :, y0, x1i]
                                   + ly * hx * feat[bi, :, y1i, x0]
                                   + ly * lx * feat[bi, :, y1i, x1i])
    return out


if __name__ == "__main__":
    # Deterministic parameters (PyTorch-like uniform bound = 1/sqrt(fan_in)) and inputs.
    fan_in = C_IN * KSIZE * KSIZE
    bound = 1.0 / (fan_in ** 0.5)
    kw_key, kb_key, kx, kbi, kc, ks = jax.random.split(jax.random.PRNGKey(0), 6)
    conv_weight = jax.random.uniform(kw_key, (C_OUT, C_IN, KSIZE, KSIZE), jnp.float32,
                                     -bound, bound)
    conv_bias = jax.random.uniform(kb_key, (C_OUT,), jnp.float32, -bound, bound)

    N, H, W, K = 2, 16, 16, 8
    x = jax.random.normal(kx, (N, C_IN, H, W), jnp.float32)
    batch_idx = jax.random.randint(kbi, (K,), 0, N).astype(jnp.float32)
    tl = jax.random.uniform(kc, (K, 2), jnp.float32, 0.0, W - 2.0)        # x1, y1
    sz = jax.random.uniform(ks, (K, 2), jnp.float32, 2.0, 8.0)            # box sizes
    br = jnp.minimum(tl + sz, W - 1.0)                                    # x2, y2
    proposals = jnp.concatenate(
        [batch_idx[:, None], tl[:, 0:1], tl[:, 1:2], br[:, 0:1], br[:, 1:2]], axis=1)

    out = roi_feature_extractor(x, proposals, conv_weight, conv_bias)
    out = jax.block_until_ready(out)

    assert out.shape == (K, C_OUT, POOL, POOL), out.shape
    assert bool(jnp.all(jnp.isfinite(out)))

    ref = _reference_forward(x, proposals, conv_weight, conv_bias)
    err = float(np.max(np.abs(np.asarray(out, np.float64) - ref)))
    assert np.allclose(np.asarray(out, np.float64), ref, rtol=2e-2, atol=2e-2), err
    print("KERNEL_OK")
</pallas_src>

<mosaic_0001>
module attributes {stable_mosaic.version = 11 : i64} {
  func.func @_fused_kernel(%arg0: i32, %arg1: memref<81xf32, #tpu.memory_space<smem>>, %arg2: memref<3xf32, #tpu.memory_space<smem>>, %arg3: memref<224x2xf32, #tpu.memory_space<vmem>>, %arg4: memref<2x32xf32, #tpu.memory_space<vmem>>, %arg5: memref<2x1024xf32, #tpu.memory_space<vmem>>, %arg6: memref<48x2xf32, #tpu.memory_space<vmem>>, %arg7: memref<224x1024xf32, #tpu.memory_space<vmem>>, %arg8: memref<1024x21xf32, #tpu.memory_space<vmem>>, %arg9: memref<2x3x16x16xf32, #tpu.memory_space<any>>, %arg10: memref<224x21xf32, #tpu.memory_space<vmem>>, %arg11: memref<32x48xf32, #tpu.memory_space<vmem>>) attributes {dimension_semantics = [#tpu.dimension_semantics<arbitrary>], iteration_bounds = array<i64: 1>, scalar_prefetch = 0 : i64, scratch_operands = 1 : i64, tpu.core_type = #tpu.core_type<tc>, window_params = [{transform_indices = @transform_0, window_bounds = array<i64: 81>}, {transform_indices = @transform_1, window_bounds = array<i64: 3>}, {transform_indices = @transform_2, window_bounds = array<i64: 224, 2>}, {pipeline_mode = #tpu.pipeline_mode<synchronous>, transform_indices = @transform_3, window_bounds = array<i64: 2, 32>}, {transform_indices = @transform_4, window_bounds = array<i64: 2, 1024>}, {pipeline_mode = #tpu.pipeline_mode<synchronous>, transform_indices = @transform_5, window_bounds = array<i64: 48, 2>}, {pipeline_mode = #tpu.pipeline_mode<synchronous>, transform_indices = @transform_6, window_bounds = array<i64: 224, 1024>}, {pipeline_mode = #tpu.pipeline_mode<synchronous>, transform_indices = @transform_7, window_bounds = array<i64: 1024, 21>}, {}, {transform_indices = @transform_9, window_bounds = array<i64: 224, 21>}]} {
    %c0_i32 = arith.constant 0 : i32
    %0 = arith.cmpi eq, %arg0, %c0_i32 : i32
    %1 = arith.extui %0 : i1 to i32
    %c0_i32_0 = arith.constant 0 : i32
    %2 = arith.cmpi ne, %1, %c0_i32_0 : i32
    scf.if %2 {
      "tpu.region"() ({
        %alloca = memref.alloca() : memref<2x3x16x16xf32, #tpu.memory_space<vmem>>
        "tpu.region"() ({
          %849 = tpu.sem_alloc : memref<!tpu.dma_semaphore, #tpu.memory_space<semaphore_mem>>
          tpu.enqueue_dma source(%arg9 : memref<2x3x16x16xf32, #tpu.memory_space<any>>) target(%alloca : memref<2x3x16x16xf32, #tpu.memory_space<vmem>>) target_semaphore(%849 : memref<!tpu.dma_semaphore, #tpu.memory_space<semaphore_mem>>)
          tpu.wait_dma2 semaphore(%849 : memref<!tpu.dma_semaphore, #tpu.memory_space<semaphore_mem>>) src(%arg9 : memref<2x3x16x16xf32, #tpu.memory_space<any>>) dst(%alloca : memref<2x3x16x16xf32, #tpu.memory_space<vmem>>)
          tpu.yield
        }) : () -> ()
        %cst_37 = arith.constant 0.000000e+00 : f32
        %73 = vector.broadcast %cst_37 : f32 to vector<1x16xf32>
        %cst_38 = arith.constant 0.000000e+00 : f32
        %74 = vector.broadcast %cst_38 : f32 to vector<16x1xf32>
        %c0_39 = arith.constant 0 : index
        %75 = memref.load %arg2[%c0_39] : memref<3xf32, #tpu.memory_space<smem>>
        %76 = vector.broadcast %75 : f32 to vector<16x16xf32>
        %c1_40 = arith.constant 1 : index
        %77 = memref.load %arg2[%c1_40] : memref<3xf32, #tpu.memory_space<smem>>
        %78 = vector.broadcast %77 : f32 to vector<16x16xf32>
        %c2 = arith.constant 2 : index
        %79 = memref.load %arg2[%c2] : memref<3xf32, #tpu.memory_space<smem>>
        %80 = vector.broadcast %79 : f32 to vector<16x16xf32>
        %c0_41 = arith.constant 0 : index
        %c0_42 = arith.constant 0 : index
        %c0_43 = arith.constant 0 : index
        %c0_44 = arith.constant 0 : index
        %81 = vector.load %alloca[%c0_41, %c0_42, %c0_43, %c0_44] : memref<2x3x16x16xf32, #tpu.memory_space<vmem>>, vector<1x1x16x16xf32>
        %82 = vector.shape_cast %81 : vector<1x1x16x16xf32> to vector<16x16xf32>
        %83 = vector.extract_strided_slice %82 {offsets = [0, 0], sizes = [15, 16], strides = [1, 1]} : vector<16x16xf32> to vector<15x16xf32>
        %84 = tpu.concatenate %73, %83 in 0 : vector<1x16xf32>, vector<15x16xf32> -> vector<16x16xf32>
        %85 = vector.extract_strided_slice %82 {offsets = [1, 0], sizes = [15, 16], strides = [1, 1]} : vector<16x16xf32> to vector<15x16xf32>
        %86 = tpu.concatenate %85, %73 in 0 : vector<15x16xf32>, vector<1x16xf32> -> vector<16x16xf32>
        %87 = vector.extract_strided_slice %84 {offsets = [0, 0], sizes = [16, 15], strides = [1, 1]} : vector<16x16xf32> to vector<16x15xf32>
        %88 = tpu.concatenate %74, %87 in 1 : vector<16x1xf32>, vector<16x15xf32> -> vector<16x16xf32>
        %89 = vector.extract_strided_slice %84 {offsets = [0, 1], sizes = [16, 15], strides = [1, 1]} : vector<16x16xf32> to vector<16x15xf32>
        %90 = tpu.concatenate %89, %74 in 1 : vector<16x15xf32>, vector<16x1xf32> -> vector<16x16xf32>
        %c0_45 = arith.constant 0 : index
        %91 = memref.load %arg1[%c0_45] : memref<81xf32, #tpu.memory_space<smem>>
        %92 = vector.broadcast %91 : f32 to vector<16x16xf32>
        %93 = arith.mulf %88, %92 : vector<16x16xf32>
        %94 = arith.addf %76, %93 : vector<16x16xf32>
        %c27 = arith.constant 27 : index
        %95 = memref.load %arg1[%c27] : memref<81xf32, #tpu.memory_space<smem>>
        %96 = vector.broadcast %95 : f32 to vector<16x16xf32>
        %97 = arith.mulf %88, %96 : vector<16x16xf32>
        %98 = arith.addf %78, %97 : vector<16x16xf32>
        %c54 = arith.constant 54 : index
        %99 = memref.load %arg1[%c54] : memref<81xf32, #tpu.memory_space<smem>>
        %100 = vector.broadcast %99 : f32 to vector<16x16xf32>
        %101 = arith.mulf %88, %100 : vector<16x16xf32>
        %102 = arith.addf %80, %101 : vector<16x16xf32>
        %c1_46 = arith.constant 1 : index
        %103 = memref.load %arg1[%c1_46] : memref<81xf32, #tpu.memory_space<smem>>
        %104 = vector.broadcast %103 : f32 to vector<16x16xf32>
        %105 = arith.mulf %84, %104 : vector<16x16xf32>
        %106 = arith.addf %94, %105 : vector<16x16xf32>
        %c28 = arith.constant 28 : index
        %107 = memref.load %arg1[%c28] : memref<81xf32, #tpu.memory_space<smem>>
        %108 = vector.broadcast %107 : f32 to vector<16x16xf32>
        %109 = arith.mulf %84, %108 : vector<16x16xf32>
        %110 = arith.addf %98, %109 : vector<16x16xf32>
        %c55 = arith.constant 55 : index
        %111 = memref.load %arg1[%c55] : memref<81xf32, #tpu.memory_space<smem>>
        %112 = vector.broadcast %111 : f32 to vector<16x16xf32>
        %113 = arith.mulf %84, %112 : vector<16x16xf32>
        %114 = arith.addf %102, %113 : vector<16x16xf32>
        %c2_47 = arith.constant 2 : index
        %115 = memref.load %arg1[%c2_47] : memref<81xf32, #tpu.memory_space<smem>>
        %116 = vector.broadcast %115 : f32 to vector<16x16xf32>
        %117 = arith.mulf %90, %116 : vector<16x16xf32>
        %118 = arith.addf %106, %117 : vector<16x16xf32>
        %c29 = arith.constant 29 : index
        %119 = memref.load %arg1[%c29] : memref<81xf32, #tpu.memory_space<smem>>
        %120 = vector.broadcast %119 : f32 to vector<16x16xf32>
        %121 = arith.mulf %90, %120 : vector<16x16xf32>
        %122 = arith.addf %110, %121 : vector<16x16xf32>
        %c56 = arith.constant 56 : index
        %123 = memref.load %arg1[%c56] : memref<81xf32, #tpu.memory_space<smem>>
        %124 = vector.broadcast %123 : f32 to vector<16x16xf32>
        %125 = arith.mulf %90, %124 : vector<16x16xf32>
        %126 = arith.addf %114, %125 : vector<16x16xf32>
        %127 = vector.extract_strided_slice %82 {offsets = [0, 0], sizes = [16, 15], strides = [1, 1]} : vector<16x16xf32> to vector<16x15xf32>
        %128 = tpu.concatenate %74, %127 in 1 : vector<16x1xf32>, vector<16x15xf32> -> vector<16x16xf32>
        %129 = vector.extract_strided_slice %82 {offsets = [0, 1], sizes = [16, 15], strides = [1, 1]} : vector<16x16xf32> to vector<16x15xf32>
        %130 = tpu.concatenate %129, %74 in 1 : vector<16x15xf32>, vector<16x1xf32> -> vector<16x16xf32>
        %c3 = arith.constant 3 : index
        %131 = memref.load %arg1[%c3] : memref<81xf32, #tpu.memory_space<smem>>
        %132 = vector.broadcast %131 : f32 to vector<16x16xf32>
        %133 = arith.mulf %128, %132 : vector<16x16xf32>
        %134 = arith.addf %118, %133 : vector<16x16xf32>
        %c30 = arith.constant 30 : index
        %135 = memref.load %arg1[%c30] : memref<81xf32, #tpu.memory_space<smem>>
        %136 = vector.broadcast %135 : f32 to vector<16x16xf32>
        %137 = arith.mulf %128, %136 : vector<16x16xf32>
        %138 = arith.addf %122, %137 : vector<16x16xf32>
        %c57 = arith.constant 57 : index
        %139 = memref.load %arg1[%c57] : memref<81xf32, #tpu.memory_space<smem>>
        %140 = vector.broadcast %139 : f32 to vector<16x16xf32>
        %141 = arith.mulf %128, %140 : vector<16x16xf32>
        %142 = arith.addf %126, %141 : vector<16x16xf32>
        %c4 = arith.constant 4 : index
        %143 = memref.load %arg1[%c4] : memref<81xf32, #tpu.memory_space<smem>>
        %144 = vector.broadcast %143 : f32 to vector<16x16xf32>
        %145 = arith.mulf %82, %144 : vector<16x16xf32>
        %146 = arith.addf %134, %145 : vector<16x16xf32>
        %c31 = arith.constant 31 : index
        %147 = memref.load %arg1[%c31] : memref<81xf32, #tpu.memory_space<smem>>
        %148 = vector.broadcast %147 : f32 to vector<16x16xf32>
        %149 = arith.mulf %82, %148 : vector<16x16xf32>
        %150 = arith.addf %138, %149 : vector<16x16xf32>
        %c58 = arith.constant 58 : index
        %151 = memref.load %arg1[%c58] : memref<81xf32, #tpu.memory_space<smem>>
        %152 = vector.broadcast %151 : f32 to vector<16x16xf32>
        %153 = arith.mulf %82, %152 : vector<16x16xf32>
        %154 = arith.addf %142, %153 : vector<16x16xf32>
        %c5 = arith.constant 5 : index
        %155 = memref.load %arg1[%c5] : memref<81xf32, #tpu.memory_space<smem>>
        %156 = vector.broadcast %155 : f32 to vector<16x16xf32>
        %157 = arith.mulf %130, %156 : vector<16x16xf32>
        %158 = arith.addf %146, %157 : vector<16x16xf32>
        %c32 = arith.constant 32 : index
        %159 = memref.load %arg1[%c32] : memref<81xf32, #tpu.memory_space<smem>>
        %160 = vector.broadcast %159 : f32 to vector<16x16xf32>
        %161 = arith.mulf %130, %160 : vector<16x16xf32>
        %162 = arith.addf %150, %161 : vector<16x16xf32>
        %c59 = arith.constant 59 : index
        %163 = memref.load %arg1[%c59] : memref<81xf32, #tpu.memory_space<smem>>
        %164 = vector.broadcast %163 : f32 to vector<16x16xf32>
        %165 = arith.mulf %130, %164 : vector<16x16xf32>
        %166 = arith.addf %154, %165 : vector<16x16xf32>
        %167 = vector.extract_strided_slice %86 {offsets = [0, 0], sizes = [16, 15], strides = [1, 1]} : vector<16x16xf32> to vector<16x15xf32>
        %168 = tpu.concatenate %74, %167 in 1 : vector<16x1xf32>, vector<16x15xf32> -> vector<16x16xf32>
        %169 = vector.extract_strided_slice %86 {offsets = [0, 1], sizes = [16, 15], strides = [1, 1]} : vector<16x16xf32> to vector<16x15xf32>
        %170 = tpu.concatenate %169, %74 in 1 : vector<16x15xf32>, vector<16x1xf32> -> vector<16x16xf32>
        %c6 = arith.constant 6 : index
        %171 = memref.load %arg1[%c6] : memref<81xf32, #tpu.memory_space<smem>>
        %172 = vector.broadcast %171 : f32 to vector<16x16xf32>
        %173 = arith.mulf %168, %172 : vector<16x16xf32>
        %174 = arith.addf %158, %173 : vector<16x16xf32>
        %c33 = arith.constant 33 : index
        %175 = memref.load %arg1[%c33] : memref<81xf32, #tpu.memory_space<smem>>
        %176 = vector.broadcast %175 : f32 to vector<16x16xf32>
        %177 = arith.mulf %168, %176 : vector<16x16xf32>
        %178 = arith.addf %162, %177 : vector<16x16xf32>
        %c60 = arith.constant 60 : index
        %179 = memref.load %arg1[%c60] : memref<81xf32, #tpu.memory_space<smem>>
        %180 = vector.broadcast %179 : f32 to vector<16x16xf32>
        %181 = arith.mulf %168, %180 : vector<16x16xf32>
        %182 = arith.addf %166, %181 : vector<16x16xf32>
        %c7 = arith.constant 7 : index
        %183 = memref.load %arg1[%c7] : memref<81xf32, #tpu.memory_space<smem>>
        %184 = vector.broadcast %183 : f32 to vector<16x16xf32>
        %185 = arith.mulf %86, %184 : vector<16x16xf32>
        %186 = arith.addf %174, %185 : vector<16x16xf32>
        %c34 = arith.constant 34 : index
        %187 = memref.load %arg1[%c34] : memref<81xf32, #tpu.memory_space<smem>>
        %188 = vector.broadcast %187 : f32 to vector<16x16xf32>
        %189 = arith.mulf %86, %188 : vector<16x16xf32>
        %190 = arith.addf %178, %189 : vector<16x16xf32>
        %c61 = arith.constant 61 : index
        %191 = memref.load %arg1[%c61] : memref<81xf32, #tpu.memory_space<smem>>
        %192 = vector.broadcast %191 : f32 to vector<16x16xf32>
        %193 = arith.mulf %86, %192 : vector<16x16xf32>
        %194 = arith.addf %182, %193 : vector<16x16xf32>
        %c8 = arith.constant 8 : index
        %195 = memref.load %arg1[%c8] : memref<81xf32, #tpu.memory_space<smem>>
        %196 = vector.broadcast %195 : f32 to vector<16x16xf32>
        %197 = arith.mulf %170, %196 : vector<16x16xf32>
        %198 = arith.addf %186, %197 : vector<16x16xf32>
        %c35 = arith.constant 35 : index
        %199 = memref.load %arg1[%c35] : memref<81xf32, #tpu.memory_space<smem>>
        %200 = vector.broadcast %199 : f32 to vector<16x16xf32>
        %201 = arith.mulf %170, %200 : vector<16x16xf32>
        %202 = arith.addf %190, %201 : vector<16x16xf32>
        %c62 = arith.constant 62 : index
        %203 = memref.load %arg1[%c62] : memref<81xf32, #tpu.memory_space<smem>>
        %204 = vector.broadcast %203 : f32 to vector<16x16xf32>
        %205 = arith.mulf %170, %204 : vector<16x16xf32>
        %206 = arith.addf %194, %205 : vector<16x16xf32>
        %c0_48 = arith.constant 0 : index
        %c1_49 = arith.constant 1 : index
        %c0_50 = arith.constant 0 : index
        %c0_51 = arith.constant 0 : index
        %207 = vector.load %alloca[%c0_48, %c1_49, %c0_50, %c0_51] : memref<2x3x16x16xf32, #tpu.memory_space<vmem>>, vector<1x1x16x16xf32>
        %208 = vector.shape_cast %207 : vector<1x1x16x16xf32> to vector<16x16xf32>
        %209 = vector.extract_strided_slice %208 {offsets = [0, 0], sizes = [15, 16], strides = [1, 1]} : vector<16x16xf32> to vector<15x16xf32>
        %210 = tpu.concatenate %73, %209 in 0 : vector<1x16xf32>, vector<15x16xf32> -> vector<16x16xf32>
        %211 = vector.extract_strided_slice %208 {offsets = [1, 0], sizes = [15, 16], strides = [1, 1]} : vector<16x16xf32> to vector<15x16xf32>
        %212 = tpu.concatenate %211, %73 in 0 : vector<15x16xf32>, vector<1x16xf32> -> vector<16x16xf32>
        %213 = vector.extract_strided_slice %210 {offsets = [0, 0], sizes = [16, 15], strides = [1, 1]} : vector<16x16xf32> to vector<16x15xf32>
        %214 = tpu.concatenate %74, %213 in 1 : vector<16x1xf32>, vector<16x15xf32> -> vector<16x16xf32>
        %215 = vector.extract_strided_slice %210 {offsets = [0, 1], sizes = [16, 15], strides = [1, 1]} : vector<16x16xf32> to vector<16x15xf32>
        %216 = tpu.concatenate %215, %74 in 1 : vector<16x15xf32>, vector<16x1xf32> -> vector<16x16xf32>
        %c9 = arith.constant 9 : index
        %217 = memref.load %arg1[%c9] : memref<81xf32, #tpu.memory_space<smem>>
        %218 = vector.broadcast %217 : f32 to vector<16x16xf32>
        %219 = arith.mulf %214, %218 : vector<16x16xf32>
        %220 = arith.addf %198, %219 : vector<16x16xf32>
        %c36 = arith.constant 36 : index
        %221 = memref.load %arg1[%c36] : memref<81xf32, #tpu.memory_space<smem>>
        %222 = vector.broadcast %221 : f32 to vector<16x16xf32>
        %223 = arith.mulf %214, %222 : vector<16x16xf32>
        %224 = arith.addf %202, %223 : vector<16x16xf32>
        %c63 = arith.constant 63 : index
        %225 = memref.load %arg1[%c63] : memref<81xf32, #tpu.memory_space<smem>>
        %226 = vector.broadcast %225 : f32 to vector<16x16xf32>
        %227 = arith.mulf %214, %226 : vector<16x16xf32>
        %228 = arith.addf %206, %227 : vector<16x16xf32>
        %c10 = arith.constant 10 : index
        %229 = memref.load %arg1[%c10] : memref<81xf32, #tpu.memory_space<smem>>
        %230 = vector.broadcast %229 : f32 to vector<16x16xf32>
        %231 = arith.mulf %210, %230 : vector<16x16xf32>
        %232 = arith.addf %220, %231 : vector<16x16xf32>
        %c37 = arith.constant 37 : index
        %233 = memref.load %arg1[%c37] : memref<81xf32, #tpu.memory_space<smem>>
        %234 = vector.broadcast %233 : f32 to vector<16x16xf32>
        %235 = arith.mulf %210, %234 : vector<16x16xf32>
        %236 = arith.addf %224, %235 : vector<16x16xf32>
        %c64 = arith.constant 64 : index
        %237 = memref.load %arg1[%c64] : memref<81xf32, #tpu.memory_space<smem>>
        %238 = vector.broadcast %237 : f32 to vector<16x16xf32>
        %239 = arith.mulf %210, %238 : vector<16x16xf32>
        %240 = arith.addf %228, %239 : vector<16x16xf32>
        %c11 = arith.constant 11 : index
        %241 = memref.load %arg1[%c11] : memref<81xf32, #tpu.memory_space<smem>>
        %242 = vector.broadcast %241 : f32 to vector<16x16xf32>
        %243 = arith.mulf %216, %242 : vector<16x16xf32>
        %244 = arith.addf %232, %243 : vector<16x16xf32>
        %c38 = arith.constant 38 : index
        %245 = memref.load %arg1[%c38] : memref<81xf32, #tpu.memory_space<smem>>
        %246 = vector.broadcast %245 : f32 to vector<16x16xf32>
        %247 = arith.mulf %216, %246 : vector<16x16xf32>
        %248 = arith.addf %236, %247 : vector<16x16xf32>
        %c65 = arith.constant 65 : index
        %249 = memref.load %arg1[%c65] : memref<81xf32, #tpu.memory_space<smem>>
        %250 = vector.broadcast %249 : f32 to vector<16x16xf32>
        %251 = arith.mulf %216, %250 : vector<16x16xf32>
        %252 = arith.addf %240, %251 : vector<16x16xf32>
        %253 = vector.extract_strided_slice %208 {offsets = [0, 0], sizes = [16, 15], strides = [1, 1]} : vector<16x16xf32> to vector<16x15xf32>
        %254 = tpu.concatenate %74, %253 in 1 : vector<16x1xf32>, vector<16x15xf32> -> vector<16x16xf32>
        %255 = vector.extract_strided_slice %208 {offsets = [0, 1], sizes = [16, 15], strides = [1, 1]} : vector<16x16xf32> to vector<16x15xf32>
        %256 = tpu.concatenate %255, %74 in 1 : vector<16x15xf32>, vector<16x1xf32> -> vector<16x16xf32>
        %c12 = arith.constant 12 : index
        %257 = memref.load %arg1[%c12] : memref<81xf32, #tpu.memory_space<smem>>
        %258 = vector.broadcast %257 : f32 to vector<16x16xf32>
        %259 = arith.mulf %254, %258 : vector<16x16xf32>
        %260 = arith.addf %244, %259 : vector<16x16xf32>
        %c39 = arith.constant 39 : index
        %261 = memref.load %arg1[%c39] : memref<81xf32, #tpu.memory_space<smem>>
        %262 = vector.broadcast %261 : f32 to vector<16x16xf32>
        %263 = arith.mulf %254, %262 : vector<16x16xf32>
        %264 = arith.addf %248, %263 : vector<16x16xf32>
        %c66 = arith.constant 66 : index
        %265 = memref.load %arg1[%c66] : memref<81xf32, #tpu.memory_space<smem>>
        %266 = vector.broadcast %265 : f32 to vector<16x16xf32>
        %267 = arith.mulf %254, %266 : vector<16x16xf32>
        %268 = arith.addf %252, %267 : vector<16x16xf32>
        %c13 = arith.constant 13 : index
        %269 = memref.load %arg1[%c13] : memref<81xf32, #tpu.memory_space<smem>>
        %270 = vector.broadcast %269 : f32 to vector<16x16xf32>
        %271 = arith.mulf %208, %270 : vector<16x16xf32>
        %272 = arith.addf %260, %271 : vector<16x16xf32>
        %c40 = arith.constant 40 : index
        %273 = memref.load %arg1[%c40] : memref<81xf32, #tpu.memory_space<smem>>
        %274 = vector.broadcast %273 : f32 to vector<16x16xf32>
        %275 = arith.mulf %208, %274 : vector<16x16xf32>
        %276 = arith.addf %264, %275 : vector<16x16xf32>
        %c67 = arith.constant 67 : index
        %277 = memref.load %arg1[%c67] : memref<81xf32, #tpu.memory_space<smem>>
        %278 = vector.broadcast %277 : f32 to vector<16x16xf32>
        %279 = arith.mulf %208, %278 : vector<16x16xf32>
        %280 = arith.addf %268, %279 : vector<16x16xf32>
        %c14 = arith.constant 14 : index
        %281 = memref.load %arg1[%c14] : memref<81xf32, #tpu.memory_space<smem>>
        %282 = vector.broadcast %281 : f32 to vector<16x16xf32>
        %283 = arith.mulf %256, %282 : vector<16x16xf32>
        %284 = arith.addf %272, %283 : vector<16x16xf32>
        %c41 = arith.constant 41 : index
        %285 = memref.load %arg1[%c41] : memref<81xf32, #tpu.memory_space<smem>>
        %286 = vector.broadcast %285 : f32 to vector<16x16xf32>
        %287 = arith.mulf %256, %286 : vector<16x16xf32>
        %288 = arith.addf %276, %287 : vector<16x16xf32>
        %c68 = arith.constant 68 : index
        %289 = memref.load %arg1[%c68] : memref<81xf32, #tpu.memory_space<smem>>
        %290 = vector.broadcast %289 : f32 to vector<16x16xf32>
        %291 = arith.mulf %256, %290 : vector<16x16xf32>
        %292 = arith.addf %280, %291 : vector<16x16xf32>
        %293 = vector.extract_strided_slice %212 {offsets = [0, 0], sizes = [16, 15], strides = [1, 1]} : vector<16x16xf32> to vector<16x15xf32>
        %294 = tpu.concatenate %74, %293 in 1 : vector<16x1xf32>, vector<16x15xf32> -> vector<16x16xf32>
        %295 = vector.extract_strided_slice %212 {offsets = [0, 1], sizes = [16, 15], strides = [1, 1]} : vector<16x16xf32> to vector<16x15xf32>
        %296 = tpu.concatenate %295, %74 in 1 : vector<16x15xf32>, vector<16x1xf32> -> vector<16x16xf32>
        %c15 = arith.constant 15 : index
        %297 = memref.load %arg1[%c15] : memref<81xf32, #tpu.memory_space<smem>>
        %298 = vector.broadcast %297 : f32 to vector<16x16xf32>
        %299 = arith.mulf %294, %298 : vector<16x16xf32>
        %300 = arith.addf %284, %299 : vector<16x16xf32>
        %c42 = arith.constant 42 : index
        %301 = memref.load %arg1[%c42] : memref<81xf32, #tpu.memory_space<smem>>
        %302 = vector.broadcast %301 : f32 to vector<16x16xf32>
        %303 = arith.mulf %294, %302 : vector<16x16xf32>
        %304 = arith.addf %288, %303 : vector<16x16xf32>
        %c69 = arith.constant 69 : index
        %305 = memref.load %arg1[%c69] : memref<81xf32, #tpu.memory_space<smem>>
        %306 = vector.broadcast %305 : f32 to vector<16x16xf32>
        %307 = arith.mulf %294, %306 : vector<16x16xf32>
        %308 = arith.addf %292, %307 : vector<16x16xf32>
        %c16 = arith.constant 16 : index
        %309 = memref.load %arg1[%c16] : memref<81xf32, #tpu.memory_space<smem>>
        %310 = vector.broadcast %309 : f32 to vector<16x16xf32>
        %311 = arith.mulf %212, %310 : vector<16x16xf32>
        %312 = arith.addf %300, %311 : vector<16x16xf32>
        %c43 = arith.constant 43 : index
        %313 = memref.load %arg1[%c43] : memref<81xf32, #tpu.memory_space<smem>>
        %314 = vector.broadcast %313 : f32 to vector<16x16xf32>
        %315 = arith.mulf %212, %314 : vector<16x16xf32>
        %316 = arith.addf %304, %315 : vector<16x16xf32>
        %c70 = arith.constant 70 : index
        %317 = memref.load %arg1[%c70] : memref<81xf32, #tpu.memory_space<smem>>
        %318 = vector.broadcast %317 : f32 to vector<16x16xf32>
        %319 = arith.mulf %212, %318 : vector<16x16xf32>
        %320 = arith.addf %308, %319 : vector<16x16xf32>
        %c17 = arith.constant 17 : index
        %321 = memref.load %arg1[%c17] : memref<81xf32, #tpu.memory_space<smem>>
        %322 = vector.broadcast %321 : f32 to vector<16x16xf32>
        %323 = arith.mulf %296, %322 : vector<16x16xf32>
        %324 = arith.addf %312, %323 : vector<16x16xf32>
        %c44 = arith.constant 44 : index
        %325 = memref.load %arg1[%c44] : memref<81xf32, #tpu.memory_space<smem>>
        %326 = vector.broadcast %325 : f32 to vector<16x16xf32>
        %327 = arith.mulf %296, %326 : vector<16x16xf32>
        %328 = arith.addf %316, %327 : vector<16x16xf32>
        %c71 = arith.constant 71 : index
        %329 = memref.load %arg1[%c71] : memref<81xf32, #tpu.memory_space<smem>>
        %330 = vector.broadcast %329 : f32 to vector<16x16xf32>
        %331 = arith.mulf %296, %330 : vector<16x16xf32>
        %332 = arith.addf %320, %331 : vector<16x16xf32>
        %c0_52 = arith.constant 0 : index
        %c2_53 = arith.constant 2 : index
        %c0_54 = arith.constant 0 : index
        %c0_55 = arith.constant 0 : index
        %333 = vector.load %alloca[%c0_52, %c2_53, %c0_54, %c0_55] : memref<2x3x16x16xf32, #tpu.memory_space<vmem>>, vector<1x1x16x16xf32>
        %334 = vector.shape_cast %333 : vector<1x1x16x16xf32> to vector<16x16xf32>
        %335 = vector.extract_strided_slice %334 {offsets = [0, 0], sizes = [15, 16], strides = [1, 1]} : vector<16x16xf32> to vector<15x16xf32>
        %336 = tpu.concatenate %73, %335 in 0 : vector<1x16xf32>, vector<15x16xf32> -> vector<16x16xf32>
        %337 = vector.extract_strided_slice %334 {offsets = [1, 0], sizes = [15, 16], strides = [1, 1]} : vector<16x16xf32> to vector<15x16xf32>
        %338 = tpu.concatenate %337, %73 in 0 : vector<15x16xf32>, vector<1x16xf32> -> vector<16x16xf32>
        %339 = vector.extract_strided_slice %336 {offsets = [0, 0], sizes = [16, 15], strides = [1, 1]} : vector<16x16xf32> to vector<16x15xf32>
        %340 = tpu.concatenate %74, %339 in 1 : vector<16x1xf32>, vector<16x15xf32> -> vector<16x16xf32>
        %341 = vector.extract_strided_slice %336 {offsets = [0, 1], sizes = [16, 15], strides = [1, 1]} : vector<16x16xf32> to vector<16x15xf32>
        %342 = tpu.concatenate %341, %74 in 1 : vector<16x15xf32>, vector<16x1xf32> -> vector<16x16xf32>
        %c18 = arith.constant 18 : index
        %343 = memref.load %arg1[%c18] : memref<81xf32, #tpu.memory_space<smem>>
        %344 = vector.broadcast %343 : f32 to vector<16x16xf32>
        %345 = arith.mulf %340, %344 : vector<16x16xf32>
        %346 = arith.addf %324, %345 : vector<16x16xf32>
        %c45 = arith.constant 45 : index
        %347 = memref.load %arg1[%c45] : memref<81xf32, #tpu.memory_space<smem>>
        %348 = vector.broadcast %347 : f32 to vector<16x16xf32>
        %349 = arith.mulf %340, %348 : vector<16x16xf32>
        %350 = arith.addf %328, %349 : vector<16x16xf32>
        %c72 = arith.constant 72 : index
        %351 = memref.load %arg1[%c72] : memref<81xf32, #tpu.memory_space<smem>>
        %352 = vector.broadcast %351 : f32 to vector<16x16xf32>
        %353 = arith.mulf %340, %352 : vector<16x16xf32>
        %354 = arith.addf %332, %353 : vector<16x16xf32>
        %c19 = arith.constant 19 : index
        %355 = memref.load %arg1[%c19] : memref<81xf32, #tpu.memory_space<smem>>
        %356 = vector.broadcast %355 : f32 to vector<16x16xf32>
        %357 = arith.mulf %336, %356 : vector<16x16xf32>
        %358 = arith.addf %346, %357 : vector<16x16xf32>
        %c46 = arith.constant 46 : index
        %359 = memref.load %arg1[%c46] : memref<81xf32, #tpu.memory_space<smem>>
        %360 = vector.broadcast %359 : f32 to vector<16x16xf32>
        %361 = arith.mulf %336, %360 : vector<16x16xf32>
        %362 = arith.addf %350, %361 : vector<16x16xf32>
        %c73 = arith.constant 73 : index
        %363 = memref.load %arg1[%c73] : memref<81xf32, #tpu.memory_space<smem>>
        %364 = vector.broadcast %363 : f32 to vector<16x16xf32>
        %365 = arith.mulf %336, %364 : vector<16x16xf32>
        %366 = arith.addf %354, %365 : vector<16x16xf32>
        %c20 = arith.constant 20 : index
        %367 = memref.load %arg1[%c20] : memref<81xf32, #tpu.memory_space<smem>>
        %368 = vector.broadcast %367 : f32 to vector<16x16xf32>
        %369 = arith.mulf %342, %368 : vector<16x16xf32>
        %370 = arith.addf %358, %369 : vector<16x16xf32>
        %c47 = arith.constant 47 : index
        %371 = memref.load %arg1[%c47] : memref<81xf32, #tpu.memory_space<smem>>
        %372 = vector.broadcast %371 : f32 to vector<16x16xf32>
        %373 = arith.mulf %342, %372 : vector<16x16xf32>
        %374 = arith.addf %362, %373 : vector<16x16xf32>
        %c74 = arith.constant 74 : index
        %375 = memref.load %arg1[%c74] : memref<81xf32, #tpu.memory_space<smem>>
        %376 = vector.broadcast %375 : f32 to vector<16x16xf32>
        %377 = arith.mulf %342, %376 : vector<16x16xf32>
        %378 = arith.addf %366, %377 : vector<16x16xf32>
        %379 = vector.extract_strided_slice %334 {offsets = [0, 0], sizes = [16, 15], strides = [1, 1]} : vector<16x16xf32> to vector<16x15xf32>
        %380 = tpu.concatenate %74, %379 in 1 : vector<16x1xf32>, vector<16x15xf32> -> vector<16x16xf32>
        %381 = vector.extract_strided_slice %334 {offsets = [0, 1], sizes = [16, 15], strides = [1, 1]} : vector<16x16xf32> to vector<16x15xf32>
        %382 = tpu.concatenate %381, %74 in 1 : vector<16x15xf32>, vector<16x1xf32> -> vector<16x16xf32>
        %c21 = arith.constant 21 : index
        %383 = memref.load %arg1[%c21] : memref<81xf32, #tpu.memory_space<smem>>
        %384 = vector.broadcast %383 : f32 to vector<16x16xf32>
        %385 = arith.mulf %380, %384 : vector<16x16xf32>
        %386 = arith.addf %370, %385 : vector<16x16xf32>
        %c48 = arith.constant 48 : index
        %387 = memref.load %arg1[%c48] : memref<81xf32, #tpu.memory_space<smem>>
        %388 = vector.broadcast %387 : f32 to vector<16x16xf32>
        %389 = arith.mulf %380, %388 : vector<16x16xf32>
        %390 = arith.addf %374, %389 : vector<16x16xf32>
        %c75 = arith.constant 75 : index
        %391 = memref.load %arg1[%c75] : memref<81xf32, #tpu.memory_space<smem>>
        %392 = vector.broadcast %391 : f32 to vector<16x16xf32>
        %393 = arith.mulf %380, %392 : vector<16x16xf32>
        %394 = arith.addf %378, %393 : vector<16x16xf32>
        %c22 = arith.constant 22 : index
        %395 = memref.load %arg1[%c22] : memref<81xf32, #tpu.memory_space<smem>>
        %396 = vector.broadcast %395 : f32 to vector<16x16xf32>
        %397 = arith.mulf %334, %396 : vector<16x16xf32>
        %398 = arith.addf %386, %397 : vector<16x16xf32>
        %c49 = arith.constant 49 : index
        %399 = memref.load %arg1[%c49] : memref<81xf32, #tpu.memory_space<smem>>
        %400 = vector.broadcast %399 : f32 to vector<16x16xf32>
        %401 = arith.mulf %334, %400 : vector<16x16xf32>
        %402 = arith.addf %390, %401 : vector<16x16xf32>
        %c76 = arith.constant 76 : index
        %403 = memref.load %arg1[%c76] : memref<81xf32, #tpu.memory_space<smem>>
        %404 = vector.broadcast %403 : f32 to vector<16x16xf32>
        %405 = arith.mulf %334, %404 : vector<16x16xf32>
        %406 = arith.addf %394, %405 : vector<16x16xf32>
        %c23 = arith.constant 23 : index
        %407 = memref.load %arg1[%c23] : memref<81xf32, #tpu.memory_space<smem>>
        %408 = vector.broadcast %407 : f32 to vector<16x16xf32>
        %409 = arith.mulf %382, %408 : vector<16x16xf32>
        %410 = arith.addf %398, %409 : vector<16x16xf32>
        %c50 = arith.constant 50 : index
        %411 = memref.load %arg1[%c50] : memref<81xf32, #tpu.memory_space<smem>>
        %412 = vector.broadcast %411 : f32 to vector<16x16xf32>
        %413 = arith.mulf %382, %412 : vector<16x16xf32>
        %414 = arith.addf %402, %413 : vector<16x16xf32>
        %c77 = arith.constant 77 : index
        %415 = memref.load %arg1[%c77] : memref<81xf32, #tpu.memory_space<smem>>
        %416 = vector.broadcast %415 : f32 to vector<16x16xf32>
        %417 = arith.mulf %382, %416 : vector<16x16xf32>
        %418 = arith.addf %406, %417 : vector<16x16xf32>
        %419 = vector.extract_strided_slice %338 {offsets = [0, 0], sizes = [16, 15], strides = [1, 1]} : vector<16x16xf32> to vector<16x15xf32>
        %420 = tpu.concatenate %74, %419 in 1 : vector<16x1xf32>, vector<16x15xf32> -> vector<16x16xf32>
        %421 = vector.extract_strided_slice %338 {offsets = [0, 1], sizes = [16, 15], strides = [1, 1]} : vector<16x16xf32> to vector<16x15xf32>
        %422 = tpu.concatenate %421, %74 in 1 : vector<16x15xf32>, vector<16x1xf32> -> vector<16x16xf32>
        %c24 = arith.constant 24 : index
        %423 = memref.load %arg1[%c24] : memref<81xf32, #tpu.memory_space<smem>>
        %424 = vector.broadcast %423 : f32 to vector<16x16xf32>
        %425 = arith.mulf %420, %424 : vector<16x16xf32>
        %426 = arith.addf %410, %425 : vector<16x16xf32>
        %c51 = arith.constant 51 : index
        %427 = memref.load %arg1[%c51] : memref<81xf32, #tpu.memory_space<smem>>
        %428 = vector.broadcast %427 : f32 to vector<16x16xf32>
        %429 = arith.mulf %420, %428 : vector<16x16xf32>
        %430 = arith.addf %414, %429 : vector<16x16xf32>
        %c78 = arith.constant 78 : index
        %431 = memref.load %arg1[%c78] : memref<81xf32, #tpu.memory_space<smem>>
        %432 = vector.broadcast %431 : f32 to vector<16x16xf32>
        %433 = arith.mulf %420, %432 : vector<16x16xf32>
        %434 = arith.addf %418, %433 : vector<16x16xf32>
        %c25 = arith.constant 25 : index
        %435 = memref.load %arg1[%c25] : memref<81xf32, #tpu.memory_space<smem>>
        %436 = vector.broadcast %435 : f32 to vector<16x16xf32>
        %437 = arith.mulf %338, %436 : vector<16x16xf32>
        %438 = arith.addf %426, %437 : vector<16x16xf32>
        %c52 = arith.constant 52 : index
        %439 = memref.load %arg1[%c52] : memref<81xf32, #tpu.memory_space<smem>>
        %440 = vector.broadcast %439 : f32 to vector<16x16xf32>
        %441 = arith.mulf %338, %440 : vector<16x16xf32>
        %442 = arith.addf %430, %441 : vector<16x16xf32>
        %c79 = arith.constant 79 : index
        %443 = memref.load %arg1[%c79] : memref<81xf32, #tpu.memory_space<smem>>
        %444 = vector.broadcast %443 : f32 to vector<16x16xf32>
        %445 = arith.mulf %338, %444 : vector<16x16xf32>
        %446 = arith.addf %434, %445 : vector<16x16xf32>
        %c26 = arith.constant 26 : index
        %447 = memref.load %arg1[%c26] : memref<81xf32, #tpu.memory_space<smem>>
        %448 = vector.broadcast %447 : f32 to vector<16x16xf32>
        %449 = arith.mulf %422, %448 : vector<16x16xf32>
        %450 = arith.addf %438, %449 : vector<16x16xf32>
        %c53 = arith.constant 53 : index
        %451 = memref.load %arg1[%c53] : memref<81xf32, #tpu.memory_space<smem>>
        %452 = vector.broadcast %451 : f32 to vector<16x16xf32>
        %453 = arith.mulf %422, %452 : vector<16x16xf32>
        %454 = arith.addf %442, %453 : vector<16x16xf32>
        %c80 = arith.constant 80 : index
        %455 = memref.load %arg1[%c80] : memref<81xf32, #tpu.memory_space<smem>>
        %456 = vector.broadcast %455 : f32 to vector<16x16xf32>
        %457 = arith.mulf %422, %456 : vector<16x16xf32>
        %458 = arith.addf %446, %457 : vector<16x16xf32>
        %c0_56 = arith.constant 0 : index
        %c0_57 = arith.constant 0 : index
        %459 = vector.load %arg11[%c0_56, %c0_57] : memref<32x48xf32, #tpu.memory_space<vmem>>, vector<16x16xf32>
        tpu.vector_store %arg11[%c0_56, %c0_57], %450 {strides = array<i32>} : memref<32x48xf32, #tpu.memory_space<vmem>>, vector<16x16xf32>,
        %c0_58 = arith.constant 0 : index
        %c16_59 = arith.constant 16 : index
        %460 = vector.load %arg11[%c0_58, %c16_59] : memref<32x48xf32, #tpu.memory_space<vmem>>, vector<16x16xf32>
        tpu.vector_store %arg11[%c0_58, %c16_59], %454 {strides = array<i32>} : memref<32x48xf32, #tpu.memory_space<vmem>>, vector<16x16xf32>,
        %c0_60 = arith.constant 0 : index
        %c32_61 = arith.constant 32 : index
        %461 = vector.load %arg11[%c0_60, %c32_61] : memref<32x48xf32, #tpu.memory_space<vmem>>, vector<16x16xf32>
        tpu.vector_store %arg11[%c0_60, %c32_61], %458 {strides = array<i32>} : memref<32x48xf32, #tpu.memory_space<vmem>>, vector<16x16xf32>,
        %c0_62 = arith.constant 0 : index
        %462 = memref.load %arg2[%c0_62] : memref<3xf32, #tpu.memory_space<smem>>
        %463 = vector.broadcast %462 : f32 to vector<16x16xf32>
        %c1_63 = arith.constant 1 : index
        %464 = memref.load %arg2[%c1_63] : memref<3xf32, #tpu.memory_space<smem>>
        %465 = vector.broadcast %464 : f32 to vector<16x16xf32>
        %c2_64 = arith.constant 2 : index
        %466 = memref.load %arg2[%c2_64] : memref<3xf32, #tpu.memory_space<smem>>
        %467 = vector.broadcast %466 : f32 to vector<16x16xf32>
        %c1_65 = arith.constant 1 : index
        %c0_66 = arith.constant 0 : index
        %c0_67 = arith.constant 0 : index
        %c0_68 = arith.constant 0 : index
        %468 = vector.load %alloca[%c1_65, %c0_66, %c0_67, %c0_68] : memref<2x3x16x16xf32, #tpu.memory_space<vmem>>, vector<1x1x16x16xf32>
        %469 = vector.shape_cast %468 : vector<1x1x16x16xf32> to vector<16x16xf32>
        %470 = vector.extract_strided_slice %469 {offsets = [0, 0], sizes = [15, 16], strides = [1, 1]} : vector<16x16xf32> to vector<15x16xf32>
        %471 = tpu.concatenate %73, %470 in 0 : vector<1x16xf32>, vector<15x16xf32> -> vector<16x16xf32>
        %472 = vector.extract_strided_slice %469 {offsets = [1, 0], sizes = [15, 16], strides = [1, 1]} : vector<16x16xf32> to vector<15x16xf32>
        %473 = tpu.concatenate %472, %73 in 0 : vector<15x16xf32>, vector<1x16xf32> -> vector<16x16xf32>
        %474 = vector.extract_strided_slice %471 {offsets = [0, 0], sizes = [16, 15], strides = [1, 1]} : vector<16x16xf32> to vector<16x15xf32>
        %475 = tpu.concatenate %74, %474 in 1 : vector<16x1xf32>, vector<16x15xf32> -> vector<16x16xf32>
        %476 = vector.extract_strided_slice %471 {offsets = [0, 1], sizes = [16, 15], strides = [1, 1]} : vector<16x16xf32> to vector<16x15xf32>
        %477 = tpu.concatenate %476, %74 in 1 : vector<16x15xf32>, vector<16x1xf32> -> vector<16x16xf32>
        %c0_69 = arith.constant 0 : index
        %478 = memref.load %arg1[%c0_69] : memref<81xf32, #tpu.memory_space<smem>>
        %479 = vector.broadcast %478 : f32 to vector<16x16xf32>
        %480 = arith.mulf %475, %479 : vector<16x16xf32>
        %481 = arith.addf %463, %480 : vector<16x16xf32>
        %c27_70 = arith.constant 27 : index
        %482 = memref.load %arg1[%c27_70] : memref<81xf32, #tpu.memory_space<smem>>
        %483 = vector.broadcast %482 : f32 to vector<16x16xf32>
        %484 = arith.mulf %475, %483 : vector<16x16xf32>
        %485 = arith.addf %465, %484 : vector<16x16xf32>
        %c54_71 = arith.constant 54 : index
        %486 = memref.load %arg1[%c54_71] : memref<81xf32, #tpu.memory_space<smem>>
        %487 = vector.broadcast %486 : f32 to vector<16x16xf32>
        %488 = arith.mulf %475, %487 : vector<16x16xf32>
        %489 = arith.addf %467, %488 : vector<16x16xf32>
        %c1_72 = arith.constant 1 : index
        %490 = memref.load %arg1[%c1_72] : memref<81xf32, #tpu.memory_space<smem>>
        %491 = vector.broadcast %490 : f32 to vector<16x16xf32>
        %492 = arith.mulf %471, %491 : vector<16x16xf32>
        %493 = arith.addf %481, %492 : vector<16x16xf32>
        %c28_73 = arith.constant 28 : index
        %494 = memref.load %arg1[%c28_73] : memref<81xf32, #tpu.memory_space<smem>>
        %495 = vector.broadcast %494 : f32 to vector<16x16xf32>
        %496 = arith.mulf %471, %495 : vector<16x16xf32>
        %497 = arith.addf %485, %496 : vector<16x16xf32>
        %c55_74 = arith.constant 55 : index
        %498 = memref.load %arg1[%c55_74] : memref<81xf32, #tpu.memory_space<smem>>
        %499 = vector.broadcast %498 : f32 to vector<16x16xf32>
        %500 = arith.mulf %471, %499 : vector<16x16xf32>
        %501 = arith.addf %489, %500 : vector<16x16xf32>
        %c2_75 = arith.constant 2 : index
        %502 = memref.load %arg1[%c2_75] : memref<81xf32, #tpu.memory_space<smem>>
        %503 = vector.broadcast %502 : f32 to vector<16x16xf32>
        %504 = arith.mulf %477, %503 : vector<16x16xf32>
        %505 = arith.addf %493, %504 : vector<16x16xf32>
        %c29_76 = arith.constant 29 : index
        %506 = memref.load %arg1[%c29_76] : memref<81xf32, #tpu.memory_space<smem>>
        %507 = vector.broadcast %506 : f32 to vector<16x16xf32>
        %508 = arith.mulf %477, %507 : vector<16x16xf32>
        %509 = arith.addf %497, %508 : vector<16x16xf32>
        %c56_77 = arith.constant 56 : index
        %510 = memref.load %arg1[%c56_77] : memref<81xf32, #tpu.memory_space<smem>>
        %511 = vector.broadcast %510 : f32 to vector<16x16xf32>
        %512 = arith.mulf %477, %511 : vector<16x16xf32>
        %513 = arith.addf %501, %512 : vector<16x16xf32>
        %514 = vector.extract_strided_slice %469 {offsets = [0, 0], sizes = [16, 15], strides = [1, 1]} : vector<16x16xf32> to vector<16x15xf32>
        %515 = tpu.concatenate %74, %514 in 1 : vector<16x1xf32>, vector<16x15xf32> -> vector<16x16xf32>
        %516 = vector.extract_strided_slice %469 {offsets = [0, 1], sizes = [16, 15], strides = [1, 1]} : vector<16x16xf32> to vector<16x15xf32>
        %517 = tpu.concatenate %516, %74 in 1 : vector<16x15xf32>, vector<16x1xf32> -> vector<16x16xf32>
        %c3_78 = arith.constant 3 : index
        %518 = memref.load %arg1[%c3_78] : memref<81xf32, #tpu.memory_space<smem>>
        %519 = vector.broadcast %518 : f32 to vector<16x16xf32>
        %520 = arith.mulf %515, %519 : vector<16x16xf32>
        %521 = arith.addf %505, %520 : vector<16x16xf32>
        %c30_79 = arith.constant 30 : index
        %522 = memref.load %arg1[%c30_79] : memref<81xf32, #tpu.memory_space<smem>>
        %523 = vector.broadcast %522 : f32 to vector<16x16xf32>
        %524 = arith.mulf %515, %523 : vector<16x16xf32>
        %525 = arith.addf %509, %524 : vector<16x16xf32>
        %c57_80 = arith.constant 57 : index
        %526 = memref.load %arg1[%c57_80] : memref<81xf32, #tpu.memory_space<smem>>
        %527 = vector.broadcast %526 : f32 to vector<16x16xf32>
        %528 = arith.mulf %515, %527 : vector<16x16xf32>
        %529 = arith.addf %513, %528 : vector<16x16xf32>
        %c4_81 = arith.constant 4 : index
        %530 = memref.load %arg1[%c4_81] : memref<81xf32, #tpu.memory_space<smem>>
        %531 = vector.broadcast %530 : f32 to vector<16x16xf32>
        %532 = arith.mulf %469, %531 : vector<16x16xf32>
        %533 = arith.addf %521, %532 : vector<16x16xf32>
        %c31_82 = arith.constant 31 : index
        %534 = memref.load %arg1[%c31_82] : memref<81xf32, #tpu.memory_space<smem>>
        %535 = vector.broadcast %534 : f32 to vector<16x16xf32>
        %536 = arith.mulf %469, %535 : vector<16x16xf32>
        %537 = arith.addf %525, %536 : vector<16x16xf32>
        %c58_83 = arith.constant 58 : index
        %538 = memref.load %arg1[%c58_83] : memref<81xf32, #tpu.memory_space<smem>>
        %539 = vector.broadcast %538 : f32 to vector<16x16xf32>
        %540 = arith.mulf %469, %539 : vector<16x16xf32>
        %541 = arith.addf %529, %540 : vector<16x16xf32>
        %c5_84 = arith.constant 5 : index
        %542 = memref.load %arg1[%c5_84] : memref<81xf32, #tpu.memory_space<smem>>
        %543 = vector.broadcast %542 : f32 to vector<16x16xf32>
        %544 = arith.mulf %517, %543 : vector<16x16xf32>
        %545 = arith.addf %533, %544 : vector<16x16xf32>
        %c32_85 = arith.constant 32 : index
        %546 = memref.load %arg1[%c32_85] : memref<81xf32, #tpu.memory_space<smem>>
        %547 = vector.broadcast %546 : f32 to vector<16x16xf32>
        %548 = arith.mulf %517, %547 : vector<16x16xf32>
        %549 = arith.addf %537, %548 : vector<16x16xf32>
        %c59_86 = arith.constant 59 : index
        %550 = memref.load %arg1[%c59_86] : memref<81xf32, #tpu.memory_space<smem>>
        %551 = vector.broadcast %550 : f32 to vector<16x16xf32>
        %552 = arith.mulf %517, %551 : vector<16x16xf32>
        %553 = arith.addf %541, %552 : vector<16x16xf32>
        %554 = vector.extract_strided_slice %473 {offsets = [0, 0], sizes = [16, 15], strides = [1, 1]} : vector<16x16xf32> to vector<16x15xf32>
        %555 = tpu.concatenate %74, %554 in 1 : vector<16x1xf32>, vector<16x15xf32> -> vector<16x16xf32>
        %556 = vector.extract_strided_slice %473 {offsets = [0, 1], sizes = [16, 15], strides = [1, 1]} : vector<16x16xf32> to vector<16x15xf32>
        %557 = tpu.concatenate %556, %74 in 1 : vector<16x15xf32>, vector<16x1xf32> -> vector<16x16xf32>
        %c6_87 = arith.constant 6 : index
        %558 = memref.load %arg1[%c6_87] : memref<81xf32, #tpu.memory_space<smem>>
        %559 = vector.broadcast %558 : f32 to vector<16x16xf32>
        %560 = arith.mulf %555, %559 : vector<16x16xf32>
        %561 = arith.addf %545, %560 : vector<16x16xf32>
        %c33_88 = arith.constant 33 : index
        %562 = memref.load %arg1[%c33_88] : memref<81xf32, #tpu.memory_space<smem>>
        %563 = vector.broadcast %562 : f32 to vector<16x16xf32>
        %564 = arith.mulf %555, %563 : vector<16x16xf32>
        %565 = arith.addf %549, %564 : vector<16x16xf32>
        %c60_89 = arith.constant 60 : index
        %566 = memref.load %arg1[%c60_89] : memref<81xf32, #tpu.memory_space<smem>>
        %567 = vector.broadcast %566 : f32 to vector<16x16xf32>
        %568 = arith.mulf %555, %567 : vector<16x16xf32>
        %569 = arith.addf %553, %568 : vector<16x16xf32>
        %c7_90 = arith.constant 7 : index
        %570 = memref.load %arg1[%c7_90] : memref<81xf32, #tpu.memory_space<smem>>
        %571 = vector.broadcast %570 : f32 to vector<16x16xf32>
        %572 = arith.mulf %473, %571 : vector<16x16xf32>
        %573 = arith.addf %561, %572 : vector<16x16xf32>
        %c34_91 = arith.constant 34 : index
        %574 = memref.load %arg1[%c34_91] : memref<81xf32, #tpu.memory_space<smem>>
        %575 = vector.broadcast %574 : f32 to vector<16x16xf32>
        %576 = arith.mulf %473, %575 : vector<16x16xf32>
        %577 = arith.addf %565, %576 : vector<16x16xf32>
        %c61_92 = arith.constant 61 : index
        %578 = memref.load %arg1[%c61_92] : memref<81xf32, #tpu.memory_space<smem>>
        %579 = vector.broadcast %578 : f32 to vector<16x16xf32>
        %580 = arith.mulf %473, %579 : vector<16x16xf32>
        %581 = arith.addf %569, %580 : vector<16x16xf32>
        %c8_93 = arith.constant 8 : index
        %582 = memref.load %arg1[%c8_93] : memref<81xf32, #tpu.memory_space<smem>>
        %583 = vector.broadcast %582 : f32 to vector<16x16xf32>
        %584 = arith.mulf %557, %583 : vector<16x16xf32>
        %585 = arith.addf %573, %584 : vector<16x16xf32>
        %c35_94 = arith.constant 35 : index
        %586 = memref.load %arg1[%c35_94] : memref<81xf32, #tpu.memory_space<smem>>
        %587 = vector.broadcast %586 : f32 to vector<16x16xf32>
        %588 = arith.mulf %557, %587 : vector<16x16xf32>
        %589 = arith.addf %577, %588 : vector<16x16xf32>
        %c62_95 = arith.constant 62 : index
        %590 = memref.load %arg1[%c62_95] : memref<81xf32, #tpu.memory_space<smem>>
        %591 = vector.broadcast %590 : f32 to vector<16x16xf32>
        %592 = arith.mulf %557, %591 : vector<16x16xf32>
        %593 = arith.addf %581, %592 : vector<16x16xf32>
        %c1_96 = arith.constant 1 : index
        %c1_97 = arith.constant 1 : index
        %c0_98 = arith.constant 0 : index
        %c0_99 = arith.constant 0 : index
        %594 = vector.load %alloca[%c1_96, %c1_97, %c0_98, %c0_99] : memref<2x3x16x16xf32, #tpu.memory_space<vmem>>, vector<1x1x16x16xf32>
        %595 = vector.shape_cast %594 : vector<1x1x16x16xf32> to vector<16x16xf32>
        %596 = vector.extract_strided_slice %595 {offsets = [0, 0], sizes = [15, 16], strides = [1, 1]} : vector<16x16xf32> to vector<15x16xf32>
        %597 = tpu.concatenate %73, %596 in 0 : vector<1x16xf32>, vector<15x16xf32> -> vector<16x16xf32>
        %598 = vector.extract_strided_slice %595 {offsets = [1, 0], sizes = [15, 16], strides = [1, 1]} : vector<16x16xf32> to vector<15x16xf32>
        %599 = tpu.concatenate %598, %73 in 0 : vector<15x16xf32>, vector<1x16xf32> -> vector<16x16xf32>
        %600 = vector.extract_strided_slice %597 {offsets = [0, 0], sizes = [16, 15], strides = [1, 1]} : vector<16x16xf32> to vector<16x15xf32>
        %601 = tpu.concatenate %74, %600 in 1 : vector<16x1xf32>, vector<16x15xf32> -> vector<16x16xf32>
        %602 = vector.extract_strided_slice %597 {offsets = [0, 1], sizes = [16, 15], strides = [1, 1]} : vector<16x16xf32> to vector<16x15xf32>
        %603 = tpu.concatenate %602, %74 in 1 : vector<16x15xf32>, vector<16x1xf32> -> vector<16x16xf32>
        %c9_100 = arith.constant 9 : index
        %604 = memref.load %arg1[%c9_100] : memref<81xf32, #tpu.memory_space<smem>>
        %605 = vector.broadcast %604 : f32 to vector<16x16xf32>
        %606 = arith.mulf %601, %605 : vector<16x16xf32>
        %607 = arith.addf %585, %606 : vector<16x16xf32>
        %c36_101 = arith.constant 36 : index
        %608 = memref.load %arg1[%c36_101] : memref<81xf32, #tpu.memory_space<smem>>
        %609 = vector.broadcast %608 : f32 to vector<16x16xf32>
        %610 = arith.mulf %601, %609 : vector<16x16xf32>
        %611 = arith.addf %589, %610 : vector<16x16xf32>
        %c63_102 = arith.constant 63 : index
        %612 = memref.load %arg1[%c63_102] : memref<81xf32, #tpu.memory_space<smem>>
        %613 = vector.broadcast %612 : f32 to vector<16x16xf32>
        %614 = arith.mulf %601, %613 : vector<16x16xf32>
        %615 = arith.addf %593, %614 : vector<16x16xf32>
        %c10_103 = arith.constant 10 : index
        %616 = memref.load %arg1[%c10_103] : memref<81xf32, #tpu.memory_space<smem>>
        %617 = vector.broadcast %616 : f32 to vector<16x16xf32>
        %618 = arith.mulf %597, %617 : vector<16x16xf32>
        %619 = arith.addf %607, %618 : vector<16x16xf32>
        %c37_104 = arith.constant 37 : index
        %620 = memref.load %arg1[%c37_104] : memref<81xf32, #tpu.memory_space<smem>>
        %621 = vector.broadcast %620 : f32 to vector<16x16xf32>
        %622 = arith.mulf %597, %621 : vector<16x16xf32>
        %623 = arith.addf %611, %622 : vector<16x16xf32>
        %c64_105 = arith.constant 64 : index
        %624 = memref.load %arg1[%c64_105] : memref<81xf32, #tpu.memory_space<smem>>
        %625 = vector.broadcast %624 : f32 to vector<16x16xf32>
        %626 = arith.mulf %597, %625 : vector<16x16xf32>
        %627 = arith.addf %615, %626 : vector<16x16xf32>
        %c11_106 = arith.constant 11 : index
        %628 = memref.load %arg1[%c11_106] : memref<81xf32, #tpu.memory_space<smem>>
        %629 = vector.broadcast %628 : f32 to vector<16x16xf32>
        %630 = arith.mulf %603, %629 : vector<16x16xf32>
        %631 = arith.addf %619, %630 : vector<16x16xf32>
        %c38_107 = arith.constant 38 : index
        %632 = memref.load %arg1[%c38_107] : memref<81xf32, #tpu.memory_space<smem>>
        %633 = vector.broadcast %632 : f32 to vector<16x16xf32>
        %634 = arith.mulf %603, %633 : vector<16x16xf32>
        %635 = arith.addf %623, %634 : vector<16x16xf32>
        %c65_108 = arith.constant 65 : index
        %636 = memref.load %arg1[%c65_108] : memref<81xf32, #tpu.memory_space<smem>>
        %637 = vector.broadcast %636 : f32 to vector<16x16xf32>
        %638 = arith.mulf %603, %637 : vector<16x16xf32>
        %639 = arith.addf %627, %638 : vector<16x16xf32>
        %640 = vector.extract_strided_slice %595 {offsets = [0, 0], sizes = [16, 15], strides = [1, 1]} : vector<16x16xf32> to vector<16x15xf32>
        %641 = tpu.concatenate %74, %640 in 1 : vector<16x1xf32>, vector<16x15xf32> -> vector<16x16xf32>
        %642 = vector.extract_strided_slice %595 {offsets = [0, 1], sizes = [16, 15], strides = [1, 1]} : vector<16x16xf32> to vector<16x15xf32>
        %643 = tpu.concatenate %642, %74 in 1 : vector<16x15xf32>, vector<16x1xf32> -> vector<16x16xf32>
        %c12_109 = arith.constant 12 : index
        %644 = memref.load %arg1[%c12_109] : memref<81xf32, #tpu.memory_space<smem>>
        %645 = vector.broadcast %644 : f32 to vector<16x16xf32>
        %646 = arith.mulf %641, %645 : vector<16x16xf32>
        %647 = arith.addf %631, %646 : vector<16x16xf32>
        %c39_110 = arith.constant 39 : index
        %648 = memref.load %arg1[%c39_110] : memref<81xf32, #tpu.memory_space<smem>>
        %649 = vector.broadcast %648 : f32 to vector<16x16xf32>
        %650 = arith.mulf %641, %649 : vector<16x16xf32>
        %651 = arith.addf %635, %650 : vector<16x16xf32>
        %c66_111 = arith.constant 66 : index
        %652 = memref.load %arg1[%c66_111] : memref<81xf32, #tpu.memory_space<smem>>
        %653 = vector.broadcast %652 : f32 to vector<16x16xf32>
        %654 = arith.mulf %641, %653 : vector<16x16xf32>
        %655 = arith.addf %639, %654 : vector<16x16xf32>
        %c13_112 = arith.constant 13 : index
        %656 = memref.load %arg1[%c13_112] : memref<81xf32, #tpu.memory_space<smem>>
        %657 = vector.broadcast %656 : f32 to vector<16x16xf32>
        %658 = arith.mulf %595, %657 : vector<16x16xf32>
        %659 = arith.addf %647, %658 : vector<16x16xf32>
        %c40_113 = arith.constant 40 : index
        %660 = memref.load %arg1[%c40_113] : memref<81xf32, #tpu.memory_space<smem>>
        %661 = vector.broadcast %660 : f32 to vector<16x16xf32>
        %662 = arith.mulf %595, %661 : vector<16x16xf32>
        %663 = arith.addf %651, %662 : vector<16x16xf32>
        %c67_114 = arith.constant 67 : index
        %664 = memref.load %arg1[%c67_114] : memref<81xf32, #tpu.memory_space<smem>>
        %665 = vector.broadcast %664 : f32 to vector<16x16xf32>
        %666 = arith.mulf %595, %665 : vector<16x16xf32>
        %667 = arith.addf %655, %666 : vector<16x16xf32>
        %c14_115 = arith.constant 14 : index
        %668 = memref.load %arg1[%c14_115] : memref<81xf32, #tpu.memory_space<smem>>
        %669 = vector.broadcast %668 : f32 to vector<16x16xf32>
        %670 = arith.mulf %643, %669 : vector<16x16xf32>
        %671 = arith.addf %659, %670 : vector<16x16xf32>
        %c41_116 = arith.constant 41 : index
        %672 = memref.load %arg1[%c41_116] : memref<81xf32, #tpu.memory_space<smem>>
        %673 = vector.broadcast %672 : f32 to vector<16x16xf32>
        %674 = arith.mulf %643, %673 : vector<16x16xf32>
        %675 = arith.addf %663, %674 : vector<16x16xf32>
        %c68_117 = arith.constant 68 : index
        %676 = memref.load %arg1[%c68_117] : memref<81xf32, #tpu.memory_space<smem>>
        %677 = vector.broadcast %676 : f32 to vector<16x16xf32>
        %678 = arith.mulf %643, %677 : vector<16x16xf32>
        %679 = arith.addf %667, %678 : vector<16x16xf32>
        %680 = vector.extract_strided_slice %599 {offsets = [0, 0], sizes = [16, 15], strides = [1, 1]} : vector<16x16xf32> to vector<16x15xf32>
        %681 = tpu.concatenate %74, %680 in 1 : vector<16x1xf32>, vector<16x15xf32> -> vector<16x16xf32>
        %682 = vector.extract_strided_slice %599 {offsets = [0, 1], sizes = [16, 15], strides = [1, 1]} : vector<16x16xf32> to vector<16x15xf32>
        %683 = tpu.concatenate %682, %74 in 1 : vector<16x15xf32>, vector<16x1xf32> -> vector<16x16xf32>
        %c15_118 = arith.constant 15 : index
        %684 = memref.load %arg1[%c15_118] : memref<81xf32, #tpu.memory_space<smem>>
        %685 = vector.broadcast %684 : f32 to vector<16x16xf32>
        %686 = arith.mulf %681, %685 : vector<16x16xf32>
        %687 = arith.addf %671, %686 : vector<16x16xf32>
        %c42_119 = arith.constant 42 : index
        %688 = memref.load %arg1[%c42_119] : memref<81xf32, #tpu.memory_space<smem>>
        %689 = vector.broadcast %688 : f32 to vector<16x16xf32>
        %690 = arith.mulf %681, %689 : vector<16x16xf32>
        %691 = arith.addf %675, %690 : vector<16x16xf32>
        %c69_120 = arith.constant 69 : index
        %692 = memref.load %arg1[%c69_120] : memref<81xf32, #tpu.memory_space<smem>>
        %693 = vector.broadcast %692 : f32 to vector<16x16xf32>
        %694 = arith.mulf %681, %693 : vector<16x16xf32>
        %695 = arith.addf %679, %694 : vector<16x16xf32>
        %c16_121 = arith.constant 16 : index
        %696 = memref.load %arg1[%c16_121] : memref<81xf32, #tpu.memory_space<smem>>
        %697 = vector.broadcast %696 : f32 to vector<16x16xf32>
        %698 = arith.mulf %599, %697 : vector<16x16xf32>
        %699 = arith.addf %687, %698 : vector<16x16xf32>
        %c43_122 = arith.constant 43 : index
        %700 = memref.load %arg1[%c43_122] : memref<81xf32, #tpu.memory_space<smem>>
        %701 = vector.broadcast %700 : f32 to vector<16x16xf32>
        %702 = arith.mulf %599, %701 : vector<16x16xf32>
        %703 = arith.addf %691, %702 : vector<16x16xf32>
        %c70_123 = arith.constant 70 : index
        %704 = memref.load %arg1[%c70_123] : memref<81xf32, #tpu.memory_space<smem>>
        %705 = vector.broadcast %704 : f32 to vector<16x16xf32>
        %706 = arith.mulf %599, %705 : vector<16x16xf32>
        %707 = arith.addf %695, %706 : vector<16x16xf32>
        %c17_124 = arith.constant 17 : index
        %708 = memref.load %arg1[%c17_124] : memref<81xf32, #tpu.memory_space<smem>>
        %709 = vector.broadcast %708 : f32 to vector<16x16xf32>
        %710 = arith.mulf %683, %709 : vector<16x16xf32>
        %711 = arith.addf %699, %710 : vector<16x16xf32>
        %c44_125 = arith.constant 44 : index
        %712 = memref.load %arg1[%c44_125] : memref<81xf32, #tpu.memory_space<smem>>
        %713 = vector.broadcast %712 : f32 to vector<16x16xf32>
        %714 = arith.mulf %683, %713 : vector<16x16xf32>
        %715 = arith.addf %703, %714 : vector<16x16xf32>
        %c71_126 = arith.constant 71 : index
        %716 = memref.load %arg1[%c71_126] : memref<81xf32, #tpu.memory_space<smem>>
        %717 = vector.broadcast %716 : f32 to vector<16x16xf32>
        %718 = arith.mulf %683, %717 : vector<16x16xf32>
        %719 = arith.addf %707, %718 : vector<16x16xf32>
        %c1_127 = arith.constant 1 : index
        %c2_128 = arith.constant 2 : index
        %c0_129 = arith.constant 0 : index
        %c0_130 = arith.constant 0 : index
        %720 = vector.load %alloca[%c1_127, %c2_128, %c0_129, %c0_130] : memref<2x3x16x16xf32, #tpu.memory_space<vmem>>, vector<1x1x16x16xf32>
        %721 = vector.shape_cast %720 : vector<1x1x16x16xf32> to vector<16x16xf32>
        %722 = vector.extract_strided_slice %721 {offsets = [0, 0], sizes = [15, 16], strides = [1, 1]} : vector<16x16xf32> to vector<15x16xf32>
        %723 = tpu.concatenate %73, %722 in 0 : vector<1x16xf32>, vector<15x16xf32> -> vector<16x16xf32>
        %724 = vector.extract_strided_slice %721 {offsets = [1, 0], sizes = [15, 16], strides = [1, 1]} : vector<16x16xf32> to vector<15x16xf32>
        %725 = tpu.concatenate %724, %73 in 0 : vector<15x16xf32>, vector<1x16xf32> -> vector<16x16xf32>
        %726 = vector.extract_strided_slice %723 {offsets = [0, 0], sizes = [16, 15], strides = [1, 1]} : vector<16x16xf32> to vector<16x15xf32>
        %727 = tpu.concatenate %74, %726 in 1 : vector<16x1xf32>, vector<16x15xf32> -> vector<16x16xf32>
        %728 = vector.extract_strided_slice %723 {offsets = [0, 1], sizes = [16, 15], strides = [1, 1]} : vector<16x16xf32> to vector<16x15xf32>
        %729 = tpu.concatenate %728, %74 in 1 : vector<16x15xf32>, vector<16x1xf32> -> vector<16x16xf32>
        %c18_131 = arith.constant 18 : index
        %730 = memref.load %arg1[%c18_131] : memref<81xf32, #tpu.memory_space<smem>>
        %731 = vector.broadcast %730 : f32 to vector<16x16xf32>
        %732 = arith.mulf %727, %731 : vector<16x16xf32>
        %733 = arith.addf %711, %732 : vector<16x16xf32>
        %c45_132 = arith.constant 45 : index
        %734 = memref.load %arg1[%c45_132] : memref<81xf32, #tpu.memory_space<smem>>
        %735 = vector.broadcast %734 : f32 to vector<16x16xf32>
        %736 = arith.mulf %727, %735 : vector<16x16xf32>
        %737 = arith.addf %715, %736 : vector<16x16xf32>
        %c72_133 = arith.constant 72 : index
        %738 = memref.load %arg1[%c72_133] : memref<81xf32, #tpu.memory_space<smem>>
        %739 = vector.broadcast %738 : f32 to vector<16x16xf32>
        %740 = arith.mulf %727, %739 : vector<16x16xf32>
        %741 = arith.addf %719, %740 : vector<16x16xf32>
        %c19_134 = arith.constant 19 : index
        %742 = memref.load %arg1[%c19_134] : memref<81xf32, #tpu.memory_space<smem>>
        %743 = vector.broadcast %742 : f32 to vector<16x16xf32>
        %744 = arith.mulf %723, %743 : vector<16x16xf32>
        %745 = arith.addf %733, %744 : vector<16x16xf32>
        %c46_135 = arith.constant 46 : index
        %746 = memref.load %arg1[%c46_135] : memref<81xf32, #tpu.memory_space<smem>>
        %747 = vector.broadcast %746 : f32 to vector<16x16xf32>
        %748 = arith.mulf %723, %747 : vector<16x16xf32>
        %749 = arith.addf %737, %748 : vector<16x16xf32>
        %c73_136 = arith.constant 73 : index
        %750 = memref.load %arg1[%c73_136] : memref<81xf32, #tpu.memory_space<smem>>
        %751 = vector.broadcast %750 : f32 to vector<16x16xf32>
        %752 = arith.mulf %723, %751 : vector<16x16xf32>
        %753 = arith.addf %741, %752 : vector<16x16xf32>
        %c20_137 = arith.constant 20 : index
        %754 = memref.load %arg1[%c20_137] : memref<81xf32, #tpu.memory_space<smem>>
        %755 = vector.broadcast %754 : f32 to vector<16x16xf32>
        %756 = arith.mulf %729, %755 : vector<16x16xf32>
        %757 = arith.addf %745, %756 : vector<16x16xf32>
        %c47_138 = arith.constant 47 : index
        %758 = memref.load %arg1[%c47_138] : memref<81xf32, #tpu.memory_space<smem>>
        %759 = vector.broadcast %758 : f32 to vector<16x16xf32>
        %760 = arith.mulf %729, %759 : vector<16x16xf32>
        %761 = arith.addf %749, %760 : vector<16x16xf32>
        %c74_139 = arith.constant 74 : index
        %762 = memref.load %arg1[%c74_139] : memref<81xf32, #tpu.memory_space<smem>>
        %763 = vector.broadcast %762 : f32 to vector<16x16xf32>
        %764 = arith.mulf %729, %763 : vector<16x16xf32>
        %765 = arith.addf %753, %764 : vector<16x16xf32>
        %766 = vector.extract_strided_slice %721 {offsets = [0, 0], sizes = [16, 15], strides = [1, 1]} : vector<16x16xf32> to vector<16x15xf32>
        %767 = tpu.concatenate %74, %766 in 1 : vector<16x1xf32>, vector<16x15xf32> -> vector<16x16xf32>
        %768 = vector.extract_strided_slice %721 {offsets = [0, 1], sizes = [16, 15], strides = [1, 1]} : vector<16x16xf32> to vector<16x15xf32>
        %769 = tpu.concatenate %768, %74 in 1 : vector<16x15xf32>, vector<16x1xf32> -> vector<16x16xf32>
        %c21_140 = arith.constant 21 : index
        %770 = memref.load %arg1[%c21_140] : memref<81xf32, #tpu.memory_space<smem>>
        %771 = vector.broadcast %770 : f32 to vector<16x16xf32>
        %772 = arith.mulf %767, %771 : vector<16x16xf32>
        %773 = arith.addf %757, %772 : vector<16x16xf32>
        %c48_141 = arith.constant 48 : index
        %774 = memref.load %arg1[%c48_141] : memref<81xf32, #tpu.memory_space<smem>>
        %775 = vector.broadcast %774 : f32 to vector<16x16xf32>
        %776 = arith.mulf %767, %775 : vector<16x16xf32>
        %777 = arith.addf %761, %776 : vector<16x16xf32>
        %c75_142 = arith.constant 75 : index
        %778 = memref.load %arg1[%c75_142] : memref<81xf32, #tpu.memory_space<smem>>
        %779 = vector.broadcast %778 : f32 to vector<16x16xf32>
        %780 = arith.mulf %767, %779 : vector<16x16xf32>
        %781 = arith.addf %765, %780 : vector<16x16xf32>
        %c22_143 = arith.constant 22 : index
        %782 = memref.load %arg1[%c22_143] : memref<81xf32, #tpu.memory_space<smem>>
        %783 = vector.broadcast %782 : f32 to vector<16x16xf32>
        %784 = arith.mulf %721, %783 : vector<16x16xf32>
        %785 = arith.addf %773, %784 : vector<16x16xf32>
        %c49_144 = arith.constant 49 : index
        %786 = memref.load %arg1[%c49_144] : memref<81xf32, #tpu.memory_space<smem>>
        %787 = vector.broadcast %786 : f32 to vector<16x16xf32>
        %788 = arith.mulf %721, %787 : vector<16x16xf32>
        %789 = arith.addf %777, %788 : vector<16x16xf32>
        %c76_145 = arith.constant 76 : index
        %790 = memref.load %arg1[%c76_145] : memref<81xf32, #tpu.memory_space<smem>>
        %791 = vector.broadcast %790 : f32 to vector<16x16xf32>
        %792 = arith.mulf %721, %791 : vector<16x16xf32>
        %793 = arith.addf %781, %792 : vector<16x16xf32>
        %c23_146 = arith.constant 23 : index
        %794 = memref.load %arg1[%c23_146] : memref<81xf32, #tpu.memory_space<smem>>
        %795 = vector.broadcast %794 : f32 to vector<16x16xf32>
        %796 = arith.mulf %769, %795 : vector<16x16xf32>
        %797 = arith.addf %785, %796 : vector<16x16xf32>
        %c50_147 = arith.constant 50 : index
        %798 = memref.load %arg1[%c50_147] : memref<81xf32, #tpu.memory_space<smem>>
        %799 = vector.broadcast %798 : f32 to vector<16x16xf32>
        %800 = arith.mulf %769, %799 : vector<16x16xf32>
        %801 = arith.addf %789, %800 : vector<16x16xf32>
        %c77_148 = arith.constant 77 : index
        %802 = memref.load %arg1[%c77_148] : memref<81xf32, #tpu.memory_space<smem>>
        %803 = vector.broadcast %802 : f32 to vector<16x16xf32>
        %804 = arith.mulf %769, %803 : vector<16x16xf32>
        %805 = arith.addf %793, %804 : vector<16x16xf32>
        %806 = vector.extract_strided_slice %725 {offsets = [0, 0], sizes = [16, 15], strides = [1, 1]} : vector<16x16xf32> to vector<16x15xf32>
        %807 = tpu.concatenate %74, %806 in 1 : vector<16x1xf32>, vector<16x15xf32> -> vector<16x16xf32>
        %808 = vector.extract_strided_slice %725 {offsets = [0, 1], sizes = [16, 15], strides = [1, 1]} : vector<16x16xf32> to vector<16x15xf32>
        %809 = tpu.concatenate %808, %74 in 1 : vector<16x15xf32>, vector<16x1xf32> -> vector<16x16xf32>
        %c24_149 = arith.constant 24 : index
        %810 = memref.load %arg1[%c24_149] : memref<81xf32, #tpu.memory_space<smem>>
        %811 = vector.broadcast %810 : f32 to vector<16x16xf32>
        %812 = arith.mulf %807, %811 : vector<16x16xf32>
        %813 = arith.addf %797, %812 : vector<16x16xf32>
        %c51_150 = arith.constant 51 : index
        %814 = memref.load %arg1[%c51_150] : memref<81xf32, #tpu.memory_space<smem>>
        %815 = vector.broadcast %814 : f32 to vector<16x16xf32>
        %816 = arith.mulf %807, %815 : vector<16x16xf32>
        %817 = arith.addf %801, %816 : vector<16x16xf32>
        %c78_151 = arith.constant 78 : index
        %818 = memref.load %arg1[%c78_151] : memref<81xf32, #tpu.memory_space<smem>>
        %819 = vector.broadcast %818 : f32 to vector<16x16xf32>
        %820 = arith.mulf %807, %819 : vector<16x16xf32>
        %821 = arith.addf %805, %820 : vector<16x16xf32>
        %c25_152 = arith.constant 25 : index
        %822 = memref.load %arg1[%c25_152] : memref<81xf32, #tpu.memory_space<smem>>
        %823 = vector.broadcast %822 : f32 to vector<16x16xf32>
        %824 = arith.mulf %725, %823 : vector<16x16xf32>
        %825 = arith.addf %813, %824 : vector<16x16xf32>
        %c52_153 = arith.constant 52 : index
        %826 = memref.load %arg1[%c52_153] : memref<81xf32, #tpu.memory_space<smem>>
        %827 = vector.broadcast %826 : f32 to vector<16x16xf32>
        %828 = arith.mulf %725, %827 : vector<16x16xf32>
        %829 = arith.addf %817, %828 : vector<16x16xf32>
        %c79_154 = arith.constant 79 : index
        %830 = memref.load %arg1[%c79_154] : memref<81xf32, #tpu.memory_space<smem>>
        %831 = vector.broadcast %830 : f32 to vector<16x16xf32>
        %832 = arith.mulf %725, %831 : vector<16x16xf32>
        %833 = arith.addf %821, %832 : vector<16x16xf32>
        %c26_155 = arith.constant 26 : index
        %834 = memref.load %arg1[%c26_155] : memref<81xf32, #tpu.memory_space<smem>>
        %835 = vector.broadcast %834 : f32 to vector<16x16xf32>
        %836 = arith.mulf %809, %835 : vector<16x16xf32>
        %837 = arith.addf %825, %836 : vector<16x16xf32>
        %c53_156 = arith.constant 53 : index
        %838 = memref.load %arg1[%c53_156] : memref<81xf32, #tpu.memory_space<smem>>
        %839 = vector.broadcast %838 : f32 to vector<16x16xf32>
        %840 = arith.mulf %809, %839 : vector<16x16xf32>
        %841 = arith.addf %829, %840 : vector<16x16xf32>
        %c80_157 = arith.constant 80 : index
        %842 = memref.load %arg1[%c80_157] : memref<81xf32, #tpu.memory_space<smem>>
        %843 = vector.broadcast %842 : f32 to vector<16x16xf32>
        %844 = arith.mulf %809, %843 : vector<16x16xf32>
        %845 = arith.addf %833, %844 : vector<16x16xf32>
        %c16_158 = arith.constant 16 : index
        %c0_159 = arith.constant 0 : index
        %846 = vector.load %arg11[%c16_158, %c0_159] : memref<32x48xf32, #tpu.memory_space<vmem>>, vector<16x16xf32>
        tpu.vector_store %arg11[%c16_158, %c0_159], %837 {strides = array<i32>} : memref<32x48xf32, #tpu.memory_space<vmem>>, vector<16x16xf32>,
        %c16_160 = arith.constant 16 : index
        %c16_161 = arith.constant 16 : index
        %847 = vector.load %arg11[%c16_160, %c16_161] : memref<32x48xf32, #tpu.memory_space<vmem>>, vector<16x16xf32>
        tpu.vector_store %arg11[%c16_160, %c16_161], %841 {strides = array<i32>} : memref<32x48xf32, #tpu.memory_space<vmem>>, vector<16x16xf32>,
        %c16_162 = arith.constant 16 : index
        %c32_163 = arith.constant 32 : index
        %848 = vector.load %arg11[%c16_162, %c32_163] : memref<32x48xf32, #tpu.memory_space<vmem>>, vector<16x16xf32>
        tpu.vector_store %arg11[%c16_162, %c32_163], %845 {strides = array<i32>} : memref<32x48xf32, #tpu.memory_space<vmem>>, vector<16x16xf32>,
        tpu.yield
      }) : () -> ()
    } else {
    }
    %c0 = arith.constant 0 : index
    %c0_1 = arith.constant 0 : index
    %3 = vector.load %arg11[%c0, %c0_1] : memref<32x48xf32, #tpu.memory_space<vmem>>, vector<32x48xf32>
    %c0_2 = arith.constant 0 : index
    %c0_3 = arith.constant 0 : index
    %4 = vector.load %arg3[%c0_2, %c0_3] : memref<224x2xf32, #tpu.memory_space<vmem>>, vector<224x1xf32>
    %c0_4 = arith.constant 0 : index
    %c1 = arith.constant 1 : index
    %5 = vector.load %arg3[%c0_4, %c1] : memref<224x2xf32, #tpu.memory_space<vmem>>, vector<224x1xf32>
    %c0_5 = arith.constant 0 : index
    %c0_6 = arith.constant 0 : index
    %6 = vector.load %arg4[%c0_5, %c0_6] : memref<2x32xf32, #tpu.memory_space<vmem>>, vector<1x32xf32>
    %c1_7 = arith.constant 1 : index
    %c0_8 = arith.constant 0 : index
    %7 = vector.load %arg4[%c1_7, %c0_8] : memref<2x32xf32, #tpu.memory_space<vmem>>, vector<1x32xf32>
    %cst = arith.constant -1.000000e+00 : f32
    %8 = vector.broadcast %cst : f32 to vector<224x1xf32>
    %9 = arith.cmpf oge, %4, %8 : vector<224x1xf32>
    %cst_9 = arith.constant 1.600000e+01 : f32
    %10 = vector.broadcast %cst_9 : f32 to vector<224x1xf32>
    %11 = arith.cmpf ole, %4, %10 : vector<224x1xf32>
    %12 = arith.andi %9, %11 : vector<224x1xi1>
    %13 = arith.extui %12 : vector<224x1xi1> to vector<224x1xi32>
    %14 = arith.sitofp %13 : vector<224x1xi32> to vector<224x1xf32>
    %cst_10 = arith.constant 0.000000e+00 : f32
    %cst_11 = arith.constant 1.500000e+01 : f32
    %15 = vector.broadcast %cst_10 : f32 to vector<224x1xf32>
    %16 = arith.maximumf %15, %4 : vector<224x1xf32>
    %17 = vector.broadcast %cst_11 : f32 to vector<224x1xf32>
    %18 = arith.minimumf %17, %16 : vector<224x1xf32>
    %19 = vector.broadcast %7 : vector<1x32xf32> to vector<224x32xf32>
    %20 = vector.broadcast %5 : vector<224x1xf32> to vector<224x32xf32>
    %21 = arith.cmpf oeq, %19, %20 : vector<224x32xf32>
    %22 = arith.extui %21 : vector<224x32xi1> to vector<224x32xi32>
    %23 = arith.sitofp %22 : vector<224x32xi32> to vector<224x32xf32>
    %24 = vector.broadcast %6 : vector<1x32xf32> to vector<224x32xf32>
    %25 = vector.broadcast %18 : vector<224x1xf32> to vector<224x32xf32>
    %26 = arith.subf %24, %25 : vector<224x32xf32>
    %27 = math.absf %26 : vector<224x32xf32>
    %cst_12 = arith.constant 1.000000e+00 : f32
    %28 = vector.broadcast %cst_12 : f32 to vector<224x32xf32>
    %29 = arith.subf %28, %27 : vector<224x32xf32>
    %cst_13 = arith.constant 0.000000e+00 : f32
    %30 = vector.broadcast %cst_13 : f32 to vector<224x32xf32>
    %31 = arith.maximumf %30, %29 : vector<224x32xf32>
    %32 = arith.mulf %23, %31 : vector<224x32xf32>
    %33 = vector.broadcast %14 : vector<224x1xf32> to vector<224x32xf32>
    %34 = arith.mulf %32, %33 : vector<224x32xf32>
    %cst_14 = arith.constant dense<0.000000e+00> : vector<224x48xf32>
    %35 = tpu.matmul %34, %3, %cst_14 {dimension_numbers = #tpu.dot_dimension_numbers<[1], [0], [0], [1], [0, 0, 1, 1], [], []>} : vector<224x32xf32>, vector<32x48xf32>, vector<224x48xf32> -> vector<224x48xf32>
    %c0_15 = arith.constant 0 : index
    %c0_16 = arith.constant 0 : index
    %36 = vector.load %arg5[%c0_15, %c0_16] : memref<2x1024xf32, #tpu.memory_space<vmem>>, vector<1x1024xf32>
    %c1_17 = arith.constant 1 : index
    %c0_18 = arith.constant 0 : index
    %37 = vector.load %arg5[%c1_17, %c0_18] : memref<2x1024xf32, #tpu.memory_space<vmem>>, vector<1x1024xf32>
    %c0_19 = arith.constant 0 : index
    %c0_20 = arith.constant 0 : index
    %38 = vector.load %arg6[%c0_19, %c0_20] : memref<48x2xf32, #tpu.memory_space<vmem>>, vector<48x1xf32>
    %c0_21 = arith.constant 0 : index
    %c1_22 = arith.constant 1 : index
    %39 = vector.load %arg6[%c0_21, %c1_22] : memref<48x2xf32, #tpu.memory_space<vmem>>, vector<48x1xf32>
    %cst_23 = arith.constant -1.000000e+00 : f32
    %40 = vector.broadcast %cst_23 : f32 to vector<1x1024xf32>
    %41 = arith.cmpf oge, %36, %40 : vector<1x1024xf32>
    %cst_24 = arith.constant 1.600000e+01 : f32
    %42 = vector.broadcast %cst_24 : f32 to vector<1x1024xf32>
    %43 = arith.cmpf ole, %36, %42 : vector<1x1024xf32>
    %44 = arith.andi %41, %43 : vector<1x1024xi1>
    %45 = arith.extui %44 : vector<1x1024xi1> to vector<1x1024xi32>
    %46 = arith.sitofp %45 : vector<1x1024xi32> to vector<1x1024xf32>
    %cst_25 = arith.constant 0.000000e+00 : f32
    %cst_26 = arith.constant 1.500000e+01 : f32
    %47 = vector.broadcast %cst_25 : f32 to vector<1x1024xf32>
    %48 = arith.maximumf %47, %36 : vector<1x1024xf32>
    %49 = vector.broadcast %cst_26 : f32 to vector<1x1024xf32>
    %50 = arith.minimumf %49, %48 : vector<1x1024xf32>
    %51 = vector.broadcast %39 : vector<48x1xf32> to vector<48x1024xf32>
    %52 = vector.broadcast %37 : vector<1x1024xf32> to vector<48x1024xf32>
    %53 = arith.cmpf oeq, %51, %52 : vector<48x1024xf32>
    %54 = arith.extui %53 : vector<48x1024xi1> to vector<48x1024xi32>
    %55 = arith.sitofp %54 : vector<48x1024xi32> to vector<48x1024xf32>
    %56 = vector.broadcast %38 : vector<48x1xf32> to vector<48x1024xf32>
    %57 = vector.broadcast %50 : vector<1x1024xf32> to vector<48x1024xf32>
    %58 = arith.subf %56, %57 : vector<48x1024xf32>
    %59 = math.absf %58 : vector<48x1024xf32>
    %cst_27 = arith.constant 1.000000e+00 : f32
    %60 = vector.broadcast %cst_27 : f32 to vector<48x1024xf32>
    %61 = arith.subf %60, %59 : vector<48x1024xf32>
    %cst_28 = arith.constant 0.000000e+00 : f32
    %62 = vector.broadcast %cst_28 : f32 to vector<48x1024xf32>
    %63 = arith.maximumf %62, %61 : vector<48x1024xf32>
    %64 = arith.mulf %55, %63 : vector<48x1024xf32>
    %65 = vector.broadcast %46 : vector<1x1024xf32> to vector<48x1024xf32>
    %66 = arith.mulf %64, %65 : vector<48x1024xf32>
    %cst_29 = arith.constant dense<0.000000e+00> : vector<224x1024xf32>
    %67 = tpu.matmul %35, %66, %cst_29 {dimension_numbers = #tpu.dot_dimension_numbers<[1], [0], [0], [1], [0, 0, 1, 1], [], []>} : vector<224x48xf32>, vector<48x1024xf32>, vector<224x1024xf32> -> vector<224x1024xf32>
    %c0_30 = arith.constant 0 : index
    %c0_31 = arith.constant 0 : index
    %68 = vector.load %arg7[%c0_30, %c0_31] : memref<224x1024xf32, #tpu.memory_space<vmem>>, vector<224x1024xf32>
    %69 = arith.mulf %67, %68 : vector<224x1024xf32>
    %c0_32 = arith.constant 0 : index
    %c0_33 = arith.constant 0 : index
    %70 = vector.load %arg8[%c0_32, %c0_33] : memref<1024x21xf32, #tpu.memory_space<vmem>>, vector<1024x21xf32>
    %cst_34 = arith.constant dense<0.000000e+00> : vector<224x21xf32>
    %71 = tpu.matmul %69, %70, %cst_34 {dimension_numbers = #tpu.dot_dimension_numbers<[1], [0], [0], [1], [0, 0, 1, 1], [], []>} : vector<224x1024xf32>, vector<1024x21xf32>, vector<224x21xf32> -> vector<224x21xf32>
    %c0_35 = arith.constant 0 : index
    %c0_36 = arith.constant 0 : index
    %72 = vector.load %arg10[%c0_35, %c0_36] : memref<224x21xf32, #tpu.memory_space<vmem>>, vector<224x21xf32>
    tpu.vector_store %arg10[%c0_35, %c0_36], %71 {strides = array<i32>} : memref<224x21xf32, #tpu.memory_space<vmem>>, vector<224x21xf32>,
    return
  }
  func.func @transform_0(%arg0: i32) -> i32 {
    %c0_i32 = arith.constant 0 : i32
    %c0_i32_0 = arith.constant 0 : i32
    return %c0_i32 : i32
  }
  func.func @transform_1(%arg0: i32) -> i32 {
    %c0_i32 = arith.constant 0 : i32
    %c0_i32_0 = arith.constant 0 : i32
    return %c0_i32 : i32
  }
  func.func @transform_2(%arg0: i32) -> (i32, i32) {
    %c0_i32 = arith.constant 0 : i32
    %c0_i32_0 = arith.constant 0 : i32
    return %arg0, %c0_i32 : i32, i32
  }
  func.func @transform_3(%arg0: i32) -> (i32, i32) {
    %c0_i32 = arith.constant 0 : i32
    %c0_i32_0 = arith.constant 0 : i32
    %c0_i32_1 = arith.constant 0 : i32
    return %c0_i32, %c0_i32_0 : i32, i32
  }
  func.func @transform_4(%arg0: i32) -> (i32, i32) {
    %c0_i32 = arith.constant 0 : i32
    %c0_i32_0 = arith.constant 0 : i32
    return %c0_i32, %arg0 : i32, i32
  }
  func.func @transform_5(%arg0: i32) -> (i32, i32) {
    %c0_i32 = arith.constant 0 : i32
    %c0_i32_0 = arith.constant 0 : i32
    %c0_i32_1 = arith.constant 0 : i32
    return %c0_i32, %c0_i32_0 : i32, i32
  }
  func.func @transform_6(%arg0: i32) -> (i32, i32) {
    %c0_i32 = arith.constant 0 : i32
    %c0_i32_0 = arith.constant 0 : i32
    %c0_i32_1 = arith.constant 0 : i32
    return %c0_i32, %c0_i32_0 : i32, i32
  }
  func.func @transform_7(%arg0: i32) -> (i32, i32) {
    %c0_i32 = arith.constant 0 : i32
    %c0_i32_0 = arith.constant 0 : i32
    %c0_i32_1 = arith.constant 0 : i32
    return %c0_i32, %c0_i32_0 : i32, i32
  }
  func.func @transform_9(%arg0: i32) -> (i32, i32) {
    %c0_i32 = arith.constant 0 : i32
    %c0_i32_0 = arith.constant 0 : i32
    return %arg0, %c0_i32 : i32, i32
  }
}

</mosaic_0001>

<llo_original>
// kernel: tpu_custom_call.1
$region0: #{tpu_custom_call.1}
  #allocation0 [shape = 'u32[]', space=smem, size = 0x4, offset = 0x4, fixed_abs, tag = 'smem constant byte address 0x4 - core index']
  #allocation1 [shape = 'u32[72,128]{1,0:T(1,128)}', space=vmem, size = 0x9000, scoped, tag = 'internal scratch']
  #allocation2 [shape = 'f32[32,48]{1,0:T(8,128)}', space=vmem, size = 0x4000, scoped, tag = 'scratch operand']
  #allocation11 [shape = 's32[]', space=sflag, size = 0x4, offset = 0, fixed_abs, tag = 'sflag constant byte address 0x0 - dummy sync flag']
  %s0 = inlined_call_operand.vmem [shape: f32[81], index: 0, kind: input, shape index: {}]
  %s1 = inlined_call_operand.vmem [shape: f32[3], index: 1, kind: input, shape index: {}]
  %s2 = inlined_call_operand.vmem [shape: f32[224,2], index: 2, kind: input, shape index: {}]
  %s3 = inlined_call_operand.vmem [shape: f32[2,32], index: 3, kind: input, shape index: {}]
  %s4 = inlined_call_operand.vmem [shape: f32[2,1024], index: 4, kind: input, shape index: {}]
  %s5 = inlined_call_operand.vmem [shape: f32[48,2], index: 5, kind: input, shape index: {}]
  %s6 = inlined_call_operand.hbm [shape: f32[224,1024], index: 6, kind: input, shape index: {}]
  %s7 = inlined_call_operand.vmem [shape: f32[1024,21], index: 7, kind: input, shape index: {}]
  %s8 = inlined_call_operand.vmem [shape: f32[2,3,16,16], index: 8, kind: input, shape index: {}]
  %s9 = inlined_call_operand.vmem [shape: f32[224,21], index: 9, kind: output, shape index: {}]
  %s10 = sld [smem:[#allocation0]]
  $region79: #{tpu_custom_call.1} parent=0
    _
  %s12 = ssub.s32 1, %s10
  %s13 = scalar_select 0, %s12, %s10
  $region1: #{tpu_custom_call.1} parent=0
    #allocation3 [shape = 'u8[512]{0}', space=smem, size = 0x200, scoped, tag = 'input window, operand 0, single buffered']
    #allocation4 [shape = 's32[1]{0}', space=sflag, size = 0x4, scoped, tag = 'scoped memory for tpu_custom_call.1']
    #allocation5 [shape = 's32[1]{0}', space=sflag, size = 0x4, scoped, tag = 'scoped memory for tpu_custom_call.1']
    #allocation6 [shape = 'u8[512]{0}', space=smem, size = 0x200, scoped, tag = 'input window, operand 1, single buffered']
    #allocation7 [shape = 's32[1]{0}', space=sflag, size = 0x4, scoped, tag = 'scoped memory for tpu_custom_call.1']
    #allocation8 [shape = 'u8[917504]{0}', space=vmem, size = 0xe0000, scoped, tag = 'input window, operand 6, single buffered']
    %14 = vsyncpa [#allocation5], 0
    %15 = vsyncpa [#allocation7], 0
    %16 = vsyncpa [#allocation4], 0
    // Predicated region
    $region2: #{tpu_custom_call.1} parent=1 // pred_check
      _
    $region3: #{tpu_custom_call.1} parent=1 // pred_check_branch
      %18 = sbr.rel (0) target = $region5
    $region4: #{tpu_custom_call.1} parent=1 // pred_region
      %20 = vsyncadd [#allocation5], 0
      %s22 = sshll.u32 %s0, 4
      %s23 = int_to_ptr.vmem [resolvable:$true] %s22
      %25 = dma.vmem_to_smem %s23, 16, [#allocation3], [#allocation5]
    $region5: #{tpu_custom_call.1} parent=1 // pred_fallthru
      _
    // Predicated region
    $region6: #{tpu_custom_call.1} parent=1 // pred_check
      _
    $region7: #{tpu_custom_call.1} parent=1 // pred_check_branch
      %27 = sbr.rel (0) target = $region9
    $region8: #{tpu_custom_call.1} parent=1 // pred_region
      %29 = vsyncadd [#allocation7], 0
      %s31 = sshll.u32 %s1, 4
      %s32 = int_to_ptr.vmem [resolvable:$true] %s31
      %34 = dma.vmem_to_smem %s32, 16, [#allocation6], [#allocation7]
    $region9: #{tpu_custom_call.1} parent=1 // pred_fallthru
      _
    // Predicated region
    $region10: #{tpu_custom_call.1} parent=1 // pred_check
      _
    $region11: #{tpu_custom_call.1} parent=1 // pred_check_branch
      %36 = sbr.rel (0) target = $region13
    $region12: #{tpu_custom_call.1} parent=1 // pred_region
      _
    $region13: #{tpu_custom_call.1} parent=1 // pred_fallthru
      _
    // Predicated region
    $region14: #{tpu_custom_call.1} parent=1 // pred_check
      _
    $region15: #{tpu_custom_call.1} parent=1 // pred_check_branch
      %38 = sbr.rel (0) target = $region17
    $region16: #{tpu_custom_call.1} parent=1 // pred_region
      _
    $region17: #{tpu_custom_call.1} parent=1 // pred_fallthru
      _
    // Predicated region
    $region18: #{tpu_custom_call.1} parent=1 // pred_check
      _
    $region19: #{tpu_custom_call.1} parent=1 // pred_check_branch
      %40 = sbr.rel (0) target = $region21
    $region20: #{tpu_custom_call.1} parent=1 // pred_region
      _
    $region21: #{tpu_custom_call.1} parent=1 // pred_fallthru
      _
    // Predicated region
    $region22: #{tpu_custom_call.1} parent=1 // pred_check
      _
    $region23: #{tpu_custom_call.1} parent=1 // pred_check_branch
      %42 = sbr.rel (0) target = $region25
    $region24: #{tpu_custom_call.1} parent=1 // pred_region
      _
    $region25: #{tpu_custom_call.1} parent=1 // pred_fallthru
      _
    // Predicated region
    $region26: #{tpu_custom_call.1} parent=1 // pred_check
      _
    $region27: #{tpu_custom_call.1} parent=1 // pred_check_branch
      %44 = sbr.rel (0) target = $region29
    $region28: #{tpu_custom_call.1} parent=1 // pred_region
      %46 = vsyncadd [#allocation4], 0
      %s47 = sshll.u32 %s6, 4
      %s48 = int_to_ptr.hbm [resolvable:$true] %s47
      %s49 = sshll.u32 [#allocation8], 4
      %s50 = int_to_ptr.vmem [resolvable:$true] %s49
      %55 = dma.hbm_to_vmem [thread:$0]  %s48, 28672, %s50, [#allocation4], 1024, 1024, 64
    $region29: #{tpu_custom_call.1} parent=1 // pred_fallthru
      _
    // Predicated region
    $region30: #{tpu_custom_call.1} parent=1 // pred_check
      _
    $region31: #{tpu_custom_call.1} parent=1 // pred_check_branch
      %57 = sbr.rel (0) target = $region33
    $region32: #{tpu_custom_call.1} parent=1 // pred_region
      _
    $region33: #{tpu_custom_call.1} parent=1 // pred_fallthru
      _
    // Predicated region
    $region34: #{tpu_custom_call.1} parent=1 // pred_check
      _
    $region35: #{tpu_custom_call.1} parent=1 // pred_check_branch
      %59 = sbr.rel (0) target = $region37
    $region36: #{tpu_custom_call.1} parent=1 // pred_region
      %61 = dma.done [#allocation5], 16
    $region37: #{tpu_custom_call.1} parent=1 // pred_fallthru
      _
    // Predicated region
    $region38: #{tpu_custom_call.1} parent=1 // pred_check
      _
    $region39: #{tpu_custom_call.1} parent=1 // pred_check_branch
      %63 = sbr.rel (0) target = $region41
    $region40: #{tpu_custom_call.1} parent=1 // pred_region
      %65 = dma.done [#allocation7], 16
    $region41: #{tpu_custom_call.1} parent=1 // pred_fallthru
      _
    // Predicated region
    $region42: #{tpu_custom_call.1} parent=1 // pred_check
      _
    $region43: #{tpu_custom_call.1} parent=1 // pred_check_branch
      %67 = sbr.rel (0) target = $region45
    $region44: #{tpu_custom_call.1} parent=1 // pred_region
      %69 = dma.done [#allocation4], 28672
    $region45: #{tpu_custom_call.1} parent=1 // pred_fallthru
      _
    %70 = sfence
    %p71 = scmp.eq.s32.totalorder 0, 0
    // Predicated region
    $region46: #{tpu_custom_call.1} parent=1 // pred_check
      %p72 = pneg %p71
    $region47: #{tpu_custom_call.1} parent=1 // pred_check_branch
      %74 = sbr.rel (%p72) target = $region49
    $region48: #{tpu_custom_call.1} parent=1 // pred_region
      $region50: #{tpu_custom_call.1} parent=48
        #allocation9 [shape = 'u8[49152]{0}', space=vmem, size = 0xc000, scoped, tag = 'scoped memory for tpu_custom_call.1']
        $region51: #{tpu_custom_call.1} parent=50
          #allocation10 [shape = 's32[1]{0}', space=sflag, size = 0x4, scoped, tag = 'scoped memory for tpu_custom_call.1']
          // Predicated region
          $region52: #{tpu_custom_call.1} parent=51 // pred_check
            _
          $region53: #{tpu_custom_call.1} parent=51 // pred_check_branch
            %76 = sbr.rel (0) target = $region55
          $region54: #{tpu_custom_call.1} parent=51 // pred_region
            loop: start=0, step=1, limit=1
            $region56: #{tpu_custom_call.1} parent=54 // loop_pre_header
              _
            $region57: #{tpu_custom_call.1} parent=54 // loop_header
              %s78 = sphi 0, %s82
              %p79 = scmp.ge.s32.totalorder %s78, 1
              %s83 = sphi %s8, %s8
              %s84 = sphi [#allocation9], [#allocation9]
            $region58: #{tpu_custom_call.1} parent=54 // loop_header_branch
              %81 = sbr.rel (%p79) target = $region62
            $region59: #{tpu_custom_call.1} parent=54 // loop_body
              %v85 = vld [vmem:[%s83] sm:$0xff]
              %86 = vst [vmem:[%s84] sm:$0xff] %v85
              %v87 = vld [vmem:[%s83 + $0x8] sm:$0xff]
              %88 = vst [vmem:[%s84 + $0x8] sm:$0xff] %v87
              %v89 = vld [vmem:[%s83 + $0x10] sm:$0xff]
              %90 = vst [vmem:[%s84 + $0x10] sm:$0xff] %v89
              %v91 = vld [vmem:[%s83 + $0x18] sm:$0xff]
              %92 = vst [vmem:[%s84 + $0x18] sm:$0xff] %v91
              %v93 = vld [vmem:[%s83 + $0x20] sm:$0xff]
              %94 = vst [vmem:[%s84 + $0x20] sm:$0xff] %v93
              %v95 = vld [vmem:[%s83 + $0x28] sm:$0xff]
              %96 = vst [vmem:[%s84 + $0x28] sm:$0xff] %v95
              %v97 = vld [vmem:[%s83 + $0x30] sm:$0xff]
              %98 = vst [vmem:[%s84 + $0x30] sm:$0xff] %v97
              %v99 = vld [vmem:[%s83 + $0x38] sm:$0xff]
              %100 = vst [vmem:[%s84 + $0x38] sm:$0xff] %v99
              %v101 = vld [vmem:[%s83 + $0x40] sm:$0xff]
              %102 = vst [vmem:[%s84 + $0x40] sm:$0xff] %v101
              %v103 = vld [vmem:[%s83 + $0x48] sm:$0xff]
              %104 = vst [vmem:[%s84 + $0x48] sm:$0xff] %v103
              %v105 = vld [vmem:[%s83 + $0x50] sm:$0xff]
              %106 = vst [vmem:[%s84 + $0x50] sm:$0xff] %v105
              %v107 = vld [vmem:[%s83 + $0x58] sm:$0xff]
              %108 = vst [vmem:[%s84 + $0x58] sm:$0xff] %v107
            $region60: #{tpu_custom_call.1} parent=54 // loop_footer
              %s82 = sadd.s32 1, %s78
            $region61: #{tpu_custom_call.1} parent=54 // loop_footer_branch
              %77 = sbr.rel target = $region57
            $region62: #{tpu_custom_call.1} parent=54 // loop_exit
              _
          $region55: #{tpu_custom_call.1} parent=51 // pred_fallthru
            _
          // Predicated region
          $region63: #{tpu_custom_call.1} parent=51 // pred_check
            _
          $region64: #{tpu_custom_call.1} parent=51 // pred_check_branch
            %110 = sbr.rel target = $region66
          $region65: #{tpu_custom_call.1} parent=51 // pred_region
            _
          $region66: #{tpu_custom_call.1} parent=51 // pred_fallthru
            _
          // Predicated region
          $region67: #{tpu_custom_call.1} parent=51 // pred_check
            _
          $region68: #{tpu_custom_call.1} parent=51 // pred_check_branch
            %113 = sbr.rel (0) target = $region70
          $region69: #{tpu_custom_call.1} parent=51 // pred_region
            %114 = vsyncadd [#allocation10], 1536
          $region70: #{tpu_custom_call.1} parent=51 // pred_fallthru
            _
          %s115 = smul.u32 2, 3
          %s116 = smul.u32 %s115, 16
          %s117 = smul.u32 %s116, 1
          %s118 = sshll.u32 %s117, 4
          %119 = dma.done [#allocation10], %s118
        %s120 = sld [smem:[#allocation6]]
        %v121 = vstv %s120
        %s122 = sld [smem:[#allocation6 + $0x1]]
        %v123 = vstv %s122
        %s124 = sld [smem:[#allocation6 + $0x2]]
        %v125 = vstv %s124
        %v126 = vld [vmem:[#allocation9] sm:$0xff]
        %v127 = vld [vmem:[#allocation9 + $0x8] sm:$0xff]
        %vm130 = vcmask 1040384
        %v131 = vrot.slane %v126, 7
        %v132 = vrot.slane %v127, 7
        %v133 = vsel %vm130, %v131, %v132
        %v136 = vsel %vm130, 0.0, %v131
        %vm137 = vcmask 1046528
        %v138 = vrot.slane %v126, 1
        %v139 = vrot.slane %v127, 1
        %v140 = vsel %vm137, %v138, %v139
        %v143 = vsel %vm137, %v139, 0.0
        %145 = vrot.lane.b32.xlu0 %v136, 1
        %v146 = vpop.permute.xlu0 %145
        %147 = vrot.lane.b32.xlu0 %v133, 1
        %v148 = vpop.permute.xlu0 %147
        %vm151 = vcmask 7168
        %v152 = vsel %vm151, 0.0, %v146
        %v153 = vsel %vm151, 0.0, %v148
        %154 = vrot.lane.b32.xlu0 %v136, 127
        %v155 = vpop.permute.xlu0 %154
        %156 = vrot.lane.b32.xlu0 %v133, 127
        %v157 = vpop.permute.xlu0 %156
        %vm160 = vcmask 121856
        %v161 = vsel %vm160, %v155, 0.0
        %v162 = vsel %vm160, %v157, 0.0
        %s163 = sld [smem:[#allocation3]]
        %v164 = vstv %s163
        %v165 = vmul.f32 %v152, %v164
        %v166 = vmul.f32 %v153, %v164
        %v167 = vadd.f32 %v121, %v165
        %v168 = vadd.f32 %v121, %v166
        %s169 = sld [smem:[#allocation3 + $0x1b]]
        %v170 = vstv %s169
        %v171 = vmul.f32 %v152, %v170
        %v172 = vmul.f32 %v153, %v170
        %v173 = vadd.f32 %v123, %v171
        %v174 = vadd.f32 %v123, %v172
        %s175 = sld [smem:[#allocation3 + $0x36]]
        %v176 = vstv %s175
        %v177 = vmul.f32 %v152, %v176
        %v178 = vmul.f32 %v153, %v176
        %v179 = vadd.f32 %v125, %v177
        %v180 = vadd.f32 %v125, %v178
        %s181 = sld [smem:[#allocation3 + $0x1]]
        %v182 = vstv %s181
        %v183 = vmul.f32 %v136, %v182
        %v184 = vmul.f32 %v133, %v182
        %v185 = vadd.f32 %v167, %v183
        %v186 = vadd.f32 %v168, %v184
        %s187 = sld [smem:[#allocation3 + $0x1c]]
        %v188 = vstv %s187
        %v189 = vmul.f32 %v136, %v188
        %v190 = vmul.f32 %v133, %v188
        %v191 = vadd.f32 %v173, %v189
        %v192 = vadd.f32 %v174, %v190
        %s193 = sld [smem:[#allocation3 + $0x37]]
        %v194 = vstv %s193
        %v195 = vmul.f32 %v136, %v194
        %v196 = vmul.f32 %v133, %v194
        %v197 = vadd.f32 %v179, %v195
        %v198 = vadd.f32 %v180, %v196
        %s199 = sld [smem:[#allocation3 + $0x2]]
        %v200 = vstv %s199
        %v201 = vmul.f32 %v161, %v200
        %v202 = vmul.f32 %v162, %v200
        %v203 = vadd.f32 %v185, %v201
        %v204 = vadd.f32 %v186, %v202
        %s205 = sld [smem:[#allocation3 + $0x1d]]
        %v206 = vstv %s205
        %v207 = vmul.f32 %v161, %v206
        %v208 = vmul.f32 %v162, %v206
        %v209 = vadd.f32 %v191, %v207
        %v210 = vadd.f32 %v192, %v208
        %s211 = sld [smem:[#allocation3 + $0x38]]
        %v212 = vstv %s211
        %v213 = vmul.f32 %v161, %v212
        %v214 = vmul.f32 %v162, %v212
        %v215 = vadd.f32 %v197, %v213
        %v216 = vadd.f32 %v198, %v214
        %217 = vrot.lane.b32.xlu0 %v126, 1
        %v218 = vpop.permute.xlu0 %217
        %219 = vrot.lane.b32.xlu0 %v127, 1
        %v220 = vpop.permute.xlu0 %219
        %v223 = vsel %vm151, 0.0, %v218
        %v224 = vsel %vm151, 0.0, %v220
        %225 = vrot.lane.b32.xlu0 %v126, 127
        %v226 = vpop.permute.xlu0 %225
        %227 = vrot.lane.b32.xlu0 %v127, 127
        %v228 = vpop.permute.xlu0 %227
        %v231 = vsel %vm160, %v226, 0.0
        %v232 = vsel %vm160, %v228, 0.0
        %s233 = sld [smem:[#allocation3 + $0x3]]
        %v234 = vstv %s233
        %v235 = vmul.f32 %v223, %v234
        %v236 = vmul.f32 %v224, %v234
        %v237 = vadd.f32 %v203, %v235
        %v238 = vadd.f32 %v204, %v236
        %s239 = sld [smem:[#allocation3 + $0x1e]]
        %v240 = vstv %s239
        %v241 = vmul.f32 %v223, %v240
        %v242 = vmul.f32 %v224, %v240
        %v243 = vadd.f32 %v209, %v241
        %v244 = vadd.f32 %v210, %v242
        %s245 = sld [smem:[#allocation3 + $0x39]]
        %v246 = vstv %s245
        %v247 = vmul.f32 %v223, %v246
        %v248 = vmul.f32 %v224, %v246
        %v249 = vadd.f32 %v215, %v247
        %v250 = vadd.f32 %v216, %v248
        %s251 = sld [smem:[#allocation3 + $0x4]]
        %v252 = vstv %s251
        %v253 = vmul.f32 %v126, %v252
        %v254 = vmul.f32 %v127, %v252
        %v255 = vadd.f32 %v237, %v253
        %v256 = vadd.f32 %v238, %v254
        %s257 = sld [smem:[#allocation3 + $0x1f]]
        %v258 = vstv %s257
        %v259 = vmul.f32 %v126, %v258
        %v260 = vmul.f32 %v127, %v258
        %v261 = vadd.f32 %v243, %v259
        %v262 = vadd.f32 %v244, %v260
        %s263 = sld [smem:[#allocation3 + $0x3a]]
        %v264 = vstv %s263
        %v265 = vmul.f32 %v126, %v264
        %v266 = vmul.f32 %v127, %v264
        %v267 = vadd.f32 %v249, %v265
        %v268 = vadd.f32 %v250, %v266
        %s269 = sld [smem:[#allocation3 + $0x5]]
        %v270 = vstv %s269
        %v271 = vmul.f32 %v231, %v270
        %v272 = vmul.f32 %v232, %v270
        %v273 = vadd.f32 %v255, %v271
        %v274 = vadd.f32 %v256, %v272
        %s275 = sld [smem:[#allocation3 + $0x20]]
        %v276 = vstv %s275
        %v277 = vmul.f32 %v231, %v276
        %v278 = vmul.f32 %v232, %v276
        %v279 = vadd.f32 %v261, %v277
        %v280 = vadd.f32 %v262, %v278
        %s281 = sld [smem:[#allocation3 + $0x3b]]
        %v282 = vstv %s281
        %v283 = vmul.f32 %v231, %v282
        %v284 = vmul.f32 %v232, %v282
        %v285 = vadd.f32 %v267, %v283
        %v286 = vadd.f32 %v268, %v284
        %288 = vrot.lane.b32.xlu0 %v140, 1
        %v289 = vpop.permute.xlu0 %288
        %290 = vrot.lane.b32.xlu0 %v143, 1
        %v291 = vpop.permute.xlu0 %290
        %v294 = vsel %vm151, 0.0, %v289
        %v295 = vsel %vm151, 0.0, %v291
        %296 = vrot.lane.b32.xlu0 %v140, 127
        %v297 = vpop.permute.xlu0 %296
        %298 = vrot.lane.b32.xlu0 %v143, 127
        %v299 = vpop.permute.xlu0 %298
        %v302 = vsel %vm160, %v297, 0.0
        %v303 = vsel %vm160, %v299, 0.0
        %s304 = sld [smem:[#allocation3 + $0x6]]
        %v305 = vstv %s304
        %v306 = vmul.f32 %v294, %v305
        %v307 = vmul.f32 %v295, %v305
        %v308 = vadd.f32 %v273, %v306
        %v309 = vadd.f32 %v274, %v307
        %s310 = sld [smem:[#allocation3 + $0x21]]
        %v311 = vstv %s310
        %v312 = vmul.f32 %v294, %v311
        %v313 = vmul.f32 %v295, %v311
        %v314 = vadd.f32 %v279, %v312
        %v315 = vadd.f32 %v280, %v313
        %s316 = sld [smem:[#allocation3 + $0x3c]]
        %v317 = vstv %s316
        %v318 = vmul.f32 %v294, %v317
        %v319 = vmul.f32 %v295, %v317
        %v320 = vadd.f32 %v285, %v318
        %v321 = vadd.f32 %v286, %v319
        %s322 = sld [smem:[#allocation3 + $0x7]]
        %v323 = vstv %s322
        %v324 = vmul.f32 %v140, %v323
        %v325 = vmul.f32 %v143, %v323
        %v326 = vadd.f32 %v308, %v324
        %v327 = vadd.f32 %v309, %v325
        %s328 = sld [smem:[#allocation3 + $0x22]]
        %v329 = vstv %s328
        %v330 = vmul.f32 %v140, %v329
        %v331 = vmul.f32 %v143, %v329
        %v332 = vadd.f32 %v314, %v330
        %v333 = vadd.f32 %v315, %v331
        %s334 = sld [smem:[#allocation3 + $0x3d]]
        %v335 = vstv %s334
        %v336 = vmul.f32 %v140, %v335
        %v337 = vmul.f32 %v143, %v335
        %v338 = vadd.f32 %v320, %v336
        %v339 = vadd.f32 %v321, %v337
        %s340 = sld [smem:[#allocation3 + $0x8]]
        %v341 = vstv %s340
        %v342 = vmul.f32 %v302, %v341
        %v343 = vmul.f32 %v303, %v341
        %v344 = vadd.f32 %v326, %v342
        %v345 = vadd.f32 %v327, %v343
        %s346 = sld [smem:[#allocation3 + $0x23]]
        %v347 = vstv %s346
        %v348 = vmul.f32 %v302, %v347
        %v349 = vmul.f32 %v303, %v347
        %v350 = vadd.f32 %v332, %v348
        %v351 = vadd.f32 %v333, %v349
        %s352 = sld [smem:[#allocation3 + $0x3e]]
        %v353 = vstv %s352
        %v354 = vmul.f32 %v302, %v353
        %v355 = vmul.f32 %v303, %v353
        %v356 = vadd.f32 %v338, %v354
        %v357 = vadd.f32 %v339, %v355
        %s358 = scalar_lea.vmem [#allocation9], 16
        %v359 = vld [vmem:[%s358] sm:$0xff]
        %v360 = vld [vmem:[%s358 + $0x8] sm:$0xff]
        %v363 = vrot.slane %v359, 7
        %v364 = vrot.slane %v360, 7
        %v365 = vsel %vm130, %v363, %v364
        %v368 = vsel %vm130, 0.0, %v363
        %v369 = vrot.slane %v359, 1
        %v370 = vrot.slane %v360, 1
        %v371 = vsel %vm137, %v369, %v370
        %v374 = vsel %vm137, %v370, 0.0
        %376 = vrot.lane.b32.xlu0 %v368, 1
        %v377 = vpop.permute.xlu0 %376
        %378 = vrot.lane.b32.xlu0 %v365, 1
        %v379 = vpop.permute.xlu0 %378
        %v382 = vsel %vm151, 0.0, %v377
        %v383 = vsel %vm151, 0.0, %v379
        %384 = vrot.lane.b32.xlu0 %v368, 127
        %v385 = vpop.permute.xlu0 %384
        %386 = vrot.lane.b32.xlu0 %v365, 127
        %v387 = vpop.permute.xlu0 %386
        %v390 = vsel %vm160, %v385, 0.0
        %v391 = vsel %vm160, %v387, 0.0
        %s392 = sld [smem:[#allocation3 + $0x9]]
        %v393 = vstv %s392
        %v394 = vmul.f32 %v382, %v393
        %v395 = vmul.f32 %v383, %v393
        %v396 = vadd.f32 %v344, %v394
        %v397 = vadd.f32 %v345, %v395
        %s398 = sld [smem:[#allocation3 + $0x24]]
        %v399 = vstv %s398
        %v400 = vmul.f32 %v382, %v399
        %v401 = vmul.f32 %v383, %v399
        %v402 = vadd.f32 %v350, %v400
        %v403 = vadd.f32 %v351, %v401
        %s404 = sld [smem:[#allocation3 + $0x3f]]
        %v405 = vstv %s404
        %v406 = vmul.f32 %v382, %v405
        %v407 = vmul.f32 %v383, %v405
        %v408 = vadd.f32 %v356, %v406
        %v409 = vadd.f32 %v357, %v407
        %s410 = sld [smem:[#allocation3 + $0xa]]
        %v411 = vstv %s410
        %v412 = vmul.f32 %v368, %v411
        %v413 = vmul.f32 %v365, %v411
        %v414 = vadd.f32 %v396, %v412
        %v415 = vadd.f32 %v397, %v413
        %s416 = sld [smem:[#allocation3 + $0x25]]
        %v417 = vstv %s416
        %v418 = vmul.f32 %v368, %v417
        %v419 = vmul.f32 %v365, %v417
        %v420 = vadd.f32 %v402, %v418
        %v421 = vadd.f32 %v403, %v419
        %s422 = sld [smem:[#allocation3 + $0x40]]
        %v423 = vstv %s422
        %v424 = vmul.f32 %v368, %v423
        %v425 = vmul.f32 %v365, %v423
        %v426 = vadd.f32 %v408, %v424
        %v427 = vadd.f32 %v409, %v425
        %s428 = sld [smem:[#allocation3 + $0xb]]
        %v429 = vstv %s428
        %v430 = vmul.f32 %v390, %v429
        %v431 = vmul.f32 %v391, %v429
        %v432 = vadd.f32 %v414, %v430
        %v433 = vadd.f32 %v415, %v431
        %s434 = sld [smem:[#allocation3 + $0x26]]
        %v435 = vstv %s434
        %v436 = vmul.f32 %v390, %v435
        %v437 = vmul.f32 %v391, %v435
        %v438 = vadd.f32 %v420, %v436
        %v439 = vadd.f32 %v421, %v437
        %s440 = sld [smem:[#allocation3 + $0x41]]
        %v441 = vstv %s440
        %v442 = vmul.f32 %v390, %v441
        %v443 = vmul.f32 %v391, %v441
        %v444 = vadd.f32 %v426, %v442
        %v445 = vadd.f32 %v427, %v443
        %446 = vrot.lane.b32.xlu0 %v359, 1
        %v447 = vpop.permute.xlu0 %446
        %448 = vrot.lane.b32.xlu0 %v360, 1
        %v449 = vpop.permute.xlu0 %448
        %v452 = vsel %vm151, 0.0, %v447
        %v453 = vsel %vm151, 0.0, %v449
        %454 = vrot.lane.b32.xlu0 %v359, 127
        %v455 = vpop.permute.xlu0 %454
        %456 = vrot.lane.b32.xlu0 %v360, 127
        %v457 = vpop.permute.xlu0 %456
        %v460 = vsel %vm160, %v455, 0.0
        %v461 = vsel %vm160, %v457, 0.0
        %s462 = sld [smem:[#allocation3 + $0xc]]
        %v463 = vstv %s462
        %v464 = vmul.f32 %v452, %v463
        %v465 = vmul.f32 %v453, %v463
        %v466 = vadd.f32 %v432, %v464
        %v467 = vadd.f32 %v433, %v465
        %s468 = sld [smem:[#allocation3 + $0x27]]
        %v469 = vstv %s468
        %v470 = vmul.f32 %v452, %v469
        %v471 = vmul.f32 %v453, %v469
        %v472 = vadd.f32 %v438, %v470
        %v473 = vadd.f32 %v439, %v471
        %s474 = sld [smem:[#allocation3 + $0x42]]
        %v475 = vstv %s474
        %v476 = vmul.f32 %v452, %v475
        %v477 = vmul.f32 %v453, %v475
        %v478 = vadd.f32 %v444, %v476
        %v479 = vadd.f32 %v445, %v477
        %s480 = sld [smem:[#allocation3 + $0xd]]
        %v481 = vstv %s480
        %v482 = vmul.f32 %v359, %v481
        %v483 = vmul.f32 %v360, %v481
        %v484 = vadd.f32 %v466, %v482
        %v485 = vadd.f32 %v467, %v483
        %s486 = sld [smem:[#allocation3 + $0x28]]
        %v487 = vstv %s486
        %v488 = vmul.f32 %v359, %v487
        %v489 = vmul.f32 %v360, %v487
        %v490 = vadd.f32 %v472, %v488
        %v491 = vadd.f32 %v473, %v489
        %s492 = sld [smem:[#allocation3 + $0x43]]
        %v493 = vstv %s492
        %v494 = vmul.f32 %v359, %v493
        %v495 = vmul.f32 %v360, %v493
        %v496 = vadd.f32 %v478, %v494
        %v497 = vadd.f32 %v479, %v495
        %s498 = sld [smem:[#allocation3 + $0xe]]
        %v499 = vstv %s498
        %v500 = vmul.f32 %v460, %v499
        %v501 = vmul.f32 %v461, %v499
        %v502 = vadd.f32 %v484, %v500
        %v503 = vadd.f32 %v485, %v501
        %s504 = sld [smem:[#allocation3 + $0x29]]
        %v505 = vstv %s504
        %v506 = vmul.f32 %v460, %v505
        %v507 = vmul.f32 %v461, %v505
        %v508 = vadd.f32 %v490, %v506
        %v509 = vadd.f32 %v491, %v507
        %s510 = sld [smem:[#allocation3 + $0x44]]
        %v511 = vstv %s510
        %v512 = vmul.f32 %v460, %v511
        %v513 = vmul.f32 %v461, %v511
        %v514 = vadd.f32 %v496, %v512
        %v515 = vadd.f32 %v497, %v513
        %517 = vrot.lane.b32.xlu0 %v371, 1
        %v518 = vpop.permute.xlu0 %517
        %519 = vrot.lane.b32.xlu0 %v374, 1
        %v520 = vpop.permute.xlu0 %519
        %v523 = vsel %vm151, 0.0, %v518
        %v524 = vsel %vm151, 0.0, %v520
        %525 = vrot.lane.b32.xlu0 %v371, 127
        %v526 = vpop.permute.xlu0 %525
        %527 = vrot.lane.b32.xlu0 %v374, 127
        %v528 = vpop.permute.xlu0 %527
        %v531 = vsel %vm160, %v526, 0.0
        %v532 = vsel %vm160, %v528, 0.0
        %s533 = sld [smem:[#allocation3 + $0xf]]
        %v534 = vstv %s533
        %v535 = vmul.f32 %v523, %v534
        %v536 = vmul.f32 %v524, %v534
        %v537 = vadd.f32 %v502, %v535
        %v538 = vadd.f32 %v503, %v536
        %s539 = sld [smem:[#allocation3 + $0x2a]]
        %v540 = vstv %s539
        %v541 = vmul.f32 %v523, %v540
        %v542 = vmul.f32 %v524, %v540
        %v543 = vadd.f32 %v508, %v541
        %v544 = vadd.f32 %v509, %v542
        %s545 = sld [smem:[#allocation3 + $0x45]]
        %v546 = vstv %s545
        %v547 = vmul.f32 %v523, %v546
        %v548 = vmul.f32 %v524, %v546
        %v549 = vadd.f32 %v514, %v547
        %v550 = vadd.f32 %v515, %v548
        %s551 = sld [smem:[#allocation3 + $0x10]]
        %v552 = vstv %s551
        %v553 = vmul.f32 %v371, %v552
        %v554 = vmul.f32 %v374, %v552
        %v555 = vadd.f32 %v537, %v553
        %v556 = vadd.f32 %v538, %v554
        %s557 = sld [smem:[#allocation3 + $0x2b]]
        %v558 = vstv %s557
        %v559 = vmul.f32 %v371, %v558
        %v560 = vmul.f32 %v374, %v558
        %v561 = vadd.f32 %v543, %v559
        %v562 = vadd.f32 %v544, %v560
        %s563 = sld [smem:[#allocation3 + $0x46]]
        %v564 = vstv %s563
        %v565 = vmul.f32 %v371, %v564
        %v566 = vmul.f32 %v374, %v564
        %v567 = vadd.f32 %v549, %v565
        %v568 = vadd.f32 %v550, %v566
        %s569 = sld [smem:[#allocation3 + $0x11]]
        %v570 = vstv %s569
        %v571 = vmul.f32 %v531, %v570
        %v572 = vmul.f32 %v532, %v570
        %v573 = vadd.f32 %v555, %v571
        %v574 = vadd.f32 %v556, %v572
        %s575 = sld [smem:[#allocation3 + $0x2c]]
        %v576 = vstv %s575
        %v577 = vmul.f32 %v531, %v576
        %v578 = vmul.f32 %v532, %v576
        %v579 = vadd.f32 %v561, %v577
        %v580 = vadd.f32 %v562, %v578
        %s581 = sld [smem:[#allocation3 + $0x47]]
        %v582 = vstv %s581
        %v583 = vmul.f32 %v531, %v582
        %v584 = vmul.f32 %v532, %v582
        %v585 = vadd.f32 %v567, %v583
        %v586 = vadd.f32 %v568, %v584
        %s587 = scalar_lea.vmem [#allocation9], 32
        %v588 = vld [vmem:[%s587] sm:$0xff]
        %v589 = vld [vmem:[%s587 + $0x8] sm:$0xff]
        %v592 = vrot.slane %v588, 7
        %v593 = vrot.slane %v589, 7
        %v594 = vsel %vm130, %v592, %v593
        %v597 = vsel %vm130, 0.0, %v592
        %v598 = vrot.slane %v588, 1
        %v599 = vrot.slane %v589, 1
        %v600 = vsel %vm137, %v598, %v599
        %v603 = vsel %vm137, %v599, 0.0
        %605 = vrot.lane.b32.xlu0 %v597, 1
        %v606 = vpop.permute.xlu0 %605
        %607 = vrot.lane.b32.xlu0 %v594, 1
        %v608 = vpop.permute.xlu0 %607
        %v611 = vsel %vm151, 0.0, %v606
        %v612 = vsel %vm151, 0.0, %v608
        %613 = vrot.lane.b32.xlu0 %v597, 127
        %v614 = vpop.permute.xlu0 %613
        %615 = vrot.lane.b32.xlu0 %v594, 127
        %v616 = vpop.permute.xlu0 %615
        %v619 = vsel %vm160, %v614, 0.0
        %v620 = vsel %vm160, %v616, 0.0
        %s621 = sld [smem:[#allocation3 + $0x12]]
        %v622 = vstv %s621
        %v623 = vmul.f32 %v611, %v622
        %v624 = vmul.f32 %v612, %v622
        %v625 = vadd.f32 %v573, %v623
        %v626 = vadd.f32 %v574, %v624
        %s627 = sld [smem:[#allocation3 + $0x2d]]
        %v628 = vstv %s627
        %v629 = vmul.f32 %v611, %v628
        %v630 = vmul.f32 %v612, %v628
        %v631 = vadd.f32 %v579, %v629
        %v632 = vadd.f32 %v580, %v630
        %s633 = sld [smem:[#allocation3 + $0x48]]
        %v634 = vstv %s633
        %v635 = vmul.f32 %v611, %v634
        %v636 = vmul.f32 %v612, %v634
        %v637 = vadd.f32 %v585, %v635
        %v638 = vadd.f32 %v586, %v636
        %s639 = sld [smem:[#allocation3 + $0x13]]
        %v640 = vstv %s639
        %v641 = vmul.f32 %v597, %v640
        %v642 = vmul.f32 %v594, %v640
        %v643 = vadd.f32 %v625, %v641
        %v644 = vadd.f32 %v626, %v642
        %s645 = sld [smem:[#allocation3 + $0x2e]]
        %v646 = vstv %s645
        %v647 = vmul.f32 %v597, %v646
        %v648 = vmul.f32 %v594, %v646
        %v649 = vadd.f32 %v631, %v647
        %v650 = vadd.f32 %v632, %v648
        %s651 = sld [smem:[#allocation3 + $0x49]]
        %v652 = vstv %s651
        %v653 = vmul.f32 %v597, %v652
        %v654 = vmul.f32 %v594, %v652
        %v655 = vadd.f32 %v637, %v653
        %v656 = vadd.f32 %v638, %v654
        %s657 = sld [smem:[#allocation3 + $0x14]]
        %v658 = vstv %s657
        %v659 = vmul.f32 %v619, %v658
        %v660 = vmul.f32 %v620, %v658
        %v661 = vadd.f32 %v643, %v659
        %v662 = vadd.f32 %v644, %v660
        %s663 = sld [smem:[#allocation3 + $0x2f]]
        %v664 = vstv %s663
        %v665 = vmul.f32 %v619, %v664
        %v666 = vmul.f32 %v620, %v664
        %v667 = vadd.f32 %v649, %v665
        %v668 = vadd.f32 %v650, %v666
        %s669 = sld [smem:[#allocation3 + $0x4a]]
        %v670 = vstv %s669
        %v671 = vmul.f32 %v619, %v670
        %v672 = vmul.f32 %v620, %v670
        %v673 = vadd.f32 %v655, %v671
        %v674 = vadd.f32 %v656, %v672
        %675 = vrot.lane.b32.xlu0 %v588, 1
        %v676 = vpop.permute.xlu0 %675
        %677 = vrot.lane.b32.xlu0 %v589, 1
        %v678 = vpop.permute.xlu0 %677
        %v681 = vsel %vm151, 0.0, %v676
        %v682 = vsel %vm151, 0.0, %v678
        %683 = vrot.lane.b32.xlu0 %v588, 127
        %v684 = vpop.permute.xlu0 %683
        %685 = vrot.lane.b32.xlu0 %v589, 127
        %v686 = vpop.permute.xlu0 %685
        %v689 = vsel %vm160, %v684, 0.0
        %v690 = vsel %vm160, %v686, 0.0
        %s691 = sld [smem:[#allocation3 + $0x15]]
        %v692 = vstv %s691
        %v693 = vmul.f32 %v681, %v692
        %v694 = vmul.f32 %v682, %v692
        %v695 = vadd.f32 %v661, %v693
        %v696 = vadd.f32 %v662, %v694
        %s697 = sld [smem:[#allocation3 + $0x30]]
        %v698 = vstv %s697
        %v699 = vmul.f32 %v681, %v698
        %v700 = vmul.f32 %v682, %v698
        %v701 = vadd.f32 %v667, %v699
        %v702 = vadd.f32 %v668, %v700
        %s703 = sld [smem:[#allocation3 + $0x4b]]
        %v704 = vstv %s703
        %v705 = vmul.f32 %v681, %v704
        %v706 = vmul.f32 %v682, %v704
        %v707 = vadd.f32 %v673, %v705
        %v708 = vadd.f32 %v674, %v706
        %s709 = sld [smem:[#allocation3 + $0x16]]
        %v710 = vstv %s709
        %v711 = vmul.f32 %v588, %v710
        %v712 = vmul.f32 %v589, %v710
        %v713 = vadd.f32 %v695, %v711
        %v714 = vadd.f32 %v696, %v712
        %s715 = sld [smem:[#allocation3 + $0x31]]
        %v716 = vstv %s715
        %v717 = vmul.f32 %v588, %v716
        %v718 = vmul.f32 %v589, %v716
        %v719 = vadd.f32 %v701, %v717
        %v720 = vadd.f32 %v702, %v718
        %s721 = sld [smem:[#allocation3 + $0x4c]]
        %v722 = vstv %s721
        %v723 = vmul.f32 %v588, %v722
        %v724 = vmul.f32 %v589, %v722
        %v725 = vadd.f32 %v707, %v723
        %v726 = vadd.f32 %v708, %v724
        %s727 = sld [smem:[#allocation3 + $0x17]]
        %v728 = vstv %s727
        %v729 = vmul.f32 %v689, %v728
        %v730 = vmul.f32 %v690, %v728
        %v731 = vadd.f32 %v713, %v729
        %v732 = vadd.f32 %v714, %v730
        %s733 = sld [smem:[#allocation3 + $0x32]]
        %v734 = vstv %s733
        %v735 = vmul.f32 %v689, %v734
        %v736 = vmul.f32 %v690, %v734
        %v737 = vadd.f32 %v719, %v735
        %v738 = vadd.f32 %v720, %v736
        %s739 = sld [smem:[#allocation3 + $0x4d]]
        %v740 = vstv %s739
        %v741 = vmul.f32 %v689, %v740
        %v742 = vmul.f32 %v690, %v740
        %v743 = vadd.f32 %v725, %v741
        %v744 = vadd.f32 %v726, %v742
        %746 = vrot.lane.b32.xlu0 %v600, 1
        %v747 = vpop.permute.xlu0 %746
        %748 = vrot.lane.b32.xlu0 %v603, 1
        %v749 = vpop.permute.xlu0 %748
        %v752 = vsel %vm151, 0.0, %v747
        %v753 = vsel %vm151, 0.0, %v749
        %754 = vrot.lane.b32.xlu0 %v600, 127
        %v755 = vpop.permute.xlu0 %754
        %756 = vrot.lane.b32.xlu0 %v603, 127
        %v757 = vpop.permute.xlu0 %756
        %v760 = vsel %vm160, %v755, 0.0
        %v761 = vsel %vm160, %v757, 0.0
        %s762 = sld [smem:[#allocation3 + $0x18]]
        %v763 = vstv %s762
        %v764 = vmul.f32 %v752, %v763
        %v765 = vmul.f32 %v753, %v763
        %v766 = vadd.f32 %v731, %v764
        %v767 = vadd.f32 %v732, %v765
        %s768 = sld [smem:[#allocation3 + $0x33]]
        %v769 = vstv %s768
        %v770 = vmul.f32 %v752, %v769
        %v771 = vmul.f32 %v753, %v769
        %v772 = vadd.f32 %v737, %v770
        %v773 = vadd.f32 %v738, %v771
        %s774 = sld [smem:[#allocation3 + $0x4e]]
        %v775 = vstv %s774
        %v776 = vmul.f32 %v752, %v775
        %v777 = vmul.f32 %v753, %v775
        %v778 = vadd.f32 %v743, %v776
        %v779 = vadd.f32 %v744, %v777
        %s780 = sld [smem:[#allocation3 + $0x19]]
        %v781 = vstv %s780
        %v782 = vmul.f32 %v600, %v781
        %v783 = vmul.f32 %v603, %v781
        %v784 = vadd.f32 %v766, %v782
        %v785 = vadd.f32 %v767, %v783
        %s786 = sld [smem:[#allocation3 + $0x34]]
        %v787 = vstv %s786
        %v788 = vmul.f32 %v600, %v787
        %v789 = vmul.f32 %v603, %v787
        %v790 = vadd.f32 %v772, %v788
        %v791 = vadd.f32 %v773, %v789
        %s792 = sld [smem:[#allocation3 + $0x4f]]
        %v793 = vstv %s792
        %v794 = vmul.f32 %v600, %v793
        %v795 = vmul.f32 %v603, %v793
        %v796 = vadd.f32 %v778, %v794
        %v797 = vadd.f32 %v779, %v795
        %s798 = sld [smem:[#allocation3 + $0x1a]]
        %v799 = vstv %s798
        %v800 = vmul.f32 %v760, %v799
        %v801 = vmul.f32 %v761, %v799
        %v802 = vadd.f32 %v784, %v800
        %v803 = vadd.f32 %v785, %v801
        %s804 = sld [smem:[#allocation3 + $0x35]]
        %v805 = vstv %s804
        %v806 = vmul.f32 %v760, %v805
        %v807 = vmul.f32 %v761, %v805
        %v808 = vadd.f32 %v790, %v806
        %v809 = vadd.f32 %v791, %v807
        %s810 = sld [smem:[#allocation3 + $0x50]]
        %v811 = vstv %s810
        %v812 = vmul.f32 %v760, %v811
        %v813 = vmul.f32 %v761, %v811
        %v814 = vadd.f32 %v796, %v812
        %v815 = vadd.f32 %v797, %v813
        %vm816 = vcmask 130048
        %817 = vst.msk [vmem:[#allocation2] sm:$0xff] %vm816, %v802
        %818 = vst.msk [vmem:[#allocation2 + $0x8] sm:$0xff] %vm816, %v803
        %821 = vrot.lane.b32.xlu0 %v808, 16
        %v822 = vpop.permute.xlu0 %821
        %823 = vrot.lane.b32.xlu0 %v809, 16
        %v824 = vpop.permute.xlu0 %823
        %vm827 = vcmask 261248
        %828 = vst.msk [vmem:[#allocation2] sm:$0xff] %vm827, %v822
        %829 = vst.msk [vmem:[#allocation2 + $0x8] sm:$0xff] %vm827, %v824
        %832 = vrot.lane.b32.xlu0 %v814, 32
        %v833 = vpop.permute.xlu0 %832
        %834 = vrot.lane.b32.xlu0 %v815, 32
        %v835 = vpop.permute.xlu0 %834
        %vm838 = vcmask 392448
        %839 = vst.msk [vmem:[#allocation2] sm:$0xff] %vm838, %v833
        %840 = vst.msk [vmem:[#allocation2 + $0x8] sm:$0xff] %vm838, %v835
        %s841 = sld [smem:[#allocation6]]
        %v842 = vstv %s841
        %s843 = sld [smem:[#allocation6 + $0x1]]
        %v844 = vstv %s843
        %s845 = sld [smem:[#allocation6 + $0x2]]
        %v846 = vstv %s845
        %s847 = scalar_lea.vmem [#allocation9], 48
        %v848 = vld [vmem:[%s847] sm:$0xff]
        %v849 = vld [vmem:[%s847 + $0x8] sm:$0xff]
        %v852 = vrot.slane %v848, 7
        %v853 = vrot.slane %v849, 7
        %v854 = vsel %vm130, %v852, %v853
        %v857 = vsel %vm130, 0.0, %v852
        %v858 = vrot.slane %v848, 1
        %v859 = vrot.slane %v849, 1
        %v860 = vsel %vm137, %v858, %v859
        %v863 = vsel %vm137, %v859, 0.0
        %865 = vrot.lane.b32.xlu0 %v857, 1
        %v866 = vpop.permute.xlu0 %865
        %867 = vrot.lane.b32.xlu0 %v854, 1
        %v868 = vpop.permute.xlu0 %867
        %v871 = vsel %vm151, 0.0, %v866
        %v872 = vsel %vm151, 0.0, %v868
        %873 = vrot.lane.b32.xlu0 %v857, 127
        %v874 = vpop.permute.xlu0 %873
        %875 = vrot.lane.b32.xlu0 %v854, 127
        %v876 = vpop.permute.xlu0 %875
        %v879 = vsel %vm160, %v874, 0.0
        %v880 = vsel %vm160, %v876, 0.0
        %s881 = sld [smem:[#allocation3]]
        %v882 = vstv %s881
        %v883 = vmul.f32 %v871, %v882
        %v884 = vmul.f32 %v872, %v882
        %v885 = vadd.f32 %v842, %v883
        %v886 = vadd.f32 %v842, %v884
        %s887 = sld [smem:[#allocation3 + $0x1b]]
        %v888 = vstv %s887
        %v889 = vmul.f32 %v871, %v888
        %v890 = vmul.f32 %v872, %v888
        %v891 = vadd.f32 %v844, %v889
        %v892 = vadd.f32 %v844, %v890
        %s893 = sld [smem:[#allocation3 + $0x36]]
        %v894 = vstv %s893
        %v895 = vmul.f32 %v871, %v894
        %v896 = vmul.f32 %v872, %v894
        %v897 = vadd.f32 %v846, %v895
        %v898 = vadd.f32 %v846, %v896
        %s899 = sld [smem:[#allocation3 + $0x1]]
        %v900 = vstv %s899
        %v901 = vmul.f32 %v857, %v900
        %v902 = vmul.f32 %v854, %v900
        %v903 = vadd.f32 %v885, %v901
        %v904 = vadd.f32 %v886, %v902
        %s905 = sld [smem:[#allocation3 + $0x1c]]
        %v906 = vstv %s905
        %v907 = vmul.f32 %v857, %v906
        %v908 = vmul.f32 %v854, %v906
        %v909 = vadd.f32 %v891, %v907
        %v910 = vadd.f32 %v892, %v908
        %s911 = sld [smem:[#allocation3 + $0x37]]
        %v912 = vstv %s911
        %v913 = vmul.f32 %v857, %v912
        %v914 = vmul.f32 %v854, %v912
        %v915 = vadd.f32 %v897, %v913
        %v916 = vadd.f32 %v898, %v914
        %s917 = sld [smem:[#allocation3 + $0x2]]
        %v918 = vstv %s917
        %v919 = vmul.f32 %v879, %v918
        %v920 = vmul.f32 %v880, %v918
        %v921 = vadd.f32 %v903, %v919
        %v922 = vadd.f32 %v904, %v920
        %s923 = sld [smem:[#allocation3 + $0x1d]]
        %v924 = vstv %s923
        %v925 = vmul.f32 %v879, %v924
        %v926 = vmul.f32 %v880, %v924
        %v927 = vadd.f32 %v909, %v925
        %v928 = vadd.f32 %v910, %v926
        %s929 = sld [smem:[#allocation3 + $0x38]]
        %v930 = vstv %s929
        %v931 = vmul.f32 %v879, %v930
        %v932 = vmul.f32 %v880, %v930
        %v933 = vadd.f32 %v915, %v931
        %v934 = vadd.f32 %v916, %v932
        %935 = vrot.lane.b32.xlu0 %v848, 1
        %v936 = vpop.permute.xlu0 %935
        %937 = vrot.lane.b32.xlu0 %v849, 1
        %v938 = vpop.permute.xlu0 %937
        %v941 = vsel %vm151, 0.0, %v936
        %v942 = vsel %vm151, 0.0, %v938
        %943 = vrot.lane.b32.xlu0 %v848, 127
        %v944 = vpop.permute.xlu0 %943
        %945 = vrot.lane.b32.xlu0 %v849, 127
        %v946 = vpop.permute.xlu0 %945
        %v949 = vsel %vm160, %v944, 0.0
        %v950 = vsel %vm160, %v946, 0.0
        %s951 = sld [smem:[#allocation3 + $0x3]]
        %v952 = vstv %s951
        %v953 = vmul.f32 %v941, %v952
        %v954 = vmul.f32 %v942, %v952
        %v955 = vadd.f32 %v921, %v953
        %v956 = vadd.f32 %v922, %v954
        %s957 = sld [smem:[#allocation3 + $0x1e]]
        %v958 = vstv %s957
        %v959 = vmul.f32 %v941, %v958
        %v960 = vmul.f32 %v942, %v958
        %v961 = vadd.f32 %v927, %v959
        %v962 = vadd.f32 %v928, %v960
        %s963 = sld [smem:[#allocation3 + $0x39]]
        %v964 = vstv %s963
        %v965 = vmul.f32 %v941, %v964
        %v966 = vmul.f32 %v942, %v964
        %v967 = vadd.f32 %v933, %v965
        %v968 = vadd.f32 %v934, %v966
        %s969 = sld [smem:[#allocation3 + $0x4]]
        %v970 = vstv %s969
        %v971 = vmul.f32 %v848, %v970
        %v972 = vmul.f32 %v849, %v970
        %v973 = vadd.f32 %v955, %v971
        %v974 = vadd.f32 %v956, %v972
        %s975 = sld [smem:[#allocation3 + $0x1f]]
        %v976 = vstv %s975
        %v977 = vmul.f32 %v848, %v976
        %v978 = vmul.f32 %v849, %v976
        %v979 = vadd.f32 %v961, %v977
        %v980 = vadd.f32 %v962, %v978
        %s981 = sld [smem:[#allocation3 + $0x3a]]
        %v982 = vstv %s981
        %v983 = vmul.f32 %v848, %v982
        %v984 = vmul.f32 %v849, %v982
        %v985 = vadd.f32 %v967, %v983
        %v986 = vadd.f32 %v968, %v984
        %s987 = sld [smem:[#allocation3 + $0x5]]
        %v988 = vstv %s987
        %v989 = vmul.f32 %v949, %v988
        %v990 = vmul.f32 %v950, %v988
        %v991 = vadd.f32 %v973, %v989
        %v992 = vadd.f32 %v974, %v990
        %s993 = sld [smem:[#allocation3 + $0x20]]
        %v994 = vstv %s993
        %v995 = vmul.f32 %v949, %v994
        %v996 = vmul.f32 %v950, %v994
        %v997 = vadd.f32 %v979, %v995
        %v998 = vadd.f32 %v980, %v996
        %s999 = sld [smem:[#allocation3 + $0x3b]]
        %v1000 = vstv %s999
        %v1001 = vmul.f32 %v949, %v1000
        %v1002 = vmul.f32 %v950, %v1000
        %v1003 = vadd.f32 %v985, %v1001
        %v1004 = vadd.f32 %v986, %v1002
        %1006 = vrot.lane.b32.xlu0 %v860, 1
        %v1007 = vpop.permute.xlu0 %1006
        %1008 = vrot.lane.b32.xlu0 %v863, 1
        %v1009 = vpop.permute.xlu0 %1008
        %v1012 = vsel %vm151, 0.0, %v1007
        %v1013 = vsel %vm151, 0.0, %v1009
        %1014 = vrot.lane.b32.xlu0 %v860, 127
        %v1015 = vpop.permute.xlu0 %1014
        %1016 = vrot.lane.b32.xlu0 %v863, 127
        %v1017 = vpop.permute.xlu0 %1016
        %v1020 = vsel %vm160, %v1015, 0.0
        %v1021 = vsel %vm160, %v1017, 0.0
        %s1022 = sld [smem:[#allocation3 + $0x6]]
        %v1023 = vstv %s1022
        %v1024 = vmul.f32 %v1012, %v1023
        %v1025 = vmul.f32 %v1013, %v1023
        %v1026 = vadd.f32 %v991, %v1024
        %v1027 = vadd.f32 %v992, %v1025
        %s1028 = sld [smem:[#allocation3 + $0x21]]
        %v1029 = vstv %s1028
        %v1030 = vmul.f32 %v1012, %v1029
        %v1031 = vmul.f32 %v1013, %v1029
        %v1032 = vadd.f32 %v997, %v1030
        %v1033 = vadd.f32 %v998, %v1031
        %s1034 = sld [smem:[#allocation3 + $0x3c]]
        %v1035 = vstv %s1034
        %v1036 = vmul.f32 %v1012, %v1035
        %v1037 = vmul.f32 %v1013, %v1035
        %v1038 = vadd.f32 %v1003, %v1036
        %v1039 = vadd.f32 %v1004, %v1037
        %s1040 = sld [smem:[#allocation3 + $0x7]]
        %v1041 = vstv %s1040
        %v1042 = vmul.f32 %v860, %v1041
        %v1043 = vmul.f32 %v863, %v1041
        %v1044 = vadd.f32 %v1026, %v1042
        %v1045 = vadd.f32 %v1027, %v1043
        %s1046 = sld [smem:[#allocation3 + $0x22]]
        %v1047 = vstv %s1046
        %v1048 = vmul.f32 %v860, %v1047
        %v1049 = vmul.f32 %v863, %v1047
        %v1050 = vadd.f32 %v1032, %v1048
        %v1051 = vadd.f32 %v1033, %v1049
        %s1052 = sld [smem:[#allocation3 + $0x3d]]
        %v1053 = vstv %s1052
        %v1054 = vmul.f32 %v860, %v1053
        %v1055 = vmul.f32 %v863, %v1053
        %v1056 = vadd.f32 %v1038, %v1054
        %v1057 = vadd.f32 %v1039, %v1055
        %s1058 = sld [smem:[#allocation3 + $0x8]]
        %v1059 = vstv %s1058
        %v1060 = vmul.f32 %v1020, %v1059
        %v1061 = vmul.f32 %v1021, %v1059
        %v1062 = vadd.f32 %v1044, %v1060
        %v1063 = vadd.f32 %v1045, %v1061
        %s1064 = sld [smem:[#allocation3 + $0x23]]
        %v1065 = vstv %s1064
        %v1066 = vmul.f32 %v1020, %v1065
        %v1067 = vmul.f32 %v1021, %v1065
        %v1068 = vadd.f32 %v1050, %v1066
        %v1069 = vadd.f32 %v1051, %v1067
        %s1070 = sld [smem:[#allocation3 + $0x3e]]
        %v1071 = vstv %s1070
        %v1072 = vmul.f32 %v1020, %v1071
        %v1073 = vmul.f32 %v1021, %v1071
        %v1074 = vadd.f32 %v1056, %v1072
        %v1075 = vadd.f32 %v1057, %v1073
        %s1076 = scalar_lea.vmem [#allocation9], 64
        %v1077 = vld [vmem:[%s1076] sm:$0xff]
        %v1078 = vld [vmem:[%s1076 + $0x8] sm:$0xff]
        %v1081 = vrot.slane %v1077, 7
        %v1082 = vrot.slane %v1078, 7
        %v1083 = vsel %vm130, %v1081, %v1082
        %v1086 = vsel %vm130, 0.0, %v1081
        %v1087 = vrot.slane %v1077, 1
        %v1088 = vrot.slane %v1078, 1
        %v1089 = vsel %vm137, %v1087, %v1088
        %v1092 = vsel %vm137, %v1088, 0.0
        %1094 = vrot.lane.b32.xlu0 %v1086, 1
        %v1095 = vpop.permute.xlu0 %1094
        %1096 = vrot.lane.b32.xlu0 %v1083, 1
        %v1097 = vpop.permute.xlu0 %1096
        %v1100 = vsel %vm151, 0.0, %v1095
        %v1101 = vsel %vm151, 0.0, %v1097
        %1102 = vrot.lane.b32.xlu0 %v1086, 127
        %v1103 = vpop.permute.xlu0 %1102
        %1104 = vrot.lane.b32.xlu0 %v1083, 127
        %v1105 = vpop.permute.xlu0 %1104
        %v1108 = vsel %vm160, %v1103, 0.0
        %v1109 = vsel %vm160, %v1105, 0.0
        %s1110 = sld [smem:[#allocation3 + $0x9]]
        %v1111 = vstv %s1110
        %v1112 = vmul.f32 %v1100, %v1111
        %v1113 = vmul.f32 %v1101, %v1111
        %v1114 = vadd.f32 %v1062, %v1112
        %v1115 = vadd.f32 %v1063, %v1113
        %s1116 = sld [smem:[#allocation3 + $0x24]]
        %v1117 = vstv %s1116
        %v1118 = vmul.f32 %v1100, %v1117
        %v1119 = vmul.f32 %v1101, %v1117
        %v1120 = vadd.f32 %v1068, %v1118
        %v1121 = vadd.f32 %v1069, %v1119
        %s1122 = sld [smem:[#allocation3 + $0x3f]]
        %v1123 = vstv %s1122
        %v1124 = vmul.f32 %v1100, %v1123
        %v1125 = vmul.f32 %v1101, %v1123
        %v1126 = vadd.f32 %v1074, %v1124
        %v1127 = vadd.f32 %v1075, %v1125
        %s1128 = sld [smem:[#allocation3 + $0xa]]
        %v1129 = vstv %s1128
        %v1130 = vmul.f32 %v1086, %v1129
        %v1131 = vmul.f32 %v1083, %v1129
        %v1132 = vadd.f32 %v1114, %v1130
        %v1133 = vadd.f32 %v1115, %v1131
        %s1134 = sld [smem:[#allocation3 + $0x25]]
        %v1135 = vstv %s1134
        %v1136 = vmul.f32 %v1086, %v1135
        %v1137 = vmul.f32 %v1083, %v1135
        %v1138 = vadd.f32 %v1120, %v1136
        %v1139 = vadd.f32 %v1121, %v1137
        %s1140 = sld [smem:[#allocation3 + $0x40]]
        %v1141 = vstv %s1140
        %v1142 = vmul.f32 %v1086, %v1141
        %v1143 = vmul.f32 %v1083, %v1141
        %v1144 = vadd.f32 %v1126, %v1142
        %v1145 = vadd.f32 %v1127, %v1143
        %s1146 = sld [smem:[#allocation3 + $0xb]]
        %v1147 = vstv %s1146
        %v1148 = vmul.f32 %v1108, %v1147
        %v1149 = vmul.f32 %v1109, %v1147
        %v1150 = vadd.f32 %v1132, %v1148
        %v1151 = vadd.f32 %v1133, %v1149
        %s1152 = sld [smem:[#allocation3 + $0x26]]
        %v1153 = vstv %s1152
        %v1154 = vmul.f32 %v1108, %v1153
        %v1155 = vmul.f32 %v1109, %v1153
        %v1156 = vadd.f32 %v1138, %v1154
        %v1157 = vadd.f32 %v1139, %v1155
        %s1158 = sld [smem:[#allocation3 + $0x41]]
        %v1159 = vstv %s1158
        %v1160 = vmul.f32 %v1108, %v1159
        %v1161 = vmul.f32 %v1109, %v1159
        %v1162 = vadd.f32 %v1144, %v1160
        %v1163 = vadd.f32 %v1145, %v1161
        %1164 = vrot.lane.b32.xlu0 %v1077, 1
        %v1165 = vpop.permute.xlu0 %1164
        %1166 = vrot.lane.b32.xlu0 %v1078, 1
        %v1167 = vpop.permute.xlu0 %1166
        %v1170 = vsel %vm151, 0.0, %v1165
        %v1171 = vsel %vm151, 0.0, %v1167
        %1172 = vrot.lane.b32.xlu0 %v1077, 127
        %v1173 = vpop.permute.xlu0 %1172
        %1174 = vrot.lane.b32.xlu0 %v1078, 127
        %v1175 = vpop.permute.xlu0 %1174
        %v1178 = vsel %vm160, %v1173, 0.0
        %v1179 = vsel %vm160, %v1175, 0.0
        %s1180 = sld [smem:[#allocation3 + $0xc]]
        %v1181 = vstv %s1180
        %v1182 = vmul.f32 %v1170, %v1181
        %v1183 = vmul.f32 %v1171, %v1181
        %v1184 = vadd.f32 %v1150, %v1182
        %v1185 = vadd.f32 %v1151, %v1183
        %s1186 = sld [smem:[#allocation3 + $0x27]]
        %v1187 = vstv %s1186
        %v1188 = vmul.f32 %v1170, %v1187
        %v1189 = vmul.f32 %v1171, %v1187
        %v1190 = vadd.f32 %v1156, %v1188
        %v1191 = vadd.f32 %v1157, %v1189
        %s1192 = sld [smem:[#allocation3 + $0x42]]
        %v1193 = vstv %s1192
        %v1194 = vmul.f32 %v1170, %v1193
        %v1195 = vmul.f32 %v1171, %v1193
        %v1196 = vadd.f32 %v1162, %v1194
        %v1197 = vadd.f32 %v1163, %v1195
        %s1198 = sld [smem:[#allocation3 + $0xd]]
        %v1199 = vstv %s1198
        %v1200 = vmul.f32 %v1077, %v1199
        %v1201 = vmul.f32 %v1078, %v1199
        %v1202 = vadd.f32 %v1184, %v1200
        %v1203 = vadd.f32 %v1185, %v1201
        %s1204 = sld [smem:[#allocation3 + $0x28]]
        %v1205 = vstv %s1204
        %v1206 = vmul.f32 %v1077, %v1205
        %v1207 = vmul.f32 %v1078, %v1205
        %v1208 = vadd.f32 %v1190, %v1206
        %v1209 = vadd.f32 %v1191, %v1207
        %s1210 = sld [smem:[#allocation3 + $0x43]]
        %v1211 = vstv %s1210
        %v1212 = vmul.f32 %v1077, %v1211
        %v1213 = vmul.f32 %v1078, %v1211
        %v1214 = vadd.f32 %v1196, %v1212
        %v1215 = vadd.f32 %v1197, %v1213
        %s1216 = sld [smem:[#allocation3 + $0xe]]
        %v1217 = vstv %s1216
        %v1218 = vmul.f32 %v1178, %v1217
        %v1219 = vmul.f32 %v1179, %v1217
        %v1220 = vadd.f32 %v1202, %v1218
        %v1221 = vadd.f32 %v1203, %v1219
        %s1222 = sld [smem:[#allocation3 + $0x29]]
        %v1223 = vstv %s1222
        %v1224 = vmul.f32 %v1178, %v1223
        %v1225 = vmul.f32 %v1179, %v1223
        %v1226 = vadd.f32 %v1208, %v1224
        %v1227 = vadd.f32 %v1209, %v1225
        %s1228 = sld [smem:[#allocation3 + $0x44]]
        %v1229 = vstv %s1228
        %v1230 = vmul.f32 %v1178, %v1229
        %v1231 = vmul.f32 %v1179, %v1229
        %v1232 = vadd.f32 %v1214, %v1230
        %v1233 = vadd.f32 %v1215, %v1231
        %1235 = vrot.lane.b32.xlu0 %v1089, 1
        %v1236 = vpop.permute.xlu0 %1235
        %1237 = vrot.lane.b32.xlu0 %v1092, 1
        %v1238 = vpop.permute.xlu0 %1237
        %v1241 = vsel %vm151, 0.0, %v1236
        %v1242 = vsel %vm151, 0.0, %v1238
        %1243 = vrot.lane.b32.xlu0 %v1089, 127
        %v1244 = vpop.permute.xlu0 %1243
        %1245 = vrot.lane.b32.xlu0 %v1092, 127
        %v1246 = vpop.permute.xlu0 %1245
        %v1249 = vsel %vm160, %v1244, 0.0
        %v1250 = vsel %vm160, %v1246, 0.0
        %s1251 = sld [smem:[#allocation3 + $0xf]]
        %v1252 = vstv %s1251
        %v1253 = vmul.f32 %v1241, %v1252
        %v1254 = vmul.f32 %v1242, %v1252
        %v1255 = vadd.f32 %v1220, %v1253
        %v1256 = vadd.f32 %v1221, %v1254
        %s1257 = sld [smem:[#allocation3 + $0x2a]]
        %v1258 = vstv %s1257
        %v1259 = vmul.f32 %v1241, %v1258
        %v1260 = vmul.f32 %v1242, %v1258
        %v1261 = vadd.f32 %v1226, %v1259
        %v1262 = vadd.f32 %v1227, %v1260
        %s1263 = sld [smem:[#allocation3 + $0x45]]
        %v1264 = vstv %s1263
        %v1265 = vmul.f32 %v1241, %v1264
        %v1266 = vmul.f32 %v1242, %v1264
        %v1267 = vadd.f32 %v1232, %v1265
        %v1268 = vadd.f32 %v1233, %v1266
        %s1269 = sld [smem:[#allocation3 + $0x10]]
        %v1270 = vstv %s1269
        %v1271 = vmul.f32 %v1089, %v1270
        %v1272 = vmul.f32 %v1092, %v1270
        %v1273 = vadd.f32 %v1255, %v1271
        %v1274 = vadd.f32 %v1256, %v1272
        %s1275 = sld [smem:[#allocation3 + $0x2b]]
        %v1276 = vstv %s1275
        %v1277 = vmul.f32 %v1089, %v1276
        %v1278 = vmul.f32 %v1092, %v1276
        %v1279 = vadd.f32 %v1261, %v1277
        %v1280 = vadd.f32 %v1262, %v1278
        %s1281 = sld [smem:[#allocation3 + $0x46]]
        %v1282 = vstv %s1281
        %v1283 = vmul.f32 %v1089, %v1282
        %v1284 = vmul.f32 %v1092, %v1282
        %v1285 = vadd.f32 %v1267, %v1283
        %v1286 = vadd.f32 %v1268, %v1284
        %s1287 = sld [smem:[#allocation3 + $0x11]]
        %v1288 = vstv %s1287
        %v1289 = vmul.f32 %v1249, %v1288
        %v1290 = vmul.f32 %v1250, %v1288
        %v1291 = vadd.f32 %v1273, %v1289
        %v1292 = vadd.f32 %v1274, %v1290
        %s1293 = sld [smem:[#allocation3 + $0x2c]]
        %v1294 = vstv %s1293
        %v1295 = vmul.f32 %v1249, %v1294
        %v1296 = vmul.f32 %v1250, %v1294
        %v1297 = vadd.f32 %v1279, %v1295
        %v1298 = vadd.f32 %v1280, %v1296
        %s1299 = sld [smem:[#allocation3 + $0x47]]
        %v1300 = vstv %s1299
        %v1301 = vmul.f32 %v1249, %v1300
        %v1302 = vmul.f32 %v1250, %v1300
        %v1303 = vadd.f32 %v1285, %v1301
        %v1304 = vadd.f32 %v1286, %v1302
        %s1305 = scalar_lea.vmem [#allocation9], 80
        %v1306 = vld [vmem:[%s1305] sm:$0xff]
        %v1307 = vld [vmem:[%s1305 + $0x8] sm:$0xff]
        %v1310 = vrot.slane %v1306, 7
        %v1311 = vrot.slane %v1307, 7
        %v1312 = vsel %vm130, %v1310, %v1311
        %v1315 = vsel %vm130, 0.0, %v1310
        %v1316 = vrot.slane %v1306, 1
        %v1317 = vrot.slane %v1307, 1
        %v1318 = vsel %vm137, %v1316, %v1317
        %v1321 = vsel %vm137, %v1317, 0.0
        %1323 = vrot.lane.b32.xlu0 %v1315, 1
        %v1324 = vpop.permute.xlu0 %1323
        %1325 = vrot.lane.b32.xlu0 %v1312, 1
        %v1326 = vpop.permute.xlu0 %1325
        %v1329 = vsel %vm151, 0.0, %v1324
        %v1330 = vsel %vm151, 0.0, %v1326
        %1331 = vrot.lane.b32.xlu0 %v1315, 127
        %v1332 = vpop.permute.xlu0 %1331
        %1333 = vrot.lane.b32.xlu0 %v1312, 127
        %v1334 = vpop.permute.xlu0 %1333
        %v1337 = vsel %vm160, %v1332, 0.0
        %v1338 = vsel %vm160, %v1334, 0.0
        %s1339 = sld [smem:[#allocation3 + $0x12]]
        %v1340 = vstv %s1339
        %v1341 = vmul.f32 %v1329, %v1340
        %v1342 = vmul.f32 %v1330, %v1340
        %v1343 = vadd.f32 %v1291, %v1341
        %v1344 = vadd.f32 %v1292, %v1342
        %s1345 = sld [smem:[#allocation3 + $0x2d]]
        %v1346 = vstv %s1345
        %v1347 = vmul.f32 %v1329, %v1346
        %v1348 = vmul.f32 %v1330, %v1346
        %v1349 = vadd.f32 %v1297, %v1347
        %v1350 = vadd.f32 %v1298, %v1348
        %s1351 = sld [smem:[#allocation3 + $0x48]]
        %v1352 = vstv %s1351
        %v1353 = vmul.f32 %v1329, %v1352
        %v1354 = vmul.f32 %v1330, %v1352
        %v1355 = vadd.f32 %v1303, %v1353
        %v1356 = vadd.f32 %v1304, %v1354
        %s1357 = sld [smem:[#allocation3 + $0x13]]
        %v1358 = vstv %s1357
        %v1359 = vmul.f32 %v1315, %v1358
        %v1360 = vmul.f32 %v1312, %v1358
        %v1361 = vadd.f32 %v1343, %v1359
        %v1362 = vadd.f32 %v1344, %v1360
        %s1363 = sld [smem:[#allocation3 + $0x2e]]
        %v1364 = vstv %s1363
        %v1365 = vmul.f32 %v1315, %v1364
        %v1366 = vmul.f32 %v1312, %v1364
        %v1367 = vadd.f32 %v1349, %v1365
        %v1368 = vadd.f32 %v1350, %v1366
        %s1369 = sld [smem:[#allocation3 + $0x49]]
        %v1370 = vstv %s1369
        %v1371 = vmul.f32 %v1315, %v1370
        %v1372 = vmul.f32 %v1312, %v1370
        %v1373 = vadd.f32 %v1355, %v1371
        %v1374 = vadd.f32 %v1356, %v1372
        %s1375 = sld [smem:[#allocation3 + $0x14]]
        %v1376 = vstv %s1375
        %v1377 = vmul.f32 %v1337, %v1376
        %v1378 = vmul.f32 %v1338, %v1376
        %v1379 = vadd.f32 %v1361, %v1377
        %v1380 = vadd.f32 %v1362, %v1378
        %s1381 = sld [smem:[#allocation3 + $0x2f]]
        %v1382 = vstv %s1381
        %v1383 = vmul.f32 %v1337, %v1382
        %v1384 = vmul.f32 %v1338, %v1382
        %v1385 = vadd.f32 %v1367, %v1383
        %v1386 = vadd.f32 %v1368, %v1384
        %s1387 = sld [smem:[#allocation3 + $0x4a]]
        %v1388 = vstv %s1387
        %v1389 = vmul.f32 %v1337, %v1388
        %v1390 = vmul.f32 %v1338, %v1388
        %v1391 = vadd.f32 %v1373, %v1389
        %v1392 = vadd.f32 %v1374, %v1390
        %1393 = vrot.lane.b32.xlu0 %v1306, 1
        %v1394 = vpop.permute.xlu0 %1393
        %1395 = vrot.lane.b32.xlu0 %v1307, 1
        %v1396 = vpop.permute.xlu0 %1395
        %v1399 = vsel %vm151, 0.0, %v1394
        %v1400 = vsel %vm151, 0.0, %v1396
        %1401 = vrot.lane.b32.xlu0 %v1306, 127
        %v1402 = vpop.permute.xlu0 %1401
        %1403 = vrot.lane.b32.xlu0 %v1307, 127
        %v1404 = vpop.permute.xlu0 %1403
        %v1407 = vsel %vm160, %v1402, 0.0
        %v1408 = vsel %vm160, %v1404, 0.0
        %s1409 = sld [smem:[#allocation3 + $0x15]]
        %v1410 = vstv %s1409
        %v1411 = vmul.f32 %v1399, %v1410
        %v1412 = vmul.f32 %v1400, %v1410
        %v1413 = vadd.f32 %v1379, %v1411
        %v1414 = vadd.f32 %v1380, %v1412
        %s1415 = sld [smem:[#allocation3 + $0x30]]
        %v1416 = vstv %s1415
        %v1417 = vmul.f32 %v1399, %v1416
        %v1418 = vmul.f32 %v1400, %v1416
        %v1419 = vadd.f32 %v1385, %v1417
        %v1420 = vadd.f32 %v1386, %v1418
        %s1421 = sld [smem:[#allocation3 + $0x4b]]
        %v1422 = vstv %s1421
        %v1423 = vmul.f32 %v1399, %v1422
        %v1424 = vmul.f32 %v1400, %v1422
        %v1425 = vadd.f32 %v1391, %v1423
        %v1426 = vadd.f32 %v1392, %v1424
        %s1427 = sld [smem:[#allocation3 + $0x16]]
        %v1428 = vstv %s1427
        %v1429 = vmul.f32 %v1306, %v1428
        %v1430 = vmul.f32 %v1307, %v1428
        %v1431 = vadd.f32 %v1413, %v1429
        %v1432 = vadd.f32 %v1414, %v1430
        %s1433 = sld [smem:[#allocation3 + $0x31]]
        %v1434 = vstv %s1433
        %v1435 = vmul.f32 %v1306, %v1434
        %v1436 = vmul.f32 %v1307, %v1434
        %v1437 = vadd.f32 %v1419, %v1435
        %v1438 = vadd.f32 %v1420, %v1436
        %s1439 = sld [smem:[#allocation3 + $0x4c]]
        %v1440 = vstv %s1439
        %v1441 = vmul.f32 %v1306, %v1440
        %v1442 = vmul.f32 %v1307, %v1440
        %v1443 = vadd.f32 %v1425, %v1441
        %v1444 = vadd.f32 %v1426, %v1442
        %s1445 = sld [smem:[#allocation3 + $0x17]]
        %v1446 = vstv %s1445
        %v1447 = vmul.f32 %v1407, %v1446
        %v1448 = vmul.f32 %v1408, %v1446
        %v1449 = vadd.f32 %v1431, %v1447
        %v1450 = vadd.f32 %v1432, %v1448
        %s1451 = sld [smem:[#allocation3 + $0x32]]
        %v1452 = vstv %s1451
        %v1453 = vmul.f32 %v1407, %v1452
        %v1454 = vmul.f32 %v1408, %v1452
        %v1455 = vadd.f32 %v1437, %v1453
        %v1456 = vadd.f32 %v1438, %v1454
        %s1457 = sld [smem:[#allocation3 + $0x4d]]
        %v1458 = vstv %s1457
        %v1459 = vmul.f32 %v1407, %v1458
        %v1460 = vmul.f32 %v1408, %v1458
        %v1461 = vadd.f32 %v1443, %v1459
        %v1462 = vadd.f32 %v1444, %v1460
        %1464 = vrot.lane.b32.xlu0 %v1318, 1
        %v1465 = vpop.permute.xlu0 %1464
        %1466 = vrot.lane.b32.xlu0 %v1321, 1
        %v1467 = vpop.permute.xlu0 %1466
        %v1470 = vsel %vm151, 0.0, %v1465
        %v1471 = vsel %vm151, 0.0, %v1467
        %1472 = vrot.lane.b32.xlu0 %v1318, 127
        %v1473 = vpop.permute.xlu0 %1472
        %1474 = vrot.lane.b32.xlu0 %v1321, 127
        %v1475 = vpop.permute.xlu0 %1474
        %v1478 = vsel %vm160, %v1473, 0.0
        %v1479 = vsel %vm160, %v1475, 0.0
        %s1480 = sld [smem:[#allocation3 + $0x18]]
        %v1481 = vstv %s1480
        %v1482 = vmul.f32 %v1470, %v1481
        %v1483 = vmul.f32 %v1471, %v1481
        %v1484 = vadd.f32 %v1449, %v1482
        %v1485 = vadd.f32 %v1450, %v1483
        %s1486 = sld [smem:[#allocation3 + $0x33]]
        %v1487 = vstv %s1486
        %v1488 = vmul.f32 %v1470, %v1487
        %v1489 = vmul.f32 %v1471, %v1487
        %v1490 = vadd.f32 %v1455, %v1488
        %v1491 = vadd.f32 %v1456, %v1489
        %s1492 = sld [smem:[#allocation3 + $0x4e]]
        %v1493 = vstv %s1492
        %v1494 = vmul.f32 %v1470, %v1493
        %v1495 = vmul.f32 %v1471, %v1493
        %v1496 = vadd.f32 %v1461, %v1494
        %v1497 = vadd.f32 %v1462, %v1495
        %s1498 = sld [smem:[#allocation3 + $0x19]]
        %v1499 = vstv %s1498
        %v1500 = vmul.f32 %v1318, %v1499
        %v1501 = vmul.f32 %v1321, %v1499
        %v1502 = vadd.f32 %v1484, %v1500
        %v1503 = vadd.f32 %v1485, %v1501
        %s1504 = sld [smem:[#allocation3 + $0x34]]
        %v1505 = vstv %s1504
        %v1506 = vmul.f32 %v1318, %v1505
        %v1507 = vmul.f32 %v1321, %v1505
        %v1508 = vadd.f32 %v1490, %v1506
        %v1509 = vadd.f32 %v1491, %v1507
        %s1510 = sld [smem:[#allocation3 + $0x4f]]
        %v1511 = vstv %s1510
        %v1512 = vmul.f32 %v1318, %v1511
        %v1513 = vmul.f32 %v1321, %v1511
        %v1514 = vadd.f32 %v1496, %v1512
        %v1515 = vadd.f32 %v1497, %v1513
        %s1516 = sld [smem:[#allocation3 + $0x1a]]
        %v1517 = vstv %s1516
        %v1518 = vmul.f32 %v1478, %v1517
        %v1519 = vmul.f32 %v1479, %v1517
        %v1520 = vadd.f32 %v1502, %v1518
        %v1521 = vadd.f32 %v1503, %v1519
        %s1522 = sld [smem:[#allocation3 + $0x35]]
        %v1523 = vstv %s1522
        %v1524 = vmul.f32 %v1478, %v1523
        %v1525 = vmul.f32 %v1479, %v1523
        %v1526 = vadd.f32 %v1508, %v1524
        %v1527 = vadd.f32 %v1509, %v1525
        %s1528 = sld [smem:[#allocation3 + $0x50]]
        %v1529 = vstv %s1528
        %v1530 = vmul.f32 %v1478, %v1529
        %v1531 = vmul.f32 %v1479, %v1529
        %v1532 = vadd.f32 %v1514, %v1530
        %v1533 = vadd.f32 %v1515, %v1531
        %1534 = vst.msk [vmem:[#allocation2 + $0x10] sm:$0xff] %vm816, %v1520
        %1535 = vst.msk [vmem:[#allocation2 + $0x18] sm:$0xff] %vm816, %v1521
        %1538 = vrot.lane.b32.xlu0 %v1526, 16
        %v1539 = vpop.permute.xlu0 %1538
        %1540 = vrot.lane.b32.xlu0 %v1527, 16
        %v1541 = vpop.permute.xlu0 %1540
        %1544 = vst.msk [vmem:[#allocation2 + $0x10] sm:$0xff] %vm827, %v1539
        %1545 = vst.msk [vmem:[#allocation2 + $0x18] sm:$0xff] %vm827, %v1541
        %1548 = vrot.lane.b32.xlu0 %v1532, 32
        %v1549 = vpop.permute.xlu0 %1548
        %1550 = vrot.lane.b32.xlu0 %v1533, 32
        %v1551 = vpop.permute.xlu0 %1550
        %1554 = vst.msk [vmem:[#allocation2 + $0x10] sm:$0xff] %vm838, %v1549
        %1555 = vst.msk [vmem:[#allocation2 + $0x18] sm:$0xff] %vm838, %v1551
    $region49: #{tpu_custom_call.1} parent=1 // pred_fallthru
      _
    %v1556 = vld [vmem:[#allocation2] sm:$0xff]
    %v1557 = vld [vmem:[#allocation2 + $0x8] sm:$0xff]
    %v1558 = vld [vmem:[#allocation2 + $0x10] sm:$0xff]
    %v1559 = vld [vmem:[#allocation2 + $0x18] sm:$0xff]
    %v1560 = vld [vmem:[%s2] sm:$0xff]
    %v1561 = vld [vmem:[%s2 + $0x8] sm:$0xff]
    %v1562 = vld [vmem:[%s2 + $0x10] sm:$0xff]
    %v1563 = vld [vmem:[%s2 + $0x18] sm:$0xff]
    %v1564 = vld [vmem:[%s2 + $0x20] sm:$0xff]
    %v1565 = vld [vmem:[%s2 + $0x28] sm:$0xff]
    %v1566 = vld [vmem:[%s2 + $0x30] sm:$0xff]
    %v1567 = vld [vmem:[%s2 + $0x38] sm:$0xff]
    %v1568 = vld [vmem:[%s2 + $0x40] sm:$0xff]
    %v1569 = vld [vmem:[%s2 + $0x48] sm:$0xff]
    %v1570 = vld [vmem:[%s2 + $0x50] sm:$0xff]
    %v1571 = vld [vmem:[%s2 + $0x58] sm:$0xff]
    %v1572 = vld [vmem:[%s2 + $0x60] sm:$0xff]
    %v1573 = vld [vmem:[%s2 + $0x68] sm:$0xff]
    %v1574 = vld [vmem:[%s2 + $0x70] sm:$0xff]
    %v1575 = vld [vmem:[%s2 + $0x78] sm:$0xff]
    %v1576 = vld [vmem:[%s2 + $0x80] sm:$0xff]
    %v1577 = vld [vmem:[%s2 + $0x88] sm:$0xff]
    %v1578 = vld [vmem:[%s2 + $0x90] sm:$0xff]
    %v1579 = vld [vmem:[%s2 + $0x98] sm:$0xff]
    %v1580 = vld [vmem:[%s2 + $0xa0] sm:$0xff]
    %v1581 = vld [vmem:[%s2 + $0xa8] sm:$0xff]
    %v1582 = vld [vmem:[%s2 + $0xb0] sm:$0xff]
    %v1583 = vld [vmem:[%s2 + $0xb8] sm:$0xff]
    %v1584 = vld [vmem:[%s2 + $0xc0] sm:$0xff]
    %v1585 = vld [vmem:[%s2 + $0xc8] sm:$0xff]
    %v1586 = vld [vmem:[%s2 + $0xd0] sm:$0xff]
    %v1587 = vld [vmem:[%s2 + $0xd8] sm:$0xff]
    %v1588 = vld [vmem:[%s3] sm:$0x1]
    %v1589 = vld [vmem:[%s3 + $0x1] sm:$0x1]
    %vm1590 = vcmp.ge.f32.partialorder %v1560, -1.0
    %vm1591 = vcmp.ge.f32.partialorder %v1561, -1.0
    %vm1592 = vcmp.ge.f32.partialorder %v1562, -1.0
    %vm1593 = vcmp.ge.f32.partialorder %v1563, -1.0
    %vm1594 = vcmp.ge.f32.partialorder %v1564, -1.0
    %vm1595 = vcmp.ge.f32.partialorder %v1565, -1.0
    %vm1596 = vcmp.ge.f32.partialorder %v1566, -1.0
    %vm1597 = vcmp.ge.f32.partialorder %v1567, -1.0
    %vm1598 = vcmp.ge.f32.partialorder %v1568, -1.0
    %vm1599 = vcmp.ge.f32.partialorder %v1569, -1.0
    %vm1600 = vcmp.ge.f32.partialorder %v1570, -1.0
    %vm1601 = vcmp.ge.f32.partialorder %v1571, -1.0
    %vm1602 = vcmp.ge.f32.partialorder %v1572, -1.0
    %vm1603 = vcmp.ge.f32.partialorder %v1573, -1.0
    %vm1604 = vcmp.ge.f32.partialorder %v1574, -1.0
    %vm1605 = vcmp.ge.f32.partialorder %v1575, -1.0
    %vm1606 = vcmp.ge.f32.partialorder %v1576, -1.0
    %vm1607 = vcmp.ge.f32.partialorder %v1577, -1.0
    %vm1608 = vcmp.ge.f32.partialorder %v1578, -1.0
    %vm1609 = vcmp.ge.f32.partialorder %v1579, -1.0
    %vm1610 = vcmp.ge.f32.partialorder %v1580, -1.0
    %vm1611 = vcmp.ge.f32.partialorder %v1581, -1.0
    %vm1612 = vcmp.ge.f32.partialorder %v1582, -1.0
    %vm1613 = vcmp.ge.f32.partialorder %v1583, -1.0
    %vm1614 = vcmp.ge.f32.partialorder %v1584, -1.0
    %vm1615 = vcmp.ge.f32.partialorder %v1585, -1.0
    %vm1616 = vcmp.ge.f32.partialorder %v1586, -1.0
    %vm1617 = vcmp.ge.f32.partialorder %v1587, -1.0
    %vm1618 = vcmp.le.f32.partialorder %v1560, 16.0
    %vm1619 = vcmp.le.f32.partialorder %v1561, 16.0
    %vm1620 = vcmp.le.f32.partialorder %v1562, 16.0
    %vm1621 = vcmp.le.f32.partialorder %v1563, 16.0
    %vm1622 = vcmp.le.f32.partialorder %v1564, 16.0
    %vm1623 = vcmp.le.f32.partialorder %v1565, 16.0
    %vm1624 = vcmp.le.f32.partialorder %v1566, 16.0
    %vm1625 = vcmp.le.f32.partialorder %v1567, 16.0
    %vm1626 = vcmp.le.f32.partialorder %v1568, 16.0
    %vm1627 = vcmp.le.f32.partialorder %v1569, 16.0
    %vm1628 = vcmp.le.f32.partialorder %v1570, 16.0
    %vm1629 = vcmp.le.f32.partialorder %v1571, 16.0
    %vm1630 = vcmp.le.f32.partialorder %v1572, 16.0
    %vm1631 = vcmp.le.f32.partialorder %v1573, 16.0
    %vm1632 = vcmp.le.f32.partialorder %v1574, 16.0
    %vm1633 = vcmp.le.f32.partialorder %v1575, 16.0
    %vm1634 = vcmp.le.f32.partialorder %v1576, 16.0
    %vm1635 = vcmp.le.f32.partialorder %v1577, 16.0
    %vm1636 = vcmp.le.f32.partialorder %v1578, 16.0
    %vm1637 = vcmp.le.f32.partialorder %v1579, 16.0
    %vm1638 = vcmp.le.f32.partialorder %v1580, 16.0
    %vm1639 = vcmp.le.f32.partialorder %v1581, 16.0
    %vm1640 = vcmp.le.f32.partialorder %v1582, 16.0
    %vm1641 = vcmp.le.f32.partialorder %v1583, 16.0
    %vm1642 = vcmp.le.f32.partialorder %v1584, 16.0
    %vm1643 = vcmp.le.f32.partialorder %v1585, 16.0
    %vm1644 = vcmp.le.f32.partialorder %v1586, 16.0
    %vm1645 = vcmp.le.f32.partialorder %v1587, 16.0
    %vm1646 = vmand %vm1590, %vm1618
    %vm1647 = vmand %vm1591, %vm1619
    %vm1648 = vmand %vm1592, %vm1620
    %vm1649 = vmand %vm1593, %vm1621
    %vm1650 = vmand %vm1594, %vm1622
    %vm1651 = vmand %vm1595, %vm1623
    %vm1652 = vmand %vm1596, %vm1624
    %vm1653 = vmand %vm1597, %vm1625
    %vm1654 = vmand %vm1598, %vm1626
    %vm1655 = vmand %vm1599, %vm1627
    %vm1656 = vmand %vm1600, %vm1628
    %vm1657 = vmand %vm1601, %vm1629
    %vm1658 = vmand %vm1602, %vm1630
    %vm1659 = vmand %vm1603, %vm1631
    %vm1660 = vmand %vm1604, %vm1632
    %vm1661 = vmand %vm1605, %vm1633
    %vm1662 = vmand %vm1606, %vm1634
    %vm1663 = vmand %vm1607, %vm1635
    %vm1664 = vmand %vm1608, %vm1636
    %vm1665 = vmand %vm1609, %vm1637
    %vm1666 = vmand %vm1610, %vm1638
    %vm1667 = vmand %vm1611, %vm1639
    %vm1668 = vmand %vm1612, %vm1640
    %vm1669 = vmand %vm1613, %vm1641
    %vm1670 = vmand %vm1614, %vm1642
    %vm1671 = vmand %vm1615, %vm1643
    %vm1672 = vmand %vm1616, %vm1644
    %vm1673 = vmand %vm1617, %vm1645
    %v1674 = vsel %vm1646, 1, 0
    %v1675 = vsel %vm1647, 1, 0
    %v1676 = vsel %vm1648, 1, 0
    %v1677 = vsel %vm1649, 1, 0
    %v1678 = vsel %vm1650, 1, 0
    %v1679 = vsel %vm1651, 1, 0
    %v1680 = vsel %vm1652, 1, 0
    %v1681 = vsel %vm1653, 1, 0
    %v1682 = vsel %vm1654, 1, 0
    %v1683 = vsel %vm1655, 1, 0
    %v1684 = vsel %vm1656, 1, 0
    %v1685 = vsel %vm1657, 1, 0
    %v1686 = vsel %vm1658, 1, 0
    %v1687 = vsel %vm1659, 1, 0
    %v1688 = vsel %vm1660, 1, 0
    %v1689 = vsel %vm1661, 1, 0
    %v1690 = vsel %vm1662, 1, 0
    %v1691 = vsel %vm1663, 1, 0
    %v1692 = vsel %vm1664, 1, 0
    %v1693 = vsel %vm1665, 1, 0
    %v1694 = vsel %vm1666, 1, 0
    %v1695 = vsel %vm1667, 1, 0
    %v1696 = vsel %vm1668, 1, 0
    %v1697 = vsel %vm1669, 1, 0
    %v1698 = vsel %vm1670, 1, 0
    %v1699 = vsel %vm1671, 1, 0
    %v1700 = vsel %vm1672, 1, 0
    %v1701 = vsel %vm1673, 1, 0
    %v1702 = vcvt.s32.f32 %v1674
    %v1703 = vcvt.s32.f32 %v1675
    %v1704 = vcvt.s32.f32 %v1676
    %v1705 = vcvt.s32.f32 %v1677
    %v1706 = vcvt.s32.f32 %v1678
    %v1707 = vcvt.s32.f32 %v1679
    %v1708 = vcvt.s32.f32 %v1680
    %v1709 = vcvt.s32.f32 %v1681
    %v1710 = vcvt.s32.f32 %v1682
    %v1711 = vcvt.s32.f32 %v1683
    %v1712 = vcvt.s32.f32 %v1684
    %v1713 = vcvt.s32.f32 %v1685
    %v1714 = vcvt.s32.f32 %v1686
    %v1715 = vcvt.s32.f32 %v1687
    %v1716 = vcvt.s32.f32 %v1688
    %v1717 = vcvt.s32.f32 %v1689
    %v1718 = vcvt.s32.f32 %v1690
    %v1719 = vcvt.s32.f32 %v1691
    %v1720 = vcvt.s32.f32 %v1692
    %v1721 = vcvt.s32.f32 %v1693
    %v1722 = vcvt.s32.f32 %v1694
    %v1723 = vcvt.s32.f32 %v1695
    %v1724 = vcvt.s32.f32 %v1696
    %v1725 = vcvt.s32.f32 %v1697
    %v1726 = vcvt.s32.f32 %v1698
    %v1727 = vcvt.s32.f32 %v1699
    %v1728 = vcvt.s32.f32 %v1700
    %v1729 = vcvt.s32.f32 %v1701
    %v1730 = vmax.f32 %v1560, 0.0
    %v1731 = vmax.f32 %v1561, 0.0
    %v1732 = vmax.f32 %v1562, 0.0
    %v1733 = vmax.f32 %v1563, 0.0
    %v1734 = vmax.f32 %v1564, 0.0
    %v1735 = vmax.f32 %v1565, 0.0
    %v1736 = vmax.f32 %v1566, 0.0
    %v1737 = vmax.f32 %v1567, 0.0
    %v1738 = vmax.f32 %v1568, 0.0
    %v1739 = vmax.f32 %v1569, 0.0
    %v1740 = vmax.f32 %v1570, 0.0
    %v1741 = vmax.f32 %v1571, 0.0
    %v1742 = vmax.f32 %v1572, 0.0
    %v1743 = vmax.f32 %v1573, 0.0
    %v1744 = vmax.f32 %v1574, 0.0
    %v1745 = vmax.f32 %v1575, 0.0
    %v1746 = vmax.f32 %v1576, 0.0
    %v1747 = vmax.f32 %v1577, 0.0
    %v1748 = vmax.f32 %v1578, 0.0
    %v1749 = vmax.f32 %v1579, 0.0
    %v1750 = vmax.f32 %v1580, 0.0
    %v1751 = vmax.f32 %v1581, 0.0
    %v1752 = vmax.f32 %v1582, 0.0
    %v1753 = vmax.f32 %v1583, 0.0
    %v1754 = vmax.f32 %v1584, 0.0
    %v1755 = vmax.f32 %v1585, 0.0
    %v1756 = vmax.f32 %v1586, 0.0
    %v1757 = vmax.f32 %v1587, 0.0
    %v1758 = vmin.f32 %v1730, 15.0
    %v1759 = vmin.f32 %v1731, 15.0
    %v1760 = vmin.f32 %v1732, 15.0
    %v1761 = vmin.f32 %v1733, 15.0
    %v1762 = vmin.f32 %v1734, 15.0
    %v1763 = vmin.f32 %v1735, 15.0
    %v1764 = vmin.f32 %v1736, 15.0
    %v1765 = vmin.f32 %v1737, 15.0
    %v1766 = vmin.f32 %v1738, 15.0
    %v1767 = vmin.f32 %v1739, 15.0
    %v1768 = vmin.f32 %v1740, 15.0
    %v1769 = vmin.f32 %v1741, 15.0
    %v1770 = vmin.f32 %v1742, 15.0
    %v1771 = vmin.f32 %v1743, 15.0
    %v1772 = vmin.f32 %v1744, 15.0
    %v1773 = vmin.f32 %v1745, 15.0
    %v1774 = vmin.f32 %v1746, 15.0
    %v1775 = vmin.f32 %v1747, 15.0
    %v1776 = vmin.f32 %v1748, 15.0
    %v1777 = vmin.f32 %v1749, 15.0
    %v1778 = vmin.f32 %v1750, 15.0
    %v1779 = vmin.f32 %v1751, 15.0
    %v1780 = vmin.f32 %v1752, 15.0
    %v1781 = vmin.f32 %v1753, 15.0
    %v1782 = vmin.f32 %v1754, 15.0
    %v1783 = vmin.f32 %v1755, 15.0
    %v1784 = vmin.f32 %v1756, 15.0
    %v1785 = vmin.f32 %v1757, 15.0
    %v1786 = vperm.slane %v1589, 0
    %1788 = vset.pattern.permute.xlu0 1
    %1789 = vperm.xlu0 %1788, %v1560
    %v1790 = vpop.permute.xlu0 %1789
    %1793 = vset.pattern.permute.xlu0 1
    %1794 = vperm.xlu0 %1793, %v1561
    %v1795 = vpop.permute.xlu0 %1794
    %1798 = vset.pattern.permute.xlu0 1
    %1799 = vperm.xlu0 %1798, %v1562
    %v1800 = vpop.permute.xlu0 %1799
    %1803 = vset.pattern.permute.xlu0 1
    %1804 = vperm.xlu0 %1803, %v1563
    %v1805 = vpop.permute.xlu0 %1804
    %1808 = vset.pattern.permute.xlu0 1
    %1809 = vperm.xlu0 %1808, %v1564
    %v1810 = vpop.permute.xlu0 %1809
    %1813 = vset.pattern.permute.xlu0 1
    %1814 = vperm.xlu0 %1813, %v1565
    %v1815 = vpop.permute.xlu0 %1814
    %1818 = vset.pattern.permute.xlu0 1
    %1819 = vperm.xlu0 %1818, %v1566
    %v1820 = vpop.permute.xlu0 %1819
    %1823 = vset.pattern.permute.xlu0 1
    %1824 = vperm.xlu0 %1823, %v1567
    %v1825 = vpop.permute.xlu0 %1824
    %1828 = vset.pattern.permute.xlu0 1
    %1829 = vperm.xlu0 %1828, %v1568
    %v1830 = vpop.permute.xlu0 %1829
    %1833 = vset.pattern.permute.xlu0 1
    %1834 = vperm.xlu0 %1833, %v1569
    %v1835 = vpop.permute.xlu0 %1834
    %1838 = vset.pattern.permute.xlu0 1
    %1839 = vperm.xlu0 %1838, %v1570
    %v1840 = vpop.permute.xlu0 %1839
    %1843 = vset.pattern.permute.xlu0 1
    %1844 = vperm.xlu0 %1843, %v1571
    %v1845 = vpop.permute.xlu0 %1844
    %1848 = vset.pattern.permute.xlu0 1
    %1849 = vperm.xlu0 %1848, %v1572
    %v1850 = vpop.permute.xlu0 %1849
    %1853 = vset.pattern.permute.xlu0 1
    %1854 = vperm.xlu0 %1853, %v1573
    %v1855 = vpop.permute.xlu0 %1854
    %1858 = vset.pattern.permute.xlu0 1
    %1859 = vperm.xlu0 %1858, %v1574
    %v1860 = vpop.permute.xlu0 %1859
    %1863 = vset.pattern.permute.xlu0 1
    %1864 = vperm.xlu0 %1863, %v1575
    %v1865 = vpop.permute.xlu0 %1864
    %1868 = vset.pattern.permute.xlu0 1
    %1869 = vperm.xlu0 %1868, %v1576
    %v1870 = vpop.permute.xlu0 %1869
    %1873 = vset.pattern.permute.xlu0 1
    %1874 = vperm.xlu0 %1873, %v1577
    %v1875 = vpop.permute.xlu0 %1874
    %1878 = vset.pattern.permute.xlu0 1
    %1879 = vperm.xlu0 %1878, %v1578
    %v1880 = vpop.permute.xlu0 %1879
    %1883 = vset.pattern.permute.xlu0 1
    %1884 = vperm.xlu0 %1883, %v1579
    %v1885 = vpop.permute.xlu0 %1884
    %1888 = vset.pattern.permute.xlu0 1
    %1889 = vperm.xlu0 %1888, %v1580
    %v1890 = vpop.permute.xlu0 %1889
    %1893 = vset.pattern.permute.xlu0 1
    %1894 = vperm.xlu0 %1893, %v1581
    %v1895 = vpop.permute.xlu0 %1894
    %1898 = vset.pattern.permute.xlu0 1
    %1899 = vperm.xlu0 %1898, %v1582
    %v1900 = vpop.permute.xlu0 %1899
    %1903 = vset.pattern.permute.xlu0 1
    %1904 = vperm.xlu0 %1903, %v1583
    %v1905 = vpop.permute.xlu0 %1904
    %1908 = vset.pattern.permute.xlu0 1
    %1909 = vperm.xlu0 %1908, %v1584
    %v1910 = vpop.permute.xlu0 %1909
    %1913 = vset.pattern.permute.xlu0 1
    %1914 = vperm.xlu0 %1913, %v1585
    %v1915 = vpop.permute.xlu0 %1914
    %1918 = vset.pattern.permute.xlu0 1
    %1919 = vperm.xlu0 %1918, %v1586
    %v1920 = vpop.permute.xlu0 %1919
    %1923 = vset.pattern.permute.xlu0 1
    %1924 = vperm.xlu0 %1923, %v1587
    %v1925 = vpop.permute.xlu0 %1924
    %vm1927 = vcmp.eq.f32.partialorder %v1786, %v1790
    %vm1928 = vcmp.eq.f32.partialorder %v1786, %v1795
    %vm1929 = vcmp.eq.f32.partialorder %v1786, %v1800
    %vm1930 = vcmp.eq.f32.partialorder %v1786, %v1805
    %vm1931 = vcmp.eq.f32.partialorder %v1786, %v1810
    %vm1932 = vcmp.eq.f32.partialorder %v1786, %v1815
    %vm1933 = vcmp.eq.f32.partialorder %v1786, %v1820
    %vm1934 = vcmp.eq.f32.partialorder %v1786, %v1825
    %vm1935 = vcmp.eq.f32.partialorder %v1786, %v1830
    %vm1936 = vcmp.eq.f32.partialorder %v1786, %v1835
    %vm1937 = vcmp.eq.f32.partialorder %v1786, %v1840
    %vm1938 = vcmp.eq.f32.partialorder %v1786, %v1845
    %vm1939 = vcmp.eq.f32.partialorder %v1786, %v1850
    %vm1940 = vcmp.eq.f32.partialorder %v1786, %v1855
    %vm1941 = vcmp.eq.f32.partialorder %v1786, %v1860
    %vm1942 = vcmp.eq.f32.partialorder %v1786, %v1865
    %vm1943 = vcmp.eq.f32.partialorder %v1786, %v1870
    %vm1944 = vcmp.eq.f32.partialorder %v1786, %v1875
    %vm1945 = vcmp.eq.f32.partialorder %v1786, %v1880
    %vm1946 = vcmp.eq.f32.partialorder %v1786, %v1885
    %vm1947 = vcmp.eq.f32.partialorder %v1786, %v1890
    %vm1948 = vcmp.eq.f32.partialorder %v1786, %v1895
    %vm1949 = vcmp.eq.f32.partialorder %v1786, %v1900
    %vm1950 = vcmp.eq.f32.partialorder %v1786, %v1905
    %vm1951 = vcmp.eq.f32.partialorder %v1786, %v1910
    %vm1952 = vcmp.eq.f32.partialorder %v1786, %v1915
    %vm1953 = vcmp.eq.f32.partialorder %v1786, %v1920
    %vm1954 = vcmp.eq.f32.partialorder %v1786, %v1925
    %v1955 = vsel %vm1927, 1, 0
    %v1956 = vsel %vm1928, 1, 0
    %v1957 = vsel %vm1929, 1, 0
    %v1958 = vsel %vm1930, 1, 0
    %v1959 = vsel %vm1931, 1, 0
    %v1960 = vsel %vm1932, 1, 0
    %v1961 = vsel %vm1933, 1, 0
    %v1962 = vsel %vm1934, 1, 0
    %v1963 = vsel %vm1935, 1, 0
    %v1964 = vsel %vm1936, 1, 0
    %v1965 = vsel %vm1937, 1, 0
    %v1966 = vsel %vm1938, 1, 0
    %v1967 = vsel %vm1939, 1, 0
    %v1968 = vsel %vm1940, 1, 0
    %v1969 = vsel %vm1941, 1, 0
    %v1970 = vsel %vm1942, 1, 0
    %v1971 = vsel %vm1943, 1, 0
    %v1972 = vsel %vm1944, 1, 0
    %v1973 = vsel %vm1945, 1, 0
    %v1974 = vsel %vm1946, 1, 0
    %v1975 = vsel %vm1947, 1, 0
    %v1976 = vsel %vm1948, 1, 0
    %v1977 = vsel %vm1949, 1, 0
    %v1978 = vsel %vm1950, 1, 0
    %v1979 = vsel %vm1951, 1, 0
    %v1980 = vsel %vm1952, 1, 0
    %v1981 = vsel %vm1953, 1, 0
    %v1982 = vsel %vm1954, 1, 0
    %v1983 = vcvt.s32.f32 %v1955
    %v1984 = vcvt.s32.f32 %v1956
    %v1985 = vcvt.s32.f32 %v1957
    %v1986 = vcvt.s32.f32 %v1958
    %v1987 = vcvt.s32.f32 %v1959
    %v1988 = vcvt.s32.f32 %v1960
    %v1989 = vcvt.s32.f32 %v1961
    %v1990 = vcvt.s32.f32 %v1962
    %v1991 = vcvt.s32.f32 %v1963
    %v1992 = vcvt.s32.f32 %v1964
    %v1993 = vcvt.s32.f32 %v1965
    %v1994 = vcvt.s32.f32 %v1966
    %v1995 = vcvt.s32.f32 %v1967
    %v1996 = vcvt.s32.f32 %v1968
    %v1997 = vcvt.s32.f32 %v1969
    %v1998 = vcvt.s32.f32 %v1970
    %v1999 = vcvt.s32.f32 %v1971
    %v2000 = vcvt.s32.f32 %v1972
    %v2001 = vcvt.s32.f32 %v1973
    %v2002 = vcvt.s32.f32 %v1974
    %v2003 = vcvt.s32.f32 %v1975
    %v2004 = vcvt.s32.f32 %v1976
    %v2005 = vcvt.s32.f32 %v1977
    %v2006 = vcvt.s32.f32 %v1978
    %v2007 = vcvt.s32.f32 %v1979
    %v2008 = vcvt.s32.f32 %v1980
    %v2009 = vcvt.s32.f32 %v1981
    %v2010 = vcvt.s32.f32 %v1982
    %v2011 = vperm.slane %v1588, 0
    %2013 = vset.pattern.permute.xlu0 0
    %2014 = vperm.xlu0 %2013, %v1758
    %v2015 = vpop.permute.xlu0 %2014
    %2018 = vset.pattern.permute.xlu0 0
    %2019 = vperm.xlu0 %2018, %v1759
    %v2020 = vpop.permute.xlu0 %2019
    %2023 = vset.pattern.permute.xlu0 0
    %2024 = vperm.xlu0 %2023, %v1760
    %v2025 = vpop.permute.xlu0 %2024
    %2028 = vset.pattern.permute.xlu0 0
    %2029 = vperm.xlu0 %2028, %v1761
    %v2030 = vpop.permute.xlu0 %2029
    %2033 = vset.pattern.permute.xlu0 0
    %2034 = vperm.xlu0 %2033, %v1762
    %v2035 = vpop.permute.xlu0 %2034
    %2038 = vset.pattern.permute.xlu0 0
    %2039 = vperm.xlu0 %2038, %v1763
    %v2040 = vpop.permute.xlu0 %2039
    %2043 = vset.pattern.permute.xlu0 0
    %2044 = vperm.xlu0 %2043, %v1764
    %v2045 = vpop.permute.xlu0 %2044
    %2048 = vset.pattern.permute.xlu0 0
    %2049 = vperm.xlu0 %2048, %v1765
    %v2050 = vpop.permute.xlu0 %2049
    %2053 = vset.pattern.permute.xlu0 0
    %2054 = vperm.xlu0 %2053, %v1766
    %v2055 = vpop.permute.xlu0 %2054
    %2058 = vset.pattern.permute.xlu0 0
    %2059 = vperm.xlu0 %2058, %v1767
    %v2060 = vpop.permute.xlu0 %2059
    %2063 = vset.pattern.permute.xlu0 0
    %2064 = vperm.xlu0 %2063, %v1768
    %v2065 = vpop.permute.xlu0 %2064
    %2068 = vset.pattern.permute.xlu0 0
    %2069 = vperm.xlu0 %2068, %v1769
    %v2070 = vpop.permute.xlu0 %2069
    %2073 = vset.pattern.permute.xlu0 0
    %2074 = vperm.xlu0 %2073, %v1770
    %v2075 = vpop.permute.xlu0 %2074
    %2078 = vset.pattern.permute.xlu0 0
    %2079 = vperm.xlu0 %2078, %v1771
    %v2080 = vpop.permute.xlu0 %2079
    %2083 = vset.pattern.permute.xlu0 0
    %2084 = vperm.xlu0 %2083, %v1772
    %v2085 = vpop.permute.xlu0 %2084
    %2088 = vset.pattern.permute.xlu0 0
    %2089 = vperm.xlu0 %2088, %v1773
    %v2090 = vpop.permute.xlu0 %2089
    %2093 = vset.pattern.permute.xlu0 0
    %2094 = vperm.xlu0 %2093, %v1774
    %v2095 = vpop.permute.xlu0 %2094
    %2098 = vset.pattern.permute.xlu0 0
    %2099 = vperm.xlu0 %2098, %v1775
    %v2100 = vpop.permute.xlu0 %2099
    %2103 = vset.pattern.permute.xlu0 0
    %2104 = vperm.xlu0 %2103, %v1776
    %v2105 = vpop.permute.xlu0 %2104
    %2108 = vset.pattern.permute.xlu0 0
    %2109 = vperm.xlu0 %2108, %v1777
    %v2110 = vpop.permute.xlu0 %2109
    %2113 = vset.pattern.permute.xlu0 0
    %2114 = vperm.xlu0 %2113, %v1778
    %v2115 = vpop.permute.xlu0 %2114
    %2118 = vset.pattern.permute.xlu0 0
    %2119 = vperm.xlu0 %2118, %v1779
    %v2120 = vpop.permute.xlu0 %2119
    %2123 = vset.pattern.permute.xlu0 0
    %2124 = vperm.xlu0 %2123, %v1780
    %v2125 = vpop.permute.xlu0 %2124
    %2128 = vset.pattern.permute.xlu0 0
    %2129 = vperm.xlu0 %2128, %v1781
    %v2130 = vpop.permute.xlu0 %2129
    %2133 = vset.pattern.permute.xlu0 0
    %2134 = vperm.xlu0 %2133, %v1782
    %v2135 = vpop.permute.xlu0 %2134
    %2138 = vset.pattern.permute.xlu0 0
    %2139 = vperm.xlu0 %2138, %v1783
    %v2140 = vpop.permute.xlu0 %2139
    %2143 = vset.pattern.permute.xlu0 0
    %2144 = vperm.xlu0 %2143, %v1784
    %v2145 = vpop.permute.xlu0 %2144
    %2148 = vset.pattern.permute.xlu0 0
    %2149 = vperm.xlu0 %2148, %v1785
    %v2150 = vpop.permute.xlu0 %2149
    %v2152 = vsub.f32 %v2011, %v2015
    %v2153 = vsub.f32 %v2011, %v2020
    %v2154 = vsub.f32 %v2011, %v2025
    %v2155 = vsub.f32 %v2011, %v2030
    %v2156 = vsub.f32 %v2011, %v2035
    %v2157 = vsub.f32 %v2011, %v2040
    %v2158 = vsub.f32 %v2011, %v2045
    %v2159 = vsub.f32 %v2011, %v2050
    %v2160 = vsub.f32 %v2011, %v2055
    %v2161 = vsub.f32 %v2011, %v2060
    %v2162 = vsub.f32 %v2011, %v2065
    %v2163 = vsub.f32 %v2011, %v2070
    %v2164 = vsub.f32 %v2011, %v2075
    %v2165 = vsub.f32 %v2011, %v2080
    %v2166 = vsub.f32 %v2011, %v2085
    %v2167 = vsub.f32 %v2011, %v2090
    %v2168 = vsub.f32 %v2011, %v2095
    %v2169 = vsub.f32 %v2011, %v2100
    %v2170 = vsub.f32 %v2011, %v2105
    %v2171 = vsub.f32 %v2011, %v2110
    %v2172 = vsub.f32 %v2011, %v2115
    %v2173 = vsub.f32 %v2011, %v2120
    %v2174 = vsub.f32 %v2011, %v2125
    %v2175 = vsub.f32 %v2011, %v2130
    %v2176 = vsub.f32 %v2011, %v2135
    %v2177 = vsub.f32 %v2011, %v2140
    %v2178 = vsub.f32 %v2011, %v2145
    %v2179 = vsub.f32 %v2011, %v2150
    %v2180 = vand.u32 2147483647, %v2152
    %v2181 = vand.u32 2147483647, %v2153
    %v2182 = vand.u32 2147483647, %v2154
    %v2183 = vand.u32 2147483647, %v2155
    %v2184 = vand.u32 2147483647, %v2156
    %v2185 = vand.u32 2147483647, %v2157
    %v2186 = vand.u32 2147483647, %v2158
    %v2187 = vand.u32 2147483647, %v2159
    %v2188 = vand.u32 2147483647, %v2160
    %v2189 = vand.u32 2147483647, %v2161
    %v2190 = vand.u32 2147483647, %v2162
    %v2191 = vand.u32 2147483647, %v2163
    %v2192 = vand.u32 2147483647, %v2164
    %v2193 = vand.u32 2147483647, %v2165
    %v2194 = vand.u32 2147483647, %v2166
    %v2195 = vand.u32 2147483647, %v2167
    %v2196 = vand.u32 2147483647, %v2168
    %v2197 = vand.u32 2147483647, %v2169
    %v2198 = vand.u32 2147483647, %v2170
    %v2199 = vand.u32 2147483647, %v2171
    %v2200 = vand.u32 2147483647, %v2172
    %v2201 = vand.u32 2147483647, %v2173
    %v2202 = vand.u32 2147483647, %v2174
    %v2203 = vand.u32 2147483647, %v2175
    %v2204 = vand.u32 2147483647, %v2176
    %v2205 = vand.u32 2147483647, %v2177
    %v2206 = vand.u32 2147483647, %v2178
    %v2207 = vand.u32 2147483647, %v2179
    %v2208 = vsub.f32 1.0, %v2180
    %v2209 = vsub.f32 1.0, %v2181
    %v2210 = vsub.f32 1.0, %v2182
    %v2211 = vsub.f32 1.0, %v2183
    %v2212 = vsub.f32 1.0, %v2184
    %v2213 = vsub.f32 1.0, %v2185
    %v2214 = vsub.f32 1.0, %v2186
    %v2215 = vsub.f32 1.0, %v2187
    %v2216 = vsub.f32 1.0, %v2188
    %v2217 = vsub.f32 1.0, %v2189
    %v2218 = vsub.f32 1.0, %v2190
    %v2219 = vsub.f32 1.0, %v2191
    %v2220 = vsub.f32 1.0, %v2192
    %v2221 = vsub.f32 1.0, %v2193
    %v2222 = vsub.f32 1.0, %v2194
    %v2223 = vsub.f32 1.0, %v2195
    %v2224 = vsub.f32 1.0, %v2196
    %v2225 = vsub.f32 1.0, %v2197
    %v2226 = vsub.f32 1.0, %v2198
    %v2227 = vsub.f32 1.0, %v2199
    %v2228 = vsub.f32 1.0, %v2200
    %v2229 = vsub.f32 1.0, %v2201
    %v2230 = vsub.f32 1.0, %v2202
    %v2231 = vsub.f32 1.0, %v2203
    %v2232 = vsub.f32 1.0, %v2204
    %v2233 = vsub.f32 1.0, %v2205
    %v2234 = vsub.f32 1.0, %v2206
    %v2235 = vsub.f32 1.0, %v2207
    %v2236 = vmax.f32 %v2208, 0.0
    %v2237 = vmax.f32 %v2209, 0.0
    %v2238 = vmax.f32 %v2210, 0.0
    %v2239 = vmax.f32 %v2211, 0.0
    %v2240 = vmax.f32 %v2212, 0.0
    %v2241 = vmax.f32 %v2213, 0.0
    %v2242 = vmax.f32 %v2214, 0.0
    %v2243 = vmax.f32 %v2215, 0.0
    %v2244 = vmax.f32 %v2216, 0.0
    %v2245 = vmax.f32 %v2217, 0.0
    %v2246 = vmax.f32 %v2218, 0.0
    %v2247 = vmax.f32 %v2219, 0.0
    %v2248 = vmax.f32 %v2220, 0.0
    %v2249 = vmax.f32 %v2221, 0.0
    %v2250 = vmax.f32 %v2222, 0.0
    %v2251 = vmax.f32 %v2223, 0.0
    %v2252 = vmax.f32 %v2224, 0.0
    %v2253 = vmax.f32 %v2225, 0.0
    %v2254 = vmax.f32 %v2226, 0.0
    %v2255 = vmax.f32 %v2227, 0.0
    %v2256 = vmax.f32 %v2228, 0.0
    %v2257 = vmax.f32 %v2229, 0.0
    %v2258 = vmax.f32 %v2230, 0.0
    %v2259 = vmax.f32 %v2231, 0.0
    %v2260 = vmax.f32 %v2232, 0.0
    %v2261 = vmax.f32 %v2233, 0.0
    %v2262 = vmax.f32 %v2234, 0.0
    %v2263 = vmax.f32 %v2235, 0.0
    %v2264 = vmul.f32 %v1983, %v2236
    %v2265 = vmul.f32 %v1984, %v2237
    %v2266 = vmul.f32 %v1985, %v2238
    %v2267 = vmul.f32 %v1986, %v2239
    %v2268 = vmul.f32 %v1987, %v2240
    %v2269 = vmul.f32 %v1988, %v2241
    %v2270 = vmul.f32 %v1989, %v2242
    %v2271 = vmul.f32 %v1990, %v2243
    %v2272 = vmul.f32 %v1991, %v2244
    %v2273 = vmul.f32 %v1992, %v2245
    %v2274 = vmul.f32 %v1993, %v2246
    %v2275 = vmul.f32 %v1994, %v2247
    %v2276 = vmul.f32 %v1995, %v2248
    %v2277 = vmul.f32 %v1996, %v2249
    %v2278 = vmul.f32 %v1997, %v2250
    %v2279 = vmul.f32 %v1998, %v2251
    %v2280 = vmul.f32 %v1999, %v2252
    %v2281 = vmul.f32 %v2000, %v2253
    %v2282 = vmul.f32 %v2001, %v2254
    %v2283 = vmul.f32 %v2002, %v2255
    %v2284 = vmul.f32 %v2003, %v2256
    %v2285 = vmul.f32 %v2004, %v2257
    %v2286 = vmul.f32 %v2005, %v2258
    %v2287 = vmul.f32 %v2006, %v2259
    %v2288 = vmul.f32 %v2007, %v2260
    %v2289 = vmul.f32 %v2008, %v2261
    %v2290 = vmul.f32 %v2009, %v2262
    %v2291 = vmul.f32 %v2010, %v2263
    %2293 = vset.pattern.permute.xlu0 0
    %2294 = vperm.xlu0 %2293, %v1702
    %v2295 = vpop.permute.xlu0 %2294
    %2298 = vset.pattern.permute.xlu0 0
    %2299 = vperm.xlu0 %2298, %v1703
    %v2300 = vpop.permute.xlu0 %2299
    %2303 = vset.pattern.permute.xlu0 0
    %2304 = vperm.xlu0 %2303, %v1704
    %v2305 = vpop.permute.xlu0 %2304
    %2308 = vset.pattern.permute.xlu0 0
    %2309 = vperm.xlu0 %2308, %v1705
    %v2310 = vpop.permute.xlu0 %2309
    %2313 = vset.pattern.permute.xlu0 0
    %2314 = vperm.xlu0 %2313, %v1706
    %v2315 = vpop.permute.xlu0 %2314
    %2318 = vset.pattern.permute.xlu0 0
    %2319 = vperm.xlu0 %2318, %v1707
    %v2320 = vpop.permute.xlu0 %2319
    %2323 = vset.pattern.permute.xlu0 0
    %2324 = vperm.xlu0 %2323, %v1708
    %v2325 = vpop.permute.xlu0 %2324
    %2328 = vset.pattern.permute.xlu0 0
    %2329 = vperm.xlu0 %2328, %v1709
    %v2330 = vpop.permute.xlu0 %2329
    %2333 = vset.pattern.permute.xlu0 0
    %2334 = vperm.xlu0 %2333, %v1710
    %v2335 = vpop.permute.xlu0 %2334
    %2338 = vset.pattern.permute.xlu0 0
    %2339 = vperm.xlu0 %2338, %v1711
    %v2340 = vpop.permute.xlu0 %2339
    %2343 = vset.pattern.permute.xlu0 0
    %2344 = vperm.xlu0 %2343, %v1712
    %v2345 = vpop.permute.xlu0 %2344
    %2348 = vset.pattern.permute.xlu0 0
    %2349 = vperm.xlu0 %2348, %v1713
    %v2350 = vpop.permute.xlu0 %2349
    %2353 = vset.pattern.permute.xlu0 0
    %2354 = vperm.xlu0 %2353, %v1714
    %v2355 = vpop.permute.xlu0 %2354
    %2358 = vset.pattern.permute.xlu0 0
    %2359 = vperm.xlu0 %2358, %v1715
    %v2360 = vpop.permute.xlu0 %2359
    %2363 = vset.pattern.permute.xlu0 0
    %2364 = vperm.xlu0 %2363, %v1716
    %v2365 = vpop.permute.xlu0 %2364
    %2368 = vset.pattern.permute.xlu0 0
    %2369 = vperm.xlu0 %2368, %v1717
    %v2370 = vpop.permute.xlu0 %2369
    %2373 = vset.pattern.permute.xlu0 0
    %2374 = vperm.xlu0 %2373, %v1718
    %v2375 = vpop.permute.xlu0 %2374
    %2378 = vset.pattern.permute.xlu0 0
    %2379 = vperm.xlu0 %2378, %v1719
    %v2380 = vpop.permute.xlu0 %2379
    %2383 = vset.pattern.permute.xlu0 0
    %2384 = vperm.xlu0 %2383, %v1720
    %v2385 = vpop.permute.xlu0 %2384
    %2388 = vset.pattern.permute.xlu0 0
    %2389 = vperm.xlu0 %2388, %v1721
    %v2390 = vpop.permute.xlu0 %2389
    %2393 = vset.pattern.permute.xlu0 0
    %2394 = vperm.xlu0 %2393, %v1722
    %v2395 = vpop.permute.xlu0 %2394
    %2398 = vset.pattern.permute.xlu0 0
    %2399 = vperm.xlu0 %2398, %v1723
    %v2400 = vpop.permute.xlu0 %2399
    %2403 = vset.pattern.permute.xlu0 0
    %2404 = vperm.xlu0 %2403, %v1724
    %v2405 = vpop.permute.xlu0 %2404
    %2408 = vset.pattern.permute.xlu0 0
    %2409 = vperm.xlu0 %2408, %v1725
    %v2410 = vpop.permute.xlu0 %2409
    %2413 = vset.pattern.permute.xlu0 0
    %2414 = vperm.xlu0 %2413, %v1726
    %v2415 = vpop.permute.xlu0 %2414
    %2418 = vset.pattern.permute.xlu0 0
    %2419 = vperm.xlu0 %2418, %v1727
    %v2420 = vpop.permute.xlu0 %2419
    %2423 = vset.pattern.permute.xlu0 0
    %2424 = vperm.xlu0 %2423, %v1728
    %v2425 = vpop.permute.xlu0 %2424
    %2428 = vset.pattern.permute.xlu0 0
    %2429 = vperm.xlu0 %2428, %v1729
    %v2430 = vpop.permute.xlu0 %2429
    %v2432 = vmul.f32 %v2264, %v2295
    %v2433 = vmul.f32 %v2265, %v2300
    %v2434 = vmul.f32 %v2266, %v2305
    %v2435 = vmul.f32 %v2267, %v2310
    %v2436 = vmul.f32 %v2268, %v2315
    %v2437 = vmul.f32 %v2269, %v2320
    %v2438 = vmul.f32 %v2270, %v2325
    %v2439 = vmul.f32 %v2271, %v2330
    %v2440 = vmul.f32 %v2272, %v2335
    %v2441 = vmul.f32 %v2273, %v2340
    %v2442 = vmul.f32 %v2274, %v2345
    %v2443 = vmul.f32 %v2275, %v2350
    %v2444 = vmul.f32 %v2276, %v2355
    %v2445 = vmul.f32 %v2277, %v2360
    %v2446 = vmul.f32 %v2278, %v2365
    %v2447 = vmul.f32 %v2279, %v2370
    %v2448 = vmul.f32 %v2280, %v2375
    %v2449 = vmul.f32 %v2281, %v2380
    %v2450 = vmul.f32 %v2282, %v2385
    %v2451 = vmul.f32 %v2283, %v2390
    %v2452 = vmul.f32 %v2284, %v2395
    %v2453 = vmul.f32 %v2285, %v2400
    %v2454 = vmul.f32 %v2286, %v2405
    %v2455 = vmul.f32 %v2287, %v2410
    %v2456 = vmul.f32 %v2288, %v2415
    %v2457 = vmul.f32 %v2289, %v2420
    %v2458 = vmul.f32 %v2290, %v2425
    %v2459 = vmul.f32 %v2291, %v2430
    %vm2460 = vcmask 261120
    %v2462 = vsel %vm2460, %v2432, 0
    %v2465 = vsel %vm2460, %v2433, 0
    %v2468 = vsel %vm2460, %v2434, 0
    %v2471 = vsel %vm2460, %v2435, 0
    %v2474 = vsel %vm2460, %v2436, 0
    %v2477 = vsel %vm2460, %v2437, 0
    %v2480 = vsel %vm2460, %v2438, 0
    %v2483 = vsel %vm2460, %v2439, 0
    %v2486 = vsel %vm2460, %v2440, 0
    %v2489 = vsel %vm2460, %v2441, 0
    %v2492 = vsel %vm2460, %v2442, 0
    %v2495 = vsel %vm2460, %v2443, 0
    %v2498 = vsel %vm2460, %v2444, 0
    %v2501 = vsel %vm2460, %v2445, 0
    %v2504 = vsel %vm2460, %v2446, 0
    %v2507 = vsel %vm2460, %v2447, 0
    %v2510 = vsel %vm2460, %v2448, 0
    %v2513 = vsel %vm2460, %v2449, 0
    %v2516 = vsel %vm2460, %v2450, 0
    %v2519 = vsel %vm2460, %v2451, 0
    %v2522 = vsel %vm2460, %v2452, 0
    %v2525 = vsel %vm2460, %v2453, 0
    %v2528 = vsel %vm2460, %v2454, 0
    %v2531 = vsel %vm2460, %v2455, 0
    %v2534 = vsel %vm2460, %v2456, 0
    %v2537 = vsel %vm2460, %v2457, 0
    %v2540 = vsel %vm2460, %v2458, 0
    %v2543 = vsel %vm2460, %v2459, 0
    %2545 = vmatpush.msra.mxu0 0.0
    %2546 = vmatpush.msra.mxu0 0.0
    %2547 = vmatpush.msra.mxu0 0.0
    %2548 = vmatpush.msra.mxu0 0.0
    %2549 = vmatpush.msra.mxu0 0.0
    %2550 = vmatpush.msra.mxu0 0.0
    %2551 = vmatpush.msra.mxu0 0.0
    %2552 = vmatpush.msra.mxu0 0.0
    %2553 = vmatpush.msra.mxu0 0.0
    %2554 = vmatpush.msra.mxu0 0.0
    %2555 = vmatpush.msra.mxu0 0.0
    %2556 = vmatpush.msra.mxu0 0.0
    %2557 = vmatpush.msra.mxu0 %v1559
    %2558 = vmatpush.msra.mxu0 %v1558
    %2559 = vmatpush.msra.mxu0 %v1557
    %2560 = vmatpush.msra.mxu0 %v1556
    %2561 = vmatmul.f32.gmra.mxu0 %v2462
    %v2562 = vpop.f32.mrf.mxu0
    %v2563 = vadd.f32 0.0, %v2562
    %2564 = vmatmul.f32.gmra.mxu0 %v2465
    %v2565 = vpop.f32.mrf.mxu0
    %v2566 = vadd.f32 0.0, %v2565
    %2567 = vmatmul.f32.gmra.mxu0 %v2468
    %v2568 = vpop.f32.mrf.mxu0
    %v2569 = vadd.f32 0.0, %v2568
    %2570 = vmatmul.f32.gmra.mxu0 %v2471
    %v2571 = vpop.f32.mrf.mxu0
    %v2572 = vadd.f32 0.0, %v2571
    %2573 = vmatmul.f32.gmra.mxu0 %v2474
    %v2574 = vpop.f32.mrf.mxu0
    %v2575 = vadd.f32 0.0, %v2574
    %2576 = vmatmul.f32.gmra.mxu0 %v2477
    %v2577 = vpop.f32.mrf.mxu0
    %v2578 = vadd.f32 0.0, %v2577
    %2579 = vmatmul.f32.gmra.mxu0 %v2480
    %v2580 = vpop.f32.mrf.mxu0
    %v2581 = vadd.f32 0.0, %v2580
    %2582 = vmatmul.f32.gmra.mxu0 %v2483
    %v2583 = vpop.f32.mrf.mxu0
    %v2584 = vadd.f32 0.0, %v2583
    %2585 = vmatmul.f32.gmra.mxu0 %v2486
    %v2586 = vpop.f32.mrf.mxu0
    %v2587 = vadd.f32 0.0, %v2586
    %2588 = vmatmul.f32.gmra.mxu0 %v2489
    %v2589 = vpop.f32.mrf.mxu0
    %v2590 = vadd.f32 0.0, %v2589
    %2591 = vmatmul.f32.gmra.mxu0 %v2492
    %v2592 = vpop.f32.mrf.mxu0
    %v2593 = vadd.f32 0.0, %v2592
    %2594 = vmatmul.f32.gmra.mxu0 %v2495
    %v2595 = vpop.f32.mrf.mxu0
    %v2596 = vadd.f32 0.0, %v2595
    %2597 = vmatmul.f32.gmra.mxu0 %v2498
    %v2598 = vpop.f32.mrf.mxu0
    %v2599 = vadd.f32 0.0, %v2598
    %2600 = vmatmul.f32.gmra.mxu0 %v2501
    %v2601 = vpop.f32.mrf.mxu0
    %v2602 = vadd.f32 0.0, %v2601
    %2603 = vmatmul.f32.gmra.mxu0 %v2504
    %v2604 = vpop.f32.mrf.mxu0
    %v2605 = vadd.f32 0.0, %v2604
    %2606 = vmatmul.f32.gmra.mxu0 %v2507
    %v2607 = vpop.f32.mrf.mxu0
    %v2608 = vadd.f32 0.0, %v2607
    %2609 = vmatmul.f32.gmra.mxu0 %v2510
    %v2610 = vpop.f32.mrf.mxu0
    %v2611 = vadd.f32 0.0, %v2610
    %2612 = vmatmul.f32.gmra.mxu0 %v2513
    %v2613 = vpop.f32.mrf.mxu0
    %v2614 = vadd.f32 0.0, %v2613
    %2615 = vmatmul.f32.gmra.mxu0 %v2516
    %v2616 = vpop.f32.mrf.mxu0
    %v2617 = vadd.f32 0.0, %v2616
    %2618 = vmatmul.f32.gmra.mxu0 %v2519
    %v2619 = vpop.f32.mrf.mxu0
    %v2620 = vadd.f32 0.0, %v2619
    %2621 = vmatmul.f32.gmra.mxu0 %v2522
    %v2622 = vpop.f32.mrf.mxu0
    %v2623 = vadd.f32 0.0, %v2622
    %2624 = vmatmul.f32.gmra.mxu0 %v2525
    %v2625 = vpop.f32.mrf.mxu0
    %v2626 = vadd.f32 0.0, %v2625
    %2627 = vmatmul.f32.gmra.mxu0 %v2528
    %v2628 = vpop.f32.mrf.mxu0
    %v2629 = vadd.f32 0.0, %v2628
    %2630 = vmatmul.f32.gmra.mxu0 %v2531
    %v2631 = vpop.f32.mrf.mxu0
    %v2632 = vadd.f32 0.0, %v2631
    %2633 = vmatmul.f32.gmra.mxu0 %v2534
    %v2634 = vpop.f32.mrf.mxu0
    %v2635 = vadd.f32 0.0, %v2634
    %2636 = vmatmul.f32.gmra.mxu0 %v2537
    %v2637 = vpop.f32.mrf.mxu0
    %v2638 = vadd.f32 0.0, %v2637
    %2639 = vmatmul.f32.gmra.mxu0 %v2540
    %v2640 = vpop.f32.mrf.mxu0
    %v2641 = vadd.f32 0.0, %v2640
    %2642 = vmatmul.f32.gmra.mxu0 %v2543
    %v2643 = vpop.f32.mrf.mxu0
    %v2644 = vadd.f32 0.0, %v2643
    %2645 = vdwg.mxu0
    %v2646 = vld [vmem:[%s4] ss:$2 sm:$0xff]
    %s2647 = scalar_lea.vmem %s4, 1
    %v2648 = vld [vmem:[%s2647] ss:$2 sm:$0xff]
    %v2649 = vld [vmem:[%s5] sm:$0xff]
    %v2650 = vld [vmem:[%s5 + $0x8] sm:$0xff]
    %v2651 = vld [vmem:[%s5 + $0x10] sm:$0xff]
    %v2652 = vld [vmem:[%s5 + $0x18] sm:$0xff]
    %v2653 = vld [vmem:[%s5 + $0x20] sm:$0xff]
    %v2654 = vld [vmem:[%s5 + $0x28] sm:$0xff]
    %vm2655 = vcmp.ge.f32.partialorder %v2646, -1.0
    %vm2656 = vcmp.le.f32.partialorder %v2646, 16.0
    %vm2657 = vmand %vm2655, %vm2656
    %v2658 = vsel %vm2657, 1, 0
    %v2659 = vcvt.s32.f32 %v2658
    %v2660 = vmax.f32 %v2646, 0.0
    %v2661 = vmin.f32 %v2660, 15.0
    %2663 = vset.pattern.permute.xlu0 1
    %2664 = vperm.xlu0 %2663, %v2649
    %v2665 = vpop.permute.xlu0 %2664
    %2668 = vset.pattern.permute.xlu0 1
    %2669 = vperm.xlu0 %2668, %v2650
    %v2670 = vpop.permute.xlu0 %2669
    %2673 = vset.pattern.permute.xlu0 1
    %2674 = vperm.xlu0 %2673, %v2651
    %v2675 = vpop.permute.xlu0 %2674
    %2678 = vset.pattern.permute.xlu0 1
    %2679 = vperm.xlu0 %2678, %v2652
    %v2680 = vpop.permute.xlu0 %2679
    %2683 = vset.pattern.permute.xlu0 1
    %2684 = vperm.xlu0 %2683, %v2653
    %v2685 = vpop.permute.xlu0 %2684
    %2688 = vset.pattern.permute.xlu0 1
    %2689 = vperm.xlu0 %2688, %v2654
    %v2690 = vpop.permute.xlu0 %2689
    %v2693 = vperm.slane %v2648, 0
    %v2694 = vperm.slane %v2648, 1
    %v2695 = vperm.slane %v2648, 2
    %v2696 = vperm.slane %v2648, 3
    %v2697 = vperm.slane %v2648, 4
    %v2698 = vperm.slane %v2648, 5
    %v2699 = vperm.slane %v2648, 6
    %v2700 = vperm.slane %v2648, 7
    %vm2709 = vcmp.eq.f32.partialorder %v2665, %v2693
    %vm2710 = vcmp.eq.f32.partialorder %v2665, %v2694
    %vm2711 = vcmp.eq.f32.partialorder %v2665, %v2695
    %vm2712 = vcmp.eq.f32.partialorder %v2665, %v2696
    %vm2713 = vcmp.eq.f32.partialorder %v2665, %v2697
    %vm2714 = vcmp.eq.f32.partialorder %v2665, %v2698
    %vm2715 = vcmp.eq.f32.partialorder %v2665, %v2699
    %vm2716 = vcmp.eq.f32.partialorder %v2665, %v2700
    %vm2717 = vcmp.eq.f32.partialorder %v2670, %v2693
    %vm2718 = vcmp.eq.f32.partialorder %v2670, %v2694
    %vm2719 = vcmp.eq.f32.partialorder %v2670, %v2695
    %vm2720 = vcmp.eq.f32.partialorder %v2670, %v2696
    %vm2721 = vcmp.eq.f32.partialorder %v2670, %v2697
    %vm2722 = vcmp.eq.f32.partialorder %v2670, %v2698
    %vm2723 = vcmp.eq.f32.partialorder %v2670, %v2699
    %vm2724 = vcmp.eq.f32.partialorder %v2670, %v2700
    %vm2725 = vcmp.eq.f32.partialorder %v2675, %v2693
    %vm2726 = vcmp.eq.f32.partialorder %v2675, %v2694
    %vm2727 = vcmp.eq.f32.partialorder %v2675, %v2695
    %vm2728 = vcmp.eq.f32.partialorder %v2675, %v2696
    %vm2729 = vcmp.eq.f32.partialorder %v2675, %v2697
    %vm2730 = vcmp.eq.f32.partialorder %v2675, %v2698
    %vm2731 = vcmp.eq.f32.partialorder %v2675, %v2699
    %vm2732 = vcmp.eq.f32.partialorder %v2675, %v2700
    %vm2733 = vcmp.eq.f32.partialorder %v2680, %v2693
    %vm2734 = vcmp.eq.f32.partialorder %v2680, %v2694
    %vm2735 = vcmp.eq.f32.partialorder %v2680, %v2695
    %vm2736 = vcmp.eq.f32.partialorder %v2680, %v2696
    %vm2737 = vcmp.eq.f32.partialorder %v2680, %v2697
    %vm2738 = vcmp.eq.f32.partialorder %v2680, %v2698
    %vm2739 = vcmp.eq.f32.partialorder %v2680, %v2699
    %vm2740 = vcmp.eq.f32.partialorder %v2680, %v2700
    %vm2741 = vcmp.eq.f32.partialorder %v2685, %v2693
    %vm2742 = vcmp.eq.f32.partialorder %v2685, %v2694
    %vm2743 = vcmp.eq.f32.partialorder %v2685, %v2695
    %vm2744 = vcmp.eq.f32.partialorder %v2685, %v2696
    %vm2745 = vcmp.eq.f32.partialorder %v2685, %v2697
    %vm2746 = vcmp.eq.f32.partialorder %v2685, %v2698
    %vm2747 = vcmp.eq.f32.partialorder %v2685, %v2699
    %vm2748 = vcmp.eq.f32.partialorder %v2685, %v2700
    %vm2749 = vcmp.eq.f32.partialorder %v2690, %v2693
    %vm2750 = vcmp.eq.f32.partialorder %v2690, %v2694
    %vm2751 = vcmp.eq.f32.partialorder %v2690, %v2695
    %vm2752 = vcmp.eq.f32.partialorder %v2690, %v2696
    %vm2753 = vcmp.eq.f32.partialorder %v2690, %v2697
    %vm2754 = vcmp.eq.f32.partialorder %v2690, %v2698
    %vm2755 = vcmp.eq.f32.partialorder %v2690, %v2699
    %vm2756 = vcmp.eq.f32.partialorder %v2690, %v2700
    %v2757 = vsel %vm2709, 1, 0
    %v2758 = vsel %vm2710, 1, 0
    %v2759 = vsel %vm2711, 1, 0
    %v2760 = vsel %vm2712, 1, 0
    %v2761 = vsel %vm2713, 1, 0
    %v2762 = vsel %vm2714, 1, 0
    %v2763 = vsel %vm2715, 1, 0
    %v2764 = vsel %vm2716, 1, 0
    %v2765 = vsel %vm2717, 1, 0
    %v2766 = vsel %vm2718, 1, 0
    %v2767 = vsel %vm2719, 1, 0
    %v2768 = vsel %vm2720, 1, 0
    %v2769 = vsel %vm2721, 1, 0
    %v2770 = vsel %vm2722, 1, 0
    %v2771 = vsel %vm2723, 1, 0
    %v2772 = vsel %vm2724, 1, 0
    %v2773 = vsel %vm2725, 1, 0
    %v2774 = vsel %vm2726, 1, 0
    %v2775 = vsel %vm2727, 1, 0
    %v2776 = vsel %vm2728, 1, 0
    %v2777 = vsel %vm2729, 1, 0
    %v2778 = vsel %vm2730, 1, 0
    %v2779 = vsel %vm2731, 1, 0
    %v2780 = vsel %vm2732, 1, 0
    %v2781 = vsel %vm2733, 1, 0
    %v2782 = vsel %vm2734, 1, 0
    %v2783 = vsel %vm2735, 1, 0
    %v2784 = vsel %vm2736, 1, 0
    %v2785 = vsel %vm2737, 1, 0
    %v2786 = vsel %vm2738, 1, 0
    %v2787 = vsel %vm2739, 1, 0
    %v2788 = vsel %vm2740, 1, 0
    %v2789 = vsel %vm2741, 1, 0
    %v2790 = vsel %vm2742, 1, 0
    %v2791 = vsel %vm2743, 1, 0
    %v2792 = vsel %vm2744, 1, 0
    %v2793 = vsel %vm2745, 1, 0
    %v2794 = vsel %vm2746, 1, 0
    %v2795 = vsel %vm2747, 1, 0
    %v2796 = vsel %vm2748, 1, 0
    %v2797 = vsel %vm2749, 1, 0
    %v2798 = vsel %vm2750, 1, 0
    %v2799 = vsel %vm2751, 1, 0
    %v2800 = vsel %vm2752, 1, 0
    %v2801 = vsel %vm2753, 1, 0
    %v2802 = vsel %vm2754, 1, 0
    %v2803 = vsel %vm2755, 1, 0
    %v2804 = vsel %vm2756, 1, 0
    %v2805 = vcvt.s32.f32 %v2757
    %v2806 = vcvt.s32.f32 %v2758
    %v2807 = vcvt.s32.f32 %v2759
    %v2808 = vcvt.s32.f32 %v2760
    %v2809 = vcvt.s32.f32 %v2761
    %v2810 = vcvt.s32.f32 %v2762
    %v2811 = vcvt.s32.f32 %v2763
    %v2812 = vcvt.s32.f32 %v2764
    %v2813 = vcvt.s32.f32 %v2765
    %v2814 = vcvt.s32.f32 %v2766
    %v2815 = vcvt.s32.f32 %v2767
    %v2816 = vcvt.s32.f32 %v2768
    %v2817 = vcvt.s32.f32 %v2769
    %v2818 = vcvt.s32.f32 %v2770
    %v2819 = vcvt.s32.f32 %v2771
    %v2820 = vcvt.s32.f32 %v2772
    %v2821 = vcvt.s32.f32 %v2773
    %v2822 = vcvt.s32.f32 %v2774
    %v2823 = vcvt.s32.f32 %v2775
    %v2824 = vcvt.s32.f32 %v2776
    %v2825 = vcvt.s32.f32 %v2777
    %v2826 = vcvt.s32.f32 %v2778
    %v2827 = vcvt.s32.f32 %v2779
    %v2828 = vcvt.s32.f32 %v2780
    %v2829 = vcvt.s32.f32 %v2781
    %v2830 = vcvt.s32.f32 %v2782
    %v2831 = vcvt.s32.f32 %v2783
    %v2832 = vcvt.s32.f32 %v2784
    %v2833 = vcvt.s32.f32 %v2785
    %v2834 = vcvt.s32.f32 %v2786
    %v2835 = vcvt.s32.f32 %v2787
    %v2836 = vcvt.s32.f32 %v2788
    %v2837 = vcvt.s32.f32 %v2789
    %v2838 = vcvt.s32.f32 %v2790
    %v2839 = vcvt.s32.f32 %v2791
    %v2840 = vcvt.s32.f32 %v2792
    %v2841 = vcvt.s32.f32 %v2793
    %v2842 = vcvt.s32.f32 %v2794
    %v2843 = vcvt.s32.f32 %v2795
    %v2844 = vcvt.s32.f32 %v2796
    %v2845 = vcvt.s32.f32 %v2797
    %v2846 = vcvt.s32.f32 %v2798
    %v2847 = vcvt.s32.f32 %v2799
    %v2848 = vcvt.s32.f32 %v2800
    %v2849 = vcvt.s32.f32 %v2801
    %v2850 = vcvt.s32.f32 %v2802
    %v2851 = vcvt.s32.f32 %v2803
    %v2852 = vcvt.s32.f32 %v2804
    %2853 = vset.pattern.permute.xlu0 0
    %2854 = vperm.xlu0 %2853, %v2649
    %v2855 = vpop.permute.xlu0 %2854
    %2857 = vset.pattern.permute.xlu0 0
    %2858 = vperm.xlu0 %2857, %v2650
    %v2859 = vpop.permute.xlu0 %2858
    %2861 = vset.pattern.permute.xlu0 0
    %2862 = vperm.xlu0 %2861, %v2651
    %v2863 = vpop.permute.xlu0 %2862
    %2865 = vset.pattern.permute.xlu0 0
    %2866 = vperm.xlu0 %2865, %v2652
    %v2867 = vpop.permute.xlu0 %2866
    %2869 = vset.pattern.permute.xlu0 0
    %2870 = vperm.xlu0 %2869, %v2653
    %v2871 = vpop.permute.xlu0 %2870
    %2873 = vset.pattern.permute.xlu0 0
    %2874 = vperm.xlu0 %2873, %v2654
    %v2875 = vpop.permute.xlu0 %2874
    %v2878 = vperm.slane %v2661, 0
    %v2879 = vperm.slane %v2661, 1
    %v2880 = vperm.slane %v2661, 2
    %v2881 = vperm.slane %v2661, 3
    %v2882 = vperm.slane %v2661, 4
    %v2883 = vperm.slane %v2661, 5
    %v2884 = vperm.slane %v2661, 6
    %v2885 = vperm.slane %v2661, 7
    %v2894 = vsub.f32 %v2855, %v2878
    %v2895 = vsub.f32 %v2855, %v2879
    %v2896 = vsub.f32 %v2855, %v2880
    %v2897 = vsub.f32 %v2855, %v2881
    %v2898 = vsub.f32 %v2855, %v2882
    %v2899 = vsub.f32 %v2855, %v2883
    %v2900 = vsub.f32 %v2855, %v2884
    %v2901 = vsub.f32 %v2855, %v2885
    %v2902 = vsub.f32 %v2859, %v2878
    %v2903 = vsub.f32 %v2859, %v2879
    %v2904 = vsub.f32 %v2859, %v2880
    %v2905 = vsub.f32 %v2859, %v2881
    %v2906 = vsub.f32 %v2859, %v2882
    %v2907 = vsub.f32 %v2859, %v2883
    %v2908 = vsub.f32 %v2859, %v2884
    %v2909 = vsub.f32 %v2859, %v2885
    %v2910 = vsub.f32 %v2863, %v2878
    %v2911 = vsub.f32 %v2863, %v2879
    %v2912 = vsub.f32 %v2863, %v2880
    %v2913 = vsub.f32 %v2863, %v2881
    %v2914 = vsub.f32 %v2863, %v2882
    %v2915 = vsub.f32 %v2863, %v2883
    %v2916 = vsub.f32 %v2863, %v2884
    %v2917 = vsub.f32 %v2863, %v2885
    %v2918 = vsub.f32 %v2867, %v2878
    %v2919 = vsub.f32 %v2867, %v2879
    %v2920 = vsub.f32 %v2867, %v2880
    %v2921 = vsub.f32 %v2867, %v2881
    %v2922 = vsub.f32 %v2867, %v2882
    %v2923 = vsub.f32 %v2867, %v2883
    %v2924 = vsub.f32 %v2867, %v2884
    %v2925 = vsub.f32 %v2867, %v2885
    %v2926 = vsub.f32 %v2871, %v2878
    %v2927 = vsub.f32 %v2871, %v2879
    %v2928 = vsub.f32 %v2871, %v2880
    %v2929 = vsub.f32 %v2871, %v2881
    %v2930 = vsub.f32 %v2871, %v2882
    %v2931 = vsub.f32 %v2871, %v2883
    %v2932 = vsub.f32 %v2871, %v2884
    %v2933 = vsub.f32 %v2871, %v2885
    %v2934 = vsub.f32 %v2875, %v2878
    %v2935 = vsub.f32 %v2875, %v2879
    %v2936 = vsub.f32 %v2875, %v2880
    %v2937 = vsub.f32 %v2875, %v2881
    %v2938 = vsub.f32 %v2875, %v2882
    %v2939 = vsub.f32 %v2875, %v2883
    %v2940 = vsub.f32 %v2875, %v2884
    %v2941 = vsub.f32 %v2875, %v2885
    %v2942 = vand.u32 2147483647, %v2894
    %v2943 = vand.u32 2147483647, %v2895
    %v2944 = vand.u32 2147483647, %v2896
    %v2945 = vand.u32 2147483647, %v2897
    %v2946 = vand.u32 2147483647, %v2898
    %v2947 = vand.u32 2147483647, %v2899
    %v2948 = vand.u32 2147483647, %v2900
    %v2949 = vand.u32 2147483647, %v2901
    %v2950 = vand.u32 2147483647, %v2902
    %v2951 = vand.u32 2147483647, %v2903
    %v2952 = vand.u32 2147483647, %v2904
    %v2953 = vand.u32 2147483647, %v2905
    %v2954 = vand.u32 2147483647, %v2906
    %v2955 = vand.u32 2147483647, %v2907
    %v2956 = vand.u32 2147483647, %v2908
    %v2957 = vand.u32 2147483647, %v2909
    %v2958 = vand.u32 2147483647, %v2910
    %v2959 = vand.u32 2147483647, %v2911
    %v2960 = vand.u32 2147483647, %v2912
    %v2961 = vand.u32 2147483647, %v2913
    %v2962 = vand.u32 2147483647, %v2914
    %v2963 = vand.u32 2147483647, %v2915
    %v2964 = vand.u32 2147483647, %v2916
    %v2965 = vand.u32 2147483647, %v2917
    %v2966 = vand.u32 2147483647, %v2918
    %v2967 = vand.u32 2147483647, %v2919
    %v2968 = vand.u32 2147483647, %v2920
    %v2969 = vand.u32 2147483647, %v2921
    %v2970 = vand.u32 2147483647, %v2922
    %v2971 = vand.u32 2147483647, %v2923
    %v2972 = vand.u32 2147483647, %v2924
    %v2973 = vand.u32 2147483647, %v2925
    %v2974 = vand.u32 2147483647, %v2926
    %v2975 = vand.u32 2147483647, %v2927
    %v2976 = vand.u32 2147483647, %v2928
    %v2977 = vand.u32 2147483647, %v2929
    %v2978 = vand.u32 2147483647, %v2930
    %v2979 = vand.u32 2147483647, %v2931
    %v2980 = vand.u32 2147483647, %v2932
    %v2981 = vand.u32 2147483647, %v2933
    %v2982 = vand.u32 2147483647, %v2934
    %v2983 = vand.u32 2147483647, %v2935
    %v2984 = vand.u32 2147483647, %v2936
    %v2985 = vand.u32 2147483647, %v2937
    %v2986 = vand.u32 2147483647, %v2938
    %v2987 = vand.u32 2147483647, %v2939
    %v2988 = vand.u32 2147483647, %v2940
    %v2989 = vand.u32 2147483647, %v2941
    %v2990 = vsub.f32 1.0, %v2942
    %v2991 = vsub.f32 1.0, %v2943
    %v2992 = vsub.f32 1.0, %v2944
    %v2993 = vsub.f32 1.0, %v2945
    %v2994 = vsub.f32 1.0, %v2946
    %v2995 = vsub.f32 1.0, %v2947
    %v2996 = vsub.f32 1.0, %v2948
    %v2997 = vsub.f32 1.0, %v2949
    %v2998 = vsub.f32 1.0, %v2950
    %v2999 = vsub.f32 1.0, %v2951
    %v3000 = vsub.f32 1.0, %v2952
    %v3001 = vsub.f32 1.0, %v2953
    %v3002 = vsub.f32 1.0, %v2954
    %v3003 = vsub.f32 1.0, %v2955
    %v3004 = vsub.f32 1.0, %v2956
    %v3005 = vsub.f32 1.0, %v2957
    %v3006 = vsub.f32 1.0, %v2958
    %v3007 = vsub.f32 1.0, %v2959
    %v3008 = vsub.f32 1.0, %v2960
    %v3009 = vsub.f32 1.0, %v2961
    %v3010 = vsub.f32 1.0, %v2962
    %v3011 = vsub.f32 1.0, %v2963
    %v3012 = vsub.f32 1.0, %v2964
    %v3013 = vsub.f32 1.0, %v2965
    %v3014 = vsub.f32 1.0, %v2966
    %v3015 = vsub.f32 1.0, %v2967
    %v3016 = vsub.f32 1.0, %v2968
    %v3017 = vsub.f32 1.0, %v2969
    %v3018 = vsub.f32 1.0, %v2970
    %v3019 = vsub.f32 1.0, %v2971
    %v3020 = vsub.f32 1.0, %v2972
    %v3021 = vsub.f32 1.0, %v2973
    %v3022 = vsub.f32 1.0, %v2974
    %v3023 = vsub.f32 1.0, %v2975
    %v3024 = vsub.f32 1.0, %v2976
    %v3025 = vsub.f32 1.0, %v2977
    %v3026 = vsub.f32 1.0, %v2978
    %v3027 = vsub.f32 1.0, %v2979
    %v3028 = vsub.f32 1.0, %v2980
    %v3029 = vsub.f32 1.0, %v2981
    %v3030 = vsub.f32 1.0, %v2982
    %v3031 = vsub.f32 1.0, %v2983
    %v3032 = vsub.f32 1.0, %v2984
    %v3033 = vsub.f32 1.0, %v2985
    %v3034 = vsub.f32 1.0, %v2986
    %v3035 = vsub.f32 1.0, %v2987
    %v3036 = vsub.f32 1.0, %v2988
    %v3037 = vsub.f32 1.0, %v2989
    %v3038 = vmax.f32 %v2990, 0.0
    %v3039 = vmax.f32 %v2991, 0.0
    %v3040 = vmax.f32 %v2992, 0.0
    %v3041 = vmax.f32 %v2993, 0.0
    %v3042 = vmax.f32 %v2994, 0.0
    %v3043 = vmax.f32 %v2995, 0.0
    %v3044 = vmax.f32 %v2996, 0.0
    %v3045 = vmax.f32 %v2997, 0.0
    %v3046 = vmax.f32 %v2998, 0.0
    %v3047 = vmax.f32 %v2999, 0.0
    %v3048 = vmax.f32 %v3000, 0.0
    %v3049 = vmax.f32 %v3001, 0.0
    %v3050 = vmax.f32 %v3002, 0.0
    %v3051 = vmax.f32 %v3003, 0.0
    %v3052 = vmax.f32 %v3004, 0.0
    %v3053 = vmax.f32 %v3005, 0.0
    %v3054 = vmax.f32 %v3006, 0.0
    %v3055 = vmax.f32 %v3007, 0.0
    %v3056 = vmax.f32 %v3008, 0.0
    %v3057 = vmax.f32 %v3009, 0.0
    %v3058 = vmax.f32 %v3010, 0.0
    %v3059 = vmax.f32 %v3011, 0.0
    %v3060 = vmax.f32 %v3012, 0.0
    %v3061 = vmax.f32 %v3013, 0.0
    %v3062 = vmax.f32 %v3014, 0.0
    %v3063 = vmax.f32 %v3015, 0.0
    %v3064 = vmax.f32 %v3016, 0.0
    %v3065 = vmax.f32 %v3017, 0.0
    %v3066 = vmax.f32 %v3018, 0.0
    %v3067 = vmax.f32 %v3019, 0.0
    %v3068 = vmax.f32 %v3020, 0.0
    %v3069 = vmax.f32 %v3021, 0.0
    %v3070 = vmax.f32 %v3022, 0.0
    %v3071 = vmax.f32 %v3023, 0.0
    %v3072 = vmax.f32 %v3024, 0.0
    %v3073 = vmax.f32 %v3025, 0.0
    %v3074 = vmax.f32 %v3026, 0.0
    %v3075 = vmax.f32 %v3027, 0.0
    %v3076 = vmax.f32 %v3028, 0.0
    %v3077 = vmax.f32 %v3029, 0.0
    %v3078 = vmax.f32 %v3030, 0.0
    %v3079 = vmax.f32 %v3031, 0.0
    %v3080 = vmax.f32 %v3032, 0.0
    %v3081 = vmax.f32 %v3033, 0.0
    %v3082 = vmax.f32 %v3034, 0.0
    %v3083 = vmax.f32 %v3035, 0.0
    %v3084 = vmax.f32 %v3036, 0.0
    %v3085 = vmax.f32 %v3037, 0.0
    %v3086 = vmul.f32 %v2805, %v3038
    %v3087 = vmul.f32 %v2806, %v3039
    %v3088 = vmul.f32 %v2807, %v3040
    %v3089 = vmul.f32 %v2808, %v3041
    %v3090 = vmul.f32 %v2809, %v3042
    %v3091 = vmul.f32 %v2810, %v3043
    %v3092 = vmul.f32 %v2811, %v3044
    %v3093 = vmul.f32 %v2812, %v3045
    %v3094 = vmul.f32 %v2813, %v3046
    %v3095 = vmul.f32 %v2814, %v3047
    %v3096 = vmul.f32 %v2815, %v3048
    %v3097 = vmul.f32 %v2816, %v3049
    %v3098 = vmul.f32 %v2817, %v3050
    %v3099 = vmul.f32 %v2818, %v3051
    %v3100 = vmul.f32 %v2819, %v3052
    %v3101 = vmul.f32 %v2820, %v3053
    %v3102 = vmul.f32 %v2821, %v3054
    %v3103 = vmul.f32 %v2822, %v3055
    %v3104 = vmul.f32 %v2823, %v3056
    %v3105 = vmul.f32 %v2824, %v3057
    %v3106 = vmul.f32 %v2825, %v3058
    %v3107 = vmul.f32 %v2826, %v3059
    %v3108 = vmul.f32 %v2827, %v3060
    %v3109 = vmul.f32 %v2828, %v3061
    %v3110 = vmul.f32 %v2829, %v3062
    %v3111 = vmul.f32 %v2830, %v3063
    %v3112 = vmul.f32 %v2831, %v3064
    %v3113 = vmul.f32 %v2832, %v3065
    %v3114 = vmul.f32 %v2833, %v3066
    %v3115 = vmul.f32 %v2834, %v3067
    %v3116 = vmul.f32 %v2835, %v3068
    %v3117 = vmul.f32 %v2836, %v3069
    %v3118 = vmul.f32 %v2837, %v3070
    %v3119 = vmul.f32 %v2838, %v3071
    %v3120 = vmul.f32 %v2839, %v3072
    %v3121 = vmul.f32 %v2840, %v3073
    %v3122 = vmul.f32 %v2841, %v3074
    %v3123 = vmul.f32 %v2842, %v3075
    %v3124 = vmul.f32 %v2843, %v3076
    %v3125 = vmul.f32 %v2844, %v3077
    %v3126 = vmul.f32 %v2845, %v3078
    %v3127 = vmul.f32 %v2846, %v3079
    %v3128 = vmul.f32 %v2847, %v3080
    %v3129 = vmul.f32 %v2848, %v3081
    %v3130 = vmul.f32 %v2849, %v3082
    %v3131 = vmul.f32 %v2850, %v3083
    %v3132 = vmul.f32 %v2851, %v3084
    %v3133 = vmul.f32 %v2852, %v3085
    %v3135 = vperm.slane %v2659, 0
    %v3136 = vperm.slane %v2659, 1
    %v3137 = vperm.slane %v2659, 2
    %v3138 = vperm.slane %v2659, 3
    %v3139 = vperm.slane %v2659, 4
    %v3140 = vperm.slane %v2659, 5
    %v3141 = vperm.slane %v2659, 6
    %v3142 = vperm.slane %v2659, 7
    %v3151 = vmul.f32 %v3086, %v3135
    %v3152 = vmul.f32 %v3087, %v3136
    %v3153 = vmul.f32 %v3088, %v3137
    %v3154 = vmul.f32 %v3089, %v3138
    %v3155 = vmul.f32 %v3090, %v3139
    %v3156 = vmul.f32 %v3091, %v3140
    %v3157 = vmul.f32 %v3092, %v3141
    %v3158 = vmul.f32 %v3093, %v3142
    %v3159 = vmul.f32 %v3094, %v3135
    %v3160 = vmul.f32 %v3095, %v3136
    %v3161 = vmul.f32 %v3096, %v3137
    %v3162 = vmul.f32 %v3097, %v3138
    %v3163 = vmul.f32 %v3098, %v3139
    %v3164 = vmul.f32 %v3099, %v3140
    %v3165 = vmul.f32 %v3100, %v3141
    %v3166 = vmul.f32 %v3101, %v3142
    %v3167 = vmul.f32 %v3102, %v3135
    %v3168 = vmul.f32 %v3103, %v3136
    %v3169 = vmul.f32 %v3104, %v3137
    %v3170 = vmul.f32 %v3105, %v3138
    %v3171 = vmul.f32 %v3106, %v3139
    %v3172 = vmul.f32 %v3107, %v3140
    %v3173 = vmul.f32 %v3108, %v3141
    %v3174 = vmul.f32 %v3109, %v3142
    %v3175 = vmul.f32 %v3110, %v3135
    %v3176 = vmul.f32 %v3111, %v3136
    %v3177 = vmul.f32 %v3112, %v3137
    %v3178 = vmul.f32 %v3113, %v3138
    %v3179 = vmul.f32 %v3114, %v3139
    %v3180 = vmul.f32 %v3115, %v3140
    %v3181 = vmul.f32 %v3116, %v3141
    %v3182 = vmul.f32 %v3117, %v3142
    %v3183 = vmul.f32 %v3118, %v3135
    %v3184 = vmul.f32 %v3119, %v3136
    %v3185 = vmul.f32 %v3120, %v3137
    %v3186 = vmul.f32 %v3121, %v3138
    %v3187 = vmul.f32 %v3122, %v3139
    %v3188 = vmul.f32 %v3123, %v3140
    %v3189 = vmul.f32 %v3124, %v3141
    %v3190 = vmul.f32 %v3125, %v3142
    %v3191 = vmul.f32 %v3126, %v3135
    %v3192 = vmul.f32 %v3127, %v3136
    %v3193 = vmul.f32 %v3128, %v3137
    %v3194 = vmul.f32 %v3129, %v3138
    %v3195 = vmul.f32 %v3130, %v3139
    %v3196 = vmul.f32 %v3131, %v3140
    %v3197 = vmul.f32 %v3132, %v3141
    %v3198 = vmul.f32 %v3133, %v3142
    %vm3199 = vcmask 392192
    %v3201 = vsel %vm3199, %v2563, 0
    %v3204 = vsel %vm3199, %v2566, 0
    %v3207 = vsel %vm3199, %v2569, 0
    %v3210 = vsel %vm3199, %v2572, 0
    %v3213 = vsel %vm3199, %v2575, 0
    %v3216 = vsel %vm3199, %v2578, 0
    %v3219 = vsel %vm3199, %v2581, 0
    %v3222 = vsel %vm3199, %v2584, 0
    %v3225 = vsel %vm3199, %v2587, 0
    %v3228 = vsel %vm3199, %v2590, 0
    %v3231 = vsel %vm3199, %v2593, 0
    %v3234 = vsel %vm3199, %v2596, 0
    %v3237 = vsel %vm3199, %v2599, 0
    %v3240 = vsel %vm3199, %v2602, 0
    %v3243 = vsel %vm3199, %v2605, 0
    %v3246 = vsel %vm3199, %v2608, 0
    %v3249 = vsel %vm3199, %v2611, 0
    %v3252 = vsel %vm3199, %v2614, 0
    %v3255 = vsel %vm3199, %v2617, 0
    %v3258 = vsel %vm3199, %v2620, 0
    %v3261 = vsel %vm3199, %v2623, 0
    %v3264 = vsel %vm3199, %v2626, 0
    %v3267 = vsel %vm3199, %v2629, 0
    %v3270 = vsel %vm3199, %v2632, 0
    %v3273 = vsel %vm3199, %v2635, 0
    %v3276 = vsel %vm3199, %v2638, 0
    %v3279 = vsel %vm3199, %v2641, 0
    %v3282 = vsel %vm3199, %v2644, 0
    %3284 = vmatpush.msra.mxu0 0.0
    %3285 = vmatpush.msra.mxu0 0.0
    %3286 = vmatpush.msra.mxu0 0.0
    %3287 = vmatpush.msra.mxu0 0.0
    %3288 = vmatpush.msra.mxu0 0.0
    %3289 = vmatpush.msra.mxu0 0.0
    %3290 = vmatpush.msra.mxu0 0.0
    %3291 = vmatpush.msra.mxu0 0.0
    %3292 = vmatpush.msra.mxu0 0.0
    %3293 = vmatpush.msra.mxu0 0.0
    %3294 = vmatpush.msra.mxu0 %v3191
    %3295 = vmatpush.msra.mxu0 %v3183
    %3296 = vmatpush.msra.mxu0 %v3175
    %3297 = vmatpush.msra.mxu0 %v3167
    %3298 = vmatpush.msra.mxu0 %v3159
    %3299 = vmatpush.msra.mxu0 %v3151
    %3300 = vmatmul.f32.gmra.mxu0 %v3201
    %v3301 = vpop.f32.mrf.mxu0
    %v3302 = vadd.f32 0.0, %v3301
    %3303 = vmatmul.f32.gmra.mxu0 %v3204
    %v3304 = vpop.f32.mrf.mxu0
    %v3305 = vadd.f32 0.0, %v3304
    %3306 = vmatmul.f32.gmra.mxu0 %v3207
    %v3307 = vpop.f32.mrf.mxu0
    %v3308 = vadd.f32 0.0, %v3307
    %3309 = vmatmul.f32.gmra.mxu0 %v3210
    %v3310 = vpop.f32.mrf.mxu0
    %v3311 = vadd.f32 0.0, %v3310
    %3312 = vmatmul.f32.gmra.mxu0 %v3213
    %v3313 = vpop.f32.mrf.mxu0
    %v3314 = vadd.f32 0.0, %v3313
    %3315 = vmatmul.f32.gmra.mxu0 %v3216
    %v3316 = vpop.f32.mrf.mxu0
    %v3317 = vadd.f32 0.0, %v3316
    %3318 = vmatmul.f32.gmra.mxu0 %v3219
    %v3319 = vpop.f32.mrf.mxu0
    %v3320 = vadd.f32 0.0, %v3319
    %3321 = vmatmul.f32.gmra.mxu0 %v3222
    %v3322 = vpop.f32.mrf.mxu0
    %v3323 = vadd.f32 0.0, %v3322
    %3324 = vmatmul.f32.gmra.mxu0 %v3225
    %v3325 = vpop.f32.mrf.mxu0
    %v3326 = vadd.f32 0.0, %v3325
    %3327 = vmatmul.f32.gmra.mxu0 %v3228
    %v3328 = vpop.f32.mrf.mxu0
    %v3329 = vadd.f32 0.0, %v3328
    %3330 = vmatmul.f32.gmra.mxu0 %v3231
    %v3331 = vpop.f32.mrf.mxu0
    %v3332 = vadd.f32 0.0, %v3331
    %3333 = vmatmul.f32.gmra.mxu0 %v3234
    %v3334 = vpop.f32.mrf.mxu0
    %v3335 = vadd.f32 0.0, %v3334
    %3336 = vmatmul.f32.gmra.mxu0 %v3237
    %v3337 = vpop.f32.mrf.mxu0
    %v3338 = vadd.f32 0.0, %v3337
    %3339 = vmatmul.f32.gmra.mxu0 %v3240
    %v3340 = vpop.f32.mrf.mxu0
    %v3341 = vadd.f32 0.0, %v3340
    %3342 = vmatmul.f32.gmra.mxu0 %v3243
    %v3343 = vpop.f32.mrf.mxu0
    %v3344 = vadd.f32 0.0, %v3343
    %3345 = vmatmul.f32.gmra.mxu0 %v3246
    %v3346 = vpop.f32.mrf.mxu0
    %v3347 = vadd.f32 0.0, %v3346
    %3348 = vmatmul.f32.gmra.mxu0 %v3249
    %v3349 = vpop.f32.mrf.mxu0
    %v3350 = vadd.f32 0.0, %v3349
    %3351 = vmatmul.f32.gmra.mxu0 %v3252
    %v3352 = vpop.f32.mrf.mxu0
    %v3353 = vadd.f32 0.0, %v3352
    %3354 = vmatmul.f32.gmra.mxu0 %v3255
    %v3355 = vpop.f32.mrf.mxu0
    %v3356 = vadd.f32 0.0, %v3355
    %3357 = vmatmul.f32.gmra.mxu0 %v3258
    %v3358 = vpop.f32.mrf.mxu0
    %v3359 = vadd.f32 0.0, %v3358
    %3360 = vmatmul.f32.gmra.mxu0 %v3261
    %v3361 = vpop.f32.mrf.mxu0
    %v3362 = vadd.f32 0.0, %v3361
    %3363 = vmatmul.f32.gmra.mxu0 %v3264
    %v3364 = vpop.f32.mrf.mxu0
    %v3365 = vadd.f32 0.0, %v3364
    %3366 = vmatmul.f32.gmra.mxu0 %v3267
    %v3367 = vpop.f32.mrf.mxu0
    %v3368 = vadd.f32 0.0, %v3367
    %3369 = vmatmul.f32.gmra.mxu0 %v3270
    %v3370 = vpop.f32.mrf.mxu0
    %v3371 = vadd.f32 0.0, %v3370
    %3372 = vmatmul.f32.gmra.mxu0 %v3273
    %v3373 = vpop.f32.mrf.mxu0
    %v3374 = vadd.f32 0.0, %v3373
    %3375 = vmatmul.f32.gmra.mxu0 %v3276
    %v3376 = vpop.f32.mrf.mxu0
    %v3377 = vadd.f32 0.0, %v3376
    %3378 = vmatmul.f32.gmra.mxu0 %v3279
    %v3379 = vpop.f32.mrf.mxu0
    %v3380 = vadd.f32 0.0, %v3379
    %3381 = vmatmul.f32.gmra.mxu0 %v3282
    %v3382 = vpop.f32.mrf.mxu0
    %v3383 = vadd.f32 0.0, %v3382
    %3384 = vdwg.mxu0
    %3385 = vmatpush.msra.mxu0 0.0
    %3386 = vmatpush.msra.mxu0 0.0
    %3387 = vmatpush.msra.mxu0 0.0
    %3388 = vmatpush.msra.mxu0 0.0
    %3389 = vmatpush.msra.mxu0 0.0
    %3390 = vmatpush.msra.mxu0 0.0
    %3391 = vmatpush.msra.mxu0 0.0
    %3392 = vmatpush.msra.mxu0 0.0
    %3393 = vmatpush.msra.mxu0 0.0
    %3394 = vmatpush.msra.mxu0 0.0
    %3395 = vmatpush.msra.mxu0 %v3192
    %3396 = vmatpush.msra.mxu0 %v3184
    %3397 = vmatpush.msra.mxu0 %v3176
    %3398 = vmatpush.msra.mxu0 %v3168
    %3399 = vmatpush.msra.mxu0 %v3160
    %3400 = vmatpush.msra.mxu0 %v3152
    %3401 = vmatmul.f32.gmra.mxu0 %v3201
    %v3402 = vpop.f32.mrf.mxu0
    %v3403 = vadd.f32 0.0, %v3402
    %3404 = vmatmul.f32.gmra.mxu0 %v3204
    %v3405 = vpop.f32.mrf.mxu0
    %v3406 = vadd.f32 0.0, %v3405
    %3407 = vmatmul.f32.gmra.mxu0 %v3207
    %v3408 = vpop.f32.mrf.mxu0
    %v3409 = vadd.f32 0.0, %v3408
    %3410 = vmatmul.f32.gmra.mxu0 %v3210
    %v3411 = vpop.f32.mrf.mxu0
    %v3412 = vadd.f32 0.0, %v3411
    %3413 = vmatmul.f32.gmra.mxu0 %v3213
    %v3414 = vpop.f32.mrf.mxu0
    %v3415 = vadd.f32 0.0, %v3414
    %3416 = vmatmul.f32.gmra.mxu0 %v3216
    %v3417 = vpop.f32.mrf.mxu0
    %v3418 = vadd.f32 0.0, %v3417
    %3419 = vmatmul.f32.gmra.mxu0 %v3219
    %v3420 = vpop.f32.mrf.mxu0
    %v3421 = vadd.f32 0.0, %v3420
    %3422 = vmatmul.f32.gmra.mxu0 %v3222
    %v3423 = vpop.f32.mrf.mxu0
    %v3424 = vadd.f32 0.0, %v3423
    %3425 = vmatmul.f32.gmra.mxu0 %v3225
    %v3426 = vpop.f32.mrf.mxu0
    %v3427 = vadd.f32 0.0, %v3426
    %3428 = vmatmul.f32.gmra.mxu0 %v3228
    %v3429 = vpop.f32.mrf.mxu0
    %v3430 = vadd.f32 0.0, %v3429
    %3431 = vmatmul.f32.gmra.mxu0 %v3231
    %v3432 = vpop.f32.mrf.mxu0
    %v3433 = vadd.f32 0.0, %v3432
    %3434 = vmatmul.f32.gmra.mxu0 %v3234
    %v3435 = vpop.f32.mrf.mxu0
    %v3436 = vadd.f32 0.0, %v3435
    %3437 = vmatmul.f32.gmra.mxu0 %v3237
    %v3438 = vpop.f32.mrf.mxu0
    %v3439 = vadd.f32 0.0, %v3438
    %3440 = vmatmul.f32.gmra.mxu0 %v3240
    %v3441 = vpop.f32.mrf.mxu0
    %v3442 = vadd.f32 0.0, %v3441
    %3443 = vmatmul.f32.gmra.mxu0 %v3243
    %v3444 = vpop.f32.mrf.mxu0
    %v3445 = vadd.f32 0.0, %v3444
    %3446 = vmatmul.f32.gmra.mxu0 %v3246
    %v3447 = vpop.f32.mrf.mxu0
    %v3448 = vadd.f32 0.0, %v3447
    %3449 = vmatmul.f32.gmra.mxu0 %v3249
    %v3450 = vpop.f32.mrf.mxu0
    %v3451 = vadd.f32 0.0, %v3450
    %3452 = vmatmul.f32.gmra.mxu0 %v3252
    %v3453 = vpop.f32.mrf.mxu0
    %v3454 = vadd.f32 0.0, %v3453
    %3455 = vmatmul.f32.gmra.mxu0 %v3255
    %v3456 = vpop.f32.mrf.mxu0
    %v3457 = vadd.f32 0.0, %v3456
    %3458 = vmatmul.f32.gmra.mxu0 %v3258
    %v3459 = vpop.f32.mrf.mxu0
    %v3460 = vadd.f32 0.0, %v3459
    %3461 = vmatmul.f32.gmra.mxu0 %v3261
    %v3462 = vpop.f32.mrf.mxu0
    %v3463 = vadd.f32 0.0, %v3462
    %3464 = vmatmul.f32.gmra.mxu0 %v3264
    %v3465 = vpop.f32.mrf.mxu0
    %v3466 = vadd.f32 0.0, %v3465
    %3467 = vmatmul.f32.gmra.mxu0 %v3267
    %v3468 = vpop.f32.mrf.mxu0
    %v3469 = vadd.f32 0.0, %v3468
    %3470 = vmatmul.f32.gmra.mxu0 %v3270
    %v3471 = vpop.f32.mrf.mxu0
    %v3472 = vadd.f32 0.0, %v3471
    %3473 = vmatmul.f32.gmra.mxu0 %v3273
    %v3474 = vpop.f32.mrf.mxu0
    %v3475 = vadd.f32 0.0, %v3474
    %3476 = vmatmul.f32.gmra.mxu0 %v3276
    %v3477 = vpop.f32.mrf.mxu0
    %v3478 = vadd.f32 0.0, %v3477
    %3479 = vmatmul.f32.gmra.mxu0 %v3279
    %v3480 = vpop.f32.mrf.mxu0
    %v3481 = vadd.f32 0.0, %v3480
    %3482 = vmatmul.f32.gmra.mxu0 %v3282
    %v3483 = vpop.f32.mrf.mxu0
    %v3484 = vadd.f32 0.0, %v3483
    %3485 = vdwg.mxu0
    %3486 = vmatpush.msra.mxu0 0.0
    %3487 = vmatpush.msra.mxu0 0.0
    %3488 = vmatpush.msra.mxu0 0.0
    %3489 = vmatpush.msra.mxu0 0.0
    %3490 = vmatpush.msra.mxu0 0.0
    %3491 = vmatpush.msra.mxu0 0.0
    %3492 = vmatpush.msra.mxu0 0.0
    %3493 = vmatpush.msra.mxu0 0.0
    %3494 = vmatpush.msra.mxu0 0.0
    %3495 = vmatpush.msra.mxu0 0.0
    %3496 = vmatpush.msra.mxu0 %v3193
    %3497 = vmatpush.msra.mxu0 %v3185
    %3498 = vmatpush.msra.mxu0 %v3177
    %3499 = vmatpush.msra.mxu0 %v3169
    %3500 = vmatpush.msra.mxu0 %v3161
    %3501 = vmatpush.msra.mxu0 %v3153
    %3502 = vmatmul.f32.gmra.mxu0 %v3201
    %v3503 = vpop.f32.mrf.mxu0
    %v3504 = vadd.f32 0.0, %v3503
    %3505 = vmatmul.f32.gmra.mxu0 %v3204
    %v3506 = vpop.f32.mrf.mxu0
    %v3507 = vadd.f32 0.0, %v3506
    %3508 = vmatmul.f32.gmra.mxu0 %v3207
    %v3509 = vpop.f32.mrf.mxu0
    %v3510 = vadd.f32 0.0, %v3509
    %3511 = vmatmul.f32.gmra.mxu0 %v3210
    %v3512 = vpop.f32.mrf.mxu0
    %v3513 = vadd.f32 0.0, %v3512
    %3514 = vmatmul.f32.gmra.mxu0 %v3213
    %v3515 = vpop.f32.mrf.mxu0
    %v3516 = vadd.f32 0.0, %v3515
    %3517 = vmatmul.f32.gmra.mxu0 %v3216
    %v3518 = vpop.f32.mrf.mxu0
    %v3519 = vadd.f32 0.0, %v3518
    %3520 = vmatmul.f32.gmra.mxu0 %v3219
    %v3521 = vpop.f32.mrf.mxu0
    %v3522 = vadd.f32 0.0, %v3521
    %3523 = vmatmul.f32.gmra.mxu0 %v3222
    %v3524 = vpop.f32.mrf.mxu0
    %v3525 = vadd.f32 0.0, %v3524
    %3526 = vmatmul.f32.gmra.mxu0 %v3225
    %v3527 = vpop.f32.mrf.mxu0
    %v3528 = vadd.f32 0.0, %v3527
    %3529 = vmatmul.f32.gmra.mxu0 %v3228
    %v3530 = vpop.f32.mrf.mxu0
    %v3531 = vadd.f32 0.0, %v3530
    %3532 = vmatmul.f32.gmra.mxu0 %v3231
    %v3533 = vpop.f32.mrf.mxu0
    %v3534 = vadd.f32 0.0, %v3533
    %3535 = vmatmul.f32.gmra.mxu0 %v3234
    %v3536 = vpop.f32.mrf.mxu0
    %v3537 = vadd.f32 0.0, %v3536
    %3538 = vmatmul.f32.gmra.mxu0 %v3237
    %v3539 = vpop.f32.mrf.mxu0
    %v3540 = vadd.f32 0.0, %v3539
    %3541 = vmatmul.f32.gmra.mxu0 %v3240
    %v3542 = vpop.f32.mrf.mxu0
    %v3543 = vadd.f32 0.0, %v3542
    %3544 = vmatmul.f32.gmra.mxu0 %v3243
    %v3545 = vpop.f32.mrf.mxu0
    %v3546 = vadd.f32 0.0, %v3545
    %3547 = vmatmul.f32.gmra.mxu0 %v3246
    %v3548 = vpop.f32.mrf.mxu0
    %v3549 = vadd.f32 0.0, %v3548
    %3550 = vmatmul.f32.gmra.mxu0 %v3249
    %v3551 = vpop.f32.mrf.mxu0
    %v3552 = vadd.f32 0.0, %v3551
    %3553 = vmatmul.f32.gmra.mxu0 %v3252
    %v3554 = vpop.f32.mrf.mxu0
    %v3555 = vadd.f32 0.0, %v3554
    %3556 = vmatmul.f32.gmra.mxu0 %v3255
    %v3557 = vpop.f32.mrf.mxu0
    %v3558 = vadd.f32 0.0, %v3557
    %3559 = vmatmul.f32.gmra.mxu0 %v3258
    %v3560 = vpop.f32.mrf.mxu0
    %v3561 = vadd.f32 0.0, %v3560
    %3562 = vmatmul.f32.gmra.mxu0 %v3261
    %v3563 = vpop.f32.mrf.mxu0
    %v3564 = vadd.f32 0.0, %v3563
    %3565 = vmatmul.f32.gmra.mxu0 %v3264
    %v3566 = vpop.f32.mrf.mxu0
    %v3567 = vadd.f32 0.0, %v3566
    %3568 = vmatmul.f32.gmra.mxu0 %v3267
    %v3569 = vpop.f32.mrf.mxu0
    %v3570 = vadd.f32 0.0, %v3569
    %3571 = vmatmul.f32.gmra.mxu0 %v3270
    %v3572 = vpop.f32.mrf.mxu0
    %v3573 = vadd.f32 0.0, %v3572
    %3574 = vmatmul.f32.gmra.mxu0 %v3273
    %v3575 = vpop.f32.mrf.mxu0
    %v3576 = vadd.f32 0.0, %v3575
    %3577 = vmatmul.f32.gmra.mxu0 %v3276
    %v3578 = vpop.f32.mrf.mxu0
    %v3579 = vadd.f32 0.0, %v3578
    %3580 = vmatmul.f32.gmra.mxu0 %v3279
    %v3581 = vpop.f32.mrf.mxu0
    %v3582 = vadd.f32 0.0, %v3581
    %3583 = vmatmul.f32.gmra.mxu0 %v3282
    %v3584 = vpop.f32.mrf.mxu0
    %v3585 = vadd.f32 0.0, %v3584
    %3586 = vdwg.mxu0
    %3587 = vmatpush.msra.mxu0 0.0
    %3588 = vmatpush.msra.mxu0 0.0
    %3589 = vmatpush.msra.mxu0 0.0
    %3590 = vmatpush.msra.mxu0 0.0
    %3591 = vmatpush.msra.mxu0 0.0
    %3592 = vmatpush.msra.mxu0 0.0
    %3593 = vmatpush.msra.mxu0 0.0
    %3594 = vmatpush.msra.mxu0 0.0
    %3595 = vmatpush.msra.mxu0 0.0
    %3596 = vmatpush.msra.mxu0 0.0
    %3597 = vmatpush.msra.mxu0 %v3194
    %3598 = vmatpush.msra.mxu0 %v3186
    %3599 = vmatpush.msra.mxu0 %v3178
    %3600 = vmatpush.msra.mxu0 %v3170
    %3601 = vmatpush.msra.mxu0 %v3162
    %3602 = vmatpush.msra.mxu0 %v3154
    %3603 = vmatmul.f32.gmra.mxu0 %v3201
    %v3604 = vpop.f32.mrf.mxu0
    %v3605 = vadd.f32 0.0, %v3604
    %3606 = vmatmul.f32.gmra.mxu0 %v3204
    %v3607 = vpop.f32.mrf.mxu0
    %v3608 = vadd.f32 0.0, %v3607
    %3609 = vmatmul.f32.gmra.mxu0 %v3207
    %v3610 = vpop.f32.mrf.mxu0
    %v3611 = vadd.f32 0.0, %v3610
    %3612 = vmatmul.f32.gmra.mxu0 %v3210
    %v3613 = vpop.f32.mrf.mxu0
    %v3614 = vadd.f32 0.0, %v3613
    %3615 = vmatmul.f32.gmra.mxu0 %v3213
    %v3616 = vpop.f32.mrf.mxu0
    %v3617 = vadd.f32 0.0, %v3616
    %3618 = vmatmul.f32.gmra.mxu0 %v3216
    %v3619 = vpop.f32.mrf.mxu0
    %v3620 = vadd.f32 0.0, %v3619
    %3621 = vmatmul.f32.gmra.mxu0 %v3219
    %v3622 = vpop.f32.mrf.mxu0
    %v3623 = vadd.f32 0.0, %v3622
    %3624 = vmatmul.f32.gmra.mxu0 %v3222
    %v3625 = vpop.f32.mrf.mxu0
    %v3626 = vadd.f32 0.0, %v3625
    %3627 = vmatmul.f32.gmra.mxu0 %v3225
    %v3628 = vpop.f32.mrf.mxu0
    %v3629 = vadd.f32 0.0, %v3628
    %3630 = vmatmul.f32.gmra.mxu0 %v3228
    %v3631 = vpop.f32.mrf.mxu0
    %v3632 = vadd.f32 0.0, %v3631
    %3633 = vmatmul.f32.gmra.mxu0 %v3231
    %v3634 = vpop.f32.mrf.mxu0
    %v3635 = vadd.f32 0.0, %v3634
    %3636 = vmatmul.f32.gmra.mxu0 %v3234
    %v3637 = vpop.f32.mrf.mxu0
    %v3638 = vadd.f32 0.0, %v3637
    %3639 = vmatmul.f32.gmra.mxu0 %v3237
    %v3640 = vpop.f32.mrf.mxu0
    %v3641 = vadd.f32 0.0, %v3640
    %3642 = vmatmul.f32.gmra.mxu0 %v3240
    %v3643 = vpop.f32.mrf.mxu0
    %v3644 = vadd.f32 0.0, %v3643
    %3645 = vmatmul.f32.gmra.mxu0 %v3243
    %v3646 = vpop.f32.mrf.mxu0
    %v3647 = vadd.f32 0.0, %v3646
    %3648 = vmatmul.f32.gmra.mxu0 %v3246
    %v3649 = vpop.f32.mrf.mxu0
    %v3650 = vadd.f32 0.0, %v3649
    %3651 = vmatmul.f32.gmra.mxu0 %v3249
    %v3652 = vpop.f32.mrf.mxu0
    %v3653 = vadd.f32 0.0, %v3652
    %3654 = vmatmul.f32.gmra.mxu0 %v3252
    %v3655 = vpop.f32.mrf.mxu0
    %v3656 = vadd.f32 0.0, %v3655
    %3657 = vmatmul.f32.gmra.mxu0 %v3255
    %v3658 = vpop.f32.mrf.mxu0
    %v3659 = vadd.f32 0.0, %v3658
    %3660 = vmatmul.f32.gmra.mxu0 %v3258
    %v3661 = vpop.f32.mrf.mxu0
    %v3662 = vadd.f32 0.0, %v3661
    %3663 = vmatmul.f32.gmra.mxu0 %v3261
    %v3664 = vpop.f32.mrf.mxu0
    %v3665 = vadd.f32 0.0, %v3664
    %3666 = vmatmul.f32.gmra.mxu0 %v3264
    %v3667 = vpop.f32.mrf.mxu0
    %v3668 = vadd.f32 0.0, %v3667
    %3669 = vmatmul.f32.gmra.mxu0 %v3267
    %v3670 = vpop.f32.mrf.mxu0
    %v3671 = vadd.f32 0.0, %v3670
    %3672 = vmatmul.f32.gmra.mxu0 %v3270
    %v3673 = vpop.f32.mrf.mxu0
    %v3674 = vadd.f32 0.0, %v3673
    %3675 = vmatmul.f32.gmra.mxu0 %v3273
    %v3676 = vpop.f32.mrf.mxu0
    %v3677 = vadd.f32 0.0, %v3676
    %3678 = vmatmul.f32.gmra.mxu0 %v3276
    %v3679 = vpop.f32.mrf.mxu0
    %v3680 = vadd.f32 0.0, %v3679
    %3681 = vmatmul.f32.gmra.mxu0 %v3279
    %v3682 = vpop.f32.mrf.mxu0
    %v3683 = vadd.f32 0.0, %v3682
    %3684 = vmatmul.f32.gmra.mxu0 %v3282
    %v3685 = vpop.f32.mrf.mxu0
    %v3686 = vadd.f32 0.0, %v3685
    %3687 = vdwg.mxu0
    %3688 = vmatpush.msra.mxu0 0.0
    %3689 = vmatpush.msra.mxu0 0.0
    %3690 = vmatpush.msra.mxu0 0.0
    %3691 = vmatpush.msra.mxu0 0.0
    %3692 = vmatpush.msra.mxu0 0.0
    %3693 = vmatpush.msra.mxu0 0.0
    %3694 = vmatpush.msra.mxu0 0.0
    %3695 = vmatpush.msra.mxu0 0.0
    %3696 = vmatpush.msra.mxu0 0.0
    %3697 = vmatpush.msra.mxu0 0.0
    %3698 = vmatpush.msra.mxu0 %v3195
    %3699 = vmatpush.msra.mxu0 %v3187
    %3700 = vmatpush.msra.mxu0 %v3179
    %3701 = vmatpush.msra.mxu0 %v3171
    %3702 = vmatpush.msra.mxu0 %v3163
    %3703 = vmatpush.msra.mxu0 %v3155
    %3704 = vmatmul.f32.gmra.mxu0 %v3201
    %v3705 = vpop.f32.mrf.mxu0
    %v3706 = vadd.f32 0.0, %v3705
    %3707 = vmatmul.f32.gmra.mxu0 %v3204
    %v3708 = vpop.f32.mrf.mxu0
    %v3709 = vadd.f32 0.0, %v3708
    %3710 = vmatmul.f32.gmra.mxu0 %v3207
    %v3711 = vpop.f32.mrf.mxu0
    %v3712 = vadd.f32 0.0, %v3711
    %3713 = vmatmul.f32.gmra.mxu0 %v3210
    %v3714 = vpop.f32.mrf.mxu0
    %v3715 = vadd.f32 0.0, %v3714
    %3716 = vmatmul.f32.gmra.mxu0 %v3213
    %v3717 = vpop.f32.mrf.mxu0
    %v3718 = vadd.f32 0.0, %v3717
    %3719 = vmatmul.f32.gmra.mxu0 %v3216
    %v3720 = vpop.f32.mrf.mxu0
    %v3721 = vadd.f32 0.0, %v3720
    %3722 = vmatmul.f32.gmra.mxu0 %v3219
    %v3723 = vpop.f32.mrf.mxu0
    %v3724 = vadd.f32 0.0, %v3723
    %3725 = vmatmul.f32.gmra.mxu0 %v3222
    %v3726 = vpop.f32.mrf.mxu0
    %v3727 = vadd.f32 0.0, %v3726
    %3728 = vmatmul.f32.gmra.mxu0 %v3225
    %v3729 = vpop.f32.mrf.mxu0
    %v3730 = vadd.f32 0.0, %v3729
    %3731 = vmatmul.f32.gmra.mxu0 %v3228
    %v3732 = vpop.f32.mrf.mxu0
    %v3733 = vadd.f32 0.0, %v3732
    %3734 = vmatmul.f32.gmra.mxu0 %v3231
    %v3735 = vpop.f32.mrf.mxu0
    %v3736 = vadd.f32 0.0, %v3735
    %3737 = vmatmul.f32.gmra.mxu0 %v3234
    %v3738 = vpop.f32.mrf.mxu0
    %v3739 = vadd.f32 0.0, %v3738
    %3740 = vmatmul.f32.gmra.mxu0 %v3237
    %v3741 = vpop.f32.mrf.mxu0
    %v3742 = vadd.f32 0.0, %v3741
    %3743 = vmatmul.f32.gmra.mxu0 %v3240
    %v3744 = vpop.f32.mrf.mxu0
    %v3745 = vadd.f32 0.0, %v3744
    %3746 = vmatmul.f32.gmra.mxu0 %v3243
    %v3747 = vpop.f32.mrf.mxu0
    %v3748 = vadd.f32 0.0, %v3747
    %3749 = vmatmul.f32.gmra.mxu0 %v3246
    %v3750 = vpop.f32.mrf.mxu0
    %v3751 = vadd.f32 0.0, %v3750
    %3752 = vmatmul.f32.gmra.mxu0 %v3249
    %v3753 = vpop.f32.mrf.mxu0
    %v3754 = vadd.f32 0.0, %v3753
    %3755 = vmatmul.f32.gmra.mxu0 %v3252
    %v3756 = vpop.f32.mrf.mxu0
    %v3757 = vadd.f32 0.0, %v3756
    %3758 = vmatmul.f32.gmra.mxu0 %v3255
    %v3759 = vpop.f32.mrf.mxu0
    %v3760 = vadd.f32 0.0, %v3759
    %3761 = vmatmul.f32.gmra.mxu0 %v3258
    %v3762 = vpop.f32.mrf.mxu0
    %v3763 = vadd.f32 0.0, %v3762
    %3764 = vmatmul.f32.gmra.mxu0 %v3261
    %v3765 = vpop.f32.mrf.mxu0
    %v3766 = vadd.f32 0.0, %v3765
    %3767 = vmatmul.f32.gmra.mxu0 %v3264
    %v3768 = vpop.f32.mrf.mxu0
    %v3769 = vadd.f32 0.0, %v3768
    %3770 = vmatmul.f32.gmra.mxu0 %v3267
    %v3771 = vpop.f32.mrf.mxu0
    %v3772 = vadd.f32 0.0, %v3771
    %3773 = vmatmul.f32.gmra.mxu0 %v3270
    %v3774 = vpop.f32.mrf.mxu0
    %v3775 = vadd.f32 0.0, %v3774
    %3776 = vmatmul.f32.gmra.mxu0 %v3273
    %v3777 = vpop.f32.mrf.mxu0
    %v3778 = vadd.f32 0.0, %v3777
    %3779 = vmatmul.f32.gmra.mxu0 %v3276
    %v3780 = vpop.f32.mrf.mxu0
    %v3781 = vadd.f32 0.0, %v3780
    %3782 = vmatmul.f32.gmra.mxu0 %v3279
    %v3783 = vpop.f32.mrf.mxu0
    %v3784 = vadd.f32 0.0, %v3783
    %3785 = vmatmul.f32.gmra.mxu0 %v3282
    %v3786 = vpop.f32.mrf.mxu0
    %v3787 = vadd.f32 0.0, %v3786
    %3788 = vdwg.mxu0
    %3789 = vmatpush.msra.mxu0 0.0
    %3790 = vmatpush.msra.mxu0 0.0
    %3791 = vmatpush.msra.mxu0 0.0
    %3792 = vmatpush.msra.mxu0 0.0
    %3793 = vmatpush.msra.mxu0 0.0
    %3794 = vmatpush.msra.mxu0 0.0
    %3795 = vmatpush.msra.mxu0 0.0
    %3796 = vmatpush.msra.mxu0 0.0
    %3797 = vmatpush.msra.mxu0 0.0
    %3798 = vmatpush.msra.mxu0 0.0
    %3799 = vmatpush.msra.mxu0 %v3196
    %3800 = vmatpush.msra.mxu0 %v3188
    %3801 = vmatpush.msra.mxu0 %v3180
    %3802 = vmatpush.msra.mxu0 %v3172
    %3803 = vmatpush.msra.mxu0 %v3164
    %3804 = vmatpush.msra.mxu0 %v3156
    %3805 = vmatmul.f32.gmra.mxu0 %v3201
    %v3806 = vpop.f32.mrf.mxu0
    %v3807 = vadd.f32 0.0, %v3806
    %3808 = vmatmul.f32.gmra.mxu0 %v3204
    %v3809 = vpop.f32.mrf.mxu0
    %v3810 = vadd.f32 0.0, %v3809
    %3811 = vmatmul.f32.gmra.mxu0 %v3207
    %v3812 = vpop.f32.mrf.mxu0
    %v3813 = vadd.f32 0.0, %v3812
    %3814 = vmatmul.f32.gmra.mxu0 %v3210
    %v3815 = vpop.f32.mrf.mxu0
    %v3816 = vadd.f32 0.0, %v3815
    %3817 = vmatmul.f32.gmra.mxu0 %v3213
    %v3818 = vpop.f32.mrf.mxu0
    %v3819 = vadd.f32 0.0, %v3818
    %3820 = vmatmul.f32.gmra.mxu0 %v3216
    %v3821 = vpop.f32.mrf.mxu0
    %v3822 = vadd.f32 0.0, %v3821
    %3823 = vmatmul.f32.gmra.mxu0 %v3219
    %v3824 = vpop.f32.mrf.mxu0
    %v3825 = vadd.f32 0.0, %v3824
    %3826 = vmatmul.f32.gmra.mxu0 %v3222
    %v3827 = vpop.f32.mrf.mxu0
    %v3828 = vadd.f32 0.0, %v3827
    %3829 = vmatmul.f32.gmra.mxu0 %v3225
    %v3830 = vpop.f32.mrf.mxu0
    %v3831 = vadd.f32 0.0, %v3830
    %3832 = vmatmul.f32.gmra.mxu0 %v3228
    %v3833 = vpop.f32.mrf.mxu0
    %v3834 = vadd.f32 0.0, %v3833
    %3835 = vmatmul.f32.gmra.mxu0 %v3231
    %v3836 = vpop.f32.mrf.mxu0
    %v3837 = vadd.f32 0.0, %v3836
    %3838 = vmatmul.f32.gmra.mxu0 %v3234
    %v3839 = vpop.f32.mrf.mxu0
    %v3840 = vadd.f32 0.0, %v3839
    %3841 = vmatmul.f32.gmra.mxu0 %v3237
    %v3842 = vpop.f32.mrf.mxu0
    %v3843 = vadd.f32 0.0, %v3842
    %3844 = vmatmul.f32.gmra.mxu0 %v3240
    %v3845 = vpop.f32.mrf.mxu0
    %v3846 = vadd.f32 0.0, %v3845
    %3847 = vmatmul.f32.gmra.mxu0 %v3243
    %v3848 = vpop.f32.mrf.mxu0
    %v3849 = vadd.f32 0.0, %v3848
    %3850 = vmatmul.f32.gmra.mxu0 %v3246
    %v3851 = vpop.f32.mrf.mxu0
    %v3852 = vadd.f32 0.0, %v3851
    %3853 = vmatmul.f32.gmra.mxu0 %v3249
    %v3854 = vpop.f32.mrf.mxu0
    %v3855 = vadd.f32 0.0, %v3854
    %3856 = vmatmul.f32.gmra.mxu0 %v3252
    %v3857 = vpop.f32.mrf.mxu0
    %v3858 = vadd.f32 0.0, %v3857
    %3859 = vmatmul.f32.gmra.mxu0 %v3255
    %v3860 = vpop.f32.mrf.mxu0
    %v3861 = vadd.f32 0.0, %v3860
    %3862 = vmatmul.f32.gmra.mxu0 %v3258
    %v3863 = vpop.f32.mrf.mxu0
    %v3864 = vadd.f32 0.0, %v3863
    %3865 = vmatmul.f32.gmra.mxu0 %v3261
    %v3866 = vpop.f32.mrf.mxu0
    %v3867 = vadd.f32 0.0, %v3866
    %3868 = vmatmul.f32.gmra.mxu0 %v3264
    %v3869 = vpop.f32.mrf.mxu0
    %v3870 = vadd.f32 0.0, %v3869
    %3871 = vmatmul.f32.gmra.mxu0 %v3267
    %v3872 = vpop.f32.mrf.mxu0
    %v3873 = vadd.f32 0.0, %v3872
    %3874 = vmatmul.f32.gmra.mxu0 %v3270
    %v3875 = vpop.f32.mrf.mxu0
    %v3876 = vadd.f32 0.0, %v3875
    %3877 = vmatmul.f32.gmra.mxu0 %v3273
    %v3878 = vpop.f32.mrf.mxu0
    %v3879 = vadd.f32 0.0, %v3878
    %3880 = vmatmul.f32.gmra.mxu0 %v3276
    %v3881 = vpop.f32.mrf.mxu0
    %v3882 = vadd.f32 0.0, %v3881
    %3883 = vmatmul.f32.gmra.mxu0 %v3279
    %v3884 = vpop.f32.mrf.mxu0
    %v3885 = vadd.f32 0.0, %v3884
    %3886 = vmatmul.f32.gmra.mxu0 %v3282
    %v3887 = vpop.f32.mrf.mxu0
    %v3888 = vadd.f32 0.0, %v3887
    %3889 = vdwg.mxu0
    %3890 = vmatpush.msra.mxu0 0.0
    %3891 = vmatpush.msra.mxu0 0.0
    %3892 = vmatpush.msra.mxu0 0.0
    %3893 = vmatpush.msra.mxu0 0.0
    %3894 = vmatpush.msra.mxu0 0.0
    %3895 = vmatpush.msra.mxu0 0.0
    %3896 = vmatpush.msra.mxu0 0.0
    %3897 = vmatpush.msra.mxu0 0.0
    %3898 = vmatpush.msra.mxu0 0.0
    %3899 = vmatpush.msra.mxu0 0.0
    %3900 = vmatpush.msra.mxu0 %v3197
    %3901 = vmatpush.msra.mxu0 %v3189
    %3902 = vmatpush.msra.mxu0 %v3181
    %3903 = vmatpush.msra.mxu0 %v3173
    %3904 = vmatpush.msra.mxu0 %v3165
    %3905 = vmatpush.msra.mxu0 %v3157
    %3906 = vmatmul.f32.gmra.mxu0 %v3201
    %v3907 = vpop.f32.mrf.mxu0
    %v3908 = vadd.f32 0.0, %v3907
    %3909 = vmatmul.f32.gmra.mxu0 %v3204
    %v3910 = vpop.f32.mrf.mxu0
    %v3911 = vadd.f32 0.0, %v3910
    %3912 = vmatmul.f32.gmra.mxu0 %v3207
    %v3913 = vpop.f32.mrf.mxu0
    %v3914 = vadd.f32 0.0, %v3913
    %3915 = vmatmul.f32.gmra.mxu0 %v3210
    %v3916 = vpop.f32.mrf.mxu0
    %v3917 = vadd.f32 0.0, %v3916
    %3918 = vmatmul.f32.gmra.mxu0 %v3213
    %v3919 = vpop.f32.mrf.mxu0
    %v3920 = vadd.f32 0.0, %v3919
    %3921 = vmatmul.f32.gmra.mxu0 %v3216
    %v3922 = vpop.f32.mrf.mxu0
    %v3923 = vadd.f32 0.0, %v3922
    %3924 = vmatmul.f32.gmra.mxu0 %v3219
    %v3925 = vpop.f32.mrf.mxu0
    %v3926 = vadd.f32 0.0, %v3925
    %3927 = vmatmul.f32.gmra.mxu0 %v3222
    %v3928 = vpop.f32.mrf.mxu0
    %v3929 = vadd.f32 0.0, %v3928
    %3930 = vmatmul.f32.gmra.mxu0 %v3225
    %v3931 = vpop.f32.mrf.mxu0
    %v3932 = vadd.f32 0.0, %v3931
    %3933 = vmatmul.f32.gmra.mxu0 %v3228
    %v3934 = vpop.f32.mrf.mxu0
    %v3935 = vadd.f32 0.0, %v3934
    %3936 = vmatmul.f32.gmra.mxu0 %v3231
    %v3937 = vpop.f32.mrf.mxu0
    %v3938 = vadd.f32 0.0, %v3937
    %3939 = vmatmul.f32.gmra.mxu0 %v3234
    %v3940 = vpop.f32.mrf.mxu0
    %v3941 = vadd.f32 0.0, %v3940
    %3942 = vmatmul.f32.gmra.mxu0 %v3237
    %v3943 = vpop.f32.mrf.mxu0
    %v3944 = vadd.f32 0.0, %v3943
    %3945 = vmatmul.f32.gmra.mxu0 %v3240
    %v3946 = vpop.f32.mrf.mxu0
    %v3947 = vadd.f32 0.0, %v3946
    %3948 = vmatmul.f32.gmra.mxu0 %v3243
    %v3949 = vpop.f32.mrf.mxu0
    %v3950 = vadd.f32 0.0, %v3949
    %3951 = vmatmul.f32.gmra.mxu0 %v3246
    %v3952 = vpop.f32.mrf.mxu0
    %v3953 = vadd.f32 0.0, %v3952
    %3954 = vmatmul.f32.gmra.mxu0 %v3249
    %v3955 = vpop.f32.mrf.mxu0
    %v3956 = vadd.f32 0.0, %v3955
    %3957 = vmatmul.f32.gmra.mxu0 %v3252
    %v3958 = vpop.f32.mrf.mxu0
    %v3959 = vadd.f32 0.0, %v3958
    %3960 = vmatmul.f32.gmra.mxu0 %v3255
    %v3961 = vpop.f32.mrf.mxu0
    %v3962 = vadd.f32 0.0, %v3961
    %3963 = vmatmul.f32.gmra.mxu0 %v3258
    %v3964 = vpop.f32.mrf.mxu0
    %v3965 = vadd.f32 0.0, %v3964
    %3966 = vmatmul.f32.gmra.mxu0 %v3261
    %v3967 = vpop.f32.mrf.mxu0
    %v3968 = vadd.f32 0.0, %v3967
    %3969 = vmatmul.f32.gmra.mxu0 %v3264
    %v3970 = vpop.f32.mrf.mxu0
    %v3971 = vadd.f32 0.0, %v3970
    %3972 = vmatmul.f32.gmra.mxu0 %v3267
    %v3973 = vpop.f32.mrf.mxu0
    %v3974 = vadd.f32 0.0, %v3973
    %3975 = vmatmul.f32.gmra.mxu0 %v3270
    %v3976 = vpop.f32.mrf.mxu0
    %v3977 = vadd.f32 0.0, %v3976
    %3978 = vmatmul.f32.gmra.mxu0 %v3273
    %v3979 = vpop.f32.mrf.mxu0
    %v3980 = vadd.f32 0.0, %v3979
    %3981 = vmatmul.f32.gmra.mxu0 %v3276
    %v3982 = vpop.f32.mrf.mxu0
    %v3983 = vadd.f32 0.0, %v3982
    %3984 = vmatmul.f32.gmra.mxu0 %v3279
    %v3985 = vpop.f32.mrf.mxu0
    %v3986 = vadd.f32 0.0, %v3985
    %3987 = vmatmul.f32.gmra.mxu0 %v3282
    %v3988 = vpop.f32.mrf.mxu0
    %v3989 = vadd.f32 0.0, %v3988
    %3990 = vdwg.mxu0
    %3991 = vmatpush.msra.mxu0 0.0
    %3992 = vmatpush.msra.mxu0 0.0
    %3993 = vmatpush.msra.mxu0 0.0
    %3994 = vmatpush.msra.mxu0 0.0
    %3995 = vmatpush.msra.mxu0 0.0
    %3996 = vmatpush.msra.mxu0 0.0
    %3997 = vmatpush.msra.mxu0 0.0
    %3998 = vmatpush.msra.mxu0 0.0
    %3999 = vmatpush.msra.mxu0 0.0
    %4000 = vmatpush.msra.mxu0 0.0
    %4001 = vmatpush.msra.mxu0 %v3198
    %4002 = vmatpush.msra.mxu0 %v3190
    %4003 = vmatpush.msra.mxu0 %v3182
    %4004 = vmatpush.msra.mxu0 %v3174
    %4005 = vmatpush.msra.mxu0 %v3166
    %4006 = vmatpush.msra.mxu0 %v3158
    %4007 = vmatmul.f32.gmra.mxu0 %v3201
    %v4008 = vpop.f32.mrf.mxu0
    %v4009 = vadd.f32 0.0, %v4008
    %4010 = vmatmul.f32.gmra.mxu0 %v3204
    %v4011 = vpop.f32.mrf.mxu0
    %v4012 = vadd.f32 0.0, %v4011
    %4013 = vmatmul.f32.gmra.mxu0 %v3207
    %v4014 = vpop.f32.mrf.mxu0
    %v4015 = vadd.f32 0.0, %v4014
    %4016 = vmatmul.f32.gmra.mxu0 %v3210
    %v4017 = vpop.f32.mrf.mxu0
    %v4018 = vadd.f32 0.0, %v4017
    %4019 = vmatmul.f32.gmra.mxu0 %v3213
    %v4020 = vpop.f32.mrf.mxu0
    %v4021 = vadd.f32 0.0, %v4020
    %4022 = vmatmul.f32.gmra.mxu0 %v3216
    %v4023 = vpop.f32.mrf.mxu0
    %v4024 = vadd.f32 0.0, %v4023
    %4025 = vmatmul.f32.gmra.mxu0 %v3219
    %v4026 = vpop.f32.mrf.mxu0
    %v4027 = vadd.f32 0.0, %v4026
    %4028 = vmatmul.f32.gmra.mxu0 %v3222
    %v4029 = vpop.f32.mrf.mxu0
    %v4030 = vadd.f32 0.0, %v4029
    %4031 = vmatmul.f32.gmra.mxu0 %v3225
    %v4032 = vpop.f32.mrf.mxu0
    %v4033 = vadd.f32 0.0, %v4032
    %4034 = vmatmul.f32.gmra.mxu0 %v3228
    %v4035 = vpop.f32.mrf.mxu0
    %v4036 = vadd.f32 0.0, %v4035
    %4037 = vmatmul.f32.gmra.mxu0 %v3231
    %v4038 = vpop.f32.mrf.mxu0
    %v4039 = vadd.f32 0.0, %v4038
    %4040 = vmatmul.f32.gmra.mxu0 %v3234
    %v4041 = vpop.f32.mrf.mxu0
    %v4042 = vadd.f32 0.0, %v4041
    %4043 = vmatmul.f32.gmra.mxu0 %v3237
    %v4044 = vpop.f32.mrf.mxu0
    %v4045 = vadd.f32 0.0, %v4044
    %4046 = vmatmul.f32.gmra.mxu0 %v3240
    %v4047 = vpop.f32.mrf.mxu0
    %v4048 = vadd.f32 0.0, %v4047
    %4049 = vmatmul.f32.gmra.mxu0 %v3243
    %v4050 = vpop.f32.mrf.mxu0
    %v4051 = vadd.f32 0.0, %v4050
    %4052 = vmatmul.f32.gmra.mxu0 %v3246
    %v4053 = vpop.f32.mrf.mxu0
    %v4054 = vadd.f32 0.0, %v4053
    %4055 = vmatmul.f32.gmra.mxu0 %v3249
    %v4056 = vpop.f32.mrf.mxu0
    %v4057 = vadd.f32 0.0, %v4056
    %4058 = vmatmul.f32.gmra.mxu0 %v3252
    %v4059 = vpop.f32.mrf.mxu0
    %v4060 = vadd.f32 0.0, %v4059
    %4061 = vmatmul.f32.gmra.mxu0 %v3255
    %v4062 = vpop.f32.mrf.mxu0
    %v4063 = vadd.f32 0.0, %v4062
    %4064 = vmatmul.f32.gmra.mxu0 %v3258
    %v4065 = vpop.f32.mrf.mxu0
    %v4066 = vadd.f32 0.0, %v4065
    %4067 = vmatmul.f32.gmra.mxu0 %v3261
    %v4068 = vpop.f32.mrf.mxu0
    %v4069 = vadd.f32 0.0, %v4068
    %4070 = vmatmul.f32.gmra.mxu0 %v3264
    %v4071 = vpop.f32.mrf.mxu0
    %v4072 = vadd.f32 0.0, %v4071
    %4073 = vmatmul.f32.gmra.mxu0 %v3267
    %v4074 = vpop.f32.mrf.mxu0
    %v4075 = vadd.f32 0.0, %v4074
    %4076 = vmatmul.f32.gmra.mxu0 %v3270
    %v4077 = vpop.f32.mrf.mxu0
    %v4078 = vadd.f32 0.0, %v4077
    %4079 = vmatmul.f32.gmra.mxu0 %v3273
    %v4080 = vpop.f32.mrf.mxu0
    %v4081 = vadd.f32 0.0, %v4080
    %4082 = vmatmul.f32.gmra.mxu0 %v3276
    %v4083 = vpop.f32.mrf.mxu0
    %v4084 = vadd.f32 0.0, %v4083
    %4085 = vmatmul.f32.gmra.mxu0 %v3279
    %v4086 = vpop.f32.mrf.mxu0
    %v4087 = vadd.f32 0.0, %v4086
    %4088 = vmatmul.f32.gmra.mxu0 %v3282
    %v4089 = vpop.f32.mrf.mxu0
    %v4090 = vadd.f32 0.0, %v4089
    %4091 = vdwg.mxu0
    %v4092 = vld [vmem:[#allocation8] sm:$0xff]
    %v4093 = vld [vmem:[#allocation8 + $0x8] sm:$0xff]
    %v4094 = vld [vmem:[#allocation8 + $0x10] sm:$0xff]
    %v4095 = vld [vmem:[#allocation8 + $0x18] sm:$0xff]
    %v4096 = vld [vmem:[#allocation8 + $0x20] sm:$0xff]
    %v4097 = vld [vmem:[#allocation8 + $0x28] sm:$0xff]
    %v4098 = vld [vmem:[#allocation8 + $0x30] sm:$0xff]
    %v4099 = vld [vmem:[#allocation8 + $0x38] sm:$0xff]
    %v4100 = vld [vmem:[#allocation8 + $0x40] sm:$0xff]
    %v4101 = vld [vmem:[#allocation8 + $0x48] sm:$0xff]
    %v4102 = vld [vmem:[#allocation8 + $0x50] sm:$0xff]
    %v4103 = vld [vmem:[#allocation8 + $0x58] sm:$0xff]
    %v4104 = vld [vmem:[#allocation8 + $0x60] sm:$0xff]
    %v4105 = vld [vmem:[#allocation8 + $0x68] sm:$0xff]
    %v4106 = vld [vmem:[#allocation8 + $0x70] sm:$0xff]
    %v4107 = vld [vmem:[#allocation8 + $0x78] sm:$0xff]
    %v4108 = vld [vmem:[#allocation8 + $0x80] sm:$0xff]
    %v4109 = vld [vmem:[#allocation8 + $0x88] sm:$0xff]
    %v4110 = vld [vmem:[#allocation8 + $0x90] sm:$0xff]
    %v4111 = vld [vmem:[#allocation8 + $0x98] sm:$0xff]
    %v4112 = vld [vmem:[#allocation8 + $0xa0] sm:$0xff]
    %v4113 = vld [vmem:[#allocation8 + $0xa8] sm:$0xff]
    %v4114 = vld [vmem:[#allocation8 + $0xb0] sm:$0xff]
    %v4115 = vld [vmem:[#allocation8 + $0xb8] sm:$0xff]
    %v4116 = vld [vmem:[#allocation8 + $0xc0] sm:$0xff]
    %v4117 = vld [vmem:[#allocation8 + $0xc8] sm:$0xff]
    %v4118 = vld [vmem:[#allocation8 + $0xd0] sm:$0xff]
    %v4119 = vld [vmem:[#allocation8 + $0xd8] sm:$0xff]
    %v4120 = vld [vmem:[#allocation8 + $0xe0] sm:$0xff]
    %v4121 = vld [vmem:[#allocation8 + $0xe8] sm:$0xff]
    %v4122 = vld [vmem:[#allocation8 + $0xf0] sm:$0xff]
    %v4123 = vld [vmem:[#allocation8 + $0xf8] sm:$0xff]
    %v4124 = vld [vmem:[#allocation8 + $0x100] sm:$0xff]
    %v4125 = vld [vmem:[#allocation8 + $0x108] sm:$0xff]
    %v4126 = vld [vmem:[#allocation8 + $0x110] sm:$0xff]
    %v4127 = vld [vmem:[#allocation8 + $0x118] sm:$0xff]
    %v4128 = vld [vmem:[#allocation8 + $0x120] sm:$0xff]
    %v4129 = vld [vmem:[#allocation8 + $0x128] sm:$0xff]
    %v4130 = vld [vmem:[#allocation8 + $0x130] sm:$0xff]
    %v4131 = vld [vmem:[#allocation8 + $0x138] sm:$0xff]
    %v4132 = vld [vmem:[#allocation8 + $0x140] sm:$0xff]
    %v4133 = vld [vmem:[#allocation8 + $0x148] sm:$0xff]
    %v4134 = vld [vmem:[#allocation8 + $0x150] sm:$0xff]
    %v4135 = vld [vmem:[#allocation8 + $0x158] sm:$0xff]
    %v4136 = vld [vmem:[#allocation8 + $0x160] sm:$0xff]
    %v4137 = vld [vmem:[#allocation8 + $0x168] sm:$0xff]
    %v4138 = vld [vmem:[#allocation8 + $0x170] sm:$0xff]
    %v4139 = vld [vmem:[#allocation8 + $0x178] sm:$0xff]
    %v4140 = vld [vmem:[#allocation8 + $0x180] sm:$0xff]
    %v4141 = vld [vmem:[#allocation8 + $0x188] sm:$0xff]
    %v4142 = vld [vmem:[#allocation8 + $0x190] sm:$0xff]
    %v4143 = vld [vmem:[#allocation8 + $0x198] sm:$0xff]
    %v4144 = vld [vmem:[#allocation8 + $0x1a0] sm:$0xff]
    %v4145 = vld [vmem:[#allocation8 + $0x1a8] sm:$0xff]
    %v4146 = vld [vmem:[#allocation8 + $0x1b0] sm:$0xff]
    %v4147 = vld [vmem:[#allocation8 + $0x1b8] sm:$0xff]
    %v4148 = vld [vmem:[#allocation8 + $0x1c0] sm:$0xff]
    %v4149 = vld [vmem:[#allocation8 + $0x1c8] sm:$0xff]
    %v4150 = vld [vmem:[#allocation8 + $0x1d0] sm:$0xff]
    %v4151 = vld [vmem:[#allocation8 + $0x1d8] sm:$0xff]
    %v4152 = vld [vmem:[#allocation8 + $0x1e0] sm:$0xff]
    %v4153 = vld [vmem:[#allocation8 + $0x1e8] sm:$0xff]
    %v4154 = vld [vmem:[#allocation8 + $0x1f0] sm:$0xff]
    %v4155 = vld [vmem:[#allocation8 + $0x1f8] sm:$0xff]
    %v4156 = vld [vmem:[#allocation8 + $0x200] sm:$0xff]
    %v4157 = vld [vmem:[#allocation8 + $0x208] sm:$0xff]
    %v4158 = vld [vmem:[#allocation8 + $0x210] sm:$0xff]
    %v4159 = vld [vmem:[#allocation8 + $0x218] sm:$0xff]
    %v4160 = vld [vmem:[#allocation8 + $0x220] sm:$0xff]
    %v4161 = vld [vmem:[#allocation8 + $0x228] sm:$0xff]
    %v4162 = vld [vmem:[#allocation8 + $0x230] sm:$0xff]
    %v4163 = vld [vmem:[#allocation8 + $0x238] sm:$0xff]
    %v4164 = vld [vmem:[#allocation8 + $0x240] sm:$0xff]
    %v4165 = vld [vmem:[#allocation8 + $0x248] sm:$0xff]
    %v4166 = vld [vmem:[#allocation8 + $0x250] sm:$0xff]
    %v4167 = vld [vmem:[#allocation8 + $0x258] sm:$0xff]
    %v4168 = vld [vmem:[#allocation8 + $0x260] sm:$0xff]
    %v4169 = vld [vmem:[#allocation8 + $0x268] sm:$0xff]
    %v4170 = vld [vmem:[#allocation8 + $0x270] sm:$0xff]
    %v4171 = vld [vmem:[#allocation8 + $0x278] sm:$0xff]
    %v4172 = vld [vmem:[#allocation8 + $0x280] sm:$0xff]
    %v4173 = vld [vmem:[#allocation8 + $0x288] sm:$0xff]
    %v4174 = vld [vmem:[#allocation8 + $0x290] sm:$0xff]
    %v4175 = vld [vmem:[#allocation8 + $0x298] sm:$0xff]
    %v4176 = vld [vmem:[#allocation8 + $0x2a0] sm:$0xff]
    %v4177 = vld [vmem:[#allocation8 + $0x2a8] sm:$0xff]
    %v4178 = vld [vmem:[#allocation8 + $0x2b0] sm:$0xff]
    %v4179 = vld [vmem:[#allocation8 + $0x2b8] sm:$0xff]
    %v4180 = vld [vmem:[#allocation8 + $0x2c0] sm:$0xff]
    %v4181 = vld [vmem:[#allocation8 + $0x2c8] sm:$0xff]
    %v4182 = vld [vmem:[#allocation8 + $0x2d0] sm:$0xff]
    %v4183 = vld [vmem:[#allocation8 + $0x2d8] sm:$0xff]
    %v4184 = vld [vmem:[#allocation8 + $0x2e0] sm:$0xff]
    %v4185 = vld [vmem:[#allocation8 + $0x2e8] sm:$0xff]
    %v4186 = vld [vmem:[#allocation8 + $0x2f0] sm:$0xff]
    %v4187 = vld [vmem:[#allocation8 + $0x2f8] sm:$0xff]
    %v4188 = vld [vmem:[#allocation8 + $0x300] sm:$0xff]
    %v4189 = vld [vmem:[#allocation8 + $0x308] sm:$0xff]
    %v4190 = vld [vmem:[#allocation8 + $0x310] sm:$0xff]
    %v4191 = vld [vmem:[#allocation8 + $0x318] sm:$0xff]
    %v4192 = vld [vmem:[#allocation8 + $0x320] sm:$0xff]
    %v4193 = vld [vmem:[#allocation8 + $0x328] sm:$0xff]
    %v4194 = vld [vmem:[#allocation8 + $0x330] sm:$0xff]
    %v4195 = vld [vmem:[#allocation8 + $0x338] sm:$0xff]
    %v4196 = vld [vmem:[#allocation8 + $0x340] sm:$0xff]
    %v4197 = vld [vmem:[#allocation8 + $0x348] sm:$0xff]
    %v4198 = vld [vmem:[#allocation8 + $0x350] sm:$0xff]
    %v4199 = vld [vmem:[#allocation8 + $0x358] sm:$0xff]
    %v4200 = vld [vmem:[#allocation8 + $0x360] sm:$0xff]
    %v4201 = vld [vmem:[#allocation8 + $0x368] sm:$0xff]
    %v4202 = vld [vmem:[#allocation8 + $0x370] sm:$0xff]
    %v4203 = vld [vmem:[#allocation8 + $0x378] sm:$0xff]
    %v4204 = vld [vmem:[#allocation8 + $0x380] sm:$0xff]
    %v4205 = vld [vmem:[#allocation8 + $0x388] sm:$0xff]
    %v4206 = vld [vmem:[#allocation8 + $0x390] sm:$0xff]
    %v4207 = vld [vmem:[#allocation8 + $0x398] sm:$0xff]
    %v4208 = vld [vmem:[#allocation8 + $0x3a0] sm:$0xff]
    %v4209 = vld [vmem:[#allocation8 + $0x3a8] sm:$0xff]
    %v4210 = vld [vmem:[#allocation8 + $0x3b0] sm:$0xff]
    %v4211 = vld [vmem:[#allocation8 + $0x3b8] sm:$0xff]
    %v4212 = vld [vmem:[#allocation8 + $0x3c0] sm:$0xff]
    %v4213 = vld [vmem:[#allocation8 + $0x3c8] sm:$0xff]
    %v4214 = vld [vmem:[#allocation8 + $0x3d0] sm:$0xff]
    %v4215 = vld [vmem:[#allocation8 + $0x3d8] sm:$0xff]
    %v4216 = vld [vmem:[#allocation8 + $0x3e0] sm:$0xff]
    %v4217 = vld [vmem:[#allocation8 + $0x3e8] sm:$0xff]
    %v4218 = vld [vmem:[#allocation8 + $0x3f0] sm:$0xff]
    %v4219 = vld [vmem:[#allocation8 + $0x3f8] sm:$0xff]
    %v4220 = vld [vmem:[#allocation8 + $0x400] sm:$0xff]
    %v4221 = vld [vmem:[#allocation8 + $0x408] sm:$0xff]
    %v4222 = vld [vmem:[#allocation8 + $0x410] sm:$0xff]
    %v4223 = vld [vmem:[#allocation8 + $0x418] sm:$0xff]
    %v4224 = vld [vmem:[#allocation8 + $0x420] sm:$0xff]
    %v4225 = vld [vmem:[#allocation8 + $0x428] sm:$0xff]
    %v4226 = vld [vmem:[#allocation8 + $0x430] sm:$0xff]
    %v4227 = vld [vmem:[#allocation8 + $0x438] sm:$0xff]
    %v4228 = vld [vmem:[#allocation8 + $0x440] sm:$0xff]
    %v4229 = vld [vmem:[#allocation8 + $0x448] sm:$0xff]
    %v4230 = vld [vmem:[#allocation8 + $0x450] sm:$0xff]
    %v4231 = vld [vmem:[#allocation8 + $0x458] sm:$0xff]
    %v4232 = vld [vmem:[#allocation8 + $0x460] sm:$0xff]
    %v4233 = vld [vmem:[#allocation8 + $0x468] sm:$0xff]
    %v4234 = vld [vmem:[#allocation8 + $0x470] sm:$0xff]
    %v4235 = vld [vmem:[#allocation8 + $0x478] sm:$0xff]
    %v4236 = vld [vmem:[#allocation8 + $0x480] sm:$0xff]
    %v4237 = vld [vmem:[#allocation8 + $0x488] sm:$0xff]
    %v4238 = vld [vmem:[#allocation8 + $0x490] sm:$0xff]
    %v4239 = vld [vmem:[#allocation8 + $0x498] sm:$0xff]
    %v4240 = vld [vmem:[#allocation8 + $0x4a0] sm:$0xff]
    %v4241 = vld [vmem:[#allocation8 + $0x4a8] sm:$0xff]
    %v4242 = vld [vmem:[#allocation8 + $0x4b0] sm:$0xff]
    %v4243 = vld [vmem:[#allocation8 + $0x4b8] sm:$0xff]
    %v4244 = vld [vmem:[#allocation8 + $0x4c0] sm:$0xff]
    %v4245 = vld [vmem:[#allocation8 + $0x4c8] sm:$0xff]
    %v4246 = vld [vmem:[#allocation8 + $0x4d0] sm:$0xff]
    %v4247 = vld [vmem:[#allocation8 + $0x4d8] sm:$0xff]
    %v4248 = vld [vmem:[#allocation8 + $0x4e0] sm:$0xff]
    %v4249 = vld [vmem:[#allocation8 + $0x4e8] sm:$0xff]
    %v4250 = vld [vmem:[#allocation8 + $0x4f0] sm:$0xff]
    %v4251 = vld [vmem:[#allocation8 + $0x4f8] sm:$0xff]
    %v4252 = vld [vmem:[#allocation8 + $0x500] sm:$0xff]
    %v4253 = vld [vmem:[#allocation8 + $0x508] sm:$0xff]
    %v4254 = vld [vmem:[#allocation8 + $0x510] sm:$0xff]
    %v4255 = vld [vmem:[#allocation8 + $0x518] sm:$0xff]
    %v4256 = vld [vmem:[#allocation8 + $0x520] sm:$0xff]
    %v4257 = vld [vmem:[#allocation8 + $0x528] sm:$0xff]
    %v4258 = vld [vmem:[#allocation8 + $0x530] sm:$0xff]
    %v4259 = vld [vmem:[#allocation8 + $0x538] sm:$0xff]
    %v4260 = vld [vmem:[#allocation8 + $0x540] sm:$0xff]
    %v4261 = vld [vmem:[#allocation8 + $0x548] sm:$0xff]
    %v4262 = vld [vmem:[#allocation8 + $0x550] sm:$0xff]
    %v4263 = vld [vmem:[#allocation8 + $0x558] sm:$0xff]
    %v4264 = vld [vmem:[#allocation8 + $0x560] sm:$0xff]
    %v4265 = vld [vmem:[#allocation8 + $0x568] sm:$0xff]
    %v4266 = vld [vmem:[#allocation8 + $0x570] sm:$0xff]
    %v4267 = vld [vmem:[#allocation8 + $0x578] sm:$0xff]
    %v4268 = vld [vmem:[#allocation8 + $0x580] sm:$0xff]
    %v4269 = vld [vmem:[#allocation8 + $0x588] sm:$0xff]
    %v4270 = vld [vmem:[#allocation8 + $0x590] sm:$0xff]
    %v4271 = vld [vmem:[#allocation8 + $0x598] sm:$0xff]
    %v4272 = vld [vmem:[#allocation8 + $0x5a0] sm:$0xff]
    %v4273 = vld [vmem:[#allocation8 + $0x5a8] sm:$0xff]
    %v4274 = vld [vmem:[#allocation8 + $0x5b0] sm:$0xff]
    %v4275 = vld [vmem:[#allocation8 + $0x5b8] sm:$0xff]
    %v4276 = vld [vmem:[#allocation8 + $0x5c0] sm:$0xff]
    %v4277 = vld [vmem:[#allocation8 + $0x5c8] sm:$0xff]
    %v4278 = vld [vmem:[#allocation8 + $0x5d0] sm:$0xff]
    %v4279 = vld [vmem:[#allocation8 + $0x5d8] sm:$0xff]
    %v4280 = vld [vmem:[#allocation8 + $0x5e0] sm:$0xff]
    %v4281 = vld [vmem:[#allocation8 + $0x5e8] sm:$0xff]
    %v4282 = vld [vmem:[#allocation8 + $0x5f0] sm:$0xff]
    %v4283 = vld [vmem:[#allocation8 + $0x5f8] sm:$0xff]
    %v4284 = vld [vmem:[#allocation8 + $0x600] sm:$0xff]
    %v4285 = vld [vmem:[#allocation8 + $0x608] sm:$0xff]
    %v4286 = vld [vmem:[#allocation8 + $0x610] sm:$0xff]
    %v4287 = vld [vmem:[#allocation8 + $0x618] sm:$0xff]
    %v4288 = vld [vmem:[#allocation8 + $0x620] sm:$0xff]
    %v4289 = vld [vmem:[#allocation8 + $0x628] sm:$0xff]
    %v4290 = vld [vmem:[#allocation8 + $0x630] sm:$0xff]
    %v4291 = vld [vmem:[#allocation8 + $0x638] sm:$0xff]
    %v4292 = vld [vmem:[#allocation8 + $0x640] sm:$0xff]
    %v4293 = vld [vmem:[#allocation8 + $0x648] sm:$0xff]
    %v4294 = vld [vmem:[#allocation8 + $0x650] sm:$0xff]
    %v4295 = vld [vmem:[#allocation8 + $0x658] sm:$0xff]
    %v4296 = vld [vmem:[#allocation8 + $0x660] sm:$0xff]
    %v4297 = vld [vmem:[#allocation8 + $0x668] sm:$0xff]
    %v4298 = vld [vmem:[#allocation8 + $0x670] sm:$0xff]
    %v4299 = vld [vmem:[#allocation8 + $0x678] sm:$0xff]
    %v4300 = vld [vmem:[#allocation8 + $0x680] sm:$0xff]
    %v4301 = vld [vmem:[#allocation8 + $0x688] sm:$0xff]
    %v4302 = vld [vmem:[#allocation8 + $0x690] sm:$0xff]
    %v4303 = vld [vmem:[#allocation8 + $0x698] sm:$0xff]
    %v4304 = vld [vmem:[#allocation8 + $0x6a0] sm:$0xff]
    %v4305 = vld [vmem:[#allocation8 + $0x6a8] sm:$0xff]
    %v4306 = vld [vmem:[#allocation8 + $0x6b0] sm:$0xff]
    %v4307 = vld [vmem:[#allocation8 + $0x6b8] sm:$0xff]
    %v4308 = vld [vmem:[#allocation8 + $0x6c0] sm:$0xff]
    %v4309 = vld [vmem:[#allocation8 + $0x6c8] sm:$0xff]
    %v4310 = vld [vmem:[#allocation8 + $0x6d0] sm:$0xff]
    %v4311 = vld [vmem:[#allocation8 + $0x6d8] sm:$0xff]
    %v4312 = vld [vmem:[#allocation8 + $0x6e0] sm:$0xff]
    %v4313 = vld [vmem:[#allocation8 + $0x6e8] sm:$0xff]
    %v4314 = vld [vmem:[#allocation8 + $0x6f0] sm:$0xff]
    %v4315 = vld [vmem:[#allocation8 + $0x6f8] sm:$0xff]
    %v4316 = vmul.f32 %v3302, %v4092
    %v4317 = vmul.f32 %v3403, %v4093
    %v4318 = vmul.f32 %v3504, %v4094
    %v4319 = vmul.f32 %v3605, %v4095
    %v4320 = vmul.f32 %v3706, %v4096
    %v4321 = vmul.f32 %v3807, %v4097
    %v4322 = vmul.f32 %v3908, %v4098
    %v4323 = vmul.f32 %v4009, %v4099
    %v4324 = vmul.f32 %v3305, %v4100
    %v4325 = vmul.f32 %v3406, %v4101
    %v4326 = vmul.f32 %v3507, %v4102
    %v4327 = vmul.f32 %v3608, %v4103
    %v4328 = vmul.f32 %v3709, %v4104
    %v4329 = vmul.f32 %v3810, %v4105
    %v4330 = vmul.f32 %v3911, %v4106
    %v4331 = vmul.f32 %v4012, %v4107
    %v4332 = vmul.f32 %v3308, %v4108
    %v4333 = vmul.f32 %v3409, %v4109
    %v4334 = vmul.f32 %v3510, %v4110
    %v4335 = vmul.f32 %v3611, %v4111
    %v4336 = vmul.f32 %v3712, %v4112
    %v4337 = vmul.f32 %v3813, %v4113
    %v4338 = vmul.f32 %v3914, %v4114
    %v4339 = vmul.f32 %v4015, %v4115
    %v4340 = vmul.f32 %v3311, %v4116
    %v4341 = vmul.f32 %v3412, %v4117
    %v4342 = vmul.f32 %v3513, %v4118
    %v4343 = vmul.f32 %v3614, %v4119
    %v4344 = vmul.f32 %v3715, %v4120
    %v4345 = vmul.f32 %v3816, %v4121
    %v4346 = vmul.f32 %v3917, %v4122
    %v4347 = vmul.f32 %v4018, %v4123
    %v4348 = vmul.f32 %v3314, %v4124
    %v4349 = vmul.f32 %v3415, %v4125
    %v4350 = vmul.f32 %v3516, %v4126
    %v4351 = vmul.f32 %v3617, %v4127
    %v4352 = vmul.f32 %v3718, %v4128
    %v4353 = vmul.f32 %v3819, %v4129
    %v4354 = vmul.f32 %v3920, %v4130
    %v4355 = vmul.f32 %v4021, %v4131
    %v4356 = vmul.f32 %v3317, %v4132
    %v4357 = vmul.f32 %v3418, %v4133
    %v4358 = vmul.f32 %v3519, %v4134
    %v4359 = vmul.f32 %v3620, %v4135
    %v4360 = vmul.f32 %v3721, %v4136
    %v4361 = vmul.f32 %v3822, %v4137
    %v4362 = vmul.f32 %v3923, %v4138
    %v4363 = vmul.f32 %v4024, %v4139
    %v4364 = vmul.f32 %v3320, %v4140
    %v4365 = vmul.f32 %v3421, %v4141
    %v4366 = vmul.f32 %v3522, %v4142
    %v4367 = vmul.f32 %v3623, %v4143
    %v4368 = vmul.f32 %v3724, %v4144
    %v4369 = vmul.f32 %v3825, %v4145
    %v4370 = vmul.f32 %v3926, %v4146
    %v4371 = vmul.f32 %v4027, %v4147
    %v4372 = vmul.f32 %v3323, %v4148
    %v4373 = vmul.f32 %v3424, %v4149
    %v4374 = vmul.f32 %v3525, %v4150
    %v4375 = vmul.f32 %v3626, %v4151
    %v4376 = vmul.f32 %v3727, %v4152
    %v4377 = vmul.f32 %v3828, %v4153
    %v4378 = vmul.f32 %v3929, %v4154
    %v4379 = vmul.f32 %v4030, %v4155
    %v4380 = vmul.f32 %v3326, %v4156
    %v4381 = vmul.f32 %v3427, %v4157
    %v4382 = vmul.f32 %v3528, %v4158
    %v4383 = vmul.f32 %v3629, %v4159
    %v4384 = vmul.f32 %v3730, %v4160
    %v4385 = vmul.f32 %v3831, %v4161
    %v4386 = vmul.f32 %v3932, %v4162
    %v4387 = vmul.f32 %v4033, %v4163
    %v4388 = vmul.f32 %v3329, %v4164
    %v4389 = vmul.f32 %v3430, %v4165
    %v4390 = vmul.f32 %v3531, %v4166
    %v4391 = vmul.f32 %v3632, %v4167
    %v4392 = vmul.f32 %v3733, %v4168
    %v4393 = vmul.f32 %v3834, %v4169
    %v4394 = vmul.f32 %v3935, %v4170
    %v4395 = vmul.f32 %v4036, %v4171
    %v4396 = vmul.f32 %v3332, %v4172
    %v4397 = vmul.f32 %v3433, %v4173
    %v4398 = vmul.f32 %v3534, %v4174
    %v4399 = vmul.f32 %v3635, %v4175
    %v4400 = vmul.f32 %v3736, %v4176
    %v4401 = vmul.f32 %v3837, %v4177
    %v4402 = vmul.f32 %v3938, %v4178
    %v4403 = vmul.f32 %v4039, %v4179
    %v4404 = vmul.f32 %v3335, %v4180
    %v4405 = vmul.f32 %v3436, %v4181
    %v4406 = vmul.f32 %v3537, %v4182
    %v4407 = vmul.f32 %v3638, %v4183
    %v4408 = vmul.f32 %v3739, %v4184
    %v4409 = vmul.f32 %v3840, %v4185
    %v4410 = vmul.f32 %v3941, %v4186
    %v4411 = vmul.f32 %v4042, %v4187
    %v4412 = vmul.f32 %v3338, %v4188
    %v4413 = vmul.f32 %v3439, %v4189
    %v4414 = vmul.f32 %v3540, %v4190
    %v4415 = vmul.f32 %v3641, %v4191
    %v4416 = vmul.f32 %v3742, %v4192
    %v4417 = vmul.f32 %v3843, %v4193
    %v4418 = vmul.f32 %v3944, %v4194
    %v4419 = vmul.f32 %v4045, %v4195
    %v4420 = vmul.f32 %v3341, %v4196
    %v4421 = vmul.f32 %v3442, %v4197
    %v4422 = vmul.f32 %v3543, %v4198
    %v4423 = vmul.f32 %v3644, %v4199
    %v4424 = vmul.f32 %v3745, %v4200
    %v4425 = vmul.f32 %v3846, %v4201
    %v4426 = vmul.f32 %v3947, %v4202
    %v4427 = vmul.f32 %v4048, %v4203
    %v4428 = vmul.f32 %v3344, %v4204
    %v4429 = vmul.f32 %v3445, %v4205
    %v4430 = vmul.f32 %v3546, %v4206
    %v4431 = vmul.f32 %v3647, %v4207
    %v4432 = vmul.f32 %v3748, %v4208
    %v4433 = vmul.f32 %v3849, %v4209
    %v4434 = vmul.f32 %v3950, %v4210
    %v4435 = vmul.f32 %v4051, %v4211
    %v4436 = vmul.f32 %v3347, %v4212
    %v4437 = vmul.f32 %v3448, %v4213
    %v4438 = vmul.f32 %v3549, %v4214
    %v4439 = vmul.f32 %v3650, %v4215
    %v4440 = vmul.f32 %v3751, %v4216
    %v4441 = vmul.f32 %v3852, %v4217
    %v4442 = vmul.f32 %v3953, %v4218
    %v4443 = vmul.f32 %v4054, %v4219
    %v4444 = vmul.f32 %v3350, %v4220
    %v4445 = vmul.f32 %v3451, %v4221
    %v4446 = vmul.f32 %v3552, %v4222
    %v4447 = vmul.f32 %v3653, %v4223
    %v4448 = vmul.f32 %v3754, %v4224
    %v4449 = vmul.f32 %v3855, %v4225
    %v4450 = vmul.f32 %v3956, %v4226
    %v4451 = vmul.f32 %v4057, %v4227
    %v4452 = vmul.f32 %v3353, %v4228
    %v4453 = vmul.f32 %v3454, %v4229
    %v4454 = vmul.f32 %v3555, %v4230
    %v4455 = vmul.f32 %v3656, %v4231
    %v4456 = vmul.f32 %v3757, %v4232
    %v4457 = vmul.f32 %v3858, %v4233
    %v4458 = vmul.f32 %v3959, %v4234
    %v4459 = vmul.f32 %v4060, %v4235
    %v4460 = vmul.f32 %v3356, %v4236
    %v4461 = vmul.f32 %v3457, %v4237
    %v4462 = vmul.f32 %v3558, %v4238
    %v4463 = vmul.f32 %v3659, %v4239
    %v4464 = vmul.f32 %v3760, %v4240
    %v4465 = vmul.f32 %v3861, %v4241
    %v4466 = vmul.f32 %v3962, %v4242
    %v4467 = vmul.f32 %v4063, %v4243
    %v4468 = vmul.f32 %v3359, %v4244
    %v4469 = vmul.f32 %v3460, %v4245
    %v4470 = vmul.f32 %v3561, %v4246
    %v4471 = vmul.f32 %v3662, %v4247
    %v4472 = vmul.f32 %v3763, %v4248
    %v4473 = vmul.f32 %v3864, %v4249
    %v4474 = vmul.f32 %v3965, %v4250
    %v4475 = vmul.f32 %v4066, %v4251
    %v4476 = vmul.f32 %v3362, %v4252
    %v4477 = vmul.f32 %v3463, %v4253
    %v4478 = vmul.f32 %v3564, %v4254
    %v4479 = vmul.f32 %v3665, %v4255
    %v4480 = vmul.f32 %v3766, %v4256
    %v4481 = vmul.f32 %v3867, %v4257
    %v4482 = vmul.f32 %v3968, %v4258
    %v4483 = vmul.f32 %v4069, %v4259
    %v4484 = vmul.f32 %v3365, %v4260
    %v4485 = vmul.f32 %v3466, %v4261
    %v4486 = vmul.f32 %v3567, %v4262
    %v4487 = vmul.f32 %v3668, %v4263
    %v4488 = vmul.f32 %v3769, %v4264
    %v4489 = vmul.f32 %v3870, %v4265
    %v4490 = vmul.f32 %v3971, %v4266
    %v4491 = vmul.f32 %v4072, %v4267
    %v4492 = vmul.f32 %v3368, %v4268
    %v4493 = vmul.f32 %v3469, %v4269
    %v4494 = vmul.f32 %v3570, %v4270
    %v4495 = vmul.f32 %v3671, %v4271
    %v4496 = vmul.f32 %v3772, %v4272
    %v4497 = vmul.f32 %v3873, %v4273
    %v4498 = vmul.f32 %v3974, %v4274
    %v4499 = vmul.f32 %v4075, %v4275
    %v4500 = vmul.f32 %v3371, %v4276
    %v4501 = vmul.f32 %v3472, %v4277
    %v4502 = vmul.f32 %v3573, %v4278
    %v4503 = vmul.f32 %v3674, %v4279
    %v4504 = vmul.f32 %v3775, %v4280
    %v4505 = vmul.f32 %v3876, %v4281
    %v4506 = vmul.f32 %v3977, %v4282
    %v4507 = vmul.f32 %v4078, %v4283
    %v4508 = vmul.f32 %v3374, %v4284
    %v4509 = vmul.f32 %v3475, %v4285
    %v4510 = vmul.f32 %v3576, %v4286
    %v4511 = vmul.f32 %v3677, %v4287
    %v4512 = vmul.f32 %v3778, %v4288
    %v4513 = vmul.f32 %v3879, %v4289
    %v4514 = vmul.f32 %v3980, %v4290
    %v4515 = vmul.f32 %v4081, %v4291
    %v4516 = vmul.f32 %v3377, %v4292
    %v4517 = vmul.f32 %v3478, %v4293
    %v4518 = vmul.f32 %v3579, %v4294
    %v4519 = vmul.f32 %v3680, %v4295
    %v4520 = vmul.f32 %v3781, %v4296
    %v4521 = vmul.f32 %v3882, %v4297
    %v4522 = vmul.f32 %v3983, %v4298
    %v4523 = vmul.f32 %v4084, %v4299
    %v4524 = vmul.f32 %v3380, %v4300
    %v4525 = vmul.f32 %v3481, %v4301
    %v4526 = vmul.f32 %v3582, %v4302
    %v4527 = vmul.f32 %v3683, %v4303
    %v4528 = vmul.f32 %v3784, %v4304
    %v4529 = vmul.f32 %v3885, %v4305
    %v4530 = vmul.f32 %v3986, %v4306
    %v4531 = vmul.f32 %v4087, %v4307
    %v4532 = vmul.f32 %v3383, %v4308
    %v4533 = vmul.f32 %v3484, %v4309
    %v4534 = vmul.f32 %v3585, %v4310
    %v4535 = vmul.f32 %v3686, %v4311
    %v4536 = vmul.f32 %v3787, %v4312
    %v4537 = vmul.f32 %v3888, %v4313
    %v4538 = vmul.f32 %v3989, %v4314
    %v4539 = vmul.f32 %v4090, %v4315
    %v4540 = vld [vmem:[%s7] sm:$0xff]
    %v4541 = vld [vmem:[%s7 + $0x8] sm:$0xff]
    %v4542 = vld [vmem:[%s7 + $0x10] sm:$0xff]
    %v4543 = vld [vmem:[%s7 + $0x18] sm:$0xff]
    %v4544 = vld [vmem:[%s7 + $0x20] sm:$0xff]
    %v4545 = vld [vmem:[%s7 + $0x28] sm:$0xff]
    %v4546 = vld [vmem:[%s7 + $0x30] sm:$0xff]
    %v4547 = vld [vmem:[%s7 + $0x38] sm:$0xff]
    %v4548 = vld [vmem:[%s7 + $0x40] sm:$0xff]
    %v4549 = vld [vmem:[%s7 + $0x48] sm:$0xff]
    %v4550 = vld [vmem:[%s7 + $0x50] sm:$0xff]
    %v4551 = vld [vmem:[%s7 + $0x58] sm:$0xff]
    %v4552 = vld [vmem:[%s7 + $0x60] sm:$0xff]
    %v4553 = vld [vmem:[%s7 + $0x68] sm:$0xff]
    %v4554 = vld [vmem:[%s7 + $0x70] sm:$0xff]
    %v4555 = vld [vmem:[%s7 + $0x78] sm:$0xff]
    %v4556 = vld [vmem:[%s7 + $0x80] sm:$0xff]
    %v4557 = vld [vmem:[%s7 + $0x88] sm:$0xff]
    %v4558 = vld [vmem:[%s7 + $0x90] sm:$0xff]
    %v4559 = vld [vmem:[%s7 + $0x98] sm:$0xff]
    %v4560 = vld [vmem:[%s7 + $0xa0] sm:$0xff]
    %v4561 = vld [vmem:[%s7 + $0xa8] sm:$0xff]
    %v4562 = vld [vmem:[%s7 + $0xb0] sm:$0xff]
    %v4563 = vld [vmem:[%s7 + $0xb8] sm:$0xff]
    %v4564 = vld [vmem:[%s7 + $0xc0] sm:$0xff]
    %v4565 = vld [vmem:[%s7 + $0xc8] sm:$0xff]
    %v4566 = vld [vmem:[%s7 + $0xd0] sm:$0xff]
    %v4567 = vld [vmem:[%s7 + $0xd8] sm:$0xff]
    %v4568 = vld [vmem:[%s7 + $0xe0] sm:$0xff]
    %v4569 = vld [vmem:[%s7 + $0xe8] sm:$0xff]
    %v4570 = vld [vmem:[%s7 + $0xf0] sm:$0xff]
    %v4571 = vld [vmem:[%s7 + $0xf8] sm:$0xff]
    %v4572 = vld [vmem:[%s7 + $0x100] sm:$0xff]
    %v4573 = vld [vmem:[%s7 + $0x108] sm:$0xff]
    %v4574 = vld [vmem:[%s7 + $0x110] sm:$0xff]
    %v4575 = vld [vmem:[%s7 + $0x118] sm:$0xff]
    %v4576 = vld [vmem:[%s7 + $0x120] sm:$0xff]
    %v4577 = vld [vmem:[%s7 + $0x128] sm:$0xff]
    %v4578 = vld [vmem:[%s7 + $0x130] sm:$0xff]
    %v4579 = vld [vmem:[%s7 + $0x138] sm:$0xff]
    %v4580 = vld [vmem:[%s7 + $0x140] sm:$0xff]
    %v4581 = vld [vmem:[%s7 + $0x148] sm:$0xff]
    %v4582 = vld [vmem:[%s7 + $0x150] sm:$0xff]
    %v4583 = vld [vmem:[%s7 + $0x158] sm:$0xff]
    %v4584 = vld [vmem:[%s7 + $0x160] sm:$0xff]
    %v4585 = vld [vmem:[%s7 + $0x168] sm:$0xff]
    %v4586 = vld [vmem:[%s7 + $0x170] sm:$0xff]
    %v4587 = vld [vmem:[%s7 + $0x178] sm:$0xff]
    %v4588 = vld [vmem:[%s7 + $0x180] sm:$0xff]
    %v4589 = vld [vmem:[%s7 + $0x188] sm:$0xff]
    %v4590 = vld [vmem:[%s7 + $0x190] sm:$0xff]
    %v4591 = vld [vmem:[%s7 + $0x198] sm:$0xff]
    %v4592 = vld [vmem:[%s7 + $0x1a0] sm:$0xff]
    %v4593 = vld [vmem:[%s7 + $0x1a8] sm:$0xff]
    %v4594 = vld [vmem:[%s7 + $0x1b0] sm:$0xff]
    %v4595 = vld [vmem:[%s7 + $0x1b8] sm:$0xff]
    %v4596 = vld [vmem:[%s7 + $0x1c0] sm:$0xff]
    %v4597 = vld [vmem:[%s7 + $0x1c8] sm:$0xff]
    %v4598 = vld [vmem:[%s7 + $0x1d0] sm:$0xff]
    %v4599 = vld [vmem:[%s7 + $0x1d8] sm:$0xff]
    %v4600 = vld [vmem:[%s7 + $0x1e0] sm:$0xff]
    %v4601 = vld [vmem:[%s7 + $0x1e8] sm:$0xff]
    %v4602 = vld [vmem:[%s7 + $0x1f0] sm:$0xff]
    %v4603 = vld [vmem:[%s7 + $0x1f8] sm:$0xff]
    %v4604 = vld [vmem:[%s7 + $0x200] sm:$0xff]
    %v4605 = vld [vmem:[%s7 + $0x208] sm:$0xff]
    %v4606 = vld [vmem:[%s7 + $0x210] sm:$0xff]
    %v4607 = vld [vmem:[%s7 + $0x218] sm:$0xff]
    %v4608 = vld [vmem:[%s7 + $0x220] sm:$0xff]
    %v4609 = vld [vmem:[%s7 + $0x228] sm:$0xff]
    %v4610 = vld [vmem:[%s7 + $0x230] sm:$0xff]
    %v4611 = vld [vmem:[%s7 + $0x238] sm:$0xff]
    %v4612 = vld [vmem:[%s7 + $0x240] sm:$0xff]
    %v4613 = vld [vmem:[%s7 + $0x248] sm:$0xff]
    %v4614 = vld [vmem:[%s7 + $0x250] sm:$0xff]
    %v4615 = vld [vmem:[%s7 + $0x258] sm:$0xff]
    %v4616 = vld [vmem:[%s7 + $0x260] sm:$0xff]
    %v4617 = vld [vmem:[%s7 + $0x268] sm:$0xff]
    %v4618 = vld [vmem:[%s7 + $0x270] sm:$0xff]
    %v4619 = vld [vmem:[%s7 + $0x278] sm:$0xff]
    %v4620 = vld [vmem:[%s7 + $0x280] sm:$0xff]
    %v4621 = vld [vmem:[%s7 + $0x288] sm:$0xff]
    %v4622 = vld [vmem:[%s7 + $0x290] sm:$0xff]
    %v4623 = vld [vmem:[%s7 + $0x298] sm:$0xff]
    %v4624 = vld [vmem:[%s7 + $0x2a0] sm:$0xff]
    %v4625 = vld [vmem:[%s7 + $0x2a8] sm:$0xff]
    %v4626 = vld [vmem:[%s7 + $0x2b0] sm:$0xff]
    %v4627 = vld [vmem:[%s7 + $0x2b8] sm:$0xff]
    %v4628 = vld [vmem:[%s7 + $0x2c0] sm:$0xff]
    %v4629 = vld [vmem:[%s7 + $0x2c8] sm:$0xff]
    %v4630 = vld [vmem:[%s7 + $0x2d0] sm:$0xff]
    %v4631 = vld [vmem:[%s7 + $0x2d8] sm:$0xff]
    %v4632 = vld [vmem:[%s7 + $0x2e0] sm:$0xff]
    %v4633 = vld [vmem:[%s7 + $0x2e8] sm:$0xff]
    %v4634 = vld [vmem:[%s7 + $0x2f0] sm:$0xff]
    %v4635 = vld [vmem:[%s7 + $0x2f8] sm:$0xff]
    %v4636 = vld [vmem:[%s7 + $0x300] sm:$0xff]
    %v4637 = vld [vmem:[%s7 + $0x308] sm:$0xff]
    %v4638 = vld [vmem:[%s7 + $0x310] sm:$0xff]
    %v4639 = vld [vmem:[%s7 + $0x318] sm:$0xff]
    %v4640 = vld [vmem:[%s7 + $0x320] sm:$0xff]
    %v4641 = vld [vmem:[%s7 + $0x328] sm:$0xff]
    %v4642 = vld [vmem:[%s7 + $0x330] sm:$0xff]
    %v4643 = vld [vmem:[%s7 + $0x338] sm:$0xff]
    %v4644 = vld [vmem:[%s7 + $0x340] sm:$0xff]
    %v4645 = vld [vmem:[%s7 + $0x348] sm:$0xff]
    %v4646 = vld [vmem:[%s7 + $0x350] sm:$0xff]
    %v4647 = vld [vmem:[%s7 + $0x358] sm:$0xff]
    %v4648 = vld [vmem:[%s7 + $0x360] sm:$0xff]
    %v4649 = vld [vmem:[%s7 + $0x368] sm:$0xff]
    %v4650 = vld [vmem:[%s7 + $0x370] sm:$0xff]
    %v4651 = vld [vmem:[%s7 + $0x378] sm:$0xff]
    %v4652 = vld [vmem:[%s7 + $0x380] sm:$0xff]
    %v4653 = vld [vmem:[%s7 + $0x388] sm:$0xff]
    %v4654 = vld [vmem:[%s7 + $0x390] sm:$0xff]
    %v4655 = vld [vmem:[%s7 + $0x398] sm:$0xff]
    %v4656 = vld [vmem:[%s7 + $0x3a0] sm:$0xff]
    %v4657 = vld [vmem:[%s7 + $0x3a8] sm:$0xff]
    %v4658 = vld [vmem:[%s7 + $0x3b0] sm:$0xff]
    %v4659 = vld [vmem:[%s7 + $0x3b8] sm:$0xff]
    %v4660 = vld [vmem:[%s7 + $0x3c0] sm:$0xff]
    %v4661 = vld [vmem:[%s7 + $0x3c8] sm:$0xff]
    %v4662 = vld [vmem:[%s7 + $0x3d0] sm:$0xff]
    %v4663 = vld [vmem:[%s7 + $0x3d8] sm:$0xff]
    %v4664 = vld [vmem:[%s7 + $0x3e0] sm:$0xff]
    %v4665 = vld [vmem:[%s7 + $0x3e8] sm:$0xff]
    %v4666 = vld [vmem:[%s7 + $0x3f0] sm:$0xff]
    %v4667 = vld [vmem:[%s7 + $0x3f8] sm:$0xff]
    %4668 = vmatpush.msra.mxu0 %v4555
    %4669 = vmatpush.msra.mxu0 %v4554
    %4670 = vmatpush.msra.mxu0 %v4553
    %4671 = vmatpush.msra.mxu0 %v4552
    %4672 = vmatpush.msra.mxu0 %v4551
    %4673 = vmatpush.msra.mxu0 %v4550
    %4674 = vmatpush.msra.mxu0 %v4549
    %4675 = vmatpush.msra.mxu0 %v4548
    %4676 = vmatpush.msra.mxu0 %v4547
    %4677 = vmatpush.msra.mxu0 %v4546
    %4678 = vmatpush.msra.mxu0 %v4545
    %4679 = vmatpush.msra.mxu0 %v4544
    %4680 = vmatpush.msra.mxu0 %v4543
    %4681 = vmatpush.msra.mxu0 %v4542
    %4682 = vmatpush.msra.mxu0 %v4541
    %4683 = vmatpush.msra.mxu0 %v4540
    %4684 = vmatmul.f32.gmra.mxu0 %v4316
    %v4685 = vpop.f32.mrf.mxu0
    %v4686 = vadd.f32 0.0, %v4685
    %4687 = vmatmul.f32.gmra.mxu0 %v4324
    %v4688 = vpop.f32.mrf.mxu0
    %v4689 = vadd.f32 0.0, %v4688
    %4690 = vmatmul.f32.gmra.mxu0 %v4332
    %v4691 = vpop.f32.mrf.mxu0
    %v4692 = vadd.f32 0.0, %v4691
    %4693 = vmatmul.f32.gmra.mxu0 %v4340
    %v4694 = vpop.f32.mrf.mxu0
    %v4695 = vadd.f32 0.0, %v4694
    %4696 = vmatmul.f32.gmra.mxu0 %v4348
    %v4697 = vpop.f32.mrf.mxu0
    %v4698 = vadd.f32 0.0, %v4697
    %4699 = vmatmul.f32.gmra.mxu0 %v4356
    %v4700 = vpop.f32.mrf.mxu0
    %v4701 = vadd.f32 0.0, %v4700
    %4702 = vmatmul.f32.gmra.mxu0 %v4364
    %v4703 = vpop.f32.mrf.mxu0
    %v4704 = vadd.f32 0.0, %v4703
    %4705 = vmatmul.f32.gmra.mxu0 %v4372
    %v4706 = vpop.f32.mrf.mxu0
    %v4707 = vadd.f32 0.0, %v4706
    %4708 = vmatmul.f32.gmra.mxu0 %v4380
    %v4709 = vpop.f32.mrf.mxu0
    %v4710 = vadd.f32 0.0, %v4709
    %4711 = vmatmul.f32.gmra.mxu0 %v4388
    %v4712 = vpop.f32.mrf.mxu0
    %v4713 = vadd.f32 0.0, %v4712
    %4714 = vmatmul.f32.gmra.mxu0 %v4396
    %v4715 = vpop.f32.mrf.mxu0
    %v4716 = vadd.f32 0.0, %v4715
    %4717 = vmatmul.f32.gmra.mxu0 %v4404
    %v4718 = vpop.f32.mrf.mxu0
    %v4719 = vadd.f32 0.0, %v4718
    %4720 = vmatmul.f32.gmra.mxu0 %v4412
    %v4721 = vpop.f32.mrf.mxu0
    %v4722 = vadd.f32 0.0, %v4721
    %4723 = vmatmul.f32.gmra.mxu0 %v4420
    %v4724 = vpop.f32.mrf.mxu0
    %v4725 = vadd.f32 0.0, %v4724
    %4726 = vmatmul.f32.gmra.mxu0 %v4428
    %v4727 = vpop.f32.mrf.mxu0
    %v4728 = vadd.f32 0.0, %v4727
    %4729 = vmatmul.f32.gmra.mxu0 %v4436
    %v4730 = vpop.f32.mrf.mxu0
    %v4731 = vadd.f32 0.0, %v4730
    %4732 = vmatmul.f32.gmra.mxu0 %v4444
    %v4733 = vpop.f32.mrf.mxu0
    %v4734 = vadd.f32 0.0, %v4733
    %4735 = vmatmul.f32.gmra.mxu0 %v4452
    %v4736 = vpop.f32.mrf.mxu0
    %v4737 = vadd.f32 0.0, %v4736
    %4738 = vmatmul.f32.gmra.mxu0 %v4460
    %v4739 = vpop.f32.mrf.mxu0
    %v4740 = vadd.f32 0.0, %v4739
    %4741 = vmatmul.f32.gmra.mxu0 %v4468
    %v4742 = vpop.f32.mrf.mxu0
    %v4743 = vadd.f32 0.0, %v4742
    %4744 = vmatmul.f32.gmra.mxu0 %v4476
    %v4745 = vpop.f32.mrf.mxu0
    %v4746 = vadd.f32 0.0, %v4745
    %4747 = vmatmul.f32.gmra.mxu0 %v4484
    %v4748 = vpop.f32.mrf.mxu0
    %v4749 = vadd.f32 0.0, %v4748
    %4750 = vmatmul.f32.gmra.mxu0 %v4492
    %v4751 = vpop.f32.mrf.mxu0
    %v4752 = vadd.f32 0.0, %v4751
    %4753 = vmatmul.f32.gmra.mxu0 %v4500
    %v4754 = vpop.f32.mrf.mxu0
    %v4755 = vadd.f32 0.0, %v4754
    %4756 = vmatmul.f32.gmra.mxu0 %v4508
    %v4757 = vpop.f32.mrf.mxu0
    %v4758 = vadd.f32 0.0, %v4757
    %4759 = vmatmul.f32.gmra.mxu0 %v4516
    %v4760 = vpop.f32.mrf.mxu0
    %v4761 = vadd.f32 0.0, %v4760
    %4762 = vmatmul.f32.gmra.mxu0 %v4524
    %v4763 = vpop.f32.mrf.mxu0
    %v4764 = vadd.f32 0.0, %v4763
    %4765 = vmatmul.f32.gmra.mxu0 %v4532
    %v4766 = vpop.f32.mrf.mxu0
    %v4767 = vadd.f32 0.0, %v4766
    %4768 = vdwg.mxu0
    %4769 = vmatpush.msra.mxu0 %v4571
    %4770 = vmatpush.msra.mxu0 %v4570
    %4771 = vmatpush.msra.mxu0 %v4569
    %4772 = vmatpush.msra.mxu0 %v4568
    %4773 = vmatpush.msra.mxu0 %v4567
    %4774 = vmatpush.msra.mxu0 %v4566
    %4775 = vmatpush.msra.mxu0 %v4565
    %4776 = vmatpush.msra.mxu0 %v4564
    %4777 = vmatpush.msra.mxu0 %v4563
    %4778 = vmatpush.msra.mxu0 %v4562
    %4779 = vmatpush.msra.mxu0 %v4561
    %4780 = vmatpush.msra.mxu0 %v4560
    %4781 = vmatpush.msra.mxu0 %v4559
    %4782 = vmatpush.msra.mxu0 %v4558
    %4783 = vmatpush.msra.mxu0 %v4557
    %4784 = vmatpush.msra.mxu0 %v4556
    %4785 = vmatmul.f32.gmra.mxu0 %v4317
    %v4786 = vpop.f32.mrf.mxu0
    %v4787 = vadd.f32 %v4686, %v4786
    %4788 = vmatmul.f32.gmra.mxu0 %v4325
    %v4789 = vpop.f32.mrf.mxu0
    %v4790 = vadd.f32 %v4689, %v4789
    %4791 = vmatmul.f32.gmra.mxu0 %v4333
    %v4792 = vpop.f32.mrf.mxu0
    %v4793 = vadd.f32 %v4692, %v4792
    %4794 = vmatmul.f32.gmra.mxu0 %v4341
    %v4795 = vpop.f32.mrf.mxu0
    %v4796 = vadd.f32 %v4695, %v4795
    %4797 = vmatmul.f32.gmra.mxu0 %v4349
    %v4798 = vpop.f32.mrf.mxu0
    %v4799 = vadd.f32 %v4698, %v4798
    %4800 = vmatmul.f32.gmra.mxu0 %v4357
    %v4801 = vpop.f32.mrf.mxu0
    %v4802 = vadd.f32 %v4701, %v4801
    %4803 = vmatmul.f32.gmra.mxu0 %v4365
    %v4804 = vpop.f32.mrf.mxu0
    %v4805 = vadd.f32 %v4704, %v4804
    %4806 = vmatmul.f32.gmra.mxu0 %v4373
    %v4807 = vpop.f32.mrf.mxu0
    %v4808 = vadd.f32 %v4707, %v4807
    %4809 = vmatmul.f32.gmra.mxu0 %v4381
    %v4810 = vpop.f32.mrf.mxu0
    %v4811 = vadd.f32 %v4710, %v4810
    %4812 = vmatmul.f32.gmra.mxu0 %v4389
    %v4813 = vpop.f32.mrf.mxu0
    %v4814 = vadd.f32 %v4713, %v4813
    %4815 = vmatmul.f32.gmra.mxu0 %v4397
    %v4816 = vpop.f32.mrf.mxu0
    %v4817 = vadd.f32 %v4716, %v4816
    %4818 = vmatmul.f32.gmra.mxu0 %v4405
    %v4819 = vpop.f32.mrf.mxu0
    %v4820 = vadd.f32 %v4719, %v4819
    %4821 = vmatmul.f32.gmra.mxu0 %v4413
    %v4822 = vpop.f32.mrf.mxu0
    %v4823 = vadd.f32 %v4722, %v4822
    %4824 = vmatmul.f32.gmra.mxu0 %v4421
    %v4825 = vpop.f32.mrf.mxu0
    %v4826 = vadd.f32 %v4725, %v4825
    %4827 = vmatmul.f32.gmra.mxu0 %v4429
    %v4828 = vpop.f32.mrf.mxu0
    %v4829 = vadd.f32 %v4728, %v4828
    %4830 = vmatmul.f32.gmra.mxu0 %v4437
    %v4831 = vpop.f32.mrf.mxu0
    %v4832 = vadd.f32 %v4731, %v4831
    %4833 = vmatmul.f32.gmra.mxu0 %v4445
    %v4834 = vpop.f32.mrf.mxu0
    %v4835 = vadd.f32 %v4734, %v4834
    %4836 = vmatmul.f32.gmra.mxu0 %v4453
    %v4837 = vpop.f32.mrf.mxu0
    %v4838 = vadd.f32 %v4737, %v4837
    %4839 = vmatmul.f32.gmra.mxu0 %v4461
    %v4840 = vpop.f32.mrf.mxu0
    %v4841 = vadd.f32 %v4740, %v4840
    %4842 = vmatmul.f32.gmra.mxu0 %v4469
    %v4843 = vpop.f32.mrf.mxu0
    %v4844 = vadd.f32 %v4743, %v4843
    %4845 = vmatmul.f32.gmra.mxu0 %v4477
    %v4846 = vpop.f32.mrf.mxu0
    %v4847 = vadd.f32 %v4746, %v4846
    %4848 = vmatmul.f32.gmra.mxu0 %v4485
    %v4849 = vpop.f32.mrf.mxu0
    %v4850 = vadd.f32 %v4749, %v4849
    %4851 = vmatmul.f32.gmra.mxu0 %v4493
    %v4852 = vpop.f32.mrf.mxu0
    %v4853 = vadd.f32 %v4752, %v4852
    %4854 = vmatmul.f32.gmra.mxu0 %v4501
    %v4855 = vpop.f32.mrf.mxu0
    %v4856 = vadd.f32 %v4755, %v4855
    %4857 = vmatmul.f32.gmra.mxu0 %v4509
    %v4858 = vpop.f32.mrf.mxu0
    %v4859 = vadd.f32 %v4758, %v4858
    %4860 = vmatmul.f32.gmra.mxu0 %v4517
    %v4861 = vpop.f32.mrf.mxu0
    %v4862 = vadd.f32 %v4761, %v4861
    %4863 = vmatmul.f32.gmra.mxu0 %v4525
    %v4864 = vpop.f32.mrf.mxu0
    %v4865 = vadd.f32 %v4764, %v4864
    %4866 = vmatmul.f32.gmra.mxu0 %v4533
    %v4867 = vpop.f32.mrf.mxu0
    %v4868 = vadd.f32 %v4767, %v4867
    %4869 = vdwg.mxu0
    %4870 = vmatpush.msra.mxu0 %v4587
    %4871 = vmatpush.msra.mxu0 %v4586
    %4872 = vmatpush.msra.mxu0 %v4585
    %4873 = vmatpush.msra.mxu0 %v4584
    %4874 = vmatpush.msra.mxu0 %v4583
    %4875 = vmatpush.msra.mxu0 %v4582
    %4876 = vmatpush.msra.mxu0 %v4581
    %4877 = vmatpush.msra.mxu0 %v4580
    %4878 = vmatpush.msra.mxu0 %v4579
    %4879 = vmatpush.msra.mxu0 %v4578
    %4880 = vmatpush.msra.mxu0 %v4577
    %4881 = vmatpush.msra.mxu0 %v4576
    %4882 = vmatpush.msra.mxu0 %v4575
    %4883 = vmatpush.msra.mxu0 %v4574
    %4884 = vmatpush.msra.mxu0 %v4573
    %4885 = vmatpush.msra.mxu0 %v4572
    %4886 = vmatmul.f32.gmra.mxu0 %v4318
    %v4887 = vpop.f32.mrf.mxu0
    %v4888 = vadd.f32 %v4787, %v4887
    %4889 = vmatmul.f32.gmra.mxu0 %v4326
    %v4890 = vpop.f32.mrf.mxu0
    %v4891 = vadd.f32 %v4790, %v4890
    %4892 = vmatmul.f32.gmra.mxu0 %v4334
    %v4893 = vpop.f32.mrf.mxu0
    %v4894 = vadd.f32 %v4793, %v4893
    %4895 = vmatmul.f32.gmra.mxu0 %v4342
    %v4896 = vpop.f32.mrf.mxu0
    %v4897 = vadd.f32 %v4796, %v4896
    %4898 = vmatmul.f32.gmra.mxu0 %v4350
    %v4899 = vpop.f32.mrf.mxu0
    %v4900 = vadd.f32 %v4799, %v4899
    %4901 = vmatmul.f32.gmra.mxu0 %v4358
    %v4902 = vpop.f32.mrf.mxu0
    %v4903 = vadd.f32 %v4802, %v4902
    %4904 = vmatmul.f32.gmra.mxu0 %v4366
    %v4905 = vpop.f32.mrf.mxu0
    %v4906 = vadd.f32 %v4805, %v4905
    %4907 = vmatmul.f32.gmra.mxu0 %v4374
    %v4908 = vpop.f32.mrf.mxu0
    %v4909 = vadd.f32 %v4808, %v4908
    %4910 = vmatmul.f32.gmra.mxu0 %v4382
    %v4911 = vpop.f32.mrf.mxu0
    %v4912 = vadd.f32 %v4811, %v4911
    %4913 = vmatmul.f32.gmra.mxu0 %v4390
    %v4914 = vpop.f32.mrf.mxu0
    %v4915 = vadd.f32 %v4814, %v4914
    %4916 = vmatmul.f32.gmra.mxu0 %v4398
    %v4917 = vpop.f32.mrf.mxu0
    %v4918 = vadd.f32 %v4817, %v4917
    %4919 = vmatmul.f32.gmra.mxu0 %v4406
    %v4920 = vpop.f32.mrf.mxu0
    %v4921 = vadd.f32 %v4820, %v4920
    %4922 = vmatmul.f32.gmra.mxu0 %v4414
    %v4923 = vpop.f32.mrf.mxu0
    %v4924 = vadd.f32 %v4823, %v4923
    %4925 = vmatmul.f32.gmra.mxu0 %v4422
    %v4926 = vpop.f32.mrf.mxu0
    %v4927 = vadd.f32 %v4826, %v4926
    %4928 = vmatmul.f32.gmra.mxu0 %v4430
    %v4929 = vpop.f32.mrf.mxu0
    %v4930 = vadd.f32 %v4829, %v4929
    %4931 = vmatmul.f32.gmra.mxu0 %v4438
    %v4932 = vpop.f32.mrf.mxu0
    %v4933 = vadd.f32 %v4832, %v4932
    %4934 = vmatmul.f32.gmra.mxu0 %v4446
    %v4935 = vpop.f32.mrf.mxu0
    %v4936 = vadd.f32 %v4835, %v4935
    %4937 = vmatmul.f32.gmra.mxu0 %v4454
    %v4938 = vpop.f32.mrf.mxu0
    %v4939 = vadd.f32 %v4838, %v4938
    %4940 = vmatmul.f32.gmra.mxu0 %v4462
    %v4941 = vpop.f32.mrf.mxu0
    %v4942 = vadd.f32 %v4841, %v4941
    %4943 = vmatmul.f32.gmra.mxu0 %v4470
    %v4944 = vpop.f32.mrf.mxu0
    %v4945 = vadd.f32 %v4844, %v4944
    %4946 = vmatmul.f32.gmra.mxu0 %v4478
    %v4947 = vpop.f32.mrf.mxu0
    %v4948 = vadd.f32 %v4847, %v4947
    %4949 = vmatmul.f32.gmra.mxu0 %v4486
    %v4950 = vpop.f32.mrf.mxu0
    %v4951 = vadd.f32 %v4850, %v4950
    %4952 = vmatmul.f32.gmra.mxu0 %v4494
    %v4953 = vpop.f32.mrf.mxu0
    %v4954 = vadd.f32 %v4853, %v4953
    %4955 = vmatmul.f32.gmra.mxu0 %v4502
    %v4956 = vpop.f32.mrf.mxu0
    %v4957 = vadd.f32 %v4856, %v4956
    %4958 = vmatmul.f32.gmra.mxu0 %v4510
    %v4959 = vpop.f32.mrf.mxu0
    %v4960 = vadd.f32 %v4859, %v4959
    %4961 = vmatmul.f32.gmra.mxu0 %v4518
    %v4962 = vpop.f32.mrf.mxu0
    %v4963 = vadd.f32 %v4862, %v4962
    %4964 = vmatmul.f32.gmra.mxu0 %v4526
    %v4965 = vpop.f32.mrf.mxu0
    %v4966 = vadd.f32 %v4865, %v4965
    %4967 = vmatmul.f32.gmra.mxu0 %v4534
    %v4968 = vpop.f32.mrf.mxu0
    %v4969 = vadd.f32 %v4868, %v4968
    %4970 = vdwg.mxu0
    %4971 = vmatpush.msra.mxu0 %v4603
    %4972 = vmatpush.msra.mxu0 %v4602
    %4973 = vmatpush.msra.mxu0 %v4601
    %4974 = vmatpush.msra.mxu0 %v4600
    %4975 = vmatpush.msra.mxu0 %v4599
    %4976 = vmatpush.msra.mxu0 %v4598
    %4977 = vmatpush.msra.mxu0 %v4597
    %4978 = vmatpush.msra.mxu0 %v4596
    %4979 = vmatpush.msra.mxu0 %v4595
    %4980 = vmatpush.msra.mxu0 %v4594
    %4981 = vmatpush.msra.mxu0 %v4593
    %4982 = vmatpush.msra.mxu0 %v4592
    %4983 = vmatpush.msra.mxu0 %v4591
    %4984 = vmatpush.msra.mxu0 %v4590
    %4985 = vmatpush.msra.mxu0 %v4589
    %4986 = vmatpush.msra.mxu0 %v4588
    %4987 = vmatmul.f32.gmra.mxu0 %v4319
    %v4988 = vpop.f32.mrf.mxu0
    %v4989 = vadd.f32 %v4888, %v4988
    %4990 = vmatmul.f32.gmra.mxu0 %v4327
    %v4991 = vpop.f32.mrf.mxu0
    %v4992 = vadd.f32 %v4891, %v4991
    %4993 = vmatmul.f32.gmra.mxu0 %v4335
    %v4994 = vpop.f32.mrf.mxu0
    %v4995 = vadd.f32 %v4894, %v4994
    %4996 = vmatmul.f32.gmra.mxu0 %v4343
    %v4997 = vpop.f32.mrf.mxu0
    %v4998 = vadd.f32 %v4897, %v4997
    %4999 = vmatmul.f32.gmra.mxu0 %v4351
    %v5000 = vpop.f32.mrf.mxu0
    %v5001 = vadd.f32 %v4900, %v5000
    %5002 = vmatmul.f32.gmra.mxu0 %v4359
    %v5003 = vpop.f32.mrf.mxu0
    %v5004 = vadd.f32 %v4903, %v5003
    %5005 = vmatmul.f32.gmra.mxu0 %v4367
    %v5006 = vpop.f32.mrf.mxu0
    %v5007 = vadd.f32 %v4906, %v5006
    %5008 = vmatmul.f32.gmra.mxu0 %v4375
    %v5009 = vpop.f32.mrf.mxu0
    %v5010 = vadd.f32 %v4909, %v5009
    %5011 = vmatmul.f32.gmra.mxu0 %v4383
    %v5012 = vpop.f32.mrf.mxu0
    %v5013 = vadd.f32 %v4912, %v5012
    %5014 = vmatmul.f32.gmra.mxu0 %v4391
    %v5015 = vpop.f32.mrf.mxu0
    %v5016 = vadd.f32 %v4915, %v5015
    %5017 = vmatmul.f32.gmra.mxu0 %v4399
    %v5018 = vpop.f32.mrf.mxu0
    %v5019 = vadd.f32 %v4918, %v5018
    %5020 = vmatmul.f32.gmra.mxu0 %v4407
    %v5021 = vpop.f32.mrf.mxu0
    %v5022 = vadd.f32 %v4921, %v5021
    %5023 = vmatmul.f32.gmra.mxu0 %v4415
    %v5024 = vpop.f32.mrf.mxu0
    %v5025 = vadd.f32 %v4924, %v5024
    %5026 = vmatmul.f32.gmra.mxu0 %v4423
    %v5027 = vpop.f32.mrf.mxu0
    %v5028 = vadd.f32 %v4927, %v5027
    %5029 = vmatmul.f32.gmra.mxu0 %v4431
    %v5030 = vpop.f32.mrf.mxu0
    %v5031 = vadd.f32 %v4930, %v5030
    %5032 = vmatmul.f32.gmra.mxu0 %v4439
    %v5033 = vpop.f32.mrf.mxu0
    %v5034 = vadd.f32 %v4933, %v5033
    %5035 = vmatmul.f32.gmra.mxu0 %v4447
    %v5036 = vpop.f32.mrf.mxu0
    %v5037 = vadd.f32 %v4936, %v5036
    %5038 = vmatmul.f32.gmra.mxu0 %v4455
    %v5039 = vpop.f32.mrf.mxu0
    %v5040 = vadd.f32 %v4939, %v5039
    %5041 = vmatmul.f32.gmra.mxu0 %v4463
    %v5042 = vpop.f32.mrf.mxu0
    %v5043 = vadd.f32 %v4942, %v5042
    %5044 = vmatmul.f32.gmra.mxu0 %v4471
    %v5045 = vpop.f32.mrf.mxu0
    %v5046 = vadd.f32 %v4945, %v5045
    %5047 = vmatmul.f32.gmra.mxu0 %v4479
    %v5048 = vpop.f32.mrf.mxu0
    %v5049 = vadd.f32 %v4948, %v5048
    %5050 = vmatmul.f32.gmra.mxu0 %v4487
    %v5051 = vpop.f32.mrf.mxu0
    %v5052 = vadd.f32 %v4951, %v5051
    %5053 = vmatmul.f32.gmra.mxu0 %v4495
    %v5054 = vpop.f32.mrf.mxu0
    %v5055 = vadd.f32 %v4954, %v5054
    %5056 = vmatmul.f32.gmra.mxu0 %v4503
    %v5057 = vpop.f32.mrf.mxu0
    %v5058 = vadd.f32 %v4957, %v5057
    %5059 = vmatmul.f32.gmra.mxu0 %v4511
    %v5060 = vpop.f32.mrf.mxu0
    %v5061 = vadd.f32 %v4960, %v5060
    %5062 = vmatmul.f32.gmra.mxu0 %v4519
    %v5063 = vpop.f32.mrf.mxu0
    %v5064 = vadd.f32 %v4963, %v5063
    %5065 = vmatmul.f32.gmra.mxu0 %v4527
    %v5066 = vpop.f32.mrf.mxu0
    %v5067 = vadd.f32 %v4966, %v5066
    %5068 = vmatmul.f32.gmra.mxu0 %v4535
    %v5069 = vpop.f32.mrf.mxu0
    %v5070 = vadd.f32 %v4969, %v5069
    %5071 = vdwg.mxu0
    %5072 = vmatpush.msra.mxu0 %v4619
    %5073 = vmatpush.msra.mxu0 %v4618
    %5074 = vmatpush.msra.mxu0 %v4617
    %5075 = vmatpush.msra.mxu0 %v4616
    %5076 = vmatpush.msra.mxu0 %v4615
    %5077 = vmatpush.msra.mxu0 %v4614
    %5078 = vmatpush.msra.mxu0 %v4613
    %5079 = vmatpush.msra.mxu0 %v4612
    %5080 = vmatpush.msra.mxu0 %v4611
    %5081 = vmatpush.msra.mxu0 %v4610
    %5082 = vmatpush.msra.mxu0 %v4609
    %5083 = vmatpush.msra.mxu0 %v4608
    %5084 = vmatpush.msra.mxu0 %v4607
    %5085 = vmatpush.msra.mxu0 %v4606
    %5086 = vmatpush.msra.mxu0 %v4605
    %5087 = vmatpush.msra.mxu0 %v4604
    %5088 = vmatmul.f32.gmra.mxu0 %v4320
    %v5089 = vpop.f32.mrf.mxu0
    %v5090 = vadd.f32 %v4989, %v5089
    %5091 = vmatmul.f32.gmra.mxu0 %v4328
    %v5092 = vpop.f32.mrf.mxu0
    %v5093 = vadd.f32 %v4992, %v5092
    %5094 = vmatmul.f32.gmra.mxu0 %v4336
    %v5095 = vpop.f32.mrf.mxu0
    %v5096 = vadd.f32 %v4995, %v5095
    %5097 = vmatmul.f32.gmra.mxu0 %v4344
    %v5098 = vpop.f32.mrf.mxu0
    %v5099 = vadd.f32 %v4998, %v5098
    %5100 = vmatmul.f32.gmra.mxu0 %v4352
    %v5101 = vpop.f32.mrf.mxu0
    %v5102 = vadd.f32 %v5001, %v5101
    %5103 = vmatmul.f32.gmra.mxu0 %v4360
    %v5104 = vpop.f32.mrf.mxu0
    %v5105 = vadd.f32 %v5004, %v5104
    %5106 = vmatmul.f32.gmra.mxu0 %v4368
    %v5107 = vpop.f32.mrf.mxu0
    %v5108 = vadd.f32 %v5007, %v5107
    %5109 = vmatmul.f32.gmra.mxu0 %v4376
    %v5110 = vpop.f32.mrf.mxu0
    %v5111 = vadd.f32 %v5010, %v5110
    %5112 = vmatmul.f32.gmra.mxu0 %v4384
    %v5113 = vpop.f32.mrf.mxu0
    %v5114 = vadd.f32 %v5013, %v5113
    %5115 = vmatmul.f32.gmra.mxu0 %v4392
    %v5116 = vpop.f32.mrf.mxu0
    %v5117 = vadd.f32 %v5016, %v5116
    %5118 = vmatmul.f32.gmra.mxu0 %v4400
    %v5119 = vpop.f32.mrf.mxu0
    %v5120 = vadd.f32 %v5019, %v5119
    %5121 = vmatmul.f32.gmra.mxu0 %v4408
    %v5122 = vpop.f32.mrf.mxu0
    %v5123 = vadd.f32 %v5022, %v5122
    %5124 = vmatmul.f32.gmra.mxu0 %v4416
    %v5125 = vpop.f32.mrf.mxu0
    %v5126 = vadd.f32 %v5025, %v5125
    %5127 = vmatmul.f32.gmra.mxu0 %v4424
    %v5128 = vpop.f32.mrf.mxu0
    %v5129 = vadd.f32 %v5028, %v5128
    %5130 = vmatmul.f32.gmra.mxu0 %v4432
    %v5131 = vpop.f32.mrf.mxu0
    %v5132 = vadd.f32 %v5031, %v5131
    %5133 = vmatmul.f32.gmra.mxu0 %v4440
    %v5134 = vpop.f32.mrf.mxu0
    %v5135 = vadd.f32 %v5034, %v5134
    %5136 = vmatmul.f32.gmra.mxu0 %v4448
    %v5137 = vpop.f32.mrf.mxu0
    %v5138 = vadd.f32 %v5037, %v5137
    %5139 = vmatmul.f32.gmra.mxu0 %v4456
    %v5140 = vpop.f32.mrf.mxu0
    %v5141 = vadd.f32 %v5040, %v5140
    %5142 = vmatmul.f32.gmra.mxu0 %v4464
    %v5143 = vpop.f32.mrf.mxu0
    %v5144 = vadd.f32 %v5043, %v5143
    %5145 = vmatmul.f32.gmra.mxu0 %v4472
    %v5146 = vpop.f32.mrf.mxu0
    %v5147 = vadd.f32 %v5046, %v5146
    %5148 = vmatmul.f32.gmra.mxu0 %v4480
    %v5149 = vpop.f32.mrf.mxu0
    %v5150 = vadd.f32 %v5049, %v5149
    %5151 = vmatmul.f32.gmra.mxu0 %v4488
    %v5152 = vpop.f32.mrf.mxu0
    %v5153 = vadd.f32 %v5052, %v5152
    %5154 = vmatmul.f32.gmra.mxu0 %v4496
    %v5155 = vpop.f32.mrf.mxu0
    %v5156 = vadd.f32 %v5055, %v5155
    %5157 = vmatmul.f32.gmra.mxu0 %v4504
    %v5158 = vpop.f32.mrf.mxu0
    %v5159 = vadd.f32 %v5058, %v5158
    %5160 = vmatmul.f32.gmra.mxu0 %v4512
    %v5161 = vpop.f32.mrf.mxu0
    %v5162 = vadd.f32 %v5061, %v5161
    %5163 = vmatmul.f32.gmra.mxu0 %v4520
    %v5164 = vpop.f32.mrf.mxu0
    %v5165 = vadd.f32 %v5064, %v5164
    %5166 = vmatmul.f32.gmra.mxu0 %v4528
    %v5167 = vpop.f32.mrf.mxu0
    %v5168 = vadd.f32 %v5067, %v5167
    %5169 = vmatmul.f32.gmra.mxu0 %v4536
    %v5170 = vpop.f32.mrf.mxu0
    %v5171 = vadd.f32 %v5070, %v5170
    %5172 = vdwg.mxu0
    %5173 = vmatpush.msra.mxu0 %v4635
    %5174 = vmatpush.msra.mxu0 %v4634
    %5175 = vmatpush.msra.mxu0 %v4633
    %5176 = vmatpush.msra.mxu0 %v4632
    %5177 = vmatpush.msra.mxu0 %v4631
    %5178 = vmatpush.msra.mxu0 %v4630
    %5179 = vmatpush.msra.mxu0 %v4629
    %5180 = vmatpush.msra.mxu0 %v4628
    %5181 = vmatpush.msra.mxu0 %v4627
    %5182 = vmatpush.msra.mxu0 %v4626
    %5183 = vmatpush.msra.mxu0 %v4625
    %5184 = vmatpush.msra.mxu0 %v4624
    %5185 = vmatpush.msra.mxu0 %v4623
    %5186 = vmatpush.msra.mxu0 %v4622
    %5187 = vmatpush.msra.mxu0 %v4621
    %5188 = vmatpush.msra.mxu0 %v4620
    %5189 = vmatmul.f32.gmra.mxu0 %v4321
    %v5190 = vpop.f32.mrf.mxu0
    %v5191 = vadd.f32 %v5090, %v5190
    %5192 = vmatmul.f32.gmra.mxu0 %v4329
    %v5193 = vpop.f32.mrf.mxu0
    %v5194 = vadd.f32 %v5093, %v5193
    %5195 = vmatmul.f32.gmra.mxu0 %v4337
    %v5196 = vpop.f32.mrf.mxu0
    %v5197 = vadd.f32 %v5096, %v5196
    %5198 = vmatmul.f32.gmra.mxu0 %v4345
    %v5199 = vpop.f32.mrf.mxu0
    %v5200 = vadd.f32 %v5099, %v5199
    %5201 = vmatmul.f32.gmra.mxu0 %v4353
    %v5202 = vpop.f32.mrf.mxu0
    %v5203 = vadd.f32 %v5102, %v5202
    %5204 = vmatmul.f32.gmra.mxu0 %v4361
    %v5205 = vpop.f32.mrf.mxu0
    %v5206 = vadd.f32 %v5105, %v5205
    %5207 = vmatmul.f32.gmra.mxu0 %v4369
    %v5208 = vpop.f32.mrf.mxu0
    %v5209 = vadd.f32 %v5108, %v5208
    %5210 = vmatmul.f32.gmra.mxu0 %v4377
    %v5211 = vpop.f32.mrf.mxu0
    %v5212 = vadd.f32 %v5111, %v5211
    %5213 = vmatmul.f32.gmra.mxu0 %v4385
    %v5214 = vpop.f32.mrf.mxu0
    %v5215 = vadd.f32 %v5114, %v5214
    %5216 = vmatmul.f32.gmra.mxu0 %v4393
    %v5217 = vpop.f32.mrf.mxu0
    %v5218 = vadd.f32 %v5117, %v5217
    %5219 = vmatmul.f32.gmra.mxu0 %v4401
    %v5220 = vpop.f32.mrf.mxu0
    %v5221 = vadd.f32 %v5120, %v5220
    %5222 = vmatmul.f32.gmra.mxu0 %v4409
    %v5223 = vpop.f32.mrf.mxu0
    %v5224 = vadd.f32 %v5123, %v5223
    %5225 = vmatmul.f32.gmra.mxu0 %v4417
    %v5226 = vpop.f32.mrf.mxu0
    %v5227 = vadd.f32 %v5126, %v5226
    %5228 = vmatmul.f32.gmra.mxu0 %v4425
    %v5229 = vpop.f32.mrf.mxu0
    %v5230 = vadd.f32 %v5129, %v5229
    %5231 = vmatmul.f32.gmra.mxu0 %v4433
    %v5232 = vpop.f32.mrf.mxu0
    %v5233 = vadd.f32 %v5132, %v5232
    %5234 = vmatmul.f32.gmra.mxu0 %v4441
    %v5235 = vpop.f32.mrf.mxu0
    %v5236 = vadd.f32 %v5135, %v5235
    %5237 = vmatmul.f32.gmra.mxu0 %v4449
    %v5238 = vpop.f32.mrf.mxu0
    %v5239 = vadd.f32 %v5138, %v5238
    %5240 = vmatmul.f32.gmra.mxu0 %v4457
    %v5241 = vpop.f32.mrf.mxu0
    %v5242 = vadd.f32 %v5141, %v5241
    %5243 = vmatmul.f32.gmra.mxu0 %v4465
    %v5244 = vpop.f32.mrf.mxu0
    %v5245 = vadd.f32 %v5144, %v5244
    %5246 = vmatmul.f32.gmra.mxu0 %v4473
    %v5247 = vpop.f32.mrf.mxu0
    %v5248 = vadd.f32 %v5147, %v5247
    %5249 = vmatmul.f32.gmra.mxu0 %v4481
    %v5250 = vpop.f32.mrf.mxu0
    %v5251 = vadd.f32 %v5150, %v5250
    %5252 = vmatmul.f32.gmra.mxu0 %v4489
    %v5253 = vpop.f32.mrf.mxu0
    %v5254 = vadd.f32 %v5153, %v5253
    %5255 = vmatmul.f32.gmra.mxu0 %v4497
    %v5256 = vpop.f32.mrf.mxu0
    %v5257 = vadd.f32 %v5156, %v5256
    %5258 = vmatmul.f32.gmra.mxu0 %v4505
    %v5259 = vpop.f32.mrf.mxu0
    %v5260 = vadd.f32 %v5159, %v5259
    %5261 = vmatmul.f32.gmra.mxu0 %v4513
    %v5262 = vpop.f32.mrf.mxu0
    %v5263 = vadd.f32 %v5162, %v5262
    %5264 = vmatmul.f32.gmra.mxu0 %v4521
    %v5265 = vpop.f32.mrf.mxu0
    %v5266 = vadd.f32 %v5165, %v5265
    %5267 = vmatmul.f32.gmra.mxu0 %v4529
    %v5268 = vpop.f32.mrf.mxu0
    %v5269 = vadd.f32 %v5168, %v5268
    %5270 = vmatmul.f32.gmra.mxu0 %v4537
    %v5271 = vpop.f32.mrf.mxu0
    %v5272 = vadd.f32 %v5171, %v5271
    %5273 = vdwg.mxu0
    %5274 = vmatpush.msra.mxu0 %v4651
    %5275 = vmatpush.msra.mxu0 %v4650
    %5276 = vmatpush.msra.mxu0 %v4649
    %5277 = vmatpush.msra.mxu0 %v4648
    %5278 = vmatpush.msra.mxu0 %v4647
    %5279 = vmatpush.msra.mxu0 %v4646
    %5280 = vmatpush.msra.mxu0 %v4645
    %5281 = vmatpush.msra.mxu0 %v4644
    %5282 = vmatpush.msra.mxu0 %v4643
    %5283 = vmatpush.msra.mxu0 %v4642
    %5284 = vmatpush.msra.mxu0 %v4641
    %5285 = vmatpush.msra.mxu0 %v4640
    %5286 = vmatpush.msra.mxu0 %v4639
    %5287 = vmatpush.msra.mxu0 %v4638
    %5288 = vmatpush.msra.mxu0 %v4637
    %5289 = vmatpush.msra.mxu0 %v4636
    %5290 = vmatmul.f32.gmra.mxu0 %v4322
    %v5291 = vpop.f32.mrf.mxu0
    %v5292 = vadd.f32 %v5191, %v5291
    %5293 = vmatmul.f32.gmra.mxu0 %v4330
    %v5294 = vpop.f32.mrf.mxu0
    %v5295 = vadd.f32 %v5194, %v5294
    %5296 = vmatmul.f32.gmra.mxu0 %v4338
    %v5297 = vpop.f32.mrf.mxu0
    %v5298 = vadd.f32 %v5197, %v5297
    %5299 = vmatmul.f32.gmra.mxu0 %v4346
    %v5300 = vpop.f32.mrf.mxu0
    %v5301 = vadd.f32 %v5200, %v5300
    %5302 = vmatmul.f32.gmra.mxu0 %v4354
    %v5303 = vpop.f32.mrf.mxu0
    %v5304 = vadd.f32 %v5203, %v5303
    %5305 = vmatmul.f32.gmra.mxu0 %v4362
    %v5306 = vpop.f32.mrf.mxu0
    %v5307 = vadd.f32 %v5206, %v5306
    %5308 = vmatmul.f32.gmra.mxu0 %v4370
    %v5309 = vpop.f32.mrf.mxu0
    %v5310 = vadd.f32 %v5209, %v5309
    %5311 = vmatmul.f32.gmra.mxu0 %v4378
    %v5312 = vpop.f32.mrf.mxu0
    %v5313 = vadd.f32 %v5212, %v5312
    %5314 = vmatmul.f32.gmra.mxu0 %v4386
    %v5315 = vpop.f32.mrf.mxu0
    %v5316 = vadd.f32 %v5215, %v5315
    %5317 = vmatmul.f32.gmra.mxu0 %v4394
    %v5318 = vpop.f32.mrf.mxu0
    %v5319 = vadd.f32 %v5218, %v5318
    %5320 = vmatmul.f32.gmra.mxu0 %v4402
    %v5321 = vpop.f32.mrf.mxu0
    %v5322 = vadd.f32 %v5221, %v5321
    %5323 = vmatmul.f32.gmra.mxu0 %v4410
    %v5324 = vpop.f32.mrf.mxu0
    %v5325 = vadd.f32 %v5224, %v5324
    %5326 = vmatmul.f32.gmra.mxu0 %v4418
    %v5327 = vpop.f32.mrf.mxu0
    %v5328 = vadd.f32 %v5227, %v5327
    %5329 = vmatmul.f32.gmra.mxu0 %v4426
    %v5330 = vpop.f32.mrf.mxu0
    %v5331 = vadd.f32 %v5230, %v5330
    %5332 = vmatmul.f32.gmra.mxu0 %v4434
    %v5333 = vpop.f32.mrf.mxu0
    %v5334 = vadd.f32 %v5233, %v5333
    %5335 = vmatmul.f32.gmra.mxu0 %v4442
    %v5336 = vpop.f32.mrf.mxu0
    %v5337 = vadd.f32 %v5236, %v5336
    %5338 = vmatmul.f32.gmra.mxu0 %v4450
    %v5339 = vpop.f32.mrf.mxu0
    %v5340 = vadd.f32 %v5239, %v5339
    %5341 = vmatmul.f32.gmra.mxu0 %v4458
    %v5342 = vpop.f32.mrf.mxu0
    %v5343 = vadd.f32 %v5242, %v5342
    %5344 = vmatmul.f32.gmra.mxu0 %v4466
    %v5345 = vpop.f32.mrf.mxu0
    %v5346 = vadd.f32 %v5245, %v5345
    %5347 = vmatmul.f32.gmra.mxu0 %v4474
    %v5348 = vpop.f32.mrf.mxu0
    %v5349 = vadd.f32 %v5248, %v5348
    %5350 = vmatmul.f32.gmra.mxu0 %v4482
    %v5351 = vpop.f32.mrf.mxu0
    %v5352 = vadd.f32 %v5251, %v5351
    %5353 = vmatmul.f32.gmra.mxu0 %v4490
    %v5354 = vpop.f32.mrf.mxu0
    %v5355 = vadd.f32 %v5254, %v5354
    %5356 = vmatmul.f32.gmra.mxu0 %v4498
    %v5357 = vpop.f32.mrf.mxu0
    %v5358 = vadd.f32 %v5257, %v5357
    %5359 = vmatmul.f32.gmra.mxu0 %v4506
    %v5360 = vpop.f32.mrf.mxu0
    %v5361 = vadd.f32 %v5260, %v5360
    %5362 = vmatmul.f32.gmra.mxu0 %v4514
    %v5363 = vpop.f32.mrf.mxu0
    %v5364 = vadd.f32 %v5263, %v5363
    %5365 = vmatmul.f32.gmra.mxu0 %v4522
    %v5366 = vpop.f32.mrf.mxu0
    %v5367 = vadd.f32 %v5266, %v5366
    %5368 = vmatmul.f32.gmra.mxu0 %v4530
    %v5369 = vpop.f32.mrf.mxu0
    %v5370 = vadd.f32 %v5269, %v5369
    %5371 = vmatmul.f32.gmra.mxu0 %v4538
    %v5372 = vpop.f32.mrf.mxu0
    %v5373 = vadd.f32 %v5272, %v5372
    %5374 = vdwg.mxu0
    %5375 = vmatpush.msra.mxu0 %v4667
    %5376 = vmatpush.msra.mxu0 %v4666
    %5377 = vmatpush.msra.mxu0 %v4665
    %5378 = vmatpush.msra.mxu0 %v4664
    %5379 = vmatpush.msra.mxu0 %v4663
    %5380 = vmatpush.msra.mxu0 %v4662
    %5381 = vmatpush.msra.mxu0 %v4661
    %5382 = vmatpush.msra.mxu0 %v4660
    %5383 = vmatpush.msra.mxu0 %v4659
    %5384 = vmatpush.msra.mxu0 %v4658
    %5385 = vmatpush.msra.mxu0 %v4657
    %5386 = vmatpush.msra.mxu0 %v4656
    %5387 = vmatpush.msra.mxu0 %v4655
    %5388 = vmatpush.msra.mxu0 %v4654
    %5389 = vmatpush.msra.mxu0 %v4653
    %5390 = vmatpush.msra.mxu0 %v4652
    %5391 = vmatmul.f32.gmra.mxu0 %v4323
    %v5392 = vpop.f32.mrf.mxu0
    %v5393 = vadd.f32 %v5292, %v5392
    %5394 = vmatmul.f32.gmra.mxu0 %v4331
    %v5395 = vpop.f32.mrf.mxu0
    %v5396 = vadd.f32 %v5295, %v5395
    %5397 = vmatmul.f32.gmra.mxu0 %v4339
    %v5398 = vpop.f32.mrf.mxu0
    %v5399 = vadd.f32 %v5298, %v5398
    %5400 = vmatmul.f32.gmra.mxu0 %v4347
    %v5401 = vpop.f32.mrf.mxu0
    %v5402 = vadd.f32 %v5301, %v5401
    %5403 = vmatmul.f32.gmra.mxu0 %v4355
    %v5404 = vpop.f32.mrf.mxu0
    %v5405 = vadd.f32 %v5304, %v5404
    %5406 = vmatmul.f32.gmra.mxu0 %v4363
    %v5407 = vpop.f32.mrf.mxu0
    %v5408 = vadd.f32 %v5307, %v5407
    %5409 = vmatmul.f32.gmra.mxu0 %v4371
    %v5410 = vpop.f32.mrf.mxu0
    %v5411 = vadd.f32 %v5310, %v5410
    %5412 = vmatmul.f32.gmra.mxu0 %v4379
    %v5413 = vpop.f32.mrf.mxu0
    %v5414 = vadd.f32 %v5313, %v5413
    %5415 = vmatmul.f32.gmra.mxu0 %v4387
    %v5416 = vpop.f32.mrf.mxu0
    %v5417 = vadd.f32 %v5316, %v5416
    %5418 = vmatmul.f32.gmra.mxu0 %v4395
    %v5419 = vpop.f32.mrf.mxu0
    %v5420 = vadd.f32 %v5319, %v5419
    %5421 = vmatmul.f32.gmra.mxu0 %v4403
    %v5422 = vpop.f32.mrf.mxu0
    %v5423 = vadd.f32 %v5322, %v5422
    %5424 = vmatmul.f32.gmra.mxu0 %v4411
    %v5425 = vpop.f32.mrf.mxu0
    %v5426 = vadd.f32 %v5325, %v5425
    %5427 = vmatmul.f32.gmra.mxu0 %v4419
    %v5428 = vpop.f32.mrf.mxu0
    %v5429 = vadd.f32 %v5328, %v5428
    %5430 = vmatmul.f32.gmra.mxu0 %v4427
    %v5431 = vpop.f32.mrf.mxu0
    %v5432 = vadd.f32 %v5331, %v5431
    %5433 = vmatmul.f32.gmra.mxu0 %v4435
    %v5434 = vpop.f32.mrf.mxu0
    %v5435 = vadd.f32 %v5334, %v5434
    %5436 = vmatmul.f32.gmra.mxu0 %v4443
    %v5437 = vpop.f32.mrf.mxu0
    %v5438 = vadd.f32 %v5337, %v5437
    %5439 = vmatmul.f32.gmra.mxu0 %v4451
    %v5440 = vpop.f32.mrf.mxu0
    %v5441 = vadd.f32 %v5340, %v5440
    %5442 = vmatmul.f32.gmra.mxu0 %v4459
    %v5443 = vpop.f32.mrf.mxu0
    %v5444 = vadd.f32 %v5343, %v5443
    %5445 = vmatmul.f32.gmra.mxu0 %v4467
    %v5446 = vpop.f32.mrf.mxu0
    %v5447 = vadd.f32 %v5346, %v5446
    %5448 = vmatmul.f32.gmra.mxu0 %v4475
    %v5449 = vpop.f32.mrf.mxu0
    %v5450 = vadd.f32 %v5349, %v5449
    %5451 = vmatmul.f32.gmra.mxu0 %v4483
    %v5452 = vpop.f32.mrf.mxu0
    %v5453 = vadd.f32 %v5352, %v5452
    %5454 = vmatmul.f32.gmra.mxu0 %v4491
    %v5455 = vpop.f32.mrf.mxu0
    %v5456 = vadd.f32 %v5355, %v5455
    %5457 = vmatmul.f32.gmra.mxu0 %v4499
    %v5458 = vpop.f32.mrf.mxu0
    %v5459 = vadd.f32 %v5358, %v5458
    %5460 = vmatmul.f32.gmra.mxu0 %v4507
    %v5461 = vpop.f32.mrf.mxu0
    %v5462 = vadd.f32 %v5361, %v5461
    %5463 = vmatmul.f32.gmra.mxu0 %v4515
    %v5464 = vpop.f32.mrf.mxu0
    %v5465 = vadd.f32 %v5364, %v5464
    %5466 = vmatmul.f32.gmra.mxu0 %v4523
    %v5467 = vpop.f32.mrf.mxu0
    %v5468 = vadd.f32 %v5367, %v5467
    %5469 = vmatmul.f32.gmra.mxu0 %v4531
    %v5470 = vpop.f32.mrf.mxu0
    %v5471 = vadd.f32 %v5370, %v5470
    %5472 = vmatmul.f32.gmra.mxu0 %v4539
    %v5473 = vpop.f32.mrf.mxu0
    %v5474 = vadd.f32 %v5373, %v5473
    %5475 = vdwg.mxu0
    %vm5476 = vcmask 171008
    %5477 = vst.msk [vmem:[%s9] sm:$0xff] %vm5476, %v5393
    %5478 = vst.msk [vmem:[%s9 + $0x8] sm:$0xff] %vm5476, %v5396
    %5479 = vst.msk [vmem:[%s9 + $0x10] sm:$0xff] %vm5476, %v5399
    %5480 = vst.msk [vmem:[%s9 + $0x18] sm:$0xff] %vm5476, %v5402
    %5481 = vst.msk [vmem:[%s9 + $0x20] sm:$0xff] %vm5476, %v5405
    %5482 = vst.msk [vmem:[%s9 + $0x28] sm:$0xff] %vm5476, %v5408
    %5483 = vst.msk [vmem:[%s9 + $0x30] sm:$0xff] %vm5476, %v5411
    %5484 = vst.msk [vmem:[%s9 + $0x38] sm:$0xff] %vm5476, %v5414
    %5485 = vst.msk [vmem:[%s9 + $0x40] sm:$0xff] %vm5476, %v5417
    %5486 = vst.msk [vmem:[%s9 + $0x48] sm:$0xff] %vm5476, %v5420
    %5487 = vst.msk [vmem:[%s9 + $0x50] sm:$0xff] %vm5476, %v5423
    %5488 = vst.msk [vmem:[%s9 + $0x58] sm:$0xff] %vm5476, %v5426
    %5489 = vst.msk [vmem:[%s9 + $0x60] sm:$0xff] %vm5476, %v5429
    %5490 = vst.msk [vmem:[%s9 + $0x68] sm:$0xff] %vm5476, %v5432
    %5491 = vst.msk [vmem:[%s9 + $0x70] sm:$0xff] %vm5476, %v5435
    %5492 = vst.msk [vmem:[%s9 + $0x78] sm:$0xff] %vm5476, %v5438
    %5493 = vst.msk [vmem:[%s9 + $0x80] sm:$0xff] %vm5476, %v5441
    %5494 = vst.msk [vmem:[%s9 + $0x88] sm:$0xff] %vm5476, %v5444
    %5495 = vst.msk [vmem:[%s9 + $0x90] sm:$0xff] %vm5476, %v5447
    %5496 = vst.msk [vmem:[%s9 + $0x98] sm:$0xff] %vm5476, %v5450
    %5497 = vst.msk [vmem:[%s9 + $0xa0] sm:$0xff] %vm5476, %v5453
    %5498 = vst.msk [vmem:[%s9 + $0xa8] sm:$0xff] %vm5476, %v5456
    %5499 = vst.msk [vmem:[%s9 + $0xb0] sm:$0xff] %vm5476, %v5459
    %5500 = vst.msk [vmem:[%s9 + $0xb8] sm:$0xff] %vm5476, %v5462
    %5501 = vst.msk [vmem:[%s9 + $0xc0] sm:$0xff] %vm5476, %v5465
    %5502 = vst.msk [vmem:[%s9 + $0xc8] sm:$0xff] %vm5476, %v5468
    %5503 = vst.msk [vmem:[%s9 + $0xd0] sm:$0xff] %vm5476, %v5471
    %5504 = vst.msk [vmem:[%s9 + $0xd8] sm:$0xff] %vm5476, %v5474
    // Predicated region
    $region71: #{tpu_custom_call.1} parent=1 // pred_check
      _
    $region72: #{tpu_custom_call.1} parent=1 // pred_check_branch
      %5506 = sbr.rel (0) target = $region74
    $region73: #{tpu_custom_call.1} parent=1 // pred_region
      _
    $region74: #{tpu_custom_call.1} parent=1 // pred_fallthru
      _
    // Predicated region
    $region75: #{tpu_custom_call.1} parent=1 // pred_check
      _
    $region76: #{tpu_custom_call.1} parent=1 // pred_check_branch
      %5508 = sbr.rel (0) target = $region78
    $region77: #{tpu_custom_call.1} parent=1 // pred_region
      _
    $region78: #{tpu_custom_call.1} parent=1 // pred_fallthru
      _
    %5509 = vsyncpa [#allocation4], 1
    %5510 = vsyncpa [#allocation5], 1
    %5511 = vsyncpa [#allocation7], 1

</llo_original>
